<compile_context>
chip_gen: v6e
topology: v6e:2x2x1
jax: 0.10.0
libtpu: 0.0.40
codegen_flags: <defaults>
</compile_context>

<pallas_src>
import math

import jax
import jax.numpy as jnp
from jax.experimental import pallas as pl
from jax.experimental.pallas import tpu as pltpu


LAYERS = [8, 'M', 16, 'M']      # scaled-down VGG cfg
IN_CHANNELS = 3
INPUT_HW = 16
NUM_CLASSES = 10
HIDDEN = 128
BN_EPS = 1e-5
POOL_OUT = 7                    # AdaptiveAvgPool2d((7, 7))
OUT_PAD = 128                   # lane-dense padded logits width (>= NUM_CLASSES)


# ---------------------------------------------------------------------------
# Static plan of the feature extractor
# ---------------------------------------------------------------------------

def _build_stage_plan(layers, in_channels, in_hw):
    """Per-stage static metadata: ('conv', H, W, Cin, Cout) or ('pool', H, W, C)."""
    H = W = in_hw
    C = in_channels
    plan = []
    for v in layers:
        if v == 'M':
            plan.append(("pool", H, W, C))
            H, W = H // 2, W // 2
        else:
            plan.append(("conv", H, W, C, v))
            C = v
    return plan, (H, W, C)


def _adaptive_matrix_1d(in_size, out_size):
    """Rows of the 1-D adaptive-average-pool averaging matrix (out_size, in_size)."""
    rows = []
    for i in range(out_size):
        s = (i * in_size) // out_size
        e = math.ceil((i + 1) * in_size / out_size)
        row = [0.0] * in_size
        for t in range(s, e):
            row[t] = 1.0 / (e - s)
        rows.append(row)
    return jnp.array(rows, jnp.float32)


# ---------------------------------------------------------------------------
# Fused Pallas kernel (whole VGG forward, whole batch, one invocation)
# ---------------------------------------------------------------------------

def _make_vgg_kernel(plan, batch):
    n_conv = sum(1 for s in plan if s[0] == "conv")
    n_stage = len(plan)

    def kernel(*refs):
        it = iter(refs)
        x_ref = next(it)                                            # (N, H0, W0, Cin) f32
        conv_refs = [(next(it), next(it)) for _ in range(n_conv)]   # (w_im2col bf16, shift f32)
        w1_ref, b1_ref, w2_ref, b2_ref, w3_ref, b3_ref = (next(it) for _ in range(6))
        o_ref = next(it)                                            # (N, OUT_PAD) f32
        stage_scratch = []
        for s in plan:
            if s[0] == "conv":
                stage_scratch.append((next(it), next(it)))          # (padded input, im2col patches)
            else:
                stage_scratch.append(next(it))                      # vertical-max staging
        feat_ref = next(it)                                         # (N*Hf*Wf, Cf) f32
        cls_ref = next(it)                                          # (N, Hf*Wf*Cf) bf16

        N = batch
        act = x_ref[...]          # (N, H, W, C) f32; batch folded into the matmul M dim
        flat = None               # (N*H*W, C) row-major-(n, h, w) flat activation
        ci = 0
        for k, stage in enumerate(plan):
            if stage[0] == "conv":
                _, H, W, Cin, Cout = stage
                w_ref, shift_ref = conv_refs[ci]
                ci += 1
                pad_ref, pat_ref = stage_scratch[k]
                # Zero-padded input staged in VMEM (pad=1 done in-kernel).  Single grid
                # step -> this zeroing runs exactly once per call.
                pad_ref[...] = jnp.zeros_like(pad_ref)
                pad_ref[:, 1:H + 1, 1:W + 1, :] = act
                # im2col: stage the 9 shifted windows into one aligned bf16 scratch,
                # then do ONE MXU matmul per conv (K = 9*Cin) instead of nine K=Cin
                # matmuls + nine lane-sparse f32 adds.
                for dy in range(3):
                    for dx in range(3):
                        t = dy * 3 + dx
                        tap = pad_ref[:, dy:dy + H, dx:dx + W, :].reshape(N * H * W, Cin)
                        pat_ref[:, t * Cin:(t + 1) * Cin] = tap.astype(pat_ref.dtype)
                acc = jnp.dot(pat_ref[...], w_ref[...],
                              preferred_element_type=jnp.float32)   # bf16 x bf16 -> f32
                # BN scale folded into the weights; shift + ReLU stay in f32 (VPU).
                flat = jnp.maximum(acc + shift_ref[...], 0.0)        # (N*H*W, Cout)
                if k + 1 < n_stage:
                    act = flat.reshape(N, H, W, Cout)
            else:                                                    # 'M': MaxPool2d(2, 2)
                _, H, W, C = stage
                Ho, Wo = H // 2, W // 2
                pool_ref = stage_scratch[k]
                a = act.reshape(N, Ho, 2, W, C)            # leading-dim split: layout-free
                v = jnp.maximum(a[:, :, 0], a[:, :, 1])    # vertical max -> (N, Ho, W, C)
                pool_ref[...] = v.reshape(N * Ho * W, C)
                # Horizontal max via sublane-strided reads (relayout-safe path).
                flat = jnp.maximum(pool_ref[pl.ds(0, N * Ho * Wo, stride=2), :],
                                   pool_ref[pl.ds(1, N * Ho * Wo, stride=2), :])
                if k + 1 < n_stage:
                    act = flat.reshape(N, Ho, Wo, C)

        # Classifier.  AdaptiveAvgPool2d((7,7)) + flatten + fc1 were folded into w1 at
        # prep time; stage the (h, w, c) flatten lane-dense in VMEM so fc1 is a single
        # (N, Hf*Wf*Cf) x (Hf*Wf*Cf, HIDDEN) MXU matmul (no per-position M=1 loop).
        P, Cf = flat.shape[0] // N, flat.shape[1]
        feat_ref[...] = flat
        for p in range(P):
            rows = feat_ref[pl.ds(p, N, stride=P), :]      # rows (n, p) for n = 0..N-1
            cls_ref[:, p * Cf:(p + 1) * Cf] = rows.astype(cls_ref.dtype)
        h = jnp.maximum(jnp.dot(cls_ref[...], w1_ref[...],
                                preferred_element_type=jnp.float32) + b1_ref[...], 0.0)
        # TODO(synk): nn.Dropout is identity at inference; train-mode RNG dropout not implemented.
        h = jnp.maximum(jnp.dot(h.astype(jnp.bfloat16), w2_ref[...],
                                preferred_element_type=jnp.float32) + b2_ref[...], 0.0)
        # Lane-dense (N, 128) logits; the wrapper slices [:, :NUM_CLASSES].
        o_ref[...] = (jnp.dot(h.astype(jnp.bfloat16), w3_ref[...],
                              preferred_element_type=jnp.float32) + b3_ref[...])

    return kernel


# ---------------------------------------------------------------------------
# Wrapper
# ---------------------------------------------------------------------------

def vgg_forward(x_nchw, kp):
    N, Cin, H0, W0 = x_nchw.shape
    # Single boundary transpose: PyTorch NCHW -> NHWC (channels on the lane dim).
    x = jnp.transpose(x_nchw, (0, 2, 3, 1)).astype(jnp.float32)
    plan, (Hf, Wf, Cf) = _build_stage_plan(LAYERS, Cin, H0)

    operands = [x]
    for w, shift in kp["convs"]:
        operands += [w, shift]
    operands += [kp["fc1_w"], kp["fc1_b"], kp["fc2_w"], kp["fc2_b"],
                 kp["fc3_w"], kp["fc3_b"]]

    scratch = []
    for stage in plan:
        if stage[0] == "conv":
            _, H, W, Ci, _ = stage
            scratch.append(pltpu.VMEM((N, H + 2, W + 2, Ci), jnp.float32))  # padded input
            scratch.append(pltpu.VMEM((N * H * W, 9 * Ci), jnp.bfloat16))   # im2col patches
        else:
            _, H, W, C = stage
            scratch.append(pltpu.VMEM((N * (H // 2) * W, C), jnp.float32))  # vertical-max staging
    scratch.append(pltpu.VMEM((N * Hf * Wf, Cf), jnp.float32))              # final feature staging
    scratch.append(pltpu.VMEM((N, Hf * Wf * Cf), jnp.bfloat16))             # lane-dense flatten

    # Single grid step: the batch is folded into the matmul M dimension, removing
    # per-grid-step setup/output-DMA overhead (best on 1-TC v5e/v6e; at this problem
    # size the batched single step also beats splitting N=2 across v7x's two cores).
    out = pl.pallas_call(
        _make_vgg_kernel(plan, N),
        out_shape=jax.ShapeDtypeStruct((N, OUT_PAD), jnp.float32),
        scratch_shapes=scratch,
    )(*operands)
    return out[:, :NUM_CLASSES]


# ---------------------------------------------------------------------------
# Parameters (deterministic synthetic) + prep-time folding
# ---------------------------------------------------------------------------

def init_params(key):
    params = {"convs": []}
    in_c = IN_CHANNELS
    for v in LAYERS:
        if v == 'M':
            continue
        key, k1, k2, k3, k4, k5, k6 = jax.random.split(key, 7)
        w = 0.1 * jax.random.normal(k1, (3, 3, in_c, v), jnp.float32)
        bias = 0.05 * jax.random.normal(k2, (v,), jnp.float32)
        gamma = 1.0 + 0.1 * jax.random.normal(k3, (v,), jnp.float32)
        beta = 0.05 * jax.random.normal(k4, (v,), jnp.float32)
        mean = 0.05 * jax.random.normal(k5, (v,), jnp.float32)
        var = 1.0 + 0.1 * jax.random.uniform(k6, (v,), jnp.float32)
        # Fold conv bias + BN (eval mode, running stats) into scale/shift:
        scale = gamma / jnp.sqrt(var + BN_EPS)
        shift = (bias - mean) * scale + beta
        params["convs"].append((w, scale, shift))
        in_c = v

    d_in = in_c * POOL_OUT * POOL_OUT
    key, k1, k2, k3, k4, k5, k6 = jax.random.split(key, 7)
    params["fc1_w"] = 0.05 * jax.random.normal(k1, (d_in, HIDDEN), jnp.float32)
    params["fc1_b"] = 0.01 * jax.random.normal(k2, (HIDDEN,), jnp.float32)
    params["fc2_w"] = 0.05 * jax.random.normal(k3, (HIDDEN, HIDDEN), jnp.float32)
    params["fc2_b"] = 0.01 * jax.random.normal(k4, (HIDDEN,), jnp.float32)
    params["fc3_w"] = 0.05 * jax.random.normal(k5, (HIDDEN, NUM_CLASSES), jnp.float32)
    params["fc3_b"] = 0.01 * jax.random.normal(k6, (NUM_CLASSES,), jnp.float32)
    return params


def prepare_params(params):
    """Kernel-ready params: fold BN scale into the conv weights and reshape them for the
    im2col matmul ((ky,kx,cin) rows); fold AdaptiveAvgPool2d((7,7)) + channel-major
    flatten into fc1; pad fc3 to a lane-dense 128-wide output; matmul weights as bf16
    (f32 accumulation in-kernel)."""
    _, (Hf, Wf, Cf) = _build_stage_plan(LAYERS, IN_CHANNELS, INPUT_HW)
    convs = []
    for w, scale, shift in params["convs"]:
        kin, kout = w.shape[2], w.shape[3]
        w_fold = (w * scale[None, None, None, :]).reshape(9 * kin, kout)
        convs.append((w_fold.astype(jnp.bfloat16),
                      shift.reshape(1, -1).astype(jnp.float32)))
    ph = _adaptive_matrix_1d(Hf, POOL_OUT)              # (7, Hf)
    pw = _adaptive_matrix_1d(Wf, POOL_OUT)              # (7, Wf)
    w1 = params["fc1_w"].reshape(Cf, POOL_OUT, POOL_OUT, HIDDEN)
    # W1'[(h, w, c), :] = sum_{i,j} P[i,h] P[j,w] fc1_w[c*49 + i*7 + j, :]
    w1_fold = jnp.einsum('ih,jw,cijk->hwck', ph, pw, w1).reshape(Hf * Wf * Cf, HIDDEN)
    w3_pad = jnp.zeros((HIDDEN, OUT_PAD), jnp.float32).at[:, :NUM_CLASSES].set(params["fc3_w"])
    b3_pad = jnp.zeros((1, OUT_PAD), jnp.float32).at[0, :NUM_CLASSES].set(params["fc3_b"])
    return {
        "convs": convs,
        "fc1_w": w1_fold.astype(jnp.bfloat16),
        "fc1_b": params["fc1_b"].reshape(1, HIDDEN).astype(jnp.float32),
        "fc2_w": params["fc2_w"].astype(jnp.bfloat16),
        "fc2_b": params["fc2_b"].reshape(1, HIDDEN).astype(jnp.float32),
        "fc3_w": w3_pad.astype(jnp.bfloat16),
        "fc3_b": b3_pad,
    }


# ---------------------------------------------------------------------------
# Pure-JAX reference (f32, un-folded params) for a numeric self-check
# ---------------------------------------------------------------------------

def vgg_reference(x_nchw, params):
    x = jnp.transpose(x_nchw, (0, 2, 3, 1)).astype(jnp.float32)
    ci = 0
    for v in LAYERS:
        if v == 'M':
            n, h, w, c = x.shape
            x = x.reshape(n, h // 2, 2, w // 2, 2, c).max(axis=(2, 4))
        else:
            wgt, scale, shift = params["convs"][ci]
            ci += 1
            x = jax.lax.conv_general_dilated(
                x, wgt, window_strides=(1, 1), padding="SAME",
                dimension_numbers=("NHWC", "HWIO", "NHWC"))
            x = jnp.maximum(x * scale + shift, 0.0)
    n, h, w, c = x.shape
    ph = _adaptive_matrix_1d(h, POOL_OUT)
    pw = _adaptive_matrix_1d(w, POOL_OUT)
    x = jnp.einsum('ih,jw,nhwc->ncij', ph, pw, x).reshape(n, c * POOL_OUT * POOL_OUT)
    h1 = jnp.maximum(x @ params["fc1_w"] + params["fc1_b"], 0.0)
    h2 = jnp.maximum(h1 @ params["fc2_w"] + params["fc2_b"], 0.0)
    return h2 @ params["fc3_w"] + params["fc3_b"]


# ---------------------------------------------------------------------------

if __name__ == "__main__":
    key = jax.random.PRNGKey(0)
    x = jax.random.normal(key, (2, IN_CHANNELS, INPUT_HW, INPUT_HW), jnp.float32)  # NCHW
    params = init_params(jax.random.fold_in(key, 1))
    kparams = prepare_params(params)

    fwd = jax.jit(vgg_forward)
    out = jax.block_until_ready(fwd(x, kparams))

    assert out.shape == (2, NUM_CLASSES), out.shape
    assert bool(jnp.all(jnp.isfinite(out)))
    ref = vgg_reference(x, params)
    # Tolerance accounts for bf16 MXU operands (f32 accumulation) vs. the f32 reference.
    assert bool(jnp.allclose(out, ref, atol=5e-3, rtol=5e-2)), \
        float(jnp.max(jnp.abs(out - ref)))
    print("KERNEL_OK")
</pallas_src>

<mosaic_0001>
module attributes {stable_mosaic.version = 11 : i64} {
  func.func @kernel(%arg0: memref<2x16x16x3xf32, #tpu.memory_space<vmem>>, %arg1: memref<27x8xbf16, #tpu.memory_space<vmem>>, %arg2: memref<1x8xf32, #tpu.memory_space<vmem>>, %arg3: memref<72x16xbf16, #tpu.memory_space<vmem>>, %arg4: memref<1x16xf32, #tpu.memory_space<vmem>>, %arg5: memref<256x128xbf16, #tpu.memory_space<vmem>>, %arg6: memref<1x128xf32, #tpu.memory_space<vmem>>, %arg7: memref<128x128xbf16, #tpu.memory_space<vmem>>, %arg8: memref<1x128xf32, #tpu.memory_space<vmem>>, %arg9: memref<128x128xbf16, #tpu.memory_space<vmem>>, %arg10: memref<1x128xf32, #tpu.memory_space<vmem>>, %arg11: memref<2x128xf32, #tpu.memory_space<vmem>>, %arg12: memref<2x18x18x3xf32, #tpu.memory_space<vmem>>, %arg13: memref<512x27xbf16, #tpu.memory_space<vmem>>, %arg14: memref<256x8xf32, #tpu.memory_space<vmem>>, %arg15: memref<2x10x10x8xf32, #tpu.memory_space<vmem>>, %arg16: memref<128x72xbf16, #tpu.memory_space<vmem>>, %arg17: memref<64x16xf32, #tpu.memory_space<vmem>>, %arg18: memref<32x16xf32, #tpu.memory_space<vmem>>, %arg19: memref<2x256xbf16, #tpu.memory_space<vmem>>) attributes {dimension_semantics = [], scalar_prefetch = 0 : i64, scratch_operands = 8 : i64, tpu.core_type = #tpu.core_type<tc>} {
    %c0 = arith.constant 0 : index
    %c0_0 = arith.constant 0 : index
    %c0_1 = arith.constant 0 : index
    %c0_2 = arith.constant 0 : index
    %0 = vector.load %arg0[%c0, %c0_0, %c0_1, %c0_2] : memref<2x16x16x3xf32, #tpu.memory_space<vmem>>, vector<2x16x16x3xf32>
    %cst = arith.constant 0.000000e+00 : f32
    %1 = vector.broadcast %cst : f32 to vector<2x18x18x3xf32>
    %c0_3 = arith.constant 0 : index
    %c0_4 = arith.constant 0 : index
    %c0_5 = arith.constant 0 : index
    %c0_6 = arith.constant 0 : index
    %2 = vector.load %arg12[%c0_3, %c0_4, %c0_5, %c0_6] : memref<2x18x18x3xf32, #tpu.memory_space<vmem>>, vector<2x18x18x3xf32>
    tpu.vector_store %arg12[%c0_3, %c0_4, %c0_5, %c0_6], %1 {strides = array<i32>} : memref<2x18x18x3xf32, #tpu.memory_space<vmem>>, vector<2x18x18x3xf32>,
    %c0_7 = arith.constant 0 : index
    %c1 = arith.constant 1 : index
    %c1_8 = arith.constant 1 : index
    %c0_9 = arith.constant 0 : index
    %3 = vector.load %arg12[%c0_7, %c1, %c1_8, %c0_9] : memref<2x18x18x3xf32, #tpu.memory_space<vmem>>, vector<2x16x16x3xf32>
    tpu.vector_store %arg12[%c0_7, %c1, %c1_8, %c0_9], %0 {strides = array<i32>} : memref<2x18x18x3xf32, #tpu.memory_space<vmem>>, vector<2x16x16x3xf32>,
    %c0_10 = arith.constant 0 : index
    %c0_11 = arith.constant 0 : index
    %c0_12 = arith.constant 0 : index
    %c0_13 = arith.constant 0 : index
    %4 = vector.load %arg12[%c0_10, %c0_11, %c0_12, %c0_13] : memref<2x18x18x3xf32, #tpu.memory_space<vmem>>, vector<2x16x16x3xf32>
    %5 = vector.shape_cast %4 : vector<2x16x16x3xf32> to vector<512x3xf32>
    %6 = arith.truncf %5 : vector<512x3xf32> to vector<512x3xbf16>
    %c0_14 = arith.constant 0 : index
    %c0_15 = arith.constant 0 : index
    %7 = vector.load %arg13[%c0_14, %c0_15] : memref<512x27xbf16, #tpu.memory_space<vmem>>, vector<512x3xbf16>
    tpu.vector_store %arg13[%c0_14, %c0_15], %6 {strides = array<i32>} : memref<512x27xbf16, #tpu.memory_space<vmem>>, vector<512x3xbf16>,
    %c0_16 = arith.constant 0 : index
    %c0_17 = arith.constant 0 : index
    %c1_18 = arith.constant 1 : index
    %c0_19 = arith.constant 0 : index
    %8 = vector.load %arg12[%c0_16, %c0_17, %c1_18, %c0_19] : memref<2x18x18x3xf32, #tpu.memory_space<vmem>>, vector<2x16x16x3xf32>
    %9 = vector.shape_cast %8 : vector<2x16x16x3xf32> to vector<512x3xf32>
    %10 = arith.truncf %9 : vector<512x3xf32> to vector<512x3xbf16>
    %c0_20 = arith.constant 0 : index
    %c3 = arith.constant 3 : index
    %11 = vector.load %arg13[%c0_20, %c3] : memref<512x27xbf16, #tpu.memory_space<vmem>>, vector<512x3xbf16>
    tpu.vector_store %arg13[%c0_20, %c3], %10 {strides = array<i32>} : memref<512x27xbf16, #tpu.memory_space<vmem>>, vector<512x3xbf16>,
    %c0_21 = arith.constant 0 : index
    %c0_22 = arith.constant 0 : index
    %c2 = arith.constant 2 : index
    %c0_23 = arith.constant 0 : index
    %12 = vector.load %arg12[%c0_21, %c0_22, %c2, %c0_23] : memref<2x18x18x3xf32, #tpu.memory_space<vmem>>, vector<2x16x16x3xf32>
    %13 = vector.shape_cast %12 : vector<2x16x16x3xf32> to vector<512x3xf32>
    %14 = arith.truncf %13 : vector<512x3xf32> to vector<512x3xbf16>
    %c0_24 = arith.constant 0 : index
    %c6 = arith.constant 6 : index
    %15 = vector.load %arg13[%c0_24, %c6] : memref<512x27xbf16, #tpu.memory_space<vmem>>, vector<512x3xbf16>
    tpu.vector_store %arg13[%c0_24, %c6], %14 {strides = array<i32>} : memref<512x27xbf16, #tpu.memory_space<vmem>>, vector<512x3xbf16>,
    %c0_25 = arith.constant 0 : index
    %c1_26 = arith.constant 1 : index
    %c0_27 = arith.constant 0 : index
    %c0_28 = arith.constant 0 : index
    %16 = vector.load %arg12[%c0_25, %c1_26, %c0_27, %c0_28] : memref<2x18x18x3xf32, #tpu.memory_space<vmem>>, vector<2x16x16x3xf32>
    %17 = vector.shape_cast %16 : vector<2x16x16x3xf32> to vector<512x3xf32>
    %18 = arith.truncf %17 : vector<512x3xf32> to vector<512x3xbf16>
    %c0_29 = arith.constant 0 : index
    %c9 = arith.constant 9 : index
    %19 = vector.load %arg13[%c0_29, %c9] : memref<512x27xbf16, #tpu.memory_space<vmem>>, vector<512x3xbf16>
    tpu.vector_store %arg13[%c0_29, %c9], %18 {strides = array<i32>} : memref<512x27xbf16, #tpu.memory_space<vmem>>, vector<512x3xbf16>,
    %c0_30 = arith.constant 0 : index
    %c1_31 = arith.constant 1 : index
    %c1_32 = arith.constant 1 : index
    %c0_33 = arith.constant 0 : index
    %20 = vector.load %arg12[%c0_30, %c1_31, %c1_32, %c0_33] : memref<2x18x18x3xf32, #tpu.memory_space<vmem>>, vector<2x16x16x3xf32>
    %21 = vector.shape_cast %20 : vector<2x16x16x3xf32> to vector<512x3xf32>
    %22 = arith.truncf %21 : vector<512x3xf32> to vector<512x3xbf16>
    %c0_34 = arith.constant 0 : index
    %c12 = arith.constant 12 : index
    %23 = vector.load %arg13[%c0_34, %c12] : memref<512x27xbf16, #tpu.memory_space<vmem>>, vector<512x3xbf16>
    tpu.vector_store %arg13[%c0_34, %c12], %22 {strides = array<i32>} : memref<512x27xbf16, #tpu.memory_space<vmem>>, vector<512x3xbf16>,
    %c0_35 = arith.constant 0 : index
    %c1_36 = arith.constant 1 : index
    %c2_37 = arith.constant 2 : index
    %c0_38 = arith.constant 0 : index
    %24 = vector.load %arg12[%c0_35, %c1_36, %c2_37, %c0_38] : memref<2x18x18x3xf32, #tpu.memory_space<vmem>>, vector<2x16x16x3xf32>
    %25 = vector.shape_cast %24 : vector<2x16x16x3xf32> to vector<512x3xf32>
    %26 = arith.truncf %25 : vector<512x3xf32> to vector<512x3xbf16>
    %c0_39 = arith.constant 0 : index
    %c15 = arith.constant 15 : index
    %27 = vector.load %arg13[%c0_39, %c15] : memref<512x27xbf16, #tpu.memory_space<vmem>>, vector<512x3xbf16>
    tpu.vector_store %arg13[%c0_39, %c15], %26 {strides = array<i32>} : memref<512x27xbf16, #tpu.memory_space<vmem>>, vector<512x3xbf16>,
    %c0_40 = arith.constant 0 : index
    %c2_41 = arith.constant 2 : index
    %c0_42 = arith.constant 0 : index
    %c0_43 = arith.constant 0 : index
    %28 = vector.load %arg12[%c0_40, %c2_41, %c0_42, %c0_43] : memref<2x18x18x3xf32, #tpu.memory_space<vmem>>, vector<2x16x16x3xf32>
    %29 = vector.shape_cast %28 : vector<2x16x16x3xf32> to vector<512x3xf32>
    %30 = arith.truncf %29 : vector<512x3xf32> to vector<512x3xbf16>
    %c0_44 = arith.constant 0 : index
    %c18 = arith.constant 18 : index
    %31 = vector.load %arg13[%c0_44, %c18] : memref<512x27xbf16, #tpu.memory_space<vmem>>, vector<512x3xbf16>
    tpu.vector_store %arg13[%c0_44, %c18], %30 {strides = array<i32>} : memref<512x27xbf16, #tpu.memory_space<vmem>>, vector<512x3xbf16>,
    %c0_45 = arith.constant 0 : index
    %c2_46 = arith.constant 2 : index
    %c1_47 = arith.constant 1 : index
    %c0_48 = arith.constant 0 : index
    %32 = vector.load %arg12[%c0_45, %c2_46, %c1_47, %c0_48] : memref<2x18x18x3xf32, #tpu.memory_space<vmem>>, vector<2x16x16x3xf32>
    %33 = vector.shape_cast %32 : vector<2x16x16x3xf32> to vector<512x3xf32>
    %34 = arith.truncf %33 : vector<512x3xf32> to vector<512x3xbf16>
    %c0_49 = arith.constant 0 : index
    %c21 = arith.constant 21 : index
    %35 = vector.load %arg13[%c0_49, %c21] : memref<512x27xbf16, #tpu.memory_space<vmem>>, vector<512x3xbf16>
    tpu.vector_store %arg13[%c0_49, %c21], %34 {strides = array<i32>} : memref<512x27xbf16, #tpu.memory_space<vmem>>, vector<512x3xbf16>,
    %c0_50 = arith.constant 0 : index
    %c2_51 = arith.constant 2 : index
    %c2_52 = arith.constant 2 : index
    %c0_53 = arith.constant 0 : index
    %36 = vector.load %arg12[%c0_50, %c2_51, %c2_52, %c0_53] : memref<2x18x18x3xf32, #tpu.memory_space<vmem>>, vector<2x16x16x3xf32>
    %37 = vector.shape_cast %36 : vector<2x16x16x3xf32> to vector<512x3xf32>
    %38 = arith.truncf %37 : vector<512x3xf32> to vector<512x3xbf16>
    %c0_54 = arith.constant 0 : index
    %c24 = arith.constant 24 : index
    %39 = vector.load %arg13[%c0_54, %c24] : memref<512x27xbf16, #tpu.memory_space<vmem>>, vector<512x3xbf16>
    tpu.vector_store %arg13[%c0_54, %c24], %38 {strides = array<i32>} : memref<512x27xbf16, #tpu.memory_space<vmem>>, vector<512x3xbf16>,
    %c0_55 = arith.constant 0 : index
    %c0_56 = arith.constant 0 : index
    %40 = vector.load %arg13[%c0_55, %c0_56] : memref<512x27xbf16, #tpu.memory_space<vmem>>, vector<512x27xbf16>
    %c0_57 = arith.constant 0 : index
    %c0_58 = arith.constant 0 : index
    %41 = vector.load %arg1[%c0_57, %c0_58] : memref<27x8xbf16, #tpu.memory_space<vmem>>, vector<27x8xbf16>
    %cst_59 = arith.constant dense<0.000000e+00> : vector<512x8xf32>
    %42 = tpu.matmul %40, %41, %cst_59 {dimension_numbers = #tpu.dot_dimension_numbers<[1], [0], [0], [1], [0, 0, 1, 1], [], []>} : vector<512x27xbf16>, vector<27x8xbf16>, vector<512x8xf32> -> vector<512x8xf32>
    %c0_60 = arith.constant 0 : index
    %c0_61 = arith.constant 0 : index
    %43 = vector.load %arg2[%c0_60, %c0_61] : memref<1x8xf32, #tpu.memory_space<vmem>>, vector<1x8xf32>
    %44 = vector.broadcast %43 : vector<1x8xf32> to vector<512x8xf32>
    %45 = arith.addf %42, %44 : vector<512x8xf32>
    %cst_62 = arith.constant 0.000000e+00 : f32
    %46 = vector.broadcast %cst_62 : f32 to vector<512x8xf32>
    %47 = arith.maximumf %45, %46 : vector<512x8xf32>
    %48 = vector.shape_cast %47 : vector<512x8xf32> to vector<2x16x16x8xf32>
    %49 = vector.shape_cast %48 : vector<2x16x16x8xf32> to vector<2x8x2x16x8xf32>
    %50 = vector.extract_strided_slice %49 {offsets = [0, 0, 0, 0, 0], sizes = [2, 8, 1, 16, 8], strides = [1, 1, 1, 1, 1]} : vector<2x8x2x16x8xf32> to vector<2x8x1x16x8xf32>
    %51 = vector.shape_cast %50 : vector<2x8x1x16x8xf32> to vector<2x8x16x8xf32>
    %52 = vector.extract_strided_slice %49 {offsets = [0, 0, 1, 0, 0], sizes = [2, 8, 1, 16, 8], strides = [1, 1, 1, 1, 1]} : vector<2x8x2x16x8xf32> to vector<2x8x1x16x8xf32>
    %53 = vector.shape_cast %52 : vector<2x8x1x16x8xf32> to vector<2x8x16x8xf32>
    %54 = arith.maximumf %51, %53 : vector<2x8x16x8xf32>
    %55 = vector.shape_cast %54 : vector<2x8x16x8xf32> to vector<256x8xf32>
    %c0_63 = arith.constant 0 : index
    %c0_64 = arith.constant 0 : index
    %56 = vector.load %arg14[%c0_63, %c0_64] : memref<256x8xf32, #tpu.memory_space<vmem>>, vector<256x8xf32>
    tpu.vector_store %arg14[%c0_63, %c0_64], %55 {strides = array<i32>} : memref<256x8xf32, #tpu.memory_space<vmem>>, vector<256x8xf32>,
    %c0_65 = arith.constant 0 : index
    %c0_66 = arith.constant 0 : index
    %57 = tpu.strided_load %arg14[%c0_65, %c0_66] {strides = array<i32: 2, 1>} : memref<256x8xf32, #tpu.memory_space<vmem>>, vector<128x8xf32>
    %c1_67 = arith.constant 1 : index
    %c0_68 = arith.constant 0 : index
    %58 = tpu.strided_load %arg14[%c1_67, %c0_68] {strides = array<i32: 2, 1>} : memref<256x8xf32, #tpu.memory_space<vmem>>, vector<128x8xf32>
    %59 = arith.maximumf %57, %58 : vector<128x8xf32>
    %60 = vector.shape_cast %59 : vector<128x8xf32> to vector<2x8x8x8xf32>
    %cst_69 = arith.constant 0.000000e+00 : f32
    %61 = vector.broadcast %cst_69 : f32 to vector<2x10x10x8xf32>
    %c0_70 = arith.constant 0 : index
    %c0_71 = arith.constant 0 : index
    %c0_72 = arith.constant 0 : index
    %c0_73 = arith.constant 0 : index
    %62 = vector.load %arg15[%c0_70, %c0_71, %c0_72, %c0_73] : memref<2x10x10x8xf32, #tpu.memory_space<vmem>>, vector<2x10x10x8xf32>
    tpu.vector_store %arg15[%c0_70, %c0_71, %c0_72, %c0_73], %61 {strides = array<i32>} : memref<2x10x10x8xf32, #tpu.memory_space<vmem>>, vector<2x10x10x8xf32>,
    %c0_74 = arith.constant 0 : index
    %c1_75 = arith.constant 1 : index
    %c1_76 = arith.constant 1 : index
    %c0_77 = arith.constant 0 : index
    %63 = vector.load %arg15[%c0_74, %c1_75, %c1_76, %c0_77] : memref<2x10x10x8xf32, #tpu.memory_space<vmem>>, vector<2x8x8x8xf32>
    tpu.vector_store %arg15[%c0_74, %c1_75, %c1_76, %c0_77], %60 {strides = array<i32>} : memref<2x10x10x8xf32, #tpu.memory_space<vmem>>, vector<2x8x8x8xf32>,
    %c0_78 = arith.constant 0 : index
    %c0_79 = arith.constant 0 : index
    %c0_80 = arith.constant 0 : index
    %c0_81 = arith.constant 0 : index
    %64 = vector.load %arg15[%c0_78, %c0_79, %c0_80, %c0_81] : memref<2x10x10x8xf32, #tpu.memory_space<vmem>>, vector<2x8x8x8xf32>
    %65 = vector.shape_cast %64 : vector<2x8x8x8xf32> to vector<128x8xf32>
    %66 = arith.truncf %65 : vector<128x8xf32> to vector<128x8xbf16>
    %c0_82 = arith.constant 0 : index
    %c0_83 = arith.constant 0 : index
    %67 = vector.load %arg16[%c0_82, %c0_83] : memref<128x72xbf16, #tpu.memory_space<vmem>>, vector<128x8xbf16>
    tpu.vector_store %arg16[%c0_82, %c0_83], %66 {strides = array<i32>} : memref<128x72xbf16, #tpu.memory_space<vmem>>, vector<128x8xbf16>,
    %c0_84 = arith.constant 0 : index
    %c0_85 = arith.constant 0 : index
    %c1_86 = arith.constant 1 : index
    %c0_87 = arith.constant 0 : index
    %68 = vector.load %arg15[%c0_84, %c0_85, %c1_86, %c0_87] : memref<2x10x10x8xf32, #tpu.memory_space<vmem>>, vector<2x8x8x8xf32>
    %69 = vector.shape_cast %68 : vector<2x8x8x8xf32> to vector<128x8xf32>
    %70 = arith.truncf %69 : vector<128x8xf32> to vector<128x8xbf16>
    %c0_88 = arith.constant 0 : index
    %c8 = arith.constant 8 : index
    %71 = vector.load %arg16[%c0_88, %c8] : memref<128x72xbf16, #tpu.memory_space<vmem>>, vector<128x8xbf16>
    tpu.vector_store %arg16[%c0_88, %c8], %70 {strides = array<i32>} : memref<128x72xbf16, #tpu.memory_space<vmem>>, vector<128x8xbf16>,
    %c0_89 = arith.constant 0 : index
    %c0_90 = arith.constant 0 : index
    %c2_91 = arith.constant 2 : index
    %c0_92 = arith.constant 0 : index
    %72 = vector.load %arg15[%c0_89, %c0_90, %c2_91, %c0_92] : memref<2x10x10x8xf32, #tpu.memory_space<vmem>>, vector<2x8x8x8xf32>
    %73 = vector.shape_cast %72 : vector<2x8x8x8xf32> to vector<128x8xf32>
    %74 = arith.truncf %73 : vector<128x8xf32> to vector<128x8xbf16>
    %c0_93 = arith.constant 0 : index
    %c16 = arith.constant 16 : index
    %75 = vector.load %arg16[%c0_93, %c16] : memref<128x72xbf16, #tpu.memory_space<vmem>>, vector<128x8xbf16>
    tpu.vector_store %arg16[%c0_93, %c16], %74 {strides = array<i32>} : memref<128x72xbf16, #tpu.memory_space<vmem>>, vector<128x8xbf16>,
    %c0_94 = arith.constant 0 : index
    %c1_95 = arith.constant 1 : index
    %c0_96 = arith.constant 0 : index
    %c0_97 = arith.constant 0 : index
    %76 = vector.load %arg15[%c0_94, %c1_95, %c0_96, %c0_97] : memref<2x10x10x8xf32, #tpu.memory_space<vmem>>, vector<2x8x8x8xf32>
    %77 = vector.shape_cast %76 : vector<2x8x8x8xf32> to vector<128x8xf32>
    %78 = arith.truncf %77 : vector<128x8xf32> to vector<128x8xbf16>
    %c0_98 = arith.constant 0 : index
    %c24_99 = arith.constant 24 : index
    %79 = vector.load %arg16[%c0_98, %c24_99] : memref<128x72xbf16, #tpu.memory_space<vmem>>, vector<128x8xbf16>
    tpu.vector_store %arg16[%c0_98, %c24_99], %78 {strides = array<i32>} : memref<128x72xbf16, #tpu.memory_space<vmem>>, vector<128x8xbf16>,
    %c0_100 = arith.constant 0 : index
    %c1_101 = arith.constant 1 : index
    %c1_102 = arith.constant 1 : index
    %c0_103 = arith.constant 0 : index
    %80 = vector.load %arg15[%c0_100, %c1_101, %c1_102, %c0_103] : memref<2x10x10x8xf32, #tpu.memory_space<vmem>>, vector<2x8x8x8xf32>
    %81 = vector.shape_cast %80 : vector<2x8x8x8xf32> to vector<128x8xf32>
    %82 = arith.truncf %81 : vector<128x8xf32> to vector<128x8xbf16>
    %c0_104 = arith.constant 0 : index
    %c32 = arith.constant 32 : index
    %83 = vector.load %arg16[%c0_104, %c32] : memref<128x72xbf16, #tpu.memory_space<vmem>>, vector<128x8xbf16>
    tpu.vector_store %arg16[%c0_104, %c32], %82 {strides = array<i32>} : memref<128x72xbf16, #tpu.memory_space<vmem>>, vector<128x8xbf16>,
    %c0_105 = arith.constant 0 : index
    %c1_106 = arith.constant 1 : index
    %c2_107 = arith.constant 2 : index
    %c0_108 = arith.constant 0 : index
    %84 = vector.load %arg15[%c0_105, %c1_106, %c2_107, %c0_108] : memref<2x10x10x8xf32, #tpu.memory_space<vmem>>, vector<2x8x8x8xf32>
    %85 = vector.shape_cast %84 : vector<2x8x8x8xf32> to vector<128x8xf32>
    %86 = arith.truncf %85 : vector<128x8xf32> to vector<128x8xbf16>
    %c0_109 = arith.constant 0 : index
    %c40 = arith.constant 40 : index
    %87 = vector.load %arg16[%c0_109, %c40] : memref<128x72xbf16, #tpu.memory_space<vmem>>, vector<128x8xbf16>
    tpu.vector_store %arg16[%c0_109, %c40], %86 {strides = array<i32>} : memref<128x72xbf16, #tpu.memory_space<vmem>>, vector<128x8xbf16>,
    %c0_110 = arith.constant 0 : index
    %c2_111 = arith.constant 2 : index
    %c0_112 = arith.constant 0 : index
    %c0_113 = arith.constant 0 : index
    %88 = vector.load %arg15[%c0_110, %c2_111, %c0_112, %c0_113] : memref<2x10x10x8xf32, #tpu.memory_space<vmem>>, vector<2x8x8x8xf32>
    %89 = vector.shape_cast %88 : vector<2x8x8x8xf32> to vector<128x8xf32>
    %90 = arith.truncf %89 : vector<128x8xf32> to vector<128x8xbf16>
    %c0_114 = arith.constant 0 : index
    %c48 = arith.constant 48 : index
    %91 = vector.load %arg16[%c0_114, %c48] : memref<128x72xbf16, #tpu.memory_space<vmem>>, vector<128x8xbf16>
    tpu.vector_store %arg16[%c0_114, %c48], %90 {strides = array<i32>} : memref<128x72xbf16, #tpu.memory_space<vmem>>, vector<128x8xbf16>,
    %c0_115 = arith.constant 0 : index
    %c2_116 = arith.constant 2 : index
    %c1_117 = arith.constant 1 : index
    %c0_118 = arith.constant 0 : index
    %92 = vector.load %arg15[%c0_115, %c2_116, %c1_117, %c0_118] : memref<2x10x10x8xf32, #tpu.memory_space<vmem>>, vector<2x8x8x8xf32>
    %93 = vector.shape_cast %92 : vector<2x8x8x8xf32> to vector<128x8xf32>
    %94 = arith.truncf %93 : vector<128x8xf32> to vector<128x8xbf16>
    %c0_119 = arith.constant 0 : index
    %c56 = arith.constant 56 : index
    %95 = vector.load %arg16[%c0_119, %c56] : memref<128x72xbf16, #tpu.memory_space<vmem>>, vector<128x8xbf16>
    tpu.vector_store %arg16[%c0_119, %c56], %94 {strides = array<i32>} : memref<128x72xbf16, #tpu.memory_space<vmem>>, vector<128x8xbf16>,
    %c0_120 = arith.constant 0 : index
    %c2_121 = arith.constant 2 : index
    %c2_122 = arith.constant 2 : index
    %c0_123 = arith.constant 0 : index
    %96 = vector.load %arg15[%c0_120, %c2_121, %c2_122, %c0_123] : memref<2x10x10x8xf32, #tpu.memory_space<vmem>>, vector<2x8x8x8xf32>
    %97 = vector.shape_cast %96 : vector<2x8x8x8xf32> to vector<128x8xf32>
    %98 = arith.truncf %97 : vector<128x8xf32> to vector<128x8xbf16>
    %c0_124 = arith.constant 0 : index
    %c64 = arith.constant 64 : index
    %99 = vector.load %arg16[%c0_124, %c64] : memref<128x72xbf16, #tpu.memory_space<vmem>>, vector<128x8xbf16>
    tpu.vector_store %arg16[%c0_124, %c64], %98 {strides = array<i32>} : memref<128x72xbf16, #tpu.memory_space<vmem>>, vector<128x8xbf16>,
    %c0_125 = arith.constant 0 : index
    %c0_126 = arith.constant 0 : index
    %100 = vector.load %arg16[%c0_125, %c0_126] : memref<128x72xbf16, #tpu.memory_space<vmem>>, vector<128x72xbf16>
    %c0_127 = arith.constant 0 : index
    %c0_128 = arith.constant 0 : index
    %101 = vector.load %arg3[%c0_127, %c0_128] : memref<72x16xbf16, #tpu.memory_space<vmem>>, vector<72x16xbf16>
    %cst_129 = arith.constant dense<0.000000e+00> : vector<128x16xf32>
    %102 = tpu.matmul %100, %101, %cst_129 {dimension_numbers = #tpu.dot_dimension_numbers<[1], [0], [0], [1], [0, 0, 1, 1], [], []>} : vector<128x72xbf16>, vector<72x16xbf16>, vector<128x16xf32> -> vector<128x16xf32>
    %c0_130 = arith.constant 0 : index
    %c0_131 = arith.constant 0 : index
    %103 = vector.load %arg4[%c0_130, %c0_131] : memref<1x16xf32, #tpu.memory_space<vmem>>, vector<1x16xf32>
    %104 = vector.broadcast %103 : vector<1x16xf32> to vector<128x16xf32>
    %105 = arith.addf %102, %104 : vector<128x16xf32>
    %cst_132 = arith.constant 0.000000e+00 : f32
    %106 = vector.broadcast %cst_132 : f32 to vector<128x16xf32>
    %107 = arith.maximumf %105, %106 : vector<128x16xf32>
    %108 = vector.shape_cast %107 : vector<128x16xf32> to vector<2x8x8x16xf32>
    %109 = vector.shape_cast %108 : vector<2x8x8x16xf32> to vector<2x4x2x8x16xf32>
    %110 = vector.extract_strided_slice %109 {offsets = [0, 0, 0, 0, 0], sizes = [2, 4, 1, 8, 16], strides = [1, 1, 1, 1, 1]} : vector<2x4x2x8x16xf32> to vector<2x4x1x8x16xf32>
    %111 = vector.shape_cast %110 : vector<2x4x1x8x16xf32> to vector<2x4x8x16xf32>
    %112 = vector.extract_strided_slice %109 {offsets = [0, 0, 1, 0, 0], sizes = [2, 4, 1, 8, 16], strides = [1, 1, 1, 1, 1]} : vector<2x4x2x8x16xf32> to vector<2x4x1x8x16xf32>
    %113 = vector.shape_cast %112 : vector<2x4x1x8x16xf32> to vector<2x4x8x16xf32>
    %114 = arith.maximumf %111, %113 : vector<2x4x8x16xf32>
    %115 = vector.shape_cast %114 : vector<2x4x8x16xf32> to vector<64x16xf32>
    %c0_133 = arith.constant 0 : index
    %c0_134 = arith.constant 0 : index
    %116 = vector.load %arg17[%c0_133, %c0_134] : memref<64x16xf32, #tpu.memory_space<vmem>>, vector<64x16xf32>
    tpu.vector_store %arg17[%c0_133, %c0_134], %115 {strides = array<i32>} : memref<64x16xf32, #tpu.memory_space<vmem>>, vector<64x16xf32>,
    %c0_135 = arith.constant 0 : index
    %c0_136 = arith.constant 0 : index
    %117 = tpu.strided_load %arg17[%c0_135, %c0_136] {strides = array<i32: 2, 1>} : memref<64x16xf32, #tpu.memory_space<vmem>>, vector<32x16xf32>
    %c1_137 = arith.constant 1 : index
    %c0_138 = arith.constant 0 : index
    %118 = tpu.strided_load %arg17[%c1_137, %c0_138] {strides = array<i32: 2, 1>} : memref<64x16xf32, #tpu.memory_space<vmem>>, vector<32x16xf32>
    %119 = arith.maximumf %117, %118 : vector<32x16xf32>
    %c0_139 = arith.constant 0 : index
    %c0_140 = arith.constant 0 : index
    %120 = vector.load %arg18[%c0_139, %c0_140] : memref<32x16xf32, #tpu.memory_space<vmem>>, vector<32x16xf32>
    tpu.vector_store %arg18[%c0_139, %c0_140], %119 {strides = array<i32>} : memref<32x16xf32, #tpu.memory_space<vmem>>, vector<32x16xf32>,
    %c0_141 = arith.constant 0 : index
    %c0_142 = arith.constant 0 : index
    %121 = tpu.strided_load %arg18[%c0_141, %c0_142] {strides = array<i32: 16, 1>} : memref<32x16xf32, #tpu.memory_space<vmem>>, vector<2x16xf32>
    %122 = arith.truncf %121 : vector<2x16xf32> to vector<2x16xbf16>
    %c0_143 = arith.constant 0 : index
    %c0_144 = arith.constant 0 : index
    %123 = vector.load %arg19[%c0_143, %c0_144] : memref<2x256xbf16, #tpu.memory_space<vmem>>, vector<2x16xbf16>
    tpu.vector_store %arg19[%c0_143, %c0_144], %122 {strides = array<i32>} : memref<2x256xbf16, #tpu.memory_space<vmem>>, vector<2x16xbf16>,
    %c1_145 = arith.constant 1 : index
    %c0_146 = arith.constant 0 : index
    %124 = tpu.strided_load %arg18[%c1_145, %c0_146] {strides = array<i32: 16, 1>} : memref<32x16xf32, #tpu.memory_space<vmem>>, vector<2x16xf32>
    %125 = arith.truncf %124 : vector<2x16xf32> to vector<2x16xbf16>
    %c0_147 = arith.constant 0 : index
    %c16_148 = arith.constant 16 : index
    %126 = vector.load %arg19[%c0_147, %c16_148] : memref<2x256xbf16, #tpu.memory_space<vmem>>, vector<2x16xbf16>
    tpu.vector_store %arg19[%c0_147, %c16_148], %125 {strides = array<i32>} : memref<2x256xbf16, #tpu.memory_space<vmem>>, vector<2x16xbf16>,
    %c2_149 = arith.constant 2 : index
    %c0_150 = arith.constant 0 : index
    %127 = tpu.strided_load %arg18[%c2_149, %c0_150] {strides = array<i32: 16, 1>} : memref<32x16xf32, #tpu.memory_space<vmem>>, vector<2x16xf32>
    %128 = arith.truncf %127 : vector<2x16xf32> to vector<2x16xbf16>
    %c0_151 = arith.constant 0 : index
    %c32_152 = arith.constant 32 : index
    %129 = vector.load %arg19[%c0_151, %c32_152] : memref<2x256xbf16, #tpu.memory_space<vmem>>, vector<2x16xbf16>
    tpu.vector_store %arg19[%c0_151, %c32_152], %128 {strides = array<i32>} : memref<2x256xbf16, #tpu.memory_space<vmem>>, vector<2x16xbf16>,
    %c3_153 = arith.constant 3 : index
    %c0_154 = arith.constant 0 : index
    %130 = tpu.strided_load %arg18[%c3_153, %c0_154] {strides = array<i32: 16, 1>} : memref<32x16xf32, #tpu.memory_space<vmem>>, vector<2x16xf32>
    %131 = arith.truncf %130 : vector<2x16xf32> to vector<2x16xbf16>
    %c0_155 = arith.constant 0 : index
    %c48_156 = arith.constant 48 : index
    %132 = vector.load %arg19[%c0_155, %c48_156] : memref<2x256xbf16, #tpu.memory_space<vmem>>, vector<2x16xbf16>
    tpu.vector_store %arg19[%c0_155, %c48_156], %131 {strides = array<i32>} : memref<2x256xbf16, #tpu.memory_space<vmem>>, vector<2x16xbf16>,
    %c4 = arith.constant 4 : index
    %c0_157 = arith.constant 0 : index
    %133 = tpu.strided_load %arg18[%c4, %c0_157] {strides = array<i32: 16, 1>} : memref<32x16xf32, #tpu.memory_space<vmem>>, vector<2x16xf32>
    %134 = arith.truncf %133 : vector<2x16xf32> to vector<2x16xbf16>
    %c0_158 = arith.constant 0 : index
    %c64_159 = arith.constant 64 : index
    %135 = vector.load %arg19[%c0_158, %c64_159] : memref<2x256xbf16, #tpu.memory_space<vmem>>, vector<2x16xbf16>
    tpu.vector_store %arg19[%c0_158, %c64_159], %134 {strides = array<i32>} : memref<2x256xbf16, #tpu.memory_space<vmem>>, vector<2x16xbf16>,
    %c5 = arith.constant 5 : index
    %c0_160 = arith.constant 0 : index
    %136 = tpu.strided_load %arg18[%c5, %c0_160] {strides = array<i32: 16, 1>} : memref<32x16xf32, #tpu.memory_space<vmem>>, vector<2x16xf32>
    %137 = arith.truncf %136 : vector<2x16xf32> to vector<2x16xbf16>
    %c0_161 = arith.constant 0 : index
    %c80 = arith.constant 80 : index
    %138 = vector.load %arg19[%c0_161, %c80] : memref<2x256xbf16, #tpu.memory_space<vmem>>, vector<2x16xbf16>
    tpu.vector_store %arg19[%c0_161, %c80], %137 {strides = array<i32>} : memref<2x256xbf16, #tpu.memory_space<vmem>>, vector<2x16xbf16>,
    %c6_162 = arith.constant 6 : index
    %c0_163 = arith.constant 0 : index
    %139 = tpu.strided_load %arg18[%c6_162, %c0_163] {strides = array<i32: 16, 1>} : memref<32x16xf32, #tpu.memory_space<vmem>>, vector<2x16xf32>
    %140 = arith.truncf %139 : vector<2x16xf32> to vector<2x16xbf16>
    %c0_164 = arith.constant 0 : index
    %c96 = arith.constant 96 : index
    %141 = vector.load %arg19[%c0_164, %c96] : memref<2x256xbf16, #tpu.memory_space<vmem>>, vector<2x16xbf16>
    tpu.vector_store %arg19[%c0_164, %c96], %140 {strides = array<i32>} : memref<2x256xbf16, #tpu.memory_space<vmem>>, vector<2x16xbf16>,
    %c7 = arith.constant 7 : index
    %c0_165 = arith.constant 0 : index
    %142 = tpu.strided_load %arg18[%c7, %c0_165] {strides = array<i32: 16, 1>} : memref<32x16xf32, #tpu.memory_space<vmem>>, vector<2x16xf32>
    %143 = arith.truncf %142 : vector<2x16xf32> to vector<2x16xbf16>
    %c0_166 = arith.constant 0 : index
    %c112 = arith.constant 112 : index
    %144 = vector.load %arg19[%c0_166, %c112] : memref<2x256xbf16, #tpu.memory_space<vmem>>, vector<2x16xbf16>
    tpu.vector_store %arg19[%c0_166, %c112], %143 {strides = array<i32>} : memref<2x256xbf16, #tpu.memory_space<vmem>>, vector<2x16xbf16>,
    %c8_167 = arith.constant 8 : index
    %c0_168 = arith.constant 0 : index
    %145 = tpu.strided_load %arg18[%c8_167, %c0_168] {strides = array<i32: 16, 1>} : memref<32x16xf32, #tpu.memory_space<vmem>>, vector<2x16xf32>
    %146 = arith.truncf %145 : vector<2x16xf32> to vector<2x16xbf16>
    %c0_169 = arith.constant 0 : index
    %c128 = arith.constant 128 : index
    %147 = vector.load %arg19[%c0_169, %c128] : memref<2x256xbf16, #tpu.memory_space<vmem>>, vector<2x16xbf16>
    tpu.vector_store %arg19[%c0_169, %c128], %146 {strides = array<i32>} : memref<2x256xbf16, #tpu.memory_space<vmem>>, vector<2x16xbf16>,
    %c9_170 = arith.constant 9 : index
    %c0_171 = arith.constant 0 : index
    %148 = tpu.strided_load %arg18[%c9_170, %c0_171] {strides = array<i32: 16, 1>} : memref<32x16xf32, #tpu.memory_space<vmem>>, vector<2x16xf32>
    %149 = arith.truncf %148 : vector<2x16xf32> to vector<2x16xbf16>
    %c0_172 = arith.constant 0 : index
    %c144 = arith.constant 144 : index
    %150 = vector.load %arg19[%c0_172, %c144] : memref<2x256xbf16, #tpu.memory_space<vmem>>, vector<2x16xbf16>
    tpu.vector_store %arg19[%c0_172, %c144], %149 {strides = array<i32>} : memref<2x256xbf16, #tpu.memory_space<vmem>>, vector<2x16xbf16>,
    %c10 = arith.constant 10 : index
    %c0_173 = arith.constant 0 : index
    %151 = tpu.strided_load %arg18[%c10, %c0_173] {strides = array<i32: 16, 1>} : memref<32x16xf32, #tpu.memory_space<vmem>>, vector<2x16xf32>
    %152 = arith.truncf %151 : vector<2x16xf32> to vector<2x16xbf16>
    %c0_174 = arith.constant 0 : index
    %c160 = arith.constant 160 : index
    %153 = vector.load %arg19[%c0_174, %c160] : memref<2x256xbf16, #tpu.memory_space<vmem>>, vector<2x16xbf16>
    tpu.vector_store %arg19[%c0_174, %c160], %152 {strides = array<i32>} : memref<2x256xbf16, #tpu.memory_space<vmem>>, vector<2x16xbf16>,
    %c11 = arith.constant 11 : index
    %c0_175 = arith.constant 0 : index
    %154 = tpu.strided_load %arg18[%c11, %c0_175] {strides = array<i32: 16, 1>} : memref<32x16xf32, #tpu.memory_space<vmem>>, vector<2x16xf32>
    %155 = arith.truncf %154 : vector<2x16xf32> to vector<2x16xbf16>
    %c0_176 = arith.constant 0 : index
    %c176 = arith.constant 176 : index
    %156 = vector.load %arg19[%c0_176, %c176] : memref<2x256xbf16, #tpu.memory_space<vmem>>, vector<2x16xbf16>
    tpu.vector_store %arg19[%c0_176, %c176], %155 {strides = array<i32>} : memref<2x256xbf16, #tpu.memory_space<vmem>>, vector<2x16xbf16>,
    %c12_177 = arith.constant 12 : index
    %c0_178 = arith.constant 0 : index
    %157 = tpu.strided_load %arg18[%c12_177, %c0_178] {strides = array<i32: 16, 1>} : memref<32x16xf32, #tpu.memory_space<vmem>>, vector<2x16xf32>
    %158 = arith.truncf %157 : vector<2x16xf32> to vector<2x16xbf16>
    %c0_179 = arith.constant 0 : index
    %c192 = arith.constant 192 : index
    %159 = vector.load %arg19[%c0_179, %c192] : memref<2x256xbf16, #tpu.memory_space<vmem>>, vector<2x16xbf16>
    tpu.vector_store %arg19[%c0_179, %c192], %158 {strides = array<i32>} : memref<2x256xbf16, #tpu.memory_space<vmem>>, vector<2x16xbf16>,
    %c13 = arith.constant 13 : index
    %c0_180 = arith.constant 0 : index
    %160 = tpu.strided_load %arg18[%c13, %c0_180] {strides = array<i32: 16, 1>} : memref<32x16xf32, #tpu.memory_space<vmem>>, vector<2x16xf32>
    %161 = arith.truncf %160 : vector<2x16xf32> to vector<2x16xbf16>
    %c0_181 = arith.constant 0 : index
    %c208 = arith.constant 208 : index
    %162 = vector.load %arg19[%c0_181, %c208] : memref<2x256xbf16, #tpu.memory_space<vmem>>, vector<2x16xbf16>
    tpu.vector_store %arg19[%c0_181, %c208], %161 {strides = array<i32>} : memref<2x256xbf16, #tpu.memory_space<vmem>>, vector<2x16xbf16>,
    %c14 = arith.constant 14 : index
    %c0_182 = arith.constant 0 : index
    %163 = tpu.strided_load %arg18[%c14, %c0_182] {strides = array<i32: 16, 1>} : memref<32x16xf32, #tpu.memory_space<vmem>>, vector<2x16xf32>
    %164 = arith.truncf %163 : vector<2x16xf32> to vector<2x16xbf16>
    %c0_183 = arith.constant 0 : index
    %c224 = arith.constant 224 : index
    %165 = vector.load %arg19[%c0_183, %c224] : memref<2x256xbf16, #tpu.memory_space<vmem>>, vector<2x16xbf16>
    tpu.vector_store %arg19[%c0_183, %c224], %164 {strides = array<i32>} : memref<2x256xbf16, #tpu.memory_space<vmem>>, vector<2x16xbf16>,
    %c15_184 = arith.constant 15 : index
    %c0_185 = arith.constant 0 : index
    %166 = tpu.strided_load %arg18[%c15_184, %c0_185] {strides = array<i32: 16, 1>} : memref<32x16xf32, #tpu.memory_space<vmem>>, vector<2x16xf32>
    %167 = arith.truncf %166 : vector<2x16xf32> to vector<2x16xbf16>
    %c0_186 = arith.constant 0 : index
    %c240 = arith.constant 240 : index
    %168 = vector.load %arg19[%c0_186, %c240] : memref<2x256xbf16, #tpu.memory_space<vmem>>, vector<2x16xbf16>
    tpu.vector_store %arg19[%c0_186, %c240], %167 {strides = array<i32>} : memref<2x256xbf16, #tpu.memory_space<vmem>>, vector<2x16xbf16>,
    %c0_187 = arith.constant 0 : index
    %c0_188 = arith.constant 0 : index
    %169 = vector.load %arg19[%c0_187, %c0_188] : memref<2x256xbf16, #tpu.memory_space<vmem>>, vector<2x256xbf16>
    %c0_189 = arith.constant 0 : index
    %c0_190 = arith.constant 0 : index
    %170 = vector.load %arg5[%c0_189, %c0_190] : memref<256x128xbf16, #tpu.memory_space<vmem>>, vector<256x128xbf16>
    %cst_191 = arith.constant dense<0.000000e+00> : vector<2x128xf32>
    %171 = tpu.matmul %169, %170, %cst_191 {dimension_numbers = #tpu.dot_dimension_numbers<[1], [0], [0], [1], [0, 0, 1, 1], [], []>} : vector<2x256xbf16>, vector<256x128xbf16>, vector<2x128xf32> -> vector<2x128xf32>
    %c0_192 = arith.constant 0 : index
    %c0_193 = arith.constant 0 : index
    %172 = vector.load %arg6[%c0_192, %c0_193] : memref<1x128xf32, #tpu.memory_space<vmem>>, vector<1x128xf32>
    %173 = vector.broadcast %172 : vector<1x128xf32> to vector<2x128xf32>
    %174 = arith.addf %171, %173 : vector<2x128xf32>
    %cst_194 = arith.constant 0.000000e+00 : f32
    %175 = vector.broadcast %cst_194 : f32 to vector<2x128xf32>
    %176 = arith.maximumf %174, %175 : vector<2x128xf32>
    %177 = arith.truncf %176 : vector<2x128xf32> to vector<2x128xbf16>
    %c0_195 = arith.constant 0 : index
    %c0_196 = arith.constant 0 : index
    %178 = vector.load %arg7[%c0_195, %c0_196] : memref<128x128xbf16, #tpu.memory_space<vmem>>, vector<128x128xbf16>
    %cst_197 = arith.constant dense<0.000000e+00> : vector<2x128xf32>
    %179 = tpu.matmul %177, %178, %cst_197 {dimension_numbers = #tpu.dot_dimension_numbers<[1], [0], [0], [1], [0, 0, 1, 1], [], []>} : vector<2x128xbf16>, vector<128x128xbf16>, vector<2x128xf32> -> vector<2x128xf32>
    %c0_198 = arith.constant 0 : index
    %c0_199 = arith.constant 0 : index
    %180 = vector.load %arg8[%c0_198, %c0_199] : memref<1x128xf32, #tpu.memory_space<vmem>>, vector<1x128xf32>
    %181 = vector.broadcast %180 : vector<1x128xf32> to vector<2x128xf32>
    %182 = arith.addf %179, %181 : vector<2x128xf32>
    %cst_200 = arith.constant 0.000000e+00 : f32
    %183 = vector.broadcast %cst_200 : f32 to vector<2x128xf32>
    %184 = arith.maximumf %182, %183 : vector<2x128xf32>
    %185 = arith.truncf %184 : vector<2x128xf32> to vector<2x128xbf16>
    %c0_201 = arith.constant 0 : index
    %c0_202 = arith.constant 0 : index
    %186 = vector.load %arg9[%c0_201, %c0_202] : memref<128x128xbf16, #tpu.memory_space<vmem>>, vector<128x128xbf16>
    %cst_203 = arith.constant dense<0.000000e+00> : vector<2x128xf32>
    %187 = tpu.matmul %185, %186, %cst_203 {dimension_numbers = #tpu.dot_dimension_numbers<[1], [0], [0], [1], [0, 0, 1, 1], [], []>} : vector<2x128xbf16>, vector<128x128xbf16>, vector<2x128xf32> -> vector<2x128xf32>
    %c0_204 = arith.constant 0 : index
    %c0_205 = arith.constant 0 : index
    %188 = vector.load %arg10[%c0_204, %c0_205] : memref<1x128xf32, #tpu.memory_space<vmem>>, vector<1x128xf32>
    %189 = vector.broadcast %188 : vector<1x128xf32> to vector<2x128xf32>
    %190 = arith.addf %187, %189 : vector<2x128xf32>
    %c0_206 = arith.constant 0 : index
    %c0_207 = arith.constant 0 : index
    %191 = vector.load %arg11[%c0_206, %c0_207] : memref<2x128xf32, #tpu.memory_space<vmem>>, vector<2x128xf32>
    tpu.vector_store %arg11[%c0_206, %c0_207], %190 {strides = array<i32>} : memref<2x128xf32, #tpu.memory_space<vmem>>, vector<2x128xf32>,
    return
  }
}

</mosaic_0001>

<llo_original>
// kernel: vgg_forward.1
$region0: #{vgg_forward.1}
  #allocation0 [shape = 'u32[]', space=smem, size = 0x4, offset = 0x4, fixed_abs, tag = 'smem constant byte address 0x4 - core index']
  #allocation1 [shape = 'u32[144,128]{1,0:T(1,128)}', space=vmem, size = 0x12000, scoped, tag = 'internal scratch']
  #allocation2 [shape = 'f32[2,18,18,3]{3,2,1,0:T(8,128)}', space=vmem, size = 0x6c000, scoped, tag = 'scratch operand']
  #allocation3 [shape = 'bf16[512,27]{1,0:T(8,128)(2,1)}', space=vmem, size = 0x20000, scoped, tag = 'scratch operand']
  #allocation4 [shape = 'f32[256,8]{1,0:T(8,128)}', space=vmem, size = 0x20000, scoped, tag = 'scratch operand']
  #allocation5 [shape = 'f32[2,10,10,8]{3,2,1,0:T(8,128)}', space=vmem, size = 0x28000, scoped, tag = 'scratch operand']
  #allocation6 [shape = 'bf16[128,72]{1,0:T(8,128)(2,1)}', space=vmem, size = 0x8000, scoped, tag = 'scratch operand']
  #allocation7 [shape = 'f32[64,16]{1,0:T(8,128)}', space=vmem, size = 0x8000, scoped, tag = 'scratch operand']
  #allocation8 [shape = 'f32[32,16]{1,0:T(8,128)}', space=vmem, size = 0x4000, scoped, tag = 'scratch operand']
  #allocation9 [shape = 'bf16[2,256]{1,0:T(2,128)(2,1)}', space=vmem, size = 0x400, scoped, tag = 'scratch operand']
  %s0 = inlined_call_operand.vmem [shape: f32[2,16,16,3], index: 0, kind: input, shape index: {}]
  %s1 = inlined_call_operand.vmem [shape: bf16[27,8], index: 1, kind: input, shape index: {}]
  %s2 = inlined_call_operand.vmem [shape: f32[1,8], index: 2, kind: input, shape index: {}]
  %s3 = inlined_call_operand.vmem [shape: bf16[72,16], index: 3, kind: input, shape index: {}]
  %s4 = inlined_call_operand.vmem [shape: f32[1,16], index: 4, kind: input, shape index: {}]
  %s5 = inlined_call_operand.vmem [shape: bf16[256,128], index: 5, kind: input, shape index: {}]
  %s6 = inlined_call_operand.vmem [shape: f32[1,128], index: 6, kind: input, shape index: {}]
  %s7 = inlined_call_operand.vmem [shape: bf16[128,128], index: 7, kind: input, shape index: {}]
  %s8 = inlined_call_operand.vmem [shape: f32[1,128], index: 8, kind: input, shape index: {}]
  %s9 = inlined_call_operand.vmem [shape: bf16[128,128], index: 9, kind: input, shape index: {}]
  %s10 = inlined_call_operand.vmem [shape: f32[1,128], index: 10, kind: input, shape index: {}]
  %s11 = inlined_call_operand.hbm [shape: f32[2,128], index: 11, kind: output, shape index: {}]
  %s12 = sld [smem:[#allocation0]]
  $region54: #{vgg_forward.1} parent=0
    _
  %s14 = ssub.s32 1, %s12
  %s15 = scalar_select 0, %s14, %s12
  $region1: #{vgg_forward.1} parent=0
    #allocation10 [shape = 'u8[1024]{0}', space=vmem, size = 0x400, scoped, tag = 'output window, operand 0, single buffered']
    #allocation11 [shape = 's32[1]{0}', space=sflag, size = 0x4, scoped, tag = 'scoped memory for vgg_forward.1']
    %16 = vsyncpa [#allocation11], 0
    // Predicated region
    $region2: #{vgg_forward.1} parent=1 // pred_check
      _
    $region3: #{vgg_forward.1} parent=1 // pred_check_branch
      %18 = sbr.rel (0) target = $region5
    $region4: #{vgg_forward.1} parent=1 // pred_region
      _
    $region5: #{vgg_forward.1} parent=1 // pred_fallthru
      _
    // Predicated region
    $region6: #{vgg_forward.1} parent=1 // pred_check
      _
    $region7: #{vgg_forward.1} parent=1 // pred_check_branch
      %20 = sbr.rel (0) target = $region9
    $region8: #{vgg_forward.1} parent=1 // pred_region
      _
    $region9: #{vgg_forward.1} parent=1 // pred_fallthru
      _
    // Predicated region
    $region10: #{vgg_forward.1} parent=1 // pred_check
      _
    $region11: #{vgg_forward.1} parent=1 // pred_check_branch
      %22 = sbr.rel (0) target = $region13
    $region12: #{vgg_forward.1} parent=1 // pred_region
      _
    $region13: #{vgg_forward.1} parent=1 // pred_fallthru
      _
    // Predicated region
    $region14: #{vgg_forward.1} parent=1 // pred_check
      _
    $region15: #{vgg_forward.1} parent=1 // pred_check_branch
      %24 = sbr.rel (0) target = $region17
    $region16: #{vgg_forward.1} parent=1 // pred_region
      _
    $region17: #{vgg_forward.1} parent=1 // pred_fallthru
      _
    // Predicated region
    $region18: #{vgg_forward.1} parent=1 // pred_check
      _
    $region19: #{vgg_forward.1} parent=1 // pred_check_branch
      %26 = sbr.rel (0) target = $region21
    $region20: #{vgg_forward.1} parent=1 // pred_region
      _
    $region21: #{vgg_forward.1} parent=1 // pred_fallthru
      _
    // Predicated region
    $region22: #{vgg_forward.1} parent=1 // pred_check
      _
    $region23: #{vgg_forward.1} parent=1 // pred_check_branch
      %28 = sbr.rel (0) target = $region25
    $region24: #{vgg_forward.1} parent=1 // pred_region
      _
    $region25: #{vgg_forward.1} parent=1 // pred_fallthru
      _
    // Predicated region
    $region26: #{vgg_forward.1} parent=1 // pred_check
      _
    $region27: #{vgg_forward.1} parent=1 // pred_check_branch
      %30 = sbr.rel (0) target = $region29
    $region28: #{vgg_forward.1} parent=1 // pred_region
      _
    $region29: #{vgg_forward.1} parent=1 // pred_fallthru
      _
    // Predicated region
    $region30: #{vgg_forward.1} parent=1 // pred_check
      _
    $region31: #{vgg_forward.1} parent=1 // pred_check_branch
      %32 = sbr.rel (0) target = $region33
    $region32: #{vgg_forward.1} parent=1 // pred_region
      _
    $region33: #{vgg_forward.1} parent=1 // pred_fallthru
      _
    // Predicated region
    $region34: #{vgg_forward.1} parent=1 // pred_check
      _
    $region35: #{vgg_forward.1} parent=1 // pred_check_branch
      %34 = sbr.rel (0) target = $region37
    $region36: #{vgg_forward.1} parent=1 // pred_region
      _
    $region37: #{vgg_forward.1} parent=1 // pred_fallthru
      _
    // Predicated region
    $region38: #{vgg_forward.1} parent=1 // pred_check
      _
    $region39: #{vgg_forward.1} parent=1 // pred_check_branch
      %36 = sbr.rel (0) target = $region41
    $region40: #{vgg_forward.1} parent=1 // pred_region
      _
    $region41: #{vgg_forward.1} parent=1 // pred_fallthru
      _
    // Predicated region
    $region42: #{vgg_forward.1} parent=1 // pred_check
      _
    $region43: #{vgg_forward.1} parent=1 // pred_check_branch
      %38 = sbr.rel (0) target = $region45
    $region44: #{vgg_forward.1} parent=1 // pred_region
      _
    $region45: #{vgg_forward.1} parent=1 // pred_fallthru
      _
    %v40 = vld [vmem:[%s0] sm:$0xff]
    %v41 = vld [vmem:[%s0 + $0x8] sm:$0xff]
    %v42 = vld [vmem:[%s0 + $0x10] sm:$0xff]
    %v43 = vld [vmem:[%s0 + $0x18] sm:$0xff]
    %v44 = vld [vmem:[%s0 + $0x20] sm:$0xff]
    %v45 = vld [vmem:[%s0 + $0x28] sm:$0xff]
    %v46 = vld [vmem:[%s0 + $0x30] sm:$0xff]
    %v47 = vld [vmem:[%s0 + $0x38] sm:$0xff]
    %v48 = vld [vmem:[%s0 + $0x40] sm:$0xff]
    %v49 = vld [vmem:[%s0 + $0x48] sm:$0xff]
    %v50 = vld [vmem:[%s0 + $0x50] sm:$0xff]
    %v51 = vld [vmem:[%s0 + $0x58] sm:$0xff]
    %v52 = vld [vmem:[%s0 + $0x60] sm:$0xff]
    %v53 = vld [vmem:[%s0 + $0x68] sm:$0xff]
    %v54 = vld [vmem:[%s0 + $0x70] sm:$0xff]
    %v55 = vld [vmem:[%s0 + $0x78] sm:$0xff]
    %v56 = vld [vmem:[%s0 + $0x80] sm:$0xff]
    %v57 = vld [vmem:[%s0 + $0x88] sm:$0xff]
    %v58 = vld [vmem:[%s0 + $0x90] sm:$0xff]
    %v59 = vld [vmem:[%s0 + $0x98] sm:$0xff]
    %v60 = vld [vmem:[%s0 + $0xa0] sm:$0xff]
    %v61 = vld [vmem:[%s0 + $0xa8] sm:$0xff]
    %v62 = vld [vmem:[%s0 + $0xb0] sm:$0xff]
    %v63 = vld [vmem:[%s0 + $0xb8] sm:$0xff]
    %v64 = vld [vmem:[%s0 + $0xc0] sm:$0xff]
    %v65 = vld [vmem:[%s0 + $0xc8] sm:$0xff]
    %v66 = vld [vmem:[%s0 + $0xd0] sm:$0xff]
    %v67 = vld [vmem:[%s0 + $0xd8] sm:$0xff]
    %v68 = vld [vmem:[%s0 + $0xe0] sm:$0xff]
    %v69 = vld [vmem:[%s0 + $0xe8] sm:$0xff]
    %v70 = vld [vmem:[%s0 + $0xf0] sm:$0xff]
    %v71 = vld [vmem:[%s0 + $0xf8] sm:$0xff]
    %v72 = vld [vmem:[%s0 + $0x100] sm:$0xff]
    %v73 = vld [vmem:[%s0 + $0x108] sm:$0xff]
    %v74 = vld [vmem:[%s0 + $0x110] sm:$0xff]
    %v75 = vld [vmem:[%s0 + $0x118] sm:$0xff]
    %v76 = vld [vmem:[%s0 + $0x120] sm:$0xff]
    %v77 = vld [vmem:[%s0 + $0x128] sm:$0xff]
    %v78 = vld [vmem:[%s0 + $0x130] sm:$0xff]
    %v79 = vld [vmem:[%s0 + $0x138] sm:$0xff]
    %v80 = vld [vmem:[%s0 + $0x140] sm:$0xff]
    %v81 = vld [vmem:[%s0 + $0x148] sm:$0xff]
    %v82 = vld [vmem:[%s0 + $0x150] sm:$0xff]
    %v83 = vld [vmem:[%s0 + $0x158] sm:$0xff]
    %v84 = vld [vmem:[%s0 + $0x160] sm:$0xff]
    %v85 = vld [vmem:[%s0 + $0x168] sm:$0xff]
    %v86 = vld [vmem:[%s0 + $0x170] sm:$0xff]
    %v87 = vld [vmem:[%s0 + $0x178] sm:$0xff]
    %v88 = vld [vmem:[%s0 + $0x180] sm:$0xff]
    %v89 = vld [vmem:[%s0 + $0x188] sm:$0xff]
    %v90 = vld [vmem:[%s0 + $0x190] sm:$0xff]
    %v91 = vld [vmem:[%s0 + $0x198] sm:$0xff]
    %v92 = vld [vmem:[%s0 + $0x1a0] sm:$0xff]
    %v93 = vld [vmem:[%s0 + $0x1a8] sm:$0xff]
    %v94 = vld [vmem:[%s0 + $0x1b0] sm:$0xff]
    %v95 = vld [vmem:[%s0 + $0x1b8] sm:$0xff]
    %v96 = vld [vmem:[%s0 + $0x1c0] sm:$0xff]
    %v97 = vld [vmem:[%s0 + $0x1c8] sm:$0xff]
    %v98 = vld [vmem:[%s0 + $0x1d0] sm:$0xff]
    %v99 = vld [vmem:[%s0 + $0x1d8] sm:$0xff]
    %v100 = vld [vmem:[%s0 + $0x1e0] sm:$0xff]
    %v101 = vld [vmem:[%s0 + $0x1e8] sm:$0xff]
    %v102 = vld [vmem:[%s0 + $0x1f0] sm:$0xff]
    %v103 = vld [vmem:[%s0 + $0x1f8] sm:$0xff]
    %vm104 = vcmask 23552
    %105 = vst.msk [vmem:[#allocation2] sm:$0xff] %vm104, 0.0
    %106 = vst.msk [vmem:[#allocation2 + $0x8] sm:$0xff] %vm104, 0.0
    %vm107 = vcmask 17408
    %108 = vst.msk [vmem:[#allocation2 + $0x10] sm:$0x3] %vm107, 0.0
    %109 = vst.msk [vmem:[#allocation2 + $0x18] sm:$0xff] %vm104, 0.0
    %110 = vst.msk [vmem:[#allocation2 + $0x20] sm:$0xff] %vm104, 0.0
    %111 = vst.msk [vmem:[#allocation2 + $0x28] sm:$0x3] %vm107, 0.0
    %112 = vst.msk [vmem:[#allocation2 + $0x30] sm:$0xff] %vm104, 0.0
    %113 = vst.msk [vmem:[#allocation2 + $0x38] sm:$0xff] %vm104, 0.0
    %114 = vst.msk [vmem:[#allocation2 + $0x40] sm:$0x3] %vm107, 0.0
    %115 = vst.msk [vmem:[#allocation2 + $0x48] sm:$0xff] %vm104, 0.0
    %116 = vst.msk [vmem:[#allocation2 + $0x50] sm:$0xff] %vm104, 0.0
    %117 = vst.msk [vmem:[#allocation2 + $0x58] sm:$0x3] %vm107, 0.0
    %118 = vst.msk [vmem:[#allocation2 + $0x60] sm:$0xff] %vm104, 0.0
    %119 = vst.msk [vmem:[#allocation2 + $0x68] sm:$0xff] %vm104, 0.0
    %120 = vst.msk [vmem:[#allocation2 + $0x70] sm:$0x3] %vm107, 0.0
    %121 = vst.msk [vmem:[#allocation2 + $0x78] sm:$0xff] %vm104, 0.0
    %122 = vst.msk [vmem:[#allocation2 + $0x80] sm:$0xff] %vm104, 0.0
    %123 = vst.msk [vmem:[#allocation2 + $0x88] sm:$0x3] %vm107, 0.0
    %124 = vst.msk [vmem:[#allocation2 + $0x90] sm:$0xff] %vm104, 0.0
    %125 = vst.msk [vmem:[#allocation2 + $0x98] sm:$0xff] %vm104, 0.0
    %126 = vst.msk [vmem:[#allocation2 + $0xa0] sm:$0x3] %vm107, 0.0
    %127 = vst.msk [vmem:[#allocation2 + $0xa8] sm:$0xff] %vm104, 0.0
    %128 = vst.msk [vmem:[#allocation2 + $0xb0] sm:$0xff] %vm104, 0.0
    %129 = vst.msk [vmem:[#allocation2 + $0xb8] sm:$0x3] %vm107, 0.0
    %130 = vst.msk [vmem:[#allocation2 + $0xc0] sm:$0xff] %vm104, 0.0
    %131 = vst.msk [vmem:[#allocation2 + $0xc8] sm:$0xff] %vm104, 0.0
    %132 = vst.msk [vmem:[#allocation2 + $0xd0] sm:$0x3] %vm107, 0.0
    %133 = vst.msk [vmem:[#allocation2 + $0xd8] sm:$0xff] %vm104, 0.0
    %134 = vst.msk [vmem:[#allocation2 + $0xe0] sm:$0xff] %vm104, 0.0
    %135 = vst.msk [vmem:[#allocation2 + $0xe8] sm:$0x3] %vm107, 0.0
    %136 = vst.msk [vmem:[#allocation2 + $0xf0] sm:$0xff] %vm104, 0.0
    %137 = vst.msk [vmem:[#allocation2 + $0xf8] sm:$0xff] %vm104, 0.0
    %138 = vst.msk [vmem:[#allocation2 + $0x100] sm:$0x3] %vm107, 0.0
    %139 = vst.msk [vmem:[#allocation2 + $0x108] sm:$0xff] %vm104, 0.0
    %140 = vst.msk [vmem:[#allocation2 + $0x110] sm:$0xff] %vm104, 0.0
    %141 = vst.msk [vmem:[#allocation2 + $0x118] sm:$0x3] %vm107, 0.0
    %142 = vst.msk [vmem:[#allocation2 + $0x120] sm:$0xff] %vm104, 0.0
    %143 = vst.msk [vmem:[#allocation2 + $0x128] sm:$0xff] %vm104, 0.0
    %144 = vst.msk [vmem:[#allocation2 + $0x130] sm:$0x3] %vm107, 0.0
    %145 = vst.msk [vmem:[#allocation2 + $0x138] sm:$0xff] %vm104, 0.0
    %146 = vst.msk [vmem:[#allocation2 + $0x140] sm:$0xff] %vm104, 0.0
    %147 = vst.msk [vmem:[#allocation2 + $0x148] sm:$0x3] %vm107, 0.0
    %148 = vst.msk [vmem:[#allocation2 + $0x150] sm:$0xff] %vm104, 0.0
    %149 = vst.msk [vmem:[#allocation2 + $0x158] sm:$0xff] %vm104, 0.0
    %150 = vst.msk [vmem:[#allocation2 + $0x160] sm:$0x3] %vm107, 0.0
    %151 = vst.msk [vmem:[#allocation2 + $0x168] sm:$0xff] %vm104, 0.0
    %152 = vst.msk [vmem:[#allocation2 + $0x170] sm:$0xff] %vm104, 0.0
    %153 = vst.msk [vmem:[#allocation2 + $0x178] sm:$0x3] %vm107, 0.0
    %154 = vst.msk [vmem:[#allocation2 + $0x180] sm:$0xff] %vm104, 0.0
    %155 = vst.msk [vmem:[#allocation2 + $0x188] sm:$0xff] %vm104, 0.0
    %156 = vst.msk [vmem:[#allocation2 + $0x190] sm:$0x3] %vm107, 0.0
    %157 = vst.msk [vmem:[#allocation2 + $0x198] sm:$0xff] %vm104, 0.0
    %158 = vst.msk [vmem:[#allocation2 + $0x1a0] sm:$0xff] %vm104, 0.0
    %159 = vst.msk [vmem:[#allocation2 + $0x1a8] sm:$0x3] %vm107, 0.0
    %160 = vst.msk [vmem:[#allocation2 + $0x1b0] sm:$0xff] %vm104, 0.0
    %161 = vst.msk [vmem:[#allocation2 + $0x1b8] sm:$0xff] %vm104, 0.0
    %162 = vst.msk [vmem:[#allocation2 + $0x1c0] sm:$0x3] %vm107, 0.0
    %163 = vst.msk [vmem:[#allocation2 + $0x1c8] sm:$0xff] %vm104, 0.0
    %164 = vst.msk [vmem:[#allocation2 + $0x1d0] sm:$0xff] %vm104, 0.0
    %165 = vst.msk [vmem:[#allocation2 + $0x1d8] sm:$0x3] %vm107, 0.0
    %166 = vst.msk [vmem:[#allocation2 + $0x1e0] sm:$0xff] %vm104, 0.0
    %167 = vst.msk [vmem:[#allocation2 + $0x1e8] sm:$0xff] %vm104, 0.0
    %168 = vst.msk [vmem:[#allocation2 + $0x1f0] sm:$0x3] %vm107, 0.0
    %169 = vst.msk [vmem:[#allocation2 + $0x1f8] sm:$0xff] %vm104, 0.0
    %170 = vst.msk [vmem:[#allocation2 + $0x200] sm:$0xff] %vm104, 0.0
    %171 = vst.msk [vmem:[#allocation2 + $0x208] sm:$0x3] %vm107, 0.0
    %172 = vst.msk [vmem:[#allocation2 + $0x210] sm:$0xff] %vm104, 0.0
    %173 = vst.msk [vmem:[#allocation2 + $0x218] sm:$0xff] %vm104, 0.0
    %174 = vst.msk [vmem:[#allocation2 + $0x220] sm:$0x3] %vm107, 0.0
    %175 = vst.msk [vmem:[#allocation2 + $0x228] sm:$0xff] %vm104, 0.0
    %176 = vst.msk [vmem:[#allocation2 + $0x230] sm:$0xff] %vm104, 0.0
    %177 = vst.msk [vmem:[#allocation2 + $0x238] sm:$0x3] %vm107, 0.0
    %178 = vst.msk [vmem:[#allocation2 + $0x240] sm:$0xff] %vm104, 0.0
    %179 = vst.msk [vmem:[#allocation2 + $0x248] sm:$0xff] %vm104, 0.0
    %180 = vst.msk [vmem:[#allocation2 + $0x250] sm:$0x3] %vm107, 0.0
    %181 = vst.msk [vmem:[#allocation2 + $0x258] sm:$0xff] %vm104, 0.0
    %182 = vst.msk [vmem:[#allocation2 + $0x260] sm:$0xff] %vm104, 0.0
    %183 = vst.msk [vmem:[#allocation2 + $0x268] sm:$0x3] %vm107, 0.0
    %184 = vst.msk [vmem:[#allocation2 + $0x270] sm:$0xff] %vm104, 0.0
    %185 = vst.msk [vmem:[#allocation2 + $0x278] sm:$0xff] %vm104, 0.0
    %186 = vst.msk [vmem:[#allocation2 + $0x280] sm:$0x3] %vm107, 0.0
    %187 = vst.msk [vmem:[#allocation2 + $0x288] sm:$0xff] %vm104, 0.0
    %188 = vst.msk [vmem:[#allocation2 + $0x290] sm:$0xff] %vm104, 0.0
    %189 = vst.msk [vmem:[#allocation2 + $0x298] sm:$0x3] %vm107, 0.0
    %190 = vst.msk [vmem:[#allocation2 + $0x2a0] sm:$0xff] %vm104, 0.0
    %191 = vst.msk [vmem:[#allocation2 + $0x2a8] sm:$0xff] %vm104, 0.0
    %192 = vst.msk [vmem:[#allocation2 + $0x2b0] sm:$0x3] %vm107, 0.0
    %193 = vst.msk [vmem:[#allocation2 + $0x2b8] sm:$0xff] %vm104, 0.0
    %194 = vst.msk [vmem:[#allocation2 + $0x2c0] sm:$0xff] %vm104, 0.0
    %195 = vst.msk [vmem:[#allocation2 + $0x2c8] sm:$0x3] %vm107, 0.0
    %196 = vst.msk [vmem:[#allocation2 + $0x2d0] sm:$0xff] %vm104, 0.0
    %197 = vst.msk [vmem:[#allocation2 + $0x2d8] sm:$0xff] %vm104, 0.0
    %198 = vst.msk [vmem:[#allocation2 + $0x2e0] sm:$0x3] %vm107, 0.0
    %199 = vst.msk [vmem:[#allocation2 + $0x2e8] sm:$0xff] %vm104, 0.0
    %200 = vst.msk [vmem:[#allocation2 + $0x2f0] sm:$0xff] %vm104, 0.0
    %201 = vst.msk [vmem:[#allocation2 + $0x2f8] sm:$0x3] %vm107, 0.0
    %202 = vst.msk [vmem:[#allocation2 + $0x300] sm:$0xff] %vm104, 0.0
    %203 = vst.msk [vmem:[#allocation2 + $0x308] sm:$0xff] %vm104, 0.0
    %204 = vst.msk [vmem:[#allocation2 + $0x310] sm:$0x3] %vm107, 0.0
    %205 = vst.msk [vmem:[#allocation2 + $0x318] sm:$0xff] %vm104, 0.0
    %206 = vst.msk [vmem:[#allocation2 + $0x320] sm:$0xff] %vm104, 0.0
    %207 = vst.msk [vmem:[#allocation2 + $0x328] sm:$0x3] %vm107, 0.0
    %208 = vst.msk [vmem:[#allocation2 + $0x330] sm:$0xff] %vm104, 0.0
    %209 = vst.msk [vmem:[#allocation2 + $0x338] sm:$0xff] %vm104, 0.0
    %210 = vst.msk [vmem:[#allocation2 + $0x340] sm:$0x3] %vm107, 0.0
    %211 = vst.msk [vmem:[#allocation2 + $0x348] sm:$0xff] %vm104, 0.0
    %212 = vst.msk [vmem:[#allocation2 + $0x350] sm:$0xff] %vm104, 0.0
    %213 = vst.msk [vmem:[#allocation2 + $0x358] sm:$0x3] %vm107, 0.0
    %s214 = scalar_lea.vmem [#allocation2], 24
    %215 = vst.msk [vmem:[%s214 + $0x1] sm:$0xff] %vm104, %v40
    %216 = vst.msk [vmem:[%s214 + $0x9] sm:$0xff] %vm104, %v41
    %217 = vst.msk [vmem:[%s214 + $0x19] sm:$0xff] %vm104, %v42
    %218 = vst.msk [vmem:[%s214 + $0x21] sm:$0xff] %vm104, %v43
    %219 = vst.msk [vmem:[%s214 + $0x31] sm:$0xff] %vm104, %v44
    %220 = vst.msk [vmem:[%s214 + $0x39] sm:$0xff] %vm104, %v45
    %221 = vst.msk [vmem:[%s214 + $0x49] sm:$0xff] %vm104, %v46
    %222 = vst.msk [vmem:[%s214 + $0x51] sm:$0xff] %vm104, %v47
    %223 = vst.msk [vmem:[%s214 + $0x61] sm:$0xff] %vm104, %v48
    %224 = vst.msk [vmem:[%s214 + $0x69] sm:$0xff] %vm104, %v49
    %225 = vst.msk [vmem:[%s214 + $0x79] sm:$0xff] %vm104, %v50
    %226 = vst.msk [vmem:[%s214 + $0x81] sm:$0xff] %vm104, %v51
    %227 = vst.msk [vmem:[%s214 + $0x91] sm:$0xff] %vm104, %v52
    %228 = vst.msk [vmem:[%s214 + $0x99] sm:$0xff] %vm104, %v53
    %229 = vst.msk [vmem:[%s214 + $0xa9] sm:$0xff] %vm104, %v54
    %230 = vst.msk [vmem:[%s214 + $0xb1] sm:$0xff] %vm104, %v55
    %231 = vst.msk [vmem:[%s214 + $0xc1] sm:$0xff] %vm104, %v56
    %232 = vst.msk [vmem:[%s214 + $0xc9] sm:$0xff] %vm104, %v57
    %233 = vst.msk [vmem:[%s214 + $0xd9] sm:$0xff] %vm104, %v58
    %234 = vst.msk [vmem:[%s214 + $0xe1] sm:$0xff] %vm104, %v59
    %235 = vst.msk [vmem:[%s214 + $0xf1] sm:$0xff] %vm104, %v60
    %236 = vst.msk [vmem:[%s214 + $0xf9] sm:$0xff] %vm104, %v61
    %237 = vst.msk [vmem:[%s214 + $0x109] sm:$0xff] %vm104, %v62
    %238 = vst.msk [vmem:[%s214 + $0x111] sm:$0xff] %vm104, %v63
    %239 = vst.msk [vmem:[%s214 + $0x121] sm:$0xff] %vm104, %v64
    %240 = vst.msk [vmem:[%s214 + $0x129] sm:$0xff] %vm104, %v65
    %241 = vst.msk [vmem:[%s214 + $0x139] sm:$0xff] %vm104, %v66
    %242 = vst.msk [vmem:[%s214 + $0x141] sm:$0xff] %vm104, %v67
    %243 = vst.msk [vmem:[%s214 + $0x151] sm:$0xff] %vm104, %v68
    %244 = vst.msk [vmem:[%s214 + $0x159] sm:$0xff] %vm104, %v69
    %245 = vst.msk [vmem:[%s214 + $0x169] sm:$0xff] %vm104, %v70
    %246 = vst.msk [vmem:[%s214 + $0x171] sm:$0xff] %vm104, %v71
    %247 = vst.msk [vmem:[%s214 + $0x1b1] sm:$0xff] %vm104, %v72
    %248 = vst.msk [vmem:[%s214 + $0x1b9] sm:$0xff] %vm104, %v73
    %249 = vst.msk [vmem:[%s214 + $0x1c9] sm:$0xff] %vm104, %v74
    %250 = vst.msk [vmem:[%s214 + $0x1d1] sm:$0xff] %vm104, %v75
    %251 = vst.msk [vmem:[%s214 + $0x1e1] sm:$0xff] %vm104, %v76
    %252 = vst.msk [vmem:[%s214 + $0x1e9] sm:$0xff] %vm104, %v77
    %253 = vst.msk [vmem:[%s214 + $0x1f9] sm:$0xff] %vm104, %v78
    %254 = vst.msk [vmem:[%s214 + $0x201] sm:$0xff] %vm104, %v79
    %255 = vst.msk [vmem:[%s214 + $0x211] sm:$0xff] %vm104, %v80
    %256 = vst.msk [vmem:[%s214 + $0x219] sm:$0xff] %vm104, %v81
    %257 = vst.msk [vmem:[%s214 + $0x229] sm:$0xff] %vm104, %v82
    %258 = vst.msk [vmem:[%s214 + $0x231] sm:$0xff] %vm104, %v83
    %259 = vst.msk [vmem:[%s214 + $0x241] sm:$0xff] %vm104, %v84
    %260 = vst.msk [vmem:[%s214 + $0x249] sm:$0xff] %vm104, %v85
    %261 = vst.msk [vmem:[%s214 + $0x259] sm:$0xff] %vm104, %v86
    %262 = vst.msk [vmem:[%s214 + $0x261] sm:$0xff] %vm104, %v87
    %263 = vst.msk [vmem:[%s214 + $0x271] sm:$0xff] %vm104, %v88
    %264 = vst.msk [vmem:[%s214 + $0x279] sm:$0xff] %vm104, %v89
    %265 = vst.msk [vmem:[%s214 + $0x289] sm:$0xff] %vm104, %v90
    %266 = vst.msk [vmem:[%s214 + $0x291] sm:$0xff] %vm104, %v91
    %267 = vst.msk [vmem:[%s214 + $0x2a1] sm:$0xff] %vm104, %v92
    %268 = vst.msk [vmem:[%s214 + $0x2a9] sm:$0xff] %vm104, %v93
    %269 = vst.msk [vmem:[%s214 + $0x2b9] sm:$0xff] %vm104, %v94
    %270 = vst.msk [vmem:[%s214 + $0x2c1] sm:$0xff] %vm104, %v95
    %271 = vst.msk [vmem:[%s214 + $0x2d1] sm:$0xff] %vm104, %v96
    %272 = vst.msk [vmem:[%s214 + $0x2d9] sm:$0xff] %vm104, %v97
    %273 = vst.msk [vmem:[%s214 + $0x2e9] sm:$0xff] %vm104, %v98
    %274 = vst.msk [vmem:[%s214 + $0x2f1] sm:$0xff] %vm104, %v99
    %275 = vst.msk [vmem:[%s214 + $0x301] sm:$0xff] %vm104, %v100
    %276 = vst.msk [vmem:[%s214 + $0x309] sm:$0xff] %vm104, %v101
    %277 = vst.msk [vmem:[%s214 + $0x319] sm:$0xff] %vm104, %v102
    %278 = vst.msk [vmem:[%s214 + $0x321] sm:$0xff] %vm104, %v103
    %v279 = vld [vmem:[#allocation2] sm:$0xff]
    %v280 = vld [vmem:[#allocation2 + $0x8] sm:$0xff]
    %v281 = vld [vmem:[#allocation2 + $0x18] sm:$0xff]
    %v282 = vld [vmem:[#allocation2 + $0x20] sm:$0xff]
    %v283 = vld [vmem:[#allocation2 + $0x30] sm:$0xff]
    %v284 = vld [vmem:[#allocation2 + $0x38] sm:$0xff]
    %v285 = vld [vmem:[#allocation2 + $0x48] sm:$0xff]
    %v286 = vld [vmem:[#allocation2 + $0x50] sm:$0xff]
    %v287 = vld [vmem:[#allocation2 + $0x60] sm:$0xff]
    %v288 = vld [vmem:[#allocation2 + $0x68] sm:$0xff]
    %v289 = vld [vmem:[#allocation2 + $0x78] sm:$0xff]
    %v290 = vld [vmem:[#allocation2 + $0x80] sm:$0xff]
    %v291 = vld [vmem:[#allocation2 + $0x90] sm:$0xff]
    %v292 = vld [vmem:[#allocation2 + $0x98] sm:$0xff]
    %v293 = vld [vmem:[#allocation2 + $0xa8] sm:$0xff]
    %v294 = vld [vmem:[#allocation2 + $0xb0] sm:$0xff]
    %v295 = vld [vmem:[#allocation2 + $0xc0] sm:$0xff]
    %v296 = vld [vmem:[#allocation2 + $0xc8] sm:$0xff]
    %v297 = vld [vmem:[#allocation2 + $0xd8] sm:$0xff]
    %v298 = vld [vmem:[#allocation2 + $0xe0] sm:$0xff]
    %v299 = vld [vmem:[#allocation2 + $0xf0] sm:$0xff]
    %v300 = vld [vmem:[#allocation2 + $0xf8] sm:$0xff]
    %v301 = vld [vmem:[#allocation2 + $0x108] sm:$0xff]
    %v302 = vld [vmem:[#allocation2 + $0x110] sm:$0xff]
    %v303 = vld [vmem:[#allocation2 + $0x120] sm:$0xff]
    %v304 = vld [vmem:[#allocation2 + $0x128] sm:$0xff]
    %v305 = vld [vmem:[#allocation2 + $0x138] sm:$0xff]
    %v306 = vld [vmem:[#allocation2 + $0x140] sm:$0xff]
    %v307 = vld [vmem:[#allocation2 + $0x150] sm:$0xff]
    %v308 = vld [vmem:[#allocation2 + $0x158] sm:$0xff]
    %v309 = vld [vmem:[#allocation2 + $0x168] sm:$0xff]
    %v310 = vld [vmem:[#allocation2 + $0x170] sm:$0xff]
    %v311 = vld [vmem:[#allocation2 + $0x1b0] sm:$0xff]
    %v312 = vld [vmem:[#allocation2 + $0x1b8] sm:$0xff]
    %v313 = vld [vmem:[#allocation2 + $0x1c8] sm:$0xff]
    %v314 = vld [vmem:[#allocation2 + $0x1d0] sm:$0xff]
    %v315 = vld [vmem:[#allocation2 + $0x1e0] sm:$0xff]
    %v316 = vld [vmem:[#allocation2 + $0x1e8] sm:$0xff]
    %v317 = vld [vmem:[#allocation2 + $0x1f8] sm:$0xff]
    %v318 = vld [vmem:[#allocation2 + $0x200] sm:$0xff]
    %v319 = vld [vmem:[#allocation2 + $0x210] sm:$0xff]
    %v320 = vld [vmem:[#allocation2 + $0x218] sm:$0xff]
    %v321 = vld [vmem:[#allocation2 + $0x228] sm:$0xff]
    %v322 = vld [vmem:[#allocation2 + $0x230] sm:$0xff]
    %v323 = vld [vmem:[#allocation2 + $0x240] sm:$0xff]
    %v324 = vld [vmem:[#allocation2 + $0x248] sm:$0xff]
    %v325 = vld [vmem:[#allocation2 + $0x258] sm:$0xff]
    %v326 = vld [vmem:[#allocation2 + $0x260] sm:$0xff]
    %v327 = vld [vmem:[#allocation2 + $0x270] sm:$0xff]
    %v328 = vld [vmem:[#allocation2 + $0x278] sm:$0xff]
    %v329 = vld [vmem:[#allocation2 + $0x288] sm:$0xff]
    %v330 = vld [vmem:[#allocation2 + $0x290] sm:$0xff]
    %v331 = vld [vmem:[#allocation2 + $0x2a0] sm:$0xff]
    %v332 = vld [vmem:[#allocation2 + $0x2a8] sm:$0xff]
    %v333 = vld [vmem:[#allocation2 + $0x2b8] sm:$0xff]
    %v334 = vld [vmem:[#allocation2 + $0x2c0] sm:$0xff]
    %v335 = vld [vmem:[#allocation2 + $0x2d0] sm:$0xff]
    %v336 = vld [vmem:[#allocation2 + $0x2d8] sm:$0xff]
    %v337 = vld [vmem:[#allocation2 + $0x2e8] sm:$0xff]
    %v338 = vld [vmem:[#allocation2 + $0x2f0] sm:$0xff]
    %v339 = vld [vmem:[#allocation2 + $0x300] sm:$0xff]
    %v340 = vld [vmem:[#allocation2 + $0x308] sm:$0xff]
    %v341 = vld [vmem:[#allocation2 + $0x318] sm:$0xff]
    %v342 = vld [vmem:[#allocation2 + $0x320] sm:$0xff]
    %v343 = vpack.c.bf16 %v280, %v279
    %v344 = vpack.c.bf16 %v282, %v281
    %v345 = vpack.c.bf16 %v284, %v283
    %v346 = vpack.c.bf16 %v286, %v285
    %v347 = vpack.c.bf16 %v288, %v287
    %v348 = vpack.c.bf16 %v290, %v289
    %v349 = vpack.c.bf16 %v292, %v291
    %v350 = vpack.c.bf16 %v294, %v293
    %v351 = vpack.c.bf16 %v296, %v295
    %v352 = vpack.c.bf16 %v298, %v297
    %v353 = vpack.c.bf16 %v300, %v299
    %v354 = vpack.c.bf16 %v302, %v301
    %v355 = vpack.c.bf16 %v304, %v303
    %v356 = vpack.c.bf16 %v306, %v305
    %v357 = vpack.c.bf16 %v308, %v307
    %v358 = vpack.c.bf16 %v310, %v309
    %v359 = vpack.c.bf16 %v312, %v311
    %v360 = vpack.c.bf16 %v314, %v313
    %v361 = vpack.c.bf16 %v316, %v315
    %v362 = vpack.c.bf16 %v318, %v317
    %v363 = vpack.c.bf16 %v320, %v319
    %v364 = vpack.c.bf16 %v322, %v321
    %v365 = vpack.c.bf16 %v324, %v323
    %v366 = vpack.c.bf16 %v326, %v325
    %v367 = vpack.c.bf16 %v328, %v327
    %v368 = vpack.c.bf16 %v330, %v329
    %v369 = vpack.c.bf16 %v332, %v331
    %v370 = vpack.c.bf16 %v334, %v333
    %v371 = vpack.c.bf16 %v336, %v335
    %v372 = vpack.c.bf16 %v338, %v337
    %v373 = vpack.c.bf16 %v340, %v339
    %v374 = vpack.c.bf16 %v342, %v341
    %v407 = vunpack.c.l.b16 %v343
    %v408 = vunpack.c.h.b16 %v343
    %v409 = vunpack.c.l.b16 %v344
    %v410 = vunpack.c.h.b16 %v344
    %v411 = vunpack.c.l.b16 %v345
    %v412 = vunpack.c.h.b16 %v345
    %v413 = vunpack.c.l.b16 %v346
    %v414 = vunpack.c.h.b16 %v346
    %v415 = vunpack.c.l.b16 %v347
    %v416 = vunpack.c.h.b16 %v347
    %v417 = vunpack.c.l.b16 %v348
    %v418 = vunpack.c.h.b16 %v348
    %v419 = vunpack.c.l.b16 %v349
    %v420 = vunpack.c.h.b16 %v349
    %v421 = vunpack.c.l.b16 %v350
    %v422 = vunpack.c.h.b16 %v350
    %v423 = vunpack.c.l.b16 %v351
    %v424 = vunpack.c.h.b16 %v351
    %v425 = vunpack.c.l.b16 %v352
    %v426 = vunpack.c.h.b16 %v352
    %v427 = vunpack.c.l.b16 %v353
    %v428 = vunpack.c.h.b16 %v353
    %v429 = vunpack.c.l.b16 %v354
    %v430 = vunpack.c.h.b16 %v354
    %v431 = vunpack.c.l.b16 %v355
    %v432 = vunpack.c.h.b16 %v355
    %v433 = vunpack.c.l.b16 %v356
    %v434 = vunpack.c.h.b16 %v356
    %v435 = vunpack.c.l.b16 %v357
    %v436 = vunpack.c.h.b16 %v357
    %v437 = vunpack.c.l.b16 %v358
    %v438 = vunpack.c.h.b16 %v358
    %v439 = vunpack.c.l.b16 %v359
    %v440 = vunpack.c.h.b16 %v359
    %v441 = vunpack.c.l.b16 %v360
    %v442 = vunpack.c.h.b16 %v360
    %v443 = vunpack.c.l.b16 %v361
    %v444 = vunpack.c.h.b16 %v361
    %v445 = vunpack.c.l.b16 %v362
    %v446 = vunpack.c.h.b16 %v362
    %v447 = vunpack.c.l.b16 %v363
    %v448 = vunpack.c.h.b16 %v363
    %v449 = vunpack.c.l.b16 %v364
    %v450 = vunpack.c.h.b16 %v364
    %v451 = vunpack.c.l.b16 %v365
    %v452 = vunpack.c.h.b16 %v365
    %v453 = vunpack.c.l.b16 %v366
    %v454 = vunpack.c.h.b16 %v366
    %v455 = vunpack.c.l.b16 %v367
    %v456 = vunpack.c.h.b16 %v367
    %v457 = vunpack.c.l.b16 %v368
    %v458 = vunpack.c.h.b16 %v368
    %v459 = vunpack.c.l.b16 %v369
    %v460 = vunpack.c.h.b16 %v369
    %v461 = vunpack.c.l.b16 %v370
    %v462 = vunpack.c.h.b16 %v370
    %v463 = vunpack.c.l.b16 %v371
    %v464 = vunpack.c.h.b16 %v371
    %v465 = vunpack.c.l.b16 %v372
    %v466 = vunpack.c.h.b16 %v372
    %v467 = vunpack.c.l.b16 %v373
    %v468 = vunpack.c.h.b16 %v373
    %v469 = vunpack.c.l.b16 %v374
    %v470 = vunpack.c.h.b16 %v374
    %v471 = vpack.c.b16 %v407, %v407
    %v472 = vpack.c.b16 %v408, %v408
    %v473 = vpack.c.b16 %v409, %v409
    %v474 = vpack.c.b16 %v410, %v410
    %v475 = vpack.c.b16 %v411, %v411
    %v476 = vpack.c.b16 %v412, %v412
    %v477 = vpack.c.b16 %v413, %v413
    %v478 = vpack.c.b16 %v414, %v414
    %v479 = vpack.c.b16 %v415, %v415
    %v480 = vpack.c.b16 %v416, %v416
    %v481 = vpack.c.b16 %v417, %v417
    %v482 = vpack.c.b16 %v418, %v418
    %v483 = vpack.c.b16 %v419, %v419
    %v484 = vpack.c.b16 %v420, %v420
    %v485 = vpack.c.b16 %v421, %v421
    %v486 = vpack.c.b16 %v422, %v422
    %v487 = vpack.c.b16 %v423, %v423
    %v488 = vpack.c.b16 %v424, %v424
    %v489 = vpack.c.b16 %v425, %v425
    %v490 = vpack.c.b16 %v426, %v426
    %v491 = vpack.c.b16 %v427, %v427
    %v492 = vpack.c.b16 %v428, %v428
    %v493 = vpack.c.b16 %v429, %v429
    %v494 = vpack.c.b16 %v430, %v430
    %v495 = vpack.c.b16 %v431, %v431
    %v496 = vpack.c.b16 %v432, %v432
    %v497 = vpack.c.b16 %v433, %v433
    %v498 = vpack.c.b16 %v434, %v434
    %v499 = vpack.c.b16 %v435, %v435
    %v500 = vpack.c.b16 %v436, %v436
    %v501 = vpack.c.b16 %v437, %v437
    %v502 = vpack.c.b16 %v438, %v438
    %v503 = vpack.c.b16 %v439, %v439
    %v504 = vpack.c.b16 %v440, %v440
    %v505 = vpack.c.b16 %v441, %v441
    %v506 = vpack.c.b16 %v442, %v442
    %v507 = vpack.c.b16 %v443, %v443
    %v508 = vpack.c.b16 %v444, %v444
    %v509 = vpack.c.b16 %v445, %v445
    %v510 = vpack.c.b16 %v446, %v446
    %v511 = vpack.c.b16 %v447, %v447
    %v512 = vpack.c.b16 %v448, %v448
    %v513 = vpack.c.b16 %v449, %v449
    %v514 = vpack.c.b16 %v450, %v450
    %v515 = vpack.c.b16 %v451, %v451
    %v516 = vpack.c.b16 %v452, %v452
    %v517 = vpack.c.b16 %v453, %v453
    %v518 = vpack.c.b16 %v454, %v454
    %v519 = vpack.c.b16 %v455, %v455
    %v520 = vpack.c.b16 %v456, %v456
    %v521 = vpack.c.b16 %v457, %v457
    %v522 = vpack.c.b16 %v458, %v458
    %v523 = vpack.c.b16 %v459, %v459
    %v524 = vpack.c.b16 %v460, %v460
    %v525 = vpack.c.b16 %v461, %v461
    %v526 = vpack.c.b16 %v462, %v462
    %v527 = vpack.c.b16 %v463, %v463
    %v528 = vpack.c.b16 %v464, %v464
    %v529 = vpack.c.b16 %v465, %v465
    %v530 = vpack.c.b16 %v466, %v466
    %v531 = vpack.c.b16 %v467, %v467
    %v532 = vpack.c.b16 %v468, %v468
    %v533 = vpack.c.b16 %v469, %v469
    %v534 = vpack.c.b16 %v470, %v470
    %vm599 = vcmask 19456
    %600 = vst.msk [vmem:[#allocation3] sm:$0xf] %vm599, %v471
    %601 = vst.msk [vmem:[#allocation3 + $0x4] sm:$0xf] %vm599, %v472
    %602 = vst.msk [vmem:[#allocation3 + $0x8] sm:$0xf] %vm599, %v473
    %603 = vst.msk [vmem:[#allocation3 + $0xc] sm:$0xf] %vm599, %v474
    %604 = vst.msk [vmem:[#allocation3 + $0x10] sm:$0xf] %vm599, %v475
    %605 = vst.msk [vmem:[#allocation3 + $0x14] sm:$0xf] %vm599, %v476
    %606 = vst.msk [vmem:[#allocation3 + $0x18] sm:$0xf] %vm599, %v477
    %607 = vst.msk [vmem:[#allocation3 + $0x1c] sm:$0xf] %vm599, %v478
    %608 = vst.msk [vmem:[#allocation3 + $0x20] sm:$0xf] %vm599, %v479
    %609 = vst.msk [vmem:[#allocation3 + $0x24] sm:$0xf] %vm599, %v480
    %610 = vst.msk [vmem:[#allocation3 + $0x28] sm:$0xf] %vm599, %v481
    %611 = vst.msk [vmem:[#allocation3 + $0x2c] sm:$0xf] %vm599, %v482
    %612 = vst.msk [vmem:[#allocation3 + $0x30] sm:$0xf] %vm599, %v483
    %613 = vst.msk [vmem:[#allocation3 + $0x34] sm:$0xf] %vm599, %v484
    %614 = vst.msk [vmem:[#allocation3 + $0x38] sm:$0xf] %vm599, %v485
    %615 = vst.msk [vmem:[#allocation3 + $0x3c] sm:$0xf] %vm599, %v486
    %616 = vst.msk [vmem:[#allocation3 + $0x40] sm:$0xf] %vm599, %v487
    %617 = vst.msk [vmem:[#allocation3 + $0x44] sm:$0xf] %vm599, %v488
    %618 = vst.msk [vmem:[#allocation3 + $0x48] sm:$0xf] %vm599, %v489
    %619 = vst.msk [vmem:[#allocation3 + $0x4c] sm:$0xf] %vm599, %v490
    %620 = vst.msk [vmem:[#allocation3 + $0x50] sm:$0xf] %vm599, %v491
    %621 = vst.msk [vmem:[#allocation3 + $0x54] sm:$0xf] %vm599, %v492
    %622 = vst.msk [vmem:[#allocation3 + $0x58] sm:$0xf] %vm599, %v493
    %623 = vst.msk [vmem:[#allocation3 + $0x5c] sm:$0xf] %vm599, %v494
    %624 = vst.msk [vmem:[#allocation3 + $0x60] sm:$0xf] %vm599, %v495
    %625 = vst.msk [vmem:[#allocation3 + $0x64] sm:$0xf] %vm599, %v496
    %626 = vst.msk [vmem:[#allocation3 + $0x68] sm:$0xf] %vm599, %v497
    %627 = vst.msk [vmem:[#allocation3 + $0x6c] sm:$0xf] %vm599, %v498
    %628 = vst.msk [vmem:[#allocation3 + $0x70] sm:$0xf] %vm599, %v499
    %629 = vst.msk [vmem:[#allocation3 + $0x74] sm:$0xf] %vm599, %v500
    %630 = vst.msk [vmem:[#allocation3 + $0x78] sm:$0xf] %vm599, %v501
    %631 = vst.msk [vmem:[#allocation3 + $0x7c] sm:$0xf] %vm599, %v502
    %632 = vst.msk [vmem:[#allocation3 + $0x80] sm:$0xf] %vm599, %v503
    %633 = vst.msk [vmem:[#allocation3 + $0x84] sm:$0xf] %vm599, %v504
    %634 = vst.msk [vmem:[#allocation3 + $0x88] sm:$0xf] %vm599, %v505
    %635 = vst.msk [vmem:[#allocation3 + $0x8c] sm:$0xf] %vm599, %v506
    %636 = vst.msk [vmem:[#allocation3 + $0x90] sm:$0xf] %vm599, %v507
    %637 = vst.msk [vmem:[#allocation3 + $0x94] sm:$0xf] %vm599, %v508
    %638 = vst.msk [vmem:[#allocation3 + $0x98] sm:$0xf] %vm599, %v509
    %639 = vst.msk [vmem:[#allocation3 + $0x9c] sm:$0xf] %vm599, %v510
    %640 = vst.msk [vmem:[#allocation3 + $0xa0] sm:$0xf] %vm599, %v511
    %641 = vst.msk [vmem:[#allocation3 + $0xa4] sm:$0xf] %vm599, %v512
    %642 = vst.msk [vmem:[#allocation3 + $0xa8] sm:$0xf] %vm599, %v513
    %643 = vst.msk [vmem:[#allocation3 + $0xac] sm:$0xf] %vm599, %v514
    %644 = vst.msk [vmem:[#allocation3 + $0xb0] sm:$0xf] %vm599, %v515
    %645 = vst.msk [vmem:[#allocation3 + $0xb4] sm:$0xf] %vm599, %v516
    %646 = vst.msk [vmem:[#allocation3 + $0xb8] sm:$0xf] %vm599, %v517
    %647 = vst.msk [vmem:[#allocation3 + $0xbc] sm:$0xf] %vm599, %v518
    %648 = vst.msk [vmem:[#allocation3 + $0xc0] sm:$0xf] %vm599, %v519
    %649 = vst.msk [vmem:[#allocation3 + $0xc4] sm:$0xf] %vm599, %v520
    %650 = vst.msk [vmem:[#allocation3 + $0xc8] sm:$0xf] %vm599, %v521
    %651 = vst.msk [vmem:[#allocation3 + $0xcc] sm:$0xf] %vm599, %v522
    %652 = vst.msk [vmem:[#allocation3 + $0xd0] sm:$0xf] %vm599, %v523
    %653 = vst.msk [vmem:[#allocation3 + $0xd4] sm:$0xf] %vm599, %v524
    %654 = vst.msk [vmem:[#allocation3 + $0xd8] sm:$0xf] %vm599, %v525
    %655 = vst.msk [vmem:[#allocation3 + $0xdc] sm:$0xf] %vm599, %v526
    %656 = vst.msk [vmem:[#allocation3 + $0xe0] sm:$0xf] %vm599, %v527
    %657 = vst.msk [vmem:[#allocation3 + $0xe4] sm:$0xf] %vm599, %v528
    %658 = vst.msk [vmem:[#allocation3 + $0xe8] sm:$0xf] %vm599, %v529
    %659 = vst.msk [vmem:[#allocation3 + $0xec] sm:$0xf] %vm599, %v530
    %660 = vst.msk [vmem:[#allocation3 + $0xf0] sm:$0xf] %vm599, %v531
    %661 = vst.msk [vmem:[#allocation3 + $0xf4] sm:$0xf] %vm599, %v532
    %662 = vst.msk [vmem:[#allocation3 + $0xf8] sm:$0xf] %vm599, %v533
    %663 = vst.msk [vmem:[#allocation3 + $0xfc] sm:$0xf] %vm599, %v534
    %v664 = vld [vmem:[#allocation2 + $0x1] sm:$0xff]
    %v665 = vld [vmem:[#allocation2 + $0x9] sm:$0xff]
    %v666 = vld [vmem:[#allocation2 + $0x19] sm:$0xff]
    %v667 = vld [vmem:[#allocation2 + $0x21] sm:$0xff]
    %v668 = vld [vmem:[#allocation2 + $0x31] sm:$0xff]
    %v669 = vld [vmem:[#allocation2 + $0x39] sm:$0xff]
    %v670 = vld [vmem:[#allocation2 + $0x49] sm:$0xff]
    %v671 = vld [vmem:[#allocation2 + $0x51] sm:$0xff]
    %v672 = vld [vmem:[#allocation2 + $0x61] sm:$0xff]
    %v673 = vld [vmem:[#allocation2 + $0x69] sm:$0xff]
    %v674 = vld [vmem:[#allocation2 + $0x79] sm:$0xff]
    %v675 = vld [vmem:[#allocation2 + $0x81] sm:$0xff]
    %v676 = vld [vmem:[#allocation2 + $0x91] sm:$0xff]
    %v677 = vld [vmem:[#allocation2 + $0x99] sm:$0xff]
    %v678 = vld [vmem:[#allocation2 + $0xa9] sm:$0xff]
    %v679 = vld [vmem:[#allocation2 + $0xb1] sm:$0xff]
    %v680 = vld [vmem:[#allocation2 + $0xc1] sm:$0xff]
    %v681 = vld [vmem:[#allocation2 + $0xc9] sm:$0xff]
    %v682 = vld [vmem:[#allocation2 + $0xd9] sm:$0xff]
    %v683 = vld [vmem:[#allocation2 + $0xe1] sm:$0xff]
    %v684 = vld [vmem:[#allocation2 + $0xf1] sm:$0xff]
    %v685 = vld [vmem:[#allocation2 + $0xf9] sm:$0xff]
    %v686 = vld [vmem:[#allocation2 + $0x109] sm:$0xff]
    %v687 = vld [vmem:[#allocation2 + $0x111] sm:$0xff]
    %v688 = vld [vmem:[#allocation2 + $0x121] sm:$0xff]
    %v689 = vld [vmem:[#allocation2 + $0x129] sm:$0xff]
    %v690 = vld [vmem:[#allocation2 + $0x139] sm:$0xff]
    %v691 = vld [vmem:[#allocation2 + $0x141] sm:$0xff]
    %v692 = vld [vmem:[#allocation2 + $0x151] sm:$0xff]
    %v693 = vld [vmem:[#allocation2 + $0x159] sm:$0xff]
    %v694 = vld [vmem:[#allocation2 + $0x169] sm:$0xff]
    %v695 = vld [vmem:[#allocation2 + $0x171] sm:$0xff]
    %v696 = vld [vmem:[#allocation2 + $0x1b1] sm:$0xff]
    %v697 = vld [vmem:[#allocation2 + $0x1b9] sm:$0xff]
    %v698 = vld [vmem:[#allocation2 + $0x1c9] sm:$0xff]
    %v699 = vld [vmem:[#allocation2 + $0x1d1] sm:$0xff]
    %v700 = vld [vmem:[#allocation2 + $0x1e1] sm:$0xff]
    %v701 = vld [vmem:[#allocation2 + $0x1e9] sm:$0xff]
    %v702 = vld [vmem:[#allocation2 + $0x1f9] sm:$0xff]
    %v703 = vld [vmem:[#allocation2 + $0x201] sm:$0xff]
    %v704 = vld [vmem:[#allocation2 + $0x211] sm:$0xff]
    %v705 = vld [vmem:[#allocation2 + $0x219] sm:$0xff]
    %v706 = vld [vmem:[#allocation2 + $0x229] sm:$0xff]
    %v707 = vld [vmem:[#allocation2 + $0x231] sm:$0xff]
    %v708 = vld [vmem:[#allocation2 + $0x241] sm:$0xff]
    %v709 = vld [vmem:[#allocation2 + $0x249] sm:$0xff]
    %v710 = vld [vmem:[#allocation2 + $0x259] sm:$0xff]
    %v711 = vld [vmem:[#allocation2 + $0x261] sm:$0xff]
    %v712 = vld [vmem:[#allocation2 + $0x271] sm:$0xff]
    %v713 = vld [vmem:[#allocation2 + $0x279] sm:$0xff]
    %v714 = vld [vmem:[#allocation2 + $0x289] sm:$0xff]
    %v715 = vld [vmem:[#allocation2 + $0x291] sm:$0xff]
    %v716 = vld [vmem:[#allocation2 + $0x2a1] sm:$0xff]
    %v717 = vld [vmem:[#allocation2 + $0x2a9] sm:$0xff]
    %v718 = vld [vmem:[#allocation2 + $0x2b9] sm:$0xff]
    %v719 = vld [vmem:[#allocation2 + $0x2c1] sm:$0xff]
    %v720 = vld [vmem:[#allocation2 + $0x2d1] sm:$0xff]
    %v721 = vld [vmem:[#allocation2 + $0x2d9] sm:$0xff]
    %v722 = vld [vmem:[#allocation2 + $0x2e9] sm:$0xff]
    %v723 = vld [vmem:[#allocation2 + $0x2f1] sm:$0xff]
    %v724 = vld [vmem:[#allocation2 + $0x301] sm:$0xff]
    %v725 = vld [vmem:[#allocation2 + $0x309] sm:$0xff]
    %v726 = vld [vmem:[#allocation2 + $0x319] sm:$0xff]
    %v727 = vld [vmem:[#allocation2 + $0x321] sm:$0xff]
    %v728 = vpack.c.bf16 %v665, %v664
    %v729 = vpack.c.bf16 %v667, %v666
    %v730 = vpack.c.bf16 %v669, %v668
    %v731 = vpack.c.bf16 %v671, %v670
    %v732 = vpack.c.bf16 %v673, %v672
    %v733 = vpack.c.bf16 %v675, %v674
    %v734 = vpack.c.bf16 %v677, %v676
    %v735 = vpack.c.bf16 %v679, %v678
    %v736 = vpack.c.bf16 %v681, %v680
    %v737 = vpack.c.bf16 %v683, %v682
    %v738 = vpack.c.bf16 %v685, %v684
    %v739 = vpack.c.bf16 %v687, %v686
    %v740 = vpack.c.bf16 %v689, %v688
    %v741 = vpack.c.bf16 %v691, %v690
    %v742 = vpack.c.bf16 %v693, %v692
    %v743 = vpack.c.bf16 %v695, %v694
    %v744 = vpack.c.bf16 %v697, %v696
    %v745 = vpack.c.bf16 %v699, %v698
    %v746 = vpack.c.bf16 %v701, %v700
    %v747 = vpack.c.bf16 %v703, %v702
    %v748 = vpack.c.bf16 %v705, %v704
    %v749 = vpack.c.bf16 %v707, %v706
    %v750 = vpack.c.bf16 %v709, %v708
    %v751 = vpack.c.bf16 %v711, %v710
    %v752 = vpack.c.bf16 %v713, %v712
    %v753 = vpack.c.bf16 %v715, %v714
    %v754 = vpack.c.bf16 %v717, %v716
    %v755 = vpack.c.bf16 %v719, %v718
    %v756 = vpack.c.bf16 %v721, %v720
    %v757 = vpack.c.bf16 %v723, %v722
    %v758 = vpack.c.bf16 %v725, %v724
    %v759 = vpack.c.bf16 %v727, %v726
    %v792 = vunpack.c.l.b16 %v728
    %v793 = vunpack.c.h.b16 %v728
    %v794 = vunpack.c.l.b16 %v729
    %v795 = vunpack.c.h.b16 %v729
    %v796 = vunpack.c.l.b16 %v730
    %v797 = vunpack.c.h.b16 %v730
    %v798 = vunpack.c.l.b16 %v731
    %v799 = vunpack.c.h.b16 %v731
    %v800 = vunpack.c.l.b16 %v732
    %v801 = vunpack.c.h.b16 %v732
    %v802 = vunpack.c.l.b16 %v733
    %v803 = vunpack.c.h.b16 %v733
    %v804 = vunpack.c.l.b16 %v734
    %v805 = vunpack.c.h.b16 %v734
    %v806 = vunpack.c.l.b16 %v735
    %v807 = vunpack.c.h.b16 %v735
    %v808 = vunpack.c.l.b16 %v736
    %v809 = vunpack.c.h.b16 %v736
    %v810 = vunpack.c.l.b16 %v737
    %v811 = vunpack.c.h.b16 %v737
    %v812 = vunpack.c.l.b16 %v738
    %v813 = vunpack.c.h.b16 %v738
    %v814 = vunpack.c.l.b16 %v739
    %v815 = vunpack.c.h.b16 %v739
    %v816 = vunpack.c.l.b16 %v740
    %v817 = vunpack.c.h.b16 %v740
    %v818 = vunpack.c.l.b16 %v741
    %v819 = vunpack.c.h.b16 %v741
    %v820 = vunpack.c.l.b16 %v742
    %v821 = vunpack.c.h.b16 %v742
    %v822 = vunpack.c.l.b16 %v743
    %v823 = vunpack.c.h.b16 %v743
    %v824 = vunpack.c.l.b16 %v744
    %v825 = vunpack.c.h.b16 %v744
    %v826 = vunpack.c.l.b16 %v745
    %v827 = vunpack.c.h.b16 %v745
    %v828 = vunpack.c.l.b16 %v746
    %v829 = vunpack.c.h.b16 %v746
    %v830 = vunpack.c.l.b16 %v747
    %v831 = vunpack.c.h.b16 %v747
    %v832 = vunpack.c.l.b16 %v748
    %v833 = vunpack.c.h.b16 %v748
    %v834 = vunpack.c.l.b16 %v749
    %v835 = vunpack.c.h.b16 %v749
    %v836 = vunpack.c.l.b16 %v750
    %v837 = vunpack.c.h.b16 %v750
    %v838 = vunpack.c.l.b16 %v751
    %v839 = vunpack.c.h.b16 %v751
    %v840 = vunpack.c.l.b16 %v752
    %v841 = vunpack.c.h.b16 %v752
    %v842 = vunpack.c.l.b16 %v753
    %v843 = vunpack.c.h.b16 %v753
    %v844 = vunpack.c.l.b16 %v754
    %v845 = vunpack.c.h.b16 %v754
    %v846 = vunpack.c.l.b16 %v755
    %v847 = vunpack.c.h.b16 %v755
    %v848 = vunpack.c.l.b16 %v756
    %v849 = vunpack.c.h.b16 %v756
    %v850 = vunpack.c.l.b16 %v757
    %v851 = vunpack.c.h.b16 %v757
    %v852 = vunpack.c.l.b16 %v758
    %v853 = vunpack.c.h.b16 %v758
    %v854 = vunpack.c.l.b16 %v759
    %v855 = vunpack.c.h.b16 %v759
    %v856 = vpack.c.b16 %v792, %v792
    %v857 = vpack.c.b16 %v793, %v793
    %v858 = vpack.c.b16 %v794, %v794
    %v859 = vpack.c.b16 %v795, %v795
    %v860 = vpack.c.b16 %v796, %v796
    %v861 = vpack.c.b16 %v797, %v797
    %v862 = vpack.c.b16 %v798, %v798
    %v863 = vpack.c.b16 %v799, %v799
    %v864 = vpack.c.b16 %v800, %v800
    %v865 = vpack.c.b16 %v801, %v801
    %v866 = vpack.c.b16 %v802, %v802
    %v867 = vpack.c.b16 %v803, %v803
    %v868 = vpack.c.b16 %v804, %v804
    %v869 = vpack.c.b16 %v805, %v805
    %v870 = vpack.c.b16 %v806, %v806
    %v871 = vpack.c.b16 %v807, %v807
    %v872 = vpack.c.b16 %v808, %v808
    %v873 = vpack.c.b16 %v809, %v809
    %v874 = vpack.c.b16 %v810, %v810
    %v875 = vpack.c.b16 %v811, %v811
    %v876 = vpack.c.b16 %v812, %v812
    %v877 = vpack.c.b16 %v813, %v813
    %v878 = vpack.c.b16 %v814, %v814
    %v879 = vpack.c.b16 %v815, %v815
    %v880 = vpack.c.b16 %v816, %v816
    %v881 = vpack.c.b16 %v817, %v817
    %v882 = vpack.c.b16 %v818, %v818
    %v883 = vpack.c.b16 %v819, %v819
    %v884 = vpack.c.b16 %v820, %v820
    %v885 = vpack.c.b16 %v821, %v821
    %v886 = vpack.c.b16 %v822, %v822
    %v887 = vpack.c.b16 %v823, %v823
    %v888 = vpack.c.b16 %v824, %v824
    %v889 = vpack.c.b16 %v825, %v825
    %v890 = vpack.c.b16 %v826, %v826
    %v891 = vpack.c.b16 %v827, %v827
    %v892 = vpack.c.b16 %v828, %v828
    %v893 = vpack.c.b16 %v829, %v829
    %v894 = vpack.c.b16 %v830, %v830
    %v895 = vpack.c.b16 %v831, %v831
    %v896 = vpack.c.b16 %v832, %v832
    %v897 = vpack.c.b16 %v833, %v833
    %v898 = vpack.c.b16 %v834, %v834
    %v899 = vpack.c.b16 %v835, %v835
    %v900 = vpack.c.b16 %v836, %v836
    %v901 = vpack.c.b16 %v837, %v837
    %v902 = vpack.c.b16 %v838, %v838
    %v903 = vpack.c.b16 %v839, %v839
    %v904 = vpack.c.b16 %v840, %v840
    %v905 = vpack.c.b16 %v841, %v841
    %v906 = vpack.c.b16 %v842, %v842
    %v907 = vpack.c.b16 %v843, %v843
    %v908 = vpack.c.b16 %v844, %v844
    %v909 = vpack.c.b16 %v845, %v845
    %v910 = vpack.c.b16 %v846, %v846
    %v911 = vpack.c.b16 %v847, %v847
    %v912 = vpack.c.b16 %v848, %v848
    %v913 = vpack.c.b16 %v849, %v849
    %v914 = vpack.c.b16 %v850, %v850
    %v915 = vpack.c.b16 %v851, %v851
    %v916 = vpack.c.b16 %v852, %v852
    %v917 = vpack.c.b16 %v853, %v853
    %v918 = vpack.c.b16 %v854, %v854
    %v919 = vpack.c.b16 %v855, %v855
    %920 = vrot.lane.b32.xlu0 %v856, 3
    %v921 = vpop.permute.xlu0 %920
    %922 = vrot.lane.b32.xlu0 %v857, 3
    %v923 = vpop.permute.xlu0 %922
    %924 = vrot.lane.b32.xlu0 %v858, 3
    %v925 = vpop.permute.xlu0 %924
    %926 = vrot.lane.b32.xlu0 %v859, 3
    %v927 = vpop.permute.xlu0 %926
    %928 = vrot.lane.b32.xlu0 %v860, 3
    %v929 = vpop.permute.xlu0 %928
    %930 = vrot.lane.b32.xlu0 %v861, 3
    %v931 = vpop.permute.xlu0 %930
    %932 = vrot.lane.b32.xlu0 %v862, 3
    %v933 = vpop.permute.xlu0 %932
    %934 = vrot.lane.b32.xlu0 %v863, 3
    %v935 = vpop.permute.xlu0 %934
    %936 = vrot.lane.b32.xlu0 %v864, 3
    %v937 = vpop.permute.xlu0 %936
    %938 = vrot.lane.b32.xlu0 %v865, 3
    %v939 = vpop.permute.xlu0 %938
    %940 = vrot.lane.b32.xlu0 %v866, 3
    %v941 = vpop.permute.xlu0 %940
    %942 = vrot.lane.b32.xlu0 %v867, 3
    %v943 = vpop.permute.xlu0 %942
    %944 = vrot.lane.b32.xlu0 %v868, 3
    %v945 = vpop.permute.xlu0 %944
    %946 = vrot.lane.b32.xlu0 %v869, 3
    %v947 = vpop.permute.xlu0 %946
    %948 = vrot.lane.b32.xlu0 %v870, 3
    %v949 = vpop.permute.xlu0 %948
    %950 = vrot.lane.b32.xlu0 %v871, 3
    %v951 = vpop.permute.xlu0 %950
    %952 = vrot.lane.b32.xlu0 %v872, 3
    %v953 = vpop.permute.xlu0 %952
    %954 = vrot.lane.b32.xlu0 %v873, 3
    %v955 = vpop.permute.xlu0 %954
    %956 = vrot.lane.b32.xlu0 %v874, 3
    %v957 = vpop.permute.xlu0 %956
    %958 = vrot.lane.b32.xlu0 %v875, 3
    %v959 = vpop.permute.xlu0 %958
    %960 = vrot.lane.b32.xlu0 %v876, 3
    %v961 = vpop.permute.xlu0 %960
    %962 = vrot.lane.b32.xlu0 %v877, 3
    %v963 = vpop.permute.xlu0 %962
    %964 = vrot.lane.b32.xlu0 %v878, 3
    %v965 = vpop.permute.xlu0 %964
    %966 = vrot.lane.b32.xlu0 %v879, 3
    %v967 = vpop.permute.xlu0 %966
    %968 = vrot.lane.b32.xlu0 %v880, 3
    %v969 = vpop.permute.xlu0 %968
    %970 = vrot.lane.b32.xlu0 %v881, 3
    %v971 = vpop.permute.xlu0 %970
    %972 = vrot.lane.b32.xlu0 %v882, 3
    %v973 = vpop.permute.xlu0 %972
    %974 = vrot.lane.b32.xlu0 %v883, 3
    %v975 = vpop.permute.xlu0 %974
    %976 = vrot.lane.b32.xlu0 %v884, 3
    %v977 = vpop.permute.xlu0 %976
    %978 = vrot.lane.b32.xlu0 %v885, 3
    %v979 = vpop.permute.xlu0 %978
    %980 = vrot.lane.b32.xlu0 %v886, 3
    %v981 = vpop.permute.xlu0 %980
    %982 = vrot.lane.b32.xlu0 %v887, 3
    %v983 = vpop.permute.xlu0 %982
    %984 = vrot.lane.b32.xlu0 %v888, 3
    %v985 = vpop.permute.xlu0 %984
    %986 = vrot.lane.b32.xlu0 %v889, 3
    %v987 = vpop.permute.xlu0 %986
    %988 = vrot.lane.b32.xlu0 %v890, 3
    %v989 = vpop.permute.xlu0 %988
    %990 = vrot.lane.b32.xlu0 %v891, 3
    %v991 = vpop.permute.xlu0 %990
    %992 = vrot.lane.b32.xlu0 %v892, 3
    %v993 = vpop.permute.xlu0 %992
    %994 = vrot.lane.b32.xlu0 %v893, 3
    %v995 = vpop.permute.xlu0 %994
    %996 = vrot.lane.b32.xlu0 %v894, 3
    %v997 = vpop.permute.xlu0 %996
    %998 = vrot.lane.b32.xlu0 %v895, 3
    %v999 = vpop.permute.xlu0 %998
    %1000 = vrot.lane.b32.xlu0 %v896, 3
    %v1001 = vpop.permute.xlu0 %1000
    %1002 = vrot.lane.b32.xlu0 %v897, 3
    %v1003 = vpop.permute.xlu0 %1002
    %1004 = vrot.lane.b32.xlu0 %v898, 3
    %v1005 = vpop.permute.xlu0 %1004
    %1006 = vrot.lane.b32.xlu0 %v899, 3
    %v1007 = vpop.permute.xlu0 %1006
    %1008 = vrot.lane.b32.xlu0 %v900, 3
    %v1009 = vpop.permute.xlu0 %1008
    %1010 = vrot.lane.b32.xlu0 %v901, 3
    %v1011 = vpop.permute.xlu0 %1010
    %1012 = vrot.lane.b32.xlu0 %v902, 3
    %v1013 = vpop.permute.xlu0 %1012
    %1014 = vrot.lane.b32.xlu0 %v903, 3
    %v1015 = vpop.permute.xlu0 %1014
    %1016 = vrot.lane.b32.xlu0 %v904, 3
    %v1017 = vpop.permute.xlu0 %1016
    %1018 = vrot.lane.b32.xlu0 %v905, 3
    %v1019 = vpop.permute.xlu0 %1018
    %1020 = vrot.lane.b32.xlu0 %v906, 3
    %v1021 = vpop.permute.xlu0 %1020
    %1022 = vrot.lane.b32.xlu0 %v907, 3
    %v1023 = vpop.permute.xlu0 %1022
    %1024 = vrot.lane.b32.xlu0 %v908, 3
    %v1025 = vpop.permute.xlu0 %1024
    %1026 = vrot.lane.b32.xlu0 %v909, 3
    %v1027 = vpop.permute.xlu0 %1026
    %1028 = vrot.lane.b32.xlu0 %v910, 3
    %v1029 = vpop.permute.xlu0 %1028
    %1030 = vrot.lane.b32.xlu0 %v911, 3
    %v1031 = vpop.permute.xlu0 %1030
    %1032 = vrot.lane.b32.xlu0 %v912, 3
    %v1033 = vpop.permute.xlu0 %1032
    %1034 = vrot.lane.b32.xlu0 %v913, 3
    %v1035 = vpop.permute.xlu0 %1034
    %1036 = vrot.lane.b32.xlu0 %v914, 3
    %v1037 = vpop.permute.xlu0 %1036
    %1038 = vrot.lane.b32.xlu0 %v915, 3
    %v1039 = vpop.permute.xlu0 %1038
    %1040 = vrot.lane.b32.xlu0 %v916, 3
    %v1041 = vpop.permute.xlu0 %1040
    %1042 = vrot.lane.b32.xlu0 %v917, 3
    %v1043 = vpop.permute.xlu0 %1042
    %1044 = vrot.lane.b32.xlu0 %v918, 3
    %v1045 = vpop.permute.xlu0 %1044
    %1046 = vrot.lane.b32.xlu0 %v919, 3
    %v1047 = vpop.permute.xlu0 %1046
    %vm1112 = vcmask 44056
    %1113 = vst.msk [vmem:[#allocation3] sm:$0xf] %vm1112, %v921
    %1114 = vst.msk [vmem:[#allocation3 + $0x4] sm:$0xf] %vm1112, %v923
    %1115 = vst.msk [vmem:[#allocation3 + $0x8] sm:$0xf] %vm1112, %v925
    %1116 = vst.msk [vmem:[#allocation3 + $0xc] sm:$0xf] %vm1112, %v927
    %1117 = vst.msk [vmem:[#allocation3 + $0x10] sm:$0xf] %vm1112, %v929
    %1118 = vst.msk [vmem:[#allocation3 + $0x14] sm:$0xf] %vm1112, %v931
    %1119 = vst.msk [vmem:[#allocation3 + $0x18] sm:$0xf] %vm1112, %v933
    %1120 = vst.msk [vmem:[#allocation3 + $0x1c] sm:$0xf] %vm1112, %v935
    %1121 = vst.msk [vmem:[#allocation3 + $0x20] sm:$0xf] %vm1112, %v937
    %1122 = vst.msk [vmem:[#allocation3 + $0x24] sm:$0xf] %vm1112, %v939
    %1123 = vst.msk [vmem:[#allocation3 + $0x28] sm:$0xf] %vm1112, %v941
    %1124 = vst.msk [vmem:[#allocation3 + $0x2c] sm:$0xf] %vm1112, %v943
    %1125 = vst.msk [vmem:[#allocation3 + $0x30] sm:$0xf] %vm1112, %v945
    %1126 = vst.msk [vmem:[#allocation3 + $0x34] sm:$0xf] %vm1112, %v947
    %1127 = vst.msk [vmem:[#allocation3 + $0x38] sm:$0xf] %vm1112, %v949
    %1128 = vst.msk [vmem:[#allocation3 + $0x3c] sm:$0xf] %vm1112, %v951
    %1129 = vst.msk [vmem:[#allocation3 + $0x40] sm:$0xf] %vm1112, %v953
    %1130 = vst.msk [vmem:[#allocation3 + $0x44] sm:$0xf] %vm1112, %v955
    %1131 = vst.msk [vmem:[#allocation3 + $0x48] sm:$0xf] %vm1112, %v957
    %1132 = vst.msk [vmem:[#allocation3 + $0x4c] sm:$0xf] %vm1112, %v959
    %1133 = vst.msk [vmem:[#allocation3 + $0x50] sm:$0xf] %vm1112, %v961
    %1134 = vst.msk [vmem:[#allocation3 + $0x54] sm:$0xf] %vm1112, %v963
    %1135 = vst.msk [vmem:[#allocation3 + $0x58] sm:$0xf] %vm1112, %v965
    %1136 = vst.msk [vmem:[#allocation3 + $0x5c] sm:$0xf] %vm1112, %v967
    %1137 = vst.msk [vmem:[#allocation3 + $0x60] sm:$0xf] %vm1112, %v969
    %1138 = vst.msk [vmem:[#allocation3 + $0x64] sm:$0xf] %vm1112, %v971
    %1139 = vst.msk [vmem:[#allocation3 + $0x68] sm:$0xf] %vm1112, %v973
    %1140 = vst.msk [vmem:[#allocation3 + $0x6c] sm:$0xf] %vm1112, %v975
    %1141 = vst.msk [vmem:[#allocation3 + $0x70] sm:$0xf] %vm1112, %v977
    %1142 = vst.msk [vmem:[#allocation3 + $0x74] sm:$0xf] %vm1112, %v979
    %1143 = vst.msk [vmem:[#allocation3 + $0x78] sm:$0xf] %vm1112, %v981
    %1144 = vst.msk [vmem:[#allocation3 + $0x7c] sm:$0xf] %vm1112, %v983
    %1145 = vst.msk [vmem:[#allocation3 + $0x80] sm:$0xf] %vm1112, %v985
    %1146 = vst.msk [vmem:[#allocation3 + $0x84] sm:$0xf] %vm1112, %v987
    %1147 = vst.msk [vmem:[#allocation3 + $0x88] sm:$0xf] %vm1112, %v989
    %1148 = vst.msk [vmem:[#allocation3 + $0x8c] sm:$0xf] %vm1112, %v991
    %1149 = vst.msk [vmem:[#allocation3 + $0x90] sm:$0xf] %vm1112, %v993
    %1150 = vst.msk [vmem:[#allocation3 + $0x94] sm:$0xf] %vm1112, %v995
    %1151 = vst.msk [vmem:[#allocation3 + $0x98] sm:$0xf] %vm1112, %v997
    %1152 = vst.msk [vmem:[#allocation3 + $0x9c] sm:$0xf] %vm1112, %v999
    %1153 = vst.msk [vmem:[#allocation3 + $0xa0] sm:$0xf] %vm1112, %v1001
    %1154 = vst.msk [vmem:[#allocation3 + $0xa4] sm:$0xf] %vm1112, %v1003
    %1155 = vst.msk [vmem:[#allocation3 + $0xa8] sm:$0xf] %vm1112, %v1005
    %1156 = vst.msk [vmem:[#allocation3 + $0xac] sm:$0xf] %vm1112, %v1007
    %1157 = vst.msk [vmem:[#allocation3 + $0xb0] sm:$0xf] %vm1112, %v1009
    %1158 = vst.msk [vmem:[#allocation3 + $0xb4] sm:$0xf] %vm1112, %v1011
    %1159 = vst.msk [vmem:[#allocation3 + $0xb8] sm:$0xf] %vm1112, %v1013
    %1160 = vst.msk [vmem:[#allocation3 + $0xbc] sm:$0xf] %vm1112, %v1015
    %1161 = vst.msk [vmem:[#allocation3 + $0xc0] sm:$0xf] %vm1112, %v1017
    %1162 = vst.msk [vmem:[#allocation3 + $0xc4] sm:$0xf] %vm1112, %v1019
    %1163 = vst.msk [vmem:[#allocation3 + $0xc8] sm:$0xf] %vm1112, %v1021
    %1164 = vst.msk [vmem:[#allocation3 + $0xcc] sm:$0xf] %vm1112, %v1023
    %1165 = vst.msk [vmem:[#allocation3 + $0xd0] sm:$0xf] %vm1112, %v1025
    %1166 = vst.msk [vmem:[#allocation3 + $0xd4] sm:$0xf] %vm1112, %v1027
    %1167 = vst.msk [vmem:[#allocation3 + $0xd8] sm:$0xf] %vm1112, %v1029
    %1168 = vst.msk [vmem:[#allocation3 + $0xdc] sm:$0xf] %vm1112, %v1031
    %1169 = vst.msk [vmem:[#allocation3 + $0xe0] sm:$0xf] %vm1112, %v1033
    %1170 = vst.msk [vmem:[#allocation3 + $0xe4] sm:$0xf] %vm1112, %v1035
    %1171 = vst.msk [vmem:[#allocation3 + $0xe8] sm:$0xf] %vm1112, %v1037
    %1172 = vst.msk [vmem:[#allocation3 + $0xec] sm:$0xf] %vm1112, %v1039
    %1173 = vst.msk [vmem:[#allocation3 + $0xf0] sm:$0xf] %vm1112, %v1041
    %1174 = vst.msk [vmem:[#allocation3 + $0xf4] sm:$0xf] %vm1112, %v1043
    %1175 = vst.msk [vmem:[#allocation3 + $0xf8] sm:$0xf] %vm1112, %v1045
    %1176 = vst.msk [vmem:[#allocation3 + $0xfc] sm:$0xf] %vm1112, %v1047
    %v1177 = vld [vmem:[#allocation2 + $0x2] sm:$0xff]
    %v1178 = vld [vmem:[#allocation2 + $0xa] sm:$0xff]
    %v1179 = vld [vmem:[#allocation2 + $0x1a] sm:$0xff]
    %v1180 = vld [vmem:[#allocation2 + $0x22] sm:$0xff]
    %v1181 = vld [vmem:[#allocation2 + $0x32] sm:$0xff]
    %v1182 = vld [vmem:[#allocation2 + $0x3a] sm:$0xff]
    %v1183 = vld [vmem:[#allocation2 + $0x4a] sm:$0xff]
    %v1184 = vld [vmem:[#allocation2 + $0x52] sm:$0xff]
    %v1185 = vld [vmem:[#allocation2 + $0x62] sm:$0xff]
    %v1186 = vld [vmem:[#allocation2 + $0x6a] sm:$0xff]
    %v1187 = vld [vmem:[#allocation2 + $0x7a] sm:$0xff]
    %v1188 = vld [vmem:[#allocation2 + $0x82] sm:$0xff]
    %v1189 = vld [vmem:[#allocation2 + $0x92] sm:$0xff]
    %v1190 = vld [vmem:[#allocation2 + $0x9a] sm:$0xff]
    %v1191 = vld [vmem:[#allocation2 + $0xaa] sm:$0xff]
    %v1192 = vld [vmem:[#allocation2 + $0xb2] sm:$0xff]
    %v1193 = vld [vmem:[#allocation2 + $0xc2] sm:$0xff]
    %v1194 = vld [vmem:[#allocation2 + $0xca] sm:$0xff]
    %v1195 = vld [vmem:[#allocation2 + $0xda] sm:$0xff]
    %v1196 = vld [vmem:[#allocation2 + $0xe2] sm:$0xff]
    %v1197 = vld [vmem:[#allocation2 + $0xf2] sm:$0xff]
    %v1198 = vld [vmem:[#allocation2 + $0xfa] sm:$0xff]
    %v1199 = vld [vmem:[#allocation2 + $0x10a] sm:$0xff]
    %v1200 = vld [vmem:[#allocation2 + $0x112] sm:$0xff]
    %v1201 = vld [vmem:[#allocation2 + $0x122] sm:$0xff]
    %v1202 = vld [vmem:[#allocation2 + $0x12a] sm:$0xff]
    %v1203 = vld [vmem:[#allocation2 + $0x13a] sm:$0xff]
    %v1204 = vld [vmem:[#allocation2 + $0x142] sm:$0xff]
    %v1205 = vld [vmem:[#allocation2 + $0x152] sm:$0xff]
    %v1206 = vld [vmem:[#allocation2 + $0x15a] sm:$0xff]
    %v1207 = vld [vmem:[#allocation2 + $0x16a] sm:$0xff]
    %v1208 = vld [vmem:[#allocation2 + $0x172] sm:$0xff]
    %v1209 = vld [vmem:[#allocation2 + $0x1b2] sm:$0xff]
    %v1210 = vld [vmem:[#allocation2 + $0x1ba] sm:$0xff]
    %v1211 = vld [vmem:[#allocation2 + $0x1ca] sm:$0xff]
    %v1212 = vld [vmem:[#allocation2 + $0x1d2] sm:$0xff]
    %v1213 = vld [vmem:[#allocation2 + $0x1e2] sm:$0xff]
    %v1214 = vld [vmem:[#allocation2 + $0x1ea] sm:$0xff]
    %v1215 = vld [vmem:[#allocation2 + $0x1fa] sm:$0xff]
    %v1216 = vld [vmem:[#allocation2 + $0x202] sm:$0xff]
    %v1217 = vld [vmem:[#allocation2 + $0x212] sm:$0xff]
    %v1218 = vld [vmem:[#allocation2 + $0x21a] sm:$0xff]
    %v1219 = vld [vmem:[#allocation2 + $0x22a] sm:$0xff]
    %v1220 = vld [vmem:[#allocation2 + $0x232] sm:$0xff]
    %v1221 = vld [vmem:[#allocation2 + $0x242] sm:$0xff]
    %v1222 = vld [vmem:[#allocation2 + $0x24a] sm:$0xff]
    %v1223 = vld [vmem:[#allocation2 + $0x25a] sm:$0xff]
    %v1224 = vld [vmem:[#allocation2 + $0x262] sm:$0xff]
    %v1225 = vld [vmem:[#allocation2 + $0x272] sm:$0xff]
    %v1226 = vld [vmem:[#allocation2 + $0x27a] sm:$0xff]
    %v1227 = vld [vmem:[#allocation2 + $0x28a] sm:$0xff]
    %v1228 = vld [vmem:[#allocation2 + $0x292] sm:$0xff]
    %v1229 = vld [vmem:[#allocation2 + $0x2a2] sm:$0xff]
    %v1230 = vld [vmem:[#allocation2 + $0x2aa] sm:$0xff]
    %v1231 = vld [vmem:[#allocation2 + $0x2ba] sm:$0xff]
    %v1232 = vld [vmem:[#allocation2 + $0x2c2] sm:$0xff]
    %v1233 = vld [vmem:[#allocation2 + $0x2d2] sm:$0xff]
    %v1234 = vld [vmem:[#allocation2 + $0x2da] sm:$0xff]
    %v1235 = vld [vmem:[#allocation2 + $0x2ea] sm:$0xff]
    %v1236 = vld [vmem:[#allocation2 + $0x2f2] sm:$0xff]
    %v1237 = vld [vmem:[#allocation2 + $0x302] sm:$0xff]
    %v1238 = vld [vmem:[#allocation2 + $0x30a] sm:$0xff]
    %v1239 = vld [vmem:[#allocation2 + $0x31a] sm:$0xff]
    %v1240 = vld [vmem:[#allocation2 + $0x322] sm:$0xff]
    %v1241 = vpack.c.bf16 %v1178, %v1177
    %v1242 = vpack.c.bf16 %v1180, %v1179
    %v1243 = vpack.c.bf16 %v1182, %v1181
    %v1244 = vpack.c.bf16 %v1184, %v1183
    %v1245 = vpack.c.bf16 %v1186, %v1185
    %v1246 = vpack.c.bf16 %v1188, %v1187
    %v1247 = vpack.c.bf16 %v1190, %v1189
    %v1248 = vpack.c.bf16 %v1192, %v1191
    %v1249 = vpack.c.bf16 %v1194, %v1193
    %v1250 = vpack.c.bf16 %v1196, %v1195
    %v1251 = vpack.c.bf16 %v1198, %v1197
    %v1252 = vpack.c.bf16 %v1200, %v1199
    %v1253 = vpack.c.bf16 %v1202, %v1201
    %v1254 = vpack.c.bf16 %v1204, %v1203
    %v1255 = vpack.c.bf16 %v1206, %v1205
    %v1256 = vpack.c.bf16 %v1208, %v1207
    %v1257 = vpack.c.bf16 %v1210, %v1209
    %v1258 = vpack.c.bf16 %v1212, %v1211
    %v1259 = vpack.c.bf16 %v1214, %v1213
    %v1260 = vpack.c.bf16 %v1216, %v1215
    %v1261 = vpack.c.bf16 %v1218, %v1217
    %v1262 = vpack.c.bf16 %v1220, %v1219
    %v1263 = vpack.c.bf16 %v1222, %v1221
    %v1264 = vpack.c.bf16 %v1224, %v1223
    %v1265 = vpack.c.bf16 %v1226, %v1225
    %v1266 = vpack.c.bf16 %v1228, %v1227
    %v1267 = vpack.c.bf16 %v1230, %v1229
    %v1268 = vpack.c.bf16 %v1232, %v1231
    %v1269 = vpack.c.bf16 %v1234, %v1233
    %v1270 = vpack.c.bf16 %v1236, %v1235
    %v1271 = vpack.c.bf16 %v1238, %v1237
    %v1272 = vpack.c.bf16 %v1240, %v1239
    %v1305 = vunpack.c.l.b16 %v1241
    %v1306 = vunpack.c.h.b16 %v1241
    %v1307 = vunpack.c.l.b16 %v1242
    %v1308 = vunpack.c.h.b16 %v1242
    %v1309 = vunpack.c.l.b16 %v1243
    %v1310 = vunpack.c.h.b16 %v1243
    %v1311 = vunpack.c.l.b16 %v1244
    %v1312 = vunpack.c.h.b16 %v1244
    %v1313 = vunpack.c.l.b16 %v1245
    %v1314 = vunpack.c.h.b16 %v1245
    %v1315 = vunpack.c.l.b16 %v1246
    %v1316 = vunpack.c.h.b16 %v1246
    %v1317 = vunpack.c.l.b16 %v1247
    %v1318 = vunpack.c.h.b16 %v1247
    %v1319 = vunpack.c.l.b16 %v1248
    %v1320 = vunpack.c.h.b16 %v1248
    %v1321 = vunpack.c.l.b16 %v1249
    %v1322 = vunpack.c.h.b16 %v1249
    %v1323 = vunpack.c.l.b16 %v1250
    %v1324 = vunpack.c.h.b16 %v1250
    %v1325 = vunpack.c.l.b16 %v1251
    %v1326 = vunpack.c.h.b16 %v1251
    %v1327 = vunpack.c.l.b16 %v1252
    %v1328 = vunpack.c.h.b16 %v1252
    %v1329 = vunpack.c.l.b16 %v1253
    %v1330 = vunpack.c.h.b16 %v1253
    %v1331 = vunpack.c.l.b16 %v1254
    %v1332 = vunpack.c.h.b16 %v1254
    %v1333 = vunpack.c.l.b16 %v1255
    %v1334 = vunpack.c.h.b16 %v1255
    %v1335 = vunpack.c.l.b16 %v1256
    %v1336 = vunpack.c.h.b16 %v1256
    %v1337 = vunpack.c.l.b16 %v1257
    %v1338 = vunpack.c.h.b16 %v1257
    %v1339 = vunpack.c.l.b16 %v1258
    %v1340 = vunpack.c.h.b16 %v1258
    %v1341 = vunpack.c.l.b16 %v1259
    %v1342 = vunpack.c.h.b16 %v1259
    %v1343 = vunpack.c.l.b16 %v1260
    %v1344 = vunpack.c.h.b16 %v1260
    %v1345 = vunpack.c.l.b16 %v1261
    %v1346 = vunpack.c.h.b16 %v1261
    %v1347 = vunpack.c.l.b16 %v1262
    %v1348 = vunpack.c.h.b16 %v1262
    %v1349 = vunpack.c.l.b16 %v1263
    %v1350 = vunpack.c.h.b16 %v1263
    %v1351 = vunpack.c.l.b16 %v1264
    %v1352 = vunpack.c.h.b16 %v1264
    %v1353 = vunpack.c.l.b16 %v1265
    %v1354 = vunpack.c.h.b16 %v1265
    %v1355 = vunpack.c.l.b16 %v1266
    %v1356 = vunpack.c.h.b16 %v1266
    %v1357 = vunpack.c.l.b16 %v1267
    %v1358 = vunpack.c.h.b16 %v1267
    %v1359 = vunpack.c.l.b16 %v1268
    %v1360 = vunpack.c.h.b16 %v1268
    %v1361 = vunpack.c.l.b16 %v1269
    %v1362 = vunpack.c.h.b16 %v1269
    %v1363 = vunpack.c.l.b16 %v1270
    %v1364 = vunpack.c.h.b16 %v1270
    %v1365 = vunpack.c.l.b16 %v1271
    %v1366 = vunpack.c.h.b16 %v1271
    %v1367 = vunpack.c.l.b16 %v1272
    %v1368 = vunpack.c.h.b16 %v1272
    %v1369 = vpack.c.b16 %v1305, %v1305
    %v1370 = vpack.c.b16 %v1306, %v1306
    %v1371 = vpack.c.b16 %v1307, %v1307
    %v1372 = vpack.c.b16 %v1308, %v1308
    %v1373 = vpack.c.b16 %v1309, %v1309
    %v1374 = vpack.c.b16 %v1310, %v1310
    %v1375 = vpack.c.b16 %v1311, %v1311
    %v1376 = vpack.c.b16 %v1312, %v1312
    %v1377 = vpack.c.b16 %v1313, %v1313
    %v1378 = vpack.c.b16 %v1314, %v1314
    %v1379 = vpack.c.b16 %v1315, %v1315
    %v1380 = vpack.c.b16 %v1316, %v1316
    %v1381 = vpack.c.b16 %v1317, %v1317
    %v1382 = vpack.c.b16 %v1318, %v1318
    %v1383 = vpack.c.b16 %v1319, %v1319
    %v1384 = vpack.c.b16 %v1320, %v1320
    %v1385 = vpack.c.b16 %v1321, %v1321
    %v1386 = vpack.c.b16 %v1322, %v1322
    %v1387 = vpack.c.b16 %v1323, %v1323
    %v1388 = vpack.c.b16 %v1324, %v1324
    %v1389 = vpack.c.b16 %v1325, %v1325
    %v1390 = vpack.c.b16 %v1326, %v1326
    %v1391 = vpack.c.b16 %v1327, %v1327
    %v1392 = vpack.c.b16 %v1328, %v1328
    %v1393 = vpack.c.b16 %v1329, %v1329
    %v1394 = vpack.c.b16 %v1330, %v1330
    %v1395 = vpack.c.b16 %v1331, %v1331
    %v1396 = vpack.c.b16 %v1332, %v1332
    %v1397 = vpack.c.b16 %v1333, %v1333
    %v1398 = vpack.c.b16 %v1334, %v1334
    %v1399 = vpack.c.b16 %v1335, %v1335
    %v1400 = vpack.c.b16 %v1336, %v1336
    %v1401 = vpack.c.b16 %v1337, %v1337
    %v1402 = vpack.c.b16 %v1338, %v1338
    %v1403 = vpack.c.b16 %v1339, %v1339
    %v1404 = vpack.c.b16 %v1340, %v1340
    %v1405 = vpack.c.b16 %v1341, %v1341
    %v1406 = vpack.c.b16 %v1342, %v1342
    %v1407 = vpack.c.b16 %v1343, %v1343
    %v1408 = vpack.c.b16 %v1344, %v1344
    %v1409 = vpack.c.b16 %v1345, %v1345
    %v1410 = vpack.c.b16 %v1346, %v1346
    %v1411 = vpack.c.b16 %v1347, %v1347
    %v1412 = vpack.c.b16 %v1348, %v1348
    %v1413 = vpack.c.b16 %v1349, %v1349
    %v1414 = vpack.c.b16 %v1350, %v1350
    %v1415 = vpack.c.b16 %v1351, %v1351
    %v1416 = vpack.c.b16 %v1352, %v1352
    %v1417 = vpack.c.b16 %v1353, %v1353
    %v1418 = vpack.c.b16 %v1354, %v1354
    %v1419 = vpack.c.b16 %v1355, %v1355
    %v1420 = vpack.c.b16 %v1356, %v1356
    %v1421 = vpack.c.b16 %v1357, %v1357
    %v1422 = vpack.c.b16 %v1358, %v1358
    %v1423 = vpack.c.b16 %v1359, %v1359
    %v1424 = vpack.c.b16 %v1360, %v1360
    %v1425 = vpack.c.b16 %v1361, %v1361
    %v1426 = vpack.c.b16 %v1362, %v1362
    %v1427 = vpack.c.b16 %v1363, %v1363
    %v1428 = vpack.c.b16 %v1364, %v1364
    %v1429 = vpack.c.b16 %v1365, %v1365
    %v1430 = vpack.c.b16 %v1366, %v1366
    %v1431 = vpack.c.b16 %v1367, %v1367
    %v1432 = vpack.c.b16 %v1368, %v1368
    %1433 = vrot.lane.b32.xlu0 %v1369, 6
    %v1434 = vpop.permute.xlu0 %1433
    %1435 = vrot.lane.b32.xlu0 %v1370, 6
    %v1436 = vpop.permute.xlu0 %1435
    %1437 = vrot.lane.b32.xlu0 %v1371, 6
    %v1438 = vpop.permute.xlu0 %1437
    %1439 = vrot.lane.b32.xlu0 %v1372, 6
    %v1440 = vpop.permute.xlu0 %1439
    %1441 = vrot.lane.b32.xlu0 %v1373, 6
    %v1442 = vpop.permute.xlu0 %1441
    %1443 = vrot.lane.b32.xlu0 %v1374, 6
    %v1444 = vpop.permute.xlu0 %1443
    %1445 = vrot.lane.b32.xlu0 %v1375, 6
    %v1446 = vpop.permute.xlu0 %1445
    %1447 = vrot.lane.b32.xlu0 %v1376, 6
    %v1448 = vpop.permute.xlu0 %1447
    %1449 = vrot.lane.b32.xlu0 %v1377, 6
    %v1450 = vpop.permute.xlu0 %1449
    %1451 = vrot.lane.b32.xlu0 %v1378, 6
    %v1452 = vpop.permute.xlu0 %1451
    %1453 = vrot.lane.b32.xlu0 %v1379, 6
    %v1454 = vpop.permute.xlu0 %1453
    %1455 = vrot.lane.b32.xlu0 %v1380, 6
    %v1456 = vpop.permute.xlu0 %1455
    %1457 = vrot.lane.b32.xlu0 %v1381, 6
    %v1458 = vpop.permute.xlu0 %1457
    %1459 = vrot.lane.b32.xlu0 %v1382, 6
    %v1460 = vpop.permute.xlu0 %1459
    %1461 = vrot.lane.b32.xlu0 %v1383, 6
    %v1462 = vpop.permute.xlu0 %1461
    %1463 = vrot.lane.b32.xlu0 %v1384, 6
    %v1464 = vpop.permute.xlu0 %1463
    %1465 = vrot.lane.b32.xlu0 %v1385, 6
    %v1466 = vpop.permute.xlu0 %1465
    %1467 = vrot.lane.b32.xlu0 %v1386, 6
    %v1468 = vpop.permute.xlu0 %1467
    %1469 = vrot.lane.b32.xlu0 %v1387, 6
    %v1470 = vpop.permute.xlu0 %1469
    %1471 = vrot.lane.b32.xlu0 %v1388, 6
    %v1472 = vpop.permute.xlu0 %1471
    %1473 = vrot.lane.b32.xlu0 %v1389, 6
    %v1474 = vpop.permute.xlu0 %1473
    %1475 = vrot.lane.b32.xlu0 %v1390, 6
    %v1476 = vpop.permute.xlu0 %1475
    %1477 = vrot.lane.b32.xlu0 %v1391, 6
    %v1478 = vpop.permute.xlu0 %1477
    %1479 = vrot.lane.b32.xlu0 %v1392, 6
    %v1480 = vpop.permute.xlu0 %1479
    %1481 = vrot.lane.b32.xlu0 %v1393, 6
    %v1482 = vpop.permute.xlu0 %1481
    %1483 = vrot.lane.b32.xlu0 %v1394, 6
    %v1484 = vpop.permute.xlu0 %1483
    %1485 = vrot.lane.b32.xlu0 %v1395, 6
    %v1486 = vpop.permute.xlu0 %1485
    %1487 = vrot.lane.b32.xlu0 %v1396, 6
    %v1488 = vpop.permute.xlu0 %1487
    %1489 = vrot.lane.b32.xlu0 %v1397, 6
    %v1490 = vpop.permute.xlu0 %1489
    %1491 = vrot.lane.b32.xlu0 %v1398, 6
    %v1492 = vpop.permute.xlu0 %1491
    %1493 = vrot.lane.b32.xlu0 %v1399, 6
    %v1494 = vpop.permute.xlu0 %1493
    %1495 = vrot.lane.b32.xlu0 %v1400, 6
    %v1496 = vpop.permute.xlu0 %1495
    %1497 = vrot.lane.b32.xlu0 %v1401, 6
    %v1498 = vpop.permute.xlu0 %1497
    %1499 = vrot.lane.b32.xlu0 %v1402, 6
    %v1500 = vpop.permute.xlu0 %1499
    %1501 = vrot.lane.b32.xlu0 %v1403, 6
    %v1502 = vpop.permute.xlu0 %1501
    %1503 = vrot.lane.b32.xlu0 %v1404, 6
    %v1504 = vpop.permute.xlu0 %1503
    %1505 = vrot.lane.b32.xlu0 %v1405, 6
    %v1506 = vpop.permute.xlu0 %1505
    %1507 = vrot.lane.b32.xlu0 %v1406, 6
    %v1508 = vpop.permute.xlu0 %1507
    %1509 = vrot.lane.b32.xlu0 %v1407, 6
    %v1510 = vpop.permute.xlu0 %1509
    %1511 = vrot.lane.b32.xlu0 %v1408, 6
    %v1512 = vpop.permute.xlu0 %1511
    %1513 = vrot.lane.b32.xlu0 %v1409, 6
    %v1514 = vpop.permute.xlu0 %1513
    %1515 = vrot.lane.b32.xlu0 %v1410, 6
    %v1516 = vpop.permute.xlu0 %1515
    %1517 = vrot.lane.b32.xlu0 %v1411, 6
    %v1518 = vpop.permute.xlu0 %1517
    %1519 = vrot.lane.b32.xlu0 %v1412, 6
    %v1520 = vpop.permute.xlu0 %1519
    %1521 = vrot.lane.b32.xlu0 %v1413, 6
    %v1522 = vpop.permute.xlu0 %1521
    %1523 = vrot.lane.b32.xlu0 %v1414, 6
    %v1524 = vpop.permute.xlu0 %1523
    %1525 = vrot.lane.b32.xlu0 %v1415, 6
    %v1526 = vpop.permute.xlu0 %1525
    %1527 = vrot.lane.b32.xlu0 %v1416, 6
    %v1528 = vpop.permute.xlu0 %1527
    %1529 = vrot.lane.b32.xlu0 %v1417, 6
    %v1530 = vpop.permute.xlu0 %1529
    %1531 = vrot.lane.b32.xlu0 %v1418, 6
    %v1532 = vpop.permute.xlu0 %1531
    %1533 = vrot.lane.b32.xlu0 %v1419, 6
    %v1534 = vpop.permute.xlu0 %1533
    %1535 = vrot.lane.b32.xlu0 %v1420, 6
    %v1536 = vpop.permute.xlu0 %1535
    %1537 = vrot.lane.b32.xlu0 %v1421, 6
    %v1538 = vpop.permute.xlu0 %1537
    %1539 = vrot.lane.b32.xlu0 %v1422, 6
    %v1540 = vpop.permute.xlu0 %1539
    %1541 = vrot.lane.b32.xlu0 %v1423, 6
    %v1542 = vpop.permute.xlu0 %1541
    %1543 = vrot.lane.b32.xlu0 %v1424, 6
    %v1544 = vpop.permute.xlu0 %1543
    %1545 = vrot.lane.b32.xlu0 %v1425, 6
    %v1546 = vpop.permute.xlu0 %1545
    %1547 = vrot.lane.b32.xlu0 %v1426, 6
    %v1548 = vpop.permute.xlu0 %1547
    %1549 = vrot.lane.b32.xlu0 %v1427, 6
    %v1550 = vpop.permute.xlu0 %1549
    %1551 = vrot.lane.b32.xlu0 %v1428, 6
    %v1552 = vpop.permute.xlu0 %1551
    %1553 = vrot.lane.b32.xlu0 %v1429, 6
    %v1554 = vpop.permute.xlu0 %1553
    %1555 = vrot.lane.b32.xlu0 %v1430, 6
    %v1556 = vpop.permute.xlu0 %1555
    %1557 = vrot.lane.b32.xlu0 %v1431, 6
    %v1558 = vpop.permute.xlu0 %1557
    %1559 = vrot.lane.b32.xlu0 %v1432, 6
    %v1560 = vpop.permute.xlu0 %1559
    %vm1625 = vcmask 68656
    %1626 = vst.msk [vmem:[#allocation3] sm:$0xf] %vm1625, %v1434
    %1627 = vst.msk [vmem:[#allocation3 + $0x4] sm:$0xf] %vm1625, %v1436
    %1628 = vst.msk [vmem:[#allocation3 + $0x8] sm:$0xf] %vm1625, %v1438
    %1629 = vst.msk [vmem:[#allocation3 + $0xc] sm:$0xf] %vm1625, %v1440
    %1630 = vst.msk [vmem:[#allocation3 + $0x10] sm:$0xf] %vm1625, %v1442
    %1631 = vst.msk [vmem:[#allocation3 + $0x14] sm:$0xf] %vm1625, %v1444
    %1632 = vst.msk [vmem:[#allocation3 + $0x18] sm:$0xf] %vm1625, %v1446
    %1633 = vst.msk [vmem:[#allocation3 + $0x1c] sm:$0xf] %vm1625, %v1448
    %1634 = vst.msk [vmem:[#allocation3 + $0x20] sm:$0xf] %vm1625, %v1450
    %1635 = vst.msk [vmem:[#allocation3 + $0x24] sm:$0xf] %vm1625, %v1452
    %1636 = vst.msk [vmem:[#allocation3 + $0x28] sm:$0xf] %vm1625, %v1454
    %1637 = vst.msk [vmem:[#allocation3 + $0x2c] sm:$0xf] %vm1625, %v1456
    %1638 = vst.msk [vmem:[#allocation3 + $0x30] sm:$0xf] %vm1625, %v1458
    %1639 = vst.msk [vmem:[#allocation3 + $0x34] sm:$0xf] %vm1625, %v1460
    %1640 = vst.msk [vmem:[#allocation3 + $0x38] sm:$0xf] %vm1625, %v1462
    %1641 = vst.msk [vmem:[#allocation3 + $0x3c] sm:$0xf] %vm1625, %v1464
    %1642 = vst.msk [vmem:[#allocation3 + $0x40] sm:$0xf] %vm1625, %v1466
    %1643 = vst.msk [vmem:[#allocation3 + $0x44] sm:$0xf] %vm1625, %v1468
    %1644 = vst.msk [vmem:[#allocation3 + $0x48] sm:$0xf] %vm1625, %v1470
    %1645 = vst.msk [vmem:[#allocation3 + $0x4c] sm:$0xf] %vm1625, %v1472
    %1646 = vst.msk [vmem:[#allocation3 + $0x50] sm:$0xf] %vm1625, %v1474
    %1647 = vst.msk [vmem:[#allocation3 + $0x54] sm:$0xf] %vm1625, %v1476
    %1648 = vst.msk [vmem:[#allocation3 + $0x58] sm:$0xf] %vm1625, %v1478
    %1649 = vst.msk [vmem:[#allocation3 + $0x5c] sm:$0xf] %vm1625, %v1480
    %1650 = vst.msk [vmem:[#allocation3 + $0x60] sm:$0xf] %vm1625, %v1482
    %1651 = vst.msk [vmem:[#allocation3 + $0x64] sm:$0xf] %vm1625, %v1484
    %1652 = vst.msk [vmem:[#allocation3 + $0x68] sm:$0xf] %vm1625, %v1486
    %1653 = vst.msk [vmem:[#allocation3 + $0x6c] sm:$0xf] %vm1625, %v1488
    %1654 = vst.msk [vmem:[#allocation3 + $0x70] sm:$0xf] %vm1625, %v1490
    %1655 = vst.msk [vmem:[#allocation3 + $0x74] sm:$0xf] %vm1625, %v1492
    %1656 = vst.msk [vmem:[#allocation3 + $0x78] sm:$0xf] %vm1625, %v1494
    %1657 = vst.msk [vmem:[#allocation3 + $0x7c] sm:$0xf] %vm1625, %v1496
    %1658 = vst.msk [vmem:[#allocation3 + $0x80] sm:$0xf] %vm1625, %v1498
    %1659 = vst.msk [vmem:[#allocation3 + $0x84] sm:$0xf] %vm1625, %v1500
    %1660 = vst.msk [vmem:[#allocation3 + $0x88] sm:$0xf] %vm1625, %v1502
    %1661 = vst.msk [vmem:[#allocation3 + $0x8c] sm:$0xf] %vm1625, %v1504
    %1662 = vst.msk [vmem:[#allocation3 + $0x90] sm:$0xf] %vm1625, %v1506
    %1663 = vst.msk [vmem:[#allocation3 + $0x94] sm:$0xf] %vm1625, %v1508
    %1664 = vst.msk [vmem:[#allocation3 + $0x98] sm:$0xf] %vm1625, %v1510
    %1665 = vst.msk [vmem:[#allocation3 + $0x9c] sm:$0xf] %vm1625, %v1512
    %1666 = vst.msk [vmem:[#allocation3 + $0xa0] sm:$0xf] %vm1625, %v1514
    %1667 = vst.msk [vmem:[#allocation3 + $0xa4] sm:$0xf] %vm1625, %v1516
    %1668 = vst.msk [vmem:[#allocation3 + $0xa8] sm:$0xf] %vm1625, %v1518
    %1669 = vst.msk [vmem:[#allocation3 + $0xac] sm:$0xf] %vm1625, %v1520
    %1670 = vst.msk [vmem:[#allocation3 + $0xb0] sm:$0xf] %vm1625, %v1522
    %1671 = vst.msk [vmem:[#allocation3 + $0xb4] sm:$0xf] %vm1625, %v1524
    %1672 = vst.msk [vmem:[#allocation3 + $0xb8] sm:$0xf] %vm1625, %v1526
    %1673 = vst.msk [vmem:[#allocation3 + $0xbc] sm:$0xf] %vm1625, %v1528
    %1674 = vst.msk [vmem:[#allocation3 + $0xc0] sm:$0xf] %vm1625, %v1530
    %1675 = vst.msk [vmem:[#allocation3 + $0xc4] sm:$0xf] %vm1625, %v1532
    %1676 = vst.msk [vmem:[#allocation3 + $0xc8] sm:$0xf] %vm1625, %v1534
    %1677 = vst.msk [vmem:[#allocation3 + $0xcc] sm:$0xf] %vm1625, %v1536
    %1678 = vst.msk [vmem:[#allocation3 + $0xd0] sm:$0xf] %vm1625, %v1538
    %1679 = vst.msk [vmem:[#allocation3 + $0xd4] sm:$0xf] %vm1625, %v1540
    %1680 = vst.msk [vmem:[#allocation3 + $0xd8] sm:$0xf] %vm1625, %v1542
    %1681 = vst.msk [vmem:[#allocation3 + $0xdc] sm:$0xf] %vm1625, %v1544
    %1682 = vst.msk [vmem:[#allocation3 + $0xe0] sm:$0xf] %vm1625, %v1546
    %1683 = vst.msk [vmem:[#allocation3 + $0xe4] sm:$0xf] %vm1625, %v1548
    %1684 = vst.msk [vmem:[#allocation3 + $0xe8] sm:$0xf] %vm1625, %v1550
    %1685 = vst.msk [vmem:[#allocation3 + $0xec] sm:$0xf] %vm1625, %v1552
    %1686 = vst.msk [vmem:[#allocation3 + $0xf0] sm:$0xf] %vm1625, %v1554
    %1687 = vst.msk [vmem:[#allocation3 + $0xf4] sm:$0xf] %vm1625, %v1556
    %1688 = vst.msk [vmem:[#allocation3 + $0xf8] sm:$0xf] %vm1625, %v1558
    %1689 = vst.msk [vmem:[#allocation3 + $0xfc] sm:$0xf] %vm1625, %v1560
    %v1690 = vld [vmem:[%s214] sm:$0xff]
    %v1691 = vld [vmem:[%s214 + $0x8] sm:$0xff]
    %v1692 = vld [vmem:[%s214 + $0x18] sm:$0xff]
    %v1693 = vld [vmem:[%s214 + $0x20] sm:$0xff]
    %v1694 = vld [vmem:[%s214 + $0x30] sm:$0xff]
    %v1695 = vld [vmem:[%s214 + $0x38] sm:$0xff]
    %v1696 = vld [vmem:[%s214 + $0x48] sm:$0xff]
    %v1697 = vld [vmem:[%s214 + $0x50] sm:$0xff]
    %v1698 = vld [vmem:[%s214 + $0x60] sm:$0xff]
    %v1699 = vld [vmem:[%s214 + $0x68] sm:$0xff]
    %v1700 = vld [vmem:[%s214 + $0x78] sm:$0xff]
    %v1701 = vld [vmem:[%s214 + $0x80] sm:$0xff]
    %v1702 = vld [vmem:[%s214 + $0x90] sm:$0xff]
    %v1703 = vld [vmem:[%s214 + $0x98] sm:$0xff]
    %v1704 = vld [vmem:[%s214 + $0xa8] sm:$0xff]
    %v1705 = vld [vmem:[%s214 + $0xb0] sm:$0xff]
    %v1706 = vld [vmem:[%s214 + $0xc0] sm:$0xff]
    %v1707 = vld [vmem:[%s214 + $0xc8] sm:$0xff]
    %v1708 = vld [vmem:[%s214 + $0xd8] sm:$0xff]
    %v1709 = vld [vmem:[%s214 + $0xe0] sm:$0xff]
    %v1710 = vld [vmem:[%s214 + $0xf0] sm:$0xff]
    %v1711 = vld [vmem:[%s214 + $0xf8] sm:$0xff]
    %v1712 = vld [vmem:[%s214 + $0x108] sm:$0xff]
    %v1713 = vld [vmem:[%s214 + $0x110] sm:$0xff]
    %v1714 = vld [vmem:[%s214 + $0x120] sm:$0xff]
    %v1715 = vld [vmem:[%s214 + $0x128] sm:$0xff]
    %v1716 = vld [vmem:[%s214 + $0x138] sm:$0xff]
    %v1717 = vld [vmem:[%s214 + $0x140] sm:$0xff]
    %v1718 = vld [vmem:[%s214 + $0x150] sm:$0xff]
    %v1719 = vld [vmem:[%s214 + $0x158] sm:$0xff]
    %v1720 = vld [vmem:[%s214 + $0x168] sm:$0xff]
    %v1721 = vld [vmem:[%s214 + $0x170] sm:$0xff]
    %v1722 = vld [vmem:[%s214 + $0x1b0] sm:$0xff]
    %v1723 = vld [vmem:[%s214 + $0x1b8] sm:$0xff]
    %v1724 = vld [vmem:[%s214 + $0x1c8] sm:$0xff]
    %v1725 = vld [vmem:[%s214 + $0x1d0] sm:$0xff]
    %v1726 = vld [vmem:[%s214 + $0x1e0] sm:$0xff]
    %v1727 = vld [vmem:[%s214 + $0x1e8] sm:$0xff]
    %v1728 = vld [vmem:[%s214 + $0x1f8] sm:$0xff]
    %v1729 = vld [vmem:[%s214 + $0x200] sm:$0xff]
    %v1730 = vld [vmem:[%s214 + $0x210] sm:$0xff]
    %v1731 = vld [vmem:[%s214 + $0x218] sm:$0xff]
    %v1732 = vld [vmem:[%s214 + $0x228] sm:$0xff]
    %v1733 = vld [vmem:[%s214 + $0x230] sm:$0xff]
    %v1734 = vld [vmem:[%s214 + $0x240] sm:$0xff]
    %v1735 = vld [vmem:[%s214 + $0x248] sm:$0xff]
    %v1736 = vld [vmem:[%s214 + $0x258] sm:$0xff]
    %v1737 = vld [vmem:[%s214 + $0x260] sm:$0xff]
    %v1738 = vld [vmem:[%s214 + $0x270] sm:$0xff]
    %v1739 = vld [vmem:[%s214 + $0x278] sm:$0xff]
    %v1740 = vld [vmem:[%s214 + $0x288] sm:$0xff]
    %v1741 = vld [vmem:[%s214 + $0x290] sm:$0xff]
    %v1742 = vld [vmem:[%s214 + $0x2a0] sm:$0xff]
    %v1743 = vld [vmem:[%s214 + $0x2a8] sm:$0xff]
    %v1744 = vld [vmem:[%s214 + $0x2b8] sm:$0xff]
    %v1745 = vld [vmem:[%s214 + $0x2c0] sm:$0xff]
    %v1746 = vld [vmem:[%s214 + $0x2d0] sm:$0xff]
    %v1747 = vld [vmem:[%s214 + $0x2d8] sm:$0xff]
    %v1748 = vld [vmem:[%s214 + $0x2e8] sm:$0xff]
    %v1749 = vld [vmem:[%s214 + $0x2f0] sm:$0xff]
    %v1750 = vld [vmem:[%s214 + $0x300] sm:$0xff]
    %v1751 = vld [vmem:[%s214 + $0x308] sm:$0xff]
    %v1752 = vld [vmem:[%s214 + $0x318] sm:$0xff]
    %v1753 = vld [vmem:[%s214 + $0x320] sm:$0xff]
    %v1754 = vpack.c.bf16 %v1691, %v1690
    %v1755 = vpack.c.bf16 %v1693, %v1692
    %v1756 = vpack.c.bf16 %v1695, %v1694
    %v1757 = vpack.c.bf16 %v1697, %v1696
    %v1758 = vpack.c.bf16 %v1699, %v1698
    %v1759 = vpack.c.bf16 %v1701, %v1700
    %v1760 = vpack.c.bf16 %v1703, %v1702
    %v1761 = vpack.c.bf16 %v1705, %v1704
    %v1762 = vpack.c.bf16 %v1707, %v1706
    %v1763 = vpack.c.bf16 %v1709, %v1708
    %v1764 = vpack.c.bf16 %v1711, %v1710
    %v1765 = vpack.c.bf16 %v1713, %v1712
    %v1766 = vpack.c.bf16 %v1715, %v1714
    %v1767 = vpack.c.bf16 %v1717, %v1716
    %v1768 = vpack.c.bf16 %v1719, %v1718
    %v1769 = vpack.c.bf16 %v1721, %v1720
    %v1770 = vpack.c.bf16 %v1723, %v1722
    %v1771 = vpack.c.bf16 %v1725, %v1724
    %v1772 = vpack.c.bf16 %v1727, %v1726
    %v1773 = vpack.c.bf16 %v1729, %v1728
    %v1774 = vpack.c.bf16 %v1731, %v1730
    %v1775 = vpack.c.bf16 %v1733, %v1732
    %v1776 = vpack.c.bf16 %v1735, %v1734
    %v1777 = vpack.c.bf16 %v1737, %v1736
    %v1778 = vpack.c.bf16 %v1739, %v1738
    %v1779 = vpack.c.bf16 %v1741, %v1740
    %v1780 = vpack.c.bf16 %v1743, %v1742
    %v1781 = vpack.c.bf16 %v1745, %v1744
    %v1782 = vpack.c.bf16 %v1747, %v1746
    %v1783 = vpack.c.bf16 %v1749, %v1748
    %v1784 = vpack.c.bf16 %v1751, %v1750
    %v1785 = vpack.c.bf16 %v1753, %v1752
    %v1818 = vunpack.c.l.b16 %v1754
    %v1819 = vunpack.c.h.b16 %v1754
    %v1820 = vunpack.c.l.b16 %v1755
    %v1821 = vunpack.c.h.b16 %v1755
    %v1822 = vunpack.c.l.b16 %v1756
    %v1823 = vunpack.c.h.b16 %v1756
    %v1824 = vunpack.c.l.b16 %v1757
    %v1825 = vunpack.c.h.b16 %v1757
    %v1826 = vunpack.c.l.b16 %v1758
    %v1827 = vunpack.c.h.b16 %v1758
    %v1828 = vunpack.c.l.b16 %v1759
    %v1829 = vunpack.c.h.b16 %v1759
    %v1830 = vunpack.c.l.b16 %v1760
    %v1831 = vunpack.c.h.b16 %v1760
    %v1832 = vunpack.c.l.b16 %v1761
    %v1833 = vunpack.c.h.b16 %v1761
    %v1834 = vunpack.c.l.b16 %v1762
    %v1835 = vunpack.c.h.b16 %v1762
    %v1836 = vunpack.c.l.b16 %v1763
    %v1837 = vunpack.c.h.b16 %v1763
    %v1838 = vunpack.c.l.b16 %v1764
    %v1839 = vunpack.c.h.b16 %v1764
    %v1840 = vunpack.c.l.b16 %v1765
    %v1841 = vunpack.c.h.b16 %v1765
    %v1842 = vunpack.c.l.b16 %v1766
    %v1843 = vunpack.c.h.b16 %v1766
    %v1844 = vunpack.c.l.b16 %v1767
    %v1845 = vunpack.c.h.b16 %v1767
    %v1846 = vunpack.c.l.b16 %v1768
    %v1847 = vunpack.c.h.b16 %v1768
    %v1848 = vunpack.c.l.b16 %v1769
    %v1849 = vunpack.c.h.b16 %v1769
    %v1850 = vunpack.c.l.b16 %v1770
    %v1851 = vunpack.c.h.b16 %v1770
    %v1852 = vunpack.c.l.b16 %v1771
    %v1853 = vunpack.c.h.b16 %v1771
    %v1854 = vunpack.c.l.b16 %v1772
    %v1855 = vunpack.c.h.b16 %v1772
    %v1856 = vunpack.c.l.b16 %v1773
    %v1857 = vunpack.c.h.b16 %v1773
    %v1858 = vunpack.c.l.b16 %v1774
    %v1859 = vunpack.c.h.b16 %v1774
    %v1860 = vunpack.c.l.b16 %v1775
    %v1861 = vunpack.c.h.b16 %v1775
    %v1862 = vunpack.c.l.b16 %v1776
    %v1863 = vunpack.c.h.b16 %v1776
    %v1864 = vunpack.c.l.b16 %v1777
    %v1865 = vunpack.c.h.b16 %v1777
    %v1866 = vunpack.c.l.b16 %v1778
    %v1867 = vunpack.c.h.b16 %v1778
    %v1868 = vunpack.c.l.b16 %v1779
    %v1869 = vunpack.c.h.b16 %v1779
    %v1870 = vunpack.c.l.b16 %v1780
    %v1871 = vunpack.c.h.b16 %v1780
    %v1872 = vunpack.c.l.b16 %v1781
    %v1873 = vunpack.c.h.b16 %v1781
    %v1874 = vunpack.c.l.b16 %v1782
    %v1875 = vunpack.c.h.b16 %v1782
    %v1876 = vunpack.c.l.b16 %v1783
    %v1877 = vunpack.c.h.b16 %v1783
    %v1878 = vunpack.c.l.b16 %v1784
    %v1879 = vunpack.c.h.b16 %v1784
    %v1880 = vunpack.c.l.b16 %v1785
    %v1881 = vunpack.c.h.b16 %v1785
    %v1882 = vpack.c.b16 %v1818, %v1818
    %v1883 = vpack.c.b16 %v1819, %v1819
    %v1884 = vpack.c.b16 %v1820, %v1820
    %v1885 = vpack.c.b16 %v1821, %v1821
    %v1886 = vpack.c.b16 %v1822, %v1822
    %v1887 = vpack.c.b16 %v1823, %v1823
    %v1888 = vpack.c.b16 %v1824, %v1824
    %v1889 = vpack.c.b16 %v1825, %v1825
    %v1890 = vpack.c.b16 %v1826, %v1826
    %v1891 = vpack.c.b16 %v1827, %v1827
    %v1892 = vpack.c.b16 %v1828, %v1828
    %v1893 = vpack.c.b16 %v1829, %v1829
    %v1894 = vpack.c.b16 %v1830, %v1830
    %v1895 = vpack.c.b16 %v1831, %v1831
    %v1896 = vpack.c.b16 %v1832, %v1832
    %v1897 = vpack.c.b16 %v1833, %v1833
    %v1898 = vpack.c.b16 %v1834, %v1834
    %v1899 = vpack.c.b16 %v1835, %v1835
    %v1900 = vpack.c.b16 %v1836, %v1836
    %v1901 = vpack.c.b16 %v1837, %v1837
    %v1902 = vpack.c.b16 %v1838, %v1838
    %v1903 = vpack.c.b16 %v1839, %v1839
    %v1904 = vpack.c.b16 %v1840, %v1840
    %v1905 = vpack.c.b16 %v1841, %v1841
    %v1906 = vpack.c.b16 %v1842, %v1842
    %v1907 = vpack.c.b16 %v1843, %v1843
    %v1908 = vpack.c.b16 %v1844, %v1844
    %v1909 = vpack.c.b16 %v1845, %v1845
    %v1910 = vpack.c.b16 %v1846, %v1846
    %v1911 = vpack.c.b16 %v1847, %v1847
    %v1912 = vpack.c.b16 %v1848, %v1848
    %v1913 = vpack.c.b16 %v1849, %v1849
    %v1914 = vpack.c.b16 %v1850, %v1850
    %v1915 = vpack.c.b16 %v1851, %v1851
    %v1916 = vpack.c.b16 %v1852, %v1852
    %v1917 = vpack.c.b16 %v1853, %v1853
    %v1918 = vpack.c.b16 %v1854, %v1854
    %v1919 = vpack.c.b16 %v1855, %v1855
    %v1920 = vpack.c.b16 %v1856, %v1856
    %v1921 = vpack.c.b16 %v1857, %v1857
    %v1922 = vpack.c.b16 %v1858, %v1858
    %v1923 = vpack.c.b16 %v1859, %v1859
    %v1924 = vpack.c.b16 %v1860, %v1860
    %v1925 = vpack.c.b16 %v1861, %v1861
    %v1926 = vpack.c.b16 %v1862, %v1862
    %v1927 = vpack.c.b16 %v1863, %v1863
    %v1928 = vpack.c.b16 %v1864, %v1864
    %v1929 = vpack.c.b16 %v1865, %v1865
    %v1930 = vpack.c.b16 %v1866, %v1866
    %v1931 = vpack.c.b16 %v1867, %v1867
    %v1932 = vpack.c.b16 %v1868, %v1868
    %v1933 = vpack.c.b16 %v1869, %v1869
    %v1934 = vpack.c.b16 %v1870, %v1870
    %v1935 = vpack.c.b16 %v1871, %v1871
    %v1936 = vpack.c.b16 %v1872, %v1872
    %v1937 = vpack.c.b16 %v1873, %v1873
    %v1938 = vpack.c.b16 %v1874, %v1874
    %v1939 = vpack.c.b16 %v1875, %v1875
    %v1940 = vpack.c.b16 %v1876, %v1876
    %v1941 = vpack.c.b16 %v1877, %v1877
    %v1942 = vpack.c.b16 %v1878, %v1878
    %v1943 = vpack.c.b16 %v1879, %v1879
    %v1944 = vpack.c.b16 %v1880, %v1880
    %v1945 = vpack.c.b16 %v1881, %v1881
    %1946 = vrot.lane.b32.xlu0 %v1882, 9
    %v1947 = vpop.permute.xlu0 %1946
    %1948 = vrot.lane.b32.xlu0 %v1883, 9
    %v1949 = vpop.permute.xlu0 %1948
    %1950 = vrot.lane.b32.xlu0 %v1884, 9
    %v1951 = vpop.permute.xlu0 %1950
    %1952 = vrot.lane.b32.xlu0 %v1885, 9
    %v1953 = vpop.permute.xlu0 %1952
    %1954 = vrot.lane.b32.xlu0 %v1886, 9
    %v1955 = vpop.permute.xlu0 %1954
    %1956 = vrot.lane.b32.xlu0 %v1887, 9
    %v1957 = vpop.permute.xlu0 %1956
    %1958 = vrot.lane.b32.xlu0 %v1888, 9
    %v1959 = vpop.permute.xlu0 %1958
    %1960 = vrot.lane.b32.xlu0 %v1889, 9
    %v1961 = vpop.permute.xlu0 %1960
    %1962 = vrot.lane.b32.xlu0 %v1890, 9
    %v1963 = vpop.permute.xlu0 %1962
    %1964 = vrot.lane.b32.xlu0 %v1891, 9
    %v1965 = vpop.permute.xlu0 %1964
    %1966 = vrot.lane.b32.xlu0 %v1892, 9
    %v1967 = vpop.permute.xlu0 %1966
    %1968 = vrot.lane.b32.xlu0 %v1893, 9
    %v1969 = vpop.permute.xlu0 %1968
    %1970 = vrot.lane.b32.xlu0 %v1894, 9
    %v1971 = vpop.permute.xlu0 %1970
    %1972 = vrot.lane.b32.xlu0 %v1895, 9
    %v1973 = vpop.permute.xlu0 %1972
    %1974 = vrot.lane.b32.xlu0 %v1896, 9
    %v1975 = vpop.permute.xlu0 %1974
    %1976 = vrot.lane.b32.xlu0 %v1897, 9
    %v1977 = vpop.permute.xlu0 %1976
    %1978 = vrot.lane.b32.xlu0 %v1898, 9
    %v1979 = vpop.permute.xlu0 %1978
    %1980 = vrot.lane.b32.xlu0 %v1899, 9
    %v1981 = vpop.permute.xlu0 %1980
    %1982 = vrot.lane.b32.xlu0 %v1900, 9
    %v1983 = vpop.permute.xlu0 %1982
    %1984 = vrot.lane.b32.xlu0 %v1901, 9
    %v1985 = vpop.permute.xlu0 %1984
    %1986 = vrot.lane.b32.xlu0 %v1902, 9
    %v1987 = vpop.permute.xlu0 %1986
    %1988 = vrot.lane.b32.xlu0 %v1903, 9
    %v1989 = vpop.permute.xlu0 %1988
    %1990 = vrot.lane.b32.xlu0 %v1904, 9
    %v1991 = vpop.permute.xlu0 %1990
    %1992 = vrot.lane.b32.xlu0 %v1905, 9
    %v1993 = vpop.permute.xlu0 %1992
    %1994 = vrot.lane.b32.xlu0 %v1906, 9
    %v1995 = vpop.permute.xlu0 %1994
    %1996 = vrot.lane.b32.xlu0 %v1907, 9
    %v1997 = vpop.permute.xlu0 %1996
    %1998 = vrot.lane.b32.xlu0 %v1908, 9
    %v1999 = vpop.permute.xlu0 %1998
    %2000 = vrot.lane.b32.xlu0 %v1909, 9
    %v2001 = vpop.permute.xlu0 %2000
    %2002 = vrot.lane.b32.xlu0 %v1910, 9
    %v2003 = vpop.permute.xlu0 %2002
    %2004 = vrot.lane.b32.xlu0 %v1911, 9
    %v2005 = vpop.permute.xlu0 %2004
    %2006 = vrot.lane.b32.xlu0 %v1912, 9
    %v2007 = vpop.permute.xlu0 %2006
    %2008 = vrot.lane.b32.xlu0 %v1913, 9
    %v2009 = vpop.permute.xlu0 %2008
    %2010 = vrot.lane.b32.xlu0 %v1914, 9
    %v2011 = vpop.permute.xlu0 %2010
    %2012 = vrot.lane.b32.xlu0 %v1915, 9
    %v2013 = vpop.permute.xlu0 %2012
    %2014 = vrot.lane.b32.xlu0 %v1916, 9
    %v2015 = vpop.permute.xlu0 %2014
    %2016 = vrot.lane.b32.xlu0 %v1917, 9
    %v2017 = vpop.permute.xlu0 %2016
    %2018 = vrot.lane.b32.xlu0 %v1918, 9
    %v2019 = vpop.permute.xlu0 %2018
    %2020 = vrot.lane.b32.xlu0 %v1919, 9
    %v2021 = vpop.permute.xlu0 %2020
    %2022 = vrot.lane.b32.xlu0 %v1920, 9
    %v2023 = vpop.permute.xlu0 %2022
    %2024 = vrot.lane.b32.xlu0 %v1921, 9
    %v2025 = vpop.permute.xlu0 %2024
    %2026 = vrot.lane.b32.xlu0 %v1922, 9
    %v2027 = vpop.permute.xlu0 %2026
    %2028 = vrot.lane.b32.xlu0 %v1923, 9
    %v2029 = vpop.permute.xlu0 %2028
    %2030 = vrot.lane.b32.xlu0 %v1924, 9
    %v2031 = vpop.permute.xlu0 %2030
    %2032 = vrot.lane.b32.xlu0 %v1925, 9
    %v2033 = vpop.permute.xlu0 %2032
    %2034 = vrot.lane.b32.xlu0 %v1926, 9
    %v2035 = vpop.permute.xlu0 %2034
    %2036 = vrot.lane.b32.xlu0 %v1927, 9
    %v2037 = vpop.permute.xlu0 %2036
    %2038 = vrot.lane.b32.xlu0 %v1928, 9
    %v2039 = vpop.permute.xlu0 %2038
    %2040 = vrot.lane.b32.xlu0 %v1929, 9
    %v2041 = vpop.permute.xlu0 %2040
    %2042 = vrot.lane.b32.xlu0 %v1930, 9
    %v2043 = vpop.permute.xlu0 %2042
    %2044 = vrot.lane.b32.xlu0 %v1931, 9
    %v2045 = vpop.permute.xlu0 %2044
    %2046 = vrot.lane.b32.xlu0 %v1932, 9
    %v2047 = vpop.permute.xlu0 %2046
    %2048 = vrot.lane.b32.xlu0 %v1933, 9
    %v2049 = vpop.permute.xlu0 %2048
    %2050 = vrot.lane.b32.xlu0 %v1934, 9
    %v2051 = vpop.permute.xlu0 %2050
    %2052 = vrot.lane.b32.xlu0 %v1935, 9
    %v2053 = vpop.permute.xlu0 %2052
    %2054 = vrot.lane.b32.xlu0 %v1936, 9
    %v2055 = vpop.permute.xlu0 %2054
    %2056 = vrot.lane.b32.xlu0 %v1937, 9
    %v2057 = vpop.permute.xlu0 %2056
    %2058 = vrot.lane.b32.xlu0 %v1938, 9
    %v2059 = vpop.permute.xlu0 %2058
    %2060 = vrot.lane.b32.xlu0 %v1939, 9
    %v2061 = vpop.permute.xlu0 %2060
    %2062 = vrot.lane.b32.xlu0 %v1940, 9
    %v2063 = vpop.permute.xlu0 %2062
    %2064 = vrot.lane.b32.xlu0 %v1941, 9
    %v2065 = vpop.permute.xlu0 %2064
    %2066 = vrot.lane.b32.xlu0 %v1942, 9
    %v2067 = vpop.permute.xlu0 %2066
    %2068 = vrot.lane.b32.xlu0 %v1943, 9
    %v2069 = vpop.permute.xlu0 %2068
    %2070 = vrot.lane.b32.xlu0 %v1944, 9
    %v2071 = vpop.permute.xlu0 %2070
    %2072 = vrot.lane.b32.xlu0 %v1945, 9
    %v2073 = vpop.permute.xlu0 %2072
    %vm2138 = vcmask 93256
    %2139 = vst.msk [vmem:[#allocation3] sm:$0xf] %vm2138, %v1947
    %2140 = vst.msk [vmem:[#allocation3 + $0x4] sm:$0xf] %vm2138, %v1949
    %2141 = vst.msk [vmem:[#allocation3 + $0x8] sm:$0xf] %vm2138, %v1951
    %2142 = vst.msk [vmem:[#allocation3 + $0xc] sm:$0xf] %vm2138, %v1953
    %2143 = vst.msk [vmem:[#allocation3 + $0x10] sm:$0xf] %vm2138, %v1955
    %2144 = vst.msk [vmem:[#allocation3 + $0x14] sm:$0xf] %vm2138, %v1957
    %2145 = vst.msk [vmem:[#allocation3 + $0x18] sm:$0xf] %vm2138, %v1959
    %2146 = vst.msk [vmem:[#allocation3 + $0x1c] sm:$0xf] %vm2138, %v1961
    %2147 = vst.msk [vmem:[#allocation3 + $0x20] sm:$0xf] %vm2138, %v1963
    %2148 = vst.msk [vmem:[#allocation3 + $0x24] sm:$0xf] %vm2138, %v1965
    %2149 = vst.msk [vmem:[#allocation3 + $0x28] sm:$0xf] %vm2138, %v1967
    %2150 = vst.msk [vmem:[#allocation3 + $0x2c] sm:$0xf] %vm2138, %v1969
    %2151 = vst.msk [vmem:[#allocation3 + $0x30] sm:$0xf] %vm2138, %v1971
    %2152 = vst.msk [vmem:[#allocation3 + $0x34] sm:$0xf] %vm2138, %v1973
    %2153 = vst.msk [vmem:[#allocation3 + $0x38] sm:$0xf] %vm2138, %v1975
    %2154 = vst.msk [vmem:[#allocation3 + $0x3c] sm:$0xf] %vm2138, %v1977
    %2155 = vst.msk [vmem:[#allocation3 + $0x40] sm:$0xf] %vm2138, %v1979
    %2156 = vst.msk [vmem:[#allocation3 + $0x44] sm:$0xf] %vm2138, %v1981
    %2157 = vst.msk [vmem:[#allocation3 + $0x48] sm:$0xf] %vm2138, %v1983
    %2158 = vst.msk [vmem:[#allocation3 + $0x4c] sm:$0xf] %vm2138, %v1985
    %2159 = vst.msk [vmem:[#allocation3 + $0x50] sm:$0xf] %vm2138, %v1987
    %2160 = vst.msk [vmem:[#allocation3 + $0x54] sm:$0xf] %vm2138, %v1989
    %2161 = vst.msk [vmem:[#allocation3 + $0x58] sm:$0xf] %vm2138, %v1991
    %2162 = vst.msk [vmem:[#allocation3 + $0x5c] sm:$0xf] %vm2138, %v1993
    %2163 = vst.msk [vmem:[#allocation3 + $0x60] sm:$0xf] %vm2138, %v1995
    %2164 = vst.msk [vmem:[#allocation3 + $0x64] sm:$0xf] %vm2138, %v1997
    %2165 = vst.msk [vmem:[#allocation3 + $0x68] sm:$0xf] %vm2138, %v1999
    %2166 = vst.msk [vmem:[#allocation3 + $0x6c] sm:$0xf] %vm2138, %v2001
    %2167 = vst.msk [vmem:[#allocation3 + $0x70] sm:$0xf] %vm2138, %v2003
    %2168 = vst.msk [vmem:[#allocation3 + $0x74] sm:$0xf] %vm2138, %v2005
    %2169 = vst.msk [vmem:[#allocation3 + $0x78] sm:$0xf] %vm2138, %v2007
    %2170 = vst.msk [vmem:[#allocation3 + $0x7c] sm:$0xf] %vm2138, %v2009
    %2171 = vst.msk [vmem:[#allocation3 + $0x80] sm:$0xf] %vm2138, %v2011
    %2172 = vst.msk [vmem:[#allocation3 + $0x84] sm:$0xf] %vm2138, %v2013
    %2173 = vst.msk [vmem:[#allocation3 + $0x88] sm:$0xf] %vm2138, %v2015
    %2174 = vst.msk [vmem:[#allocation3 + $0x8c] sm:$0xf] %vm2138, %v2017
    %2175 = vst.msk [vmem:[#allocation3 + $0x90] sm:$0xf] %vm2138, %v2019
    %2176 = vst.msk [vmem:[#allocation3 + $0x94] sm:$0xf] %vm2138, %v2021
    %2177 = vst.msk [vmem:[#allocation3 + $0x98] sm:$0xf] %vm2138, %v2023
    %2178 = vst.msk [vmem:[#allocation3 + $0x9c] sm:$0xf] %vm2138, %v2025
    %2179 = vst.msk [vmem:[#allocation3 + $0xa0] sm:$0xf] %vm2138, %v2027
    %2180 = vst.msk [vmem:[#allocation3 + $0xa4] sm:$0xf] %vm2138, %v2029
    %2181 = vst.msk [vmem:[#allocation3 + $0xa8] sm:$0xf] %vm2138, %v2031
    %2182 = vst.msk [vmem:[#allocation3 + $0xac] sm:$0xf] %vm2138, %v2033
    %2183 = vst.msk [vmem:[#allocation3 + $0xb0] sm:$0xf] %vm2138, %v2035
    %2184 = vst.msk [vmem:[#allocation3 + $0xb4] sm:$0xf] %vm2138, %v2037
    %2185 = vst.msk [vmem:[#allocation3 + $0xb8] sm:$0xf] %vm2138, %v2039
    %2186 = vst.msk [vmem:[#allocation3 + $0xbc] sm:$0xf] %vm2138, %v2041
    %2187 = vst.msk [vmem:[#allocation3 + $0xc0] sm:$0xf] %vm2138, %v2043
    %2188 = vst.msk [vmem:[#allocation3 + $0xc4] sm:$0xf] %vm2138, %v2045
    %2189 = vst.msk [vmem:[#allocation3 + $0xc8] sm:$0xf] %vm2138, %v2047
    %2190 = vst.msk [vmem:[#allocation3 + $0xcc] sm:$0xf] %vm2138, %v2049
    %2191 = vst.msk [vmem:[#allocation3 + $0xd0] sm:$0xf] %vm2138, %v2051
    %2192 = vst.msk [vmem:[#allocation3 + $0xd4] sm:$0xf] %vm2138, %v2053
    %2193 = vst.msk [vmem:[#allocation3 + $0xd8] sm:$0xf] %vm2138, %v2055
    %2194 = vst.msk [vmem:[#allocation3 + $0xdc] sm:$0xf] %vm2138, %v2057
    %2195 = vst.msk [vmem:[#allocation3 + $0xe0] sm:$0xf] %vm2138, %v2059
    %2196 = vst.msk [vmem:[#allocation3 + $0xe4] sm:$0xf] %vm2138, %v2061
    %2197 = vst.msk [vmem:[#allocation3 + $0xe8] sm:$0xf] %vm2138, %v2063
    %2198 = vst.msk [vmem:[#allocation3 + $0xec] sm:$0xf] %vm2138, %v2065
    %2199 = vst.msk [vmem:[#allocation3 + $0xf0] sm:$0xf] %vm2138, %v2067
    %2200 = vst.msk [vmem:[#allocation3 + $0xf4] sm:$0xf] %vm2138, %v2069
    %2201 = vst.msk [vmem:[#allocation3 + $0xf8] sm:$0xf] %vm2138, %v2071
    %2202 = vst.msk [vmem:[#allocation3 + $0xfc] sm:$0xf] %vm2138, %v2073
    %v2203 = vld [vmem:[%s214 + $0x1] sm:$0xff]
    %v2204 = vld [vmem:[%s214 + $0x9] sm:$0xff]
    %v2205 = vld [vmem:[%s214 + $0x19] sm:$0xff]
    %v2206 = vld [vmem:[%s214 + $0x21] sm:$0xff]
    %v2207 = vld [vmem:[%s214 + $0x31] sm:$0xff]
    %v2208 = vld [vmem:[%s214 + $0x39] sm:$0xff]
    %v2209 = vld [vmem:[%s214 + $0x49] sm:$0xff]
    %v2210 = vld [vmem:[%s214 + $0x51] sm:$0xff]
    %v2211 = vld [vmem:[%s214 + $0x61] sm:$0xff]
    %v2212 = vld [vmem:[%s214 + $0x69] sm:$0xff]
    %v2213 = vld [vmem:[%s214 + $0x79] sm:$0xff]
    %v2214 = vld [vmem:[%s214 + $0x81] sm:$0xff]
    %v2215 = vld [vmem:[%s214 + $0x91] sm:$0xff]
    %v2216 = vld [vmem:[%s214 + $0x99] sm:$0xff]
    %v2217 = vld [vmem:[%s214 + $0xa9] sm:$0xff]
    %v2218 = vld [vmem:[%s214 + $0xb1] sm:$0xff]
    %v2219 = vld [vmem:[%s214 + $0xc1] sm:$0xff]
    %v2220 = vld [vmem:[%s214 + $0xc9] sm:$0xff]
    %v2221 = vld [vmem:[%s214 + $0xd9] sm:$0xff]
    %v2222 = vld [vmem:[%s214 + $0xe1] sm:$0xff]
    %v2223 = vld [vmem:[%s214 + $0xf1] sm:$0xff]
    %v2224 = vld [vmem:[%s214 + $0xf9] sm:$0xff]
    %v2225 = vld [vmem:[%s214 + $0x109] sm:$0xff]
    %v2226 = vld [vmem:[%s214 + $0x111] sm:$0xff]
    %v2227 = vld [vmem:[%s214 + $0x121] sm:$0xff]
    %v2228 = vld [vmem:[%s214 + $0x129] sm:$0xff]
    %v2229 = vld [vmem:[%s214 + $0x139] sm:$0xff]
    %v2230 = vld [vmem:[%s214 + $0x141] sm:$0xff]
    %v2231 = vld [vmem:[%s214 + $0x151] sm:$0xff]
    %v2232 = vld [vmem:[%s214 + $0x159] sm:$0xff]
    %v2233 = vld [vmem:[%s214 + $0x169] sm:$0xff]
    %v2234 = vld [vmem:[%s214 + $0x171] sm:$0xff]
    %v2235 = vld [vmem:[%s214 + $0x1b1] sm:$0xff]
    %v2236 = vld [vmem:[%s214 + $0x1b9] sm:$0xff]
    %v2237 = vld [vmem:[%s214 + $0x1c9] sm:$0xff]
    %v2238 = vld [vmem:[%s214 + $0x1d1] sm:$0xff]
    %v2239 = vld [vmem:[%s214 + $0x1e1] sm:$0xff]
    %v2240 = vld [vmem:[%s214 + $0x1e9] sm:$0xff]
    %v2241 = vld [vmem:[%s214 + $0x1f9] sm:$0xff]
    %v2242 = vld [vmem:[%s214 + $0x201] sm:$0xff]
    %v2243 = vld [vmem:[%s214 + $0x211] sm:$0xff]
    %v2244 = vld [vmem:[%s214 + $0x219] sm:$0xff]
    %v2245 = vld [vmem:[%s214 + $0x229] sm:$0xff]
    %v2246 = vld [vmem:[%s214 + $0x231] sm:$0xff]
    %v2247 = vld [vmem:[%s214 + $0x241] sm:$0xff]
    %v2248 = vld [vmem:[%s214 + $0x249] sm:$0xff]
    %v2249 = vld [vmem:[%s214 + $0x259] sm:$0xff]
    %v2250 = vld [vmem:[%s214 + $0x261] sm:$0xff]
    %v2251 = vld [vmem:[%s214 + $0x271] sm:$0xff]
    %v2252 = vld [vmem:[%s214 + $0x279] sm:$0xff]
    %v2253 = vld [vmem:[%s214 + $0x289] sm:$0xff]
    %v2254 = vld [vmem:[%s214 + $0x291] sm:$0xff]
    %v2255 = vld [vmem:[%s214 + $0x2a1] sm:$0xff]
    %v2256 = vld [vmem:[%s214 + $0x2a9] sm:$0xff]
    %v2257 = vld [vmem:[%s214 + $0x2b9] sm:$0xff]
    %v2258 = vld [vmem:[%s214 + $0x2c1] sm:$0xff]
    %v2259 = vld [vmem:[%s214 + $0x2d1] sm:$0xff]
    %v2260 = vld [vmem:[%s214 + $0x2d9] sm:$0xff]
    %v2261 = vld [vmem:[%s214 + $0x2e9] sm:$0xff]
    %v2262 = vld [vmem:[%s214 + $0x2f1] sm:$0xff]
    %v2263 = vld [vmem:[%s214 + $0x301] sm:$0xff]
    %v2264 = vld [vmem:[%s214 + $0x309] sm:$0xff]
    %v2265 = vld [vmem:[%s214 + $0x319] sm:$0xff]
    %v2266 = vld [vmem:[%s214 + $0x321] sm:$0xff]
    %v2267 = vpack.c.bf16 %v2204, %v2203
    %v2268 = vpack.c.bf16 %v2206, %v2205
    %v2269 = vpack.c.bf16 %v2208, %v2207
    %v2270 = vpack.c.bf16 %v2210, %v2209
    %v2271 = vpack.c.bf16 %v2212, %v2211
    %v2272 = vpack.c.bf16 %v2214, %v2213
    %v2273 = vpack.c.bf16 %v2216, %v2215
    %v2274 = vpack.c.bf16 %v2218, %v2217
    %v2275 = vpack.c.bf16 %v2220, %v2219
    %v2276 = vpack.c.bf16 %v2222, %v2221
    %v2277 = vpack.c.bf16 %v2224, %v2223
    %v2278 = vpack.c.bf16 %v2226, %v2225
    %v2279 = vpack.c.bf16 %v2228, %v2227
    %v2280 = vpack.c.bf16 %v2230, %v2229
    %v2281 = vpack.c.bf16 %v2232, %v2231
    %v2282 = vpack.c.bf16 %v2234, %v2233
    %v2283 = vpack.c.bf16 %v2236, %v2235
    %v2284 = vpack.c.bf16 %v2238, %v2237
    %v2285 = vpack.c.bf16 %v2240, %v2239
    %v2286 = vpack.c.bf16 %v2242, %v2241
    %v2287 = vpack.c.bf16 %v2244, %v2243
    %v2288 = vpack.c.bf16 %v2246, %v2245
    %v2289 = vpack.c.bf16 %v2248, %v2247
    %v2290 = vpack.c.bf16 %v2250, %v2249
    %v2291 = vpack.c.bf16 %v2252, %v2251
    %v2292 = vpack.c.bf16 %v2254, %v2253
    %v2293 = vpack.c.bf16 %v2256, %v2255
    %v2294 = vpack.c.bf16 %v2258, %v2257
    %v2295 = vpack.c.bf16 %v2260, %v2259
    %v2296 = vpack.c.bf16 %v2262, %v2261
    %v2297 = vpack.c.bf16 %v2264, %v2263
    %v2298 = vpack.c.bf16 %v2266, %v2265
    %v2331 = vunpack.c.l.b16 %v2267
    %v2332 = vunpack.c.h.b16 %v2267
    %v2333 = vunpack.c.l.b16 %v2268
    %v2334 = vunpack.c.h.b16 %v2268
    %v2335 = vunpack.c.l.b16 %v2269
    %v2336 = vunpack.c.h.b16 %v2269
    %v2337 = vunpack.c.l.b16 %v2270
    %v2338 = vunpack.c.h.b16 %v2270
    %v2339 = vunpack.c.l.b16 %v2271
    %v2340 = vunpack.c.h.b16 %v2271
    %v2341 = vunpack.c.l.b16 %v2272
    %v2342 = vunpack.c.h.b16 %v2272
    %v2343 = vunpack.c.l.b16 %v2273
    %v2344 = vunpack.c.h.b16 %v2273
    %v2345 = vunpack.c.l.b16 %v2274
    %v2346 = vunpack.c.h.b16 %v2274
    %v2347 = vunpack.c.l.b16 %v2275
    %v2348 = vunpack.c.h.b16 %v2275
    %v2349 = vunpack.c.l.b16 %v2276
    %v2350 = vunpack.c.h.b16 %v2276
    %v2351 = vunpack.c.l.b16 %v2277
    %v2352 = vunpack.c.h.b16 %v2277
    %v2353 = vunpack.c.l.b16 %v2278
    %v2354 = vunpack.c.h.b16 %v2278
    %v2355 = vunpack.c.l.b16 %v2279
    %v2356 = vunpack.c.h.b16 %v2279
    %v2357 = vunpack.c.l.b16 %v2280
    %v2358 = vunpack.c.h.b16 %v2280
    %v2359 = vunpack.c.l.b16 %v2281
    %v2360 = vunpack.c.h.b16 %v2281
    %v2361 = vunpack.c.l.b16 %v2282
    %v2362 = vunpack.c.h.b16 %v2282
    %v2363 = vunpack.c.l.b16 %v2283
    %v2364 = vunpack.c.h.b16 %v2283
    %v2365 = vunpack.c.l.b16 %v2284
    %v2366 = vunpack.c.h.b16 %v2284
    %v2367 = vunpack.c.l.b16 %v2285
    %v2368 = vunpack.c.h.b16 %v2285
    %v2369 = vunpack.c.l.b16 %v2286
    %v2370 = vunpack.c.h.b16 %v2286
    %v2371 = vunpack.c.l.b16 %v2287
    %v2372 = vunpack.c.h.b16 %v2287
    %v2373 = vunpack.c.l.b16 %v2288
    %v2374 = vunpack.c.h.b16 %v2288
    %v2375 = vunpack.c.l.b16 %v2289
    %v2376 = vunpack.c.h.b16 %v2289
    %v2377 = vunpack.c.l.b16 %v2290
    %v2378 = vunpack.c.h.b16 %v2290
    %v2379 = vunpack.c.l.b16 %v2291
    %v2380 = vunpack.c.h.b16 %v2291
    %v2381 = vunpack.c.l.b16 %v2292
    %v2382 = vunpack.c.h.b16 %v2292
    %v2383 = vunpack.c.l.b16 %v2293
    %v2384 = vunpack.c.h.b16 %v2293
    %v2385 = vunpack.c.l.b16 %v2294
    %v2386 = vunpack.c.h.b16 %v2294
    %v2387 = vunpack.c.l.b16 %v2295
    %v2388 = vunpack.c.h.b16 %v2295
    %v2389 = vunpack.c.l.b16 %v2296
    %v2390 = vunpack.c.h.b16 %v2296
    %v2391 = vunpack.c.l.b16 %v2297
    %v2392 = vunpack.c.h.b16 %v2297
    %v2393 = vunpack.c.l.b16 %v2298
    %v2394 = vunpack.c.h.b16 %v2298
    %v2395 = vpack.c.b16 %v2331, %v2331
    %v2396 = vpack.c.b16 %v2332, %v2332
    %v2397 = vpack.c.b16 %v2333, %v2333
    %v2398 = vpack.c.b16 %v2334, %v2334
    %v2399 = vpack.c.b16 %v2335, %v2335
    %v2400 = vpack.c.b16 %v2336, %v2336
    %v2401 = vpack.c.b16 %v2337, %v2337
    %v2402 = vpack.c.b16 %v2338, %v2338
    %v2403 = vpack.c.b16 %v2339, %v2339
    %v2404 = vpack.c.b16 %v2340, %v2340
    %v2405 = vpack.c.b16 %v2341, %v2341
    %v2406 = vpack.c.b16 %v2342, %v2342
    %v2407 = vpack.c.b16 %v2343, %v2343
    %v2408 = vpack.c.b16 %v2344, %v2344
    %v2409 = vpack.c.b16 %v2345, %v2345
    %v2410 = vpack.c.b16 %v2346, %v2346
    %v2411 = vpack.c.b16 %v2347, %v2347
    %v2412 = vpack.c.b16 %v2348, %v2348
    %v2413 = vpack.c.b16 %v2349, %v2349
    %v2414 = vpack.c.b16 %v2350, %v2350
    %v2415 = vpack.c.b16 %v2351, %v2351
    %v2416 = vpack.c.b16 %v2352, %v2352
    %v2417 = vpack.c.b16 %v2353, %v2353
    %v2418 = vpack.c.b16 %v2354, %v2354
    %v2419 = vpack.c.b16 %v2355, %v2355
    %v2420 = vpack.c.b16 %v2356, %v2356
    %v2421 = vpack.c.b16 %v2357, %v2357
    %v2422 = vpack.c.b16 %v2358, %v2358
    %v2423 = vpack.c.b16 %v2359, %v2359
    %v2424 = vpack.c.b16 %v2360, %v2360
    %v2425 = vpack.c.b16 %v2361, %v2361
    %v2426 = vpack.c.b16 %v2362, %v2362
    %v2427 = vpack.c.b16 %v2363, %v2363
    %v2428 = vpack.c.b16 %v2364, %v2364
    %v2429 = vpack.c.b16 %v2365, %v2365
    %v2430 = vpack.c.b16 %v2366, %v2366
    %v2431 = vpack.c.b16 %v2367, %v2367
    %v2432 = vpack.c.b16 %v2368, %v2368
    %v2433 = vpack.c.b16 %v2369, %v2369
    %v2434 = vpack.c.b16 %v2370, %v2370
    %v2435 = vpack.c.b16 %v2371, %v2371
    %v2436 = vpack.c.b16 %v2372, %v2372
    %v2437 = vpack.c.b16 %v2373, %v2373
    %v2438 = vpack.c.b16 %v2374, %v2374
    %v2439 = vpack.c.b16 %v2375, %v2375
    %v2440 = vpack.c.b16 %v2376, %v2376
    %v2441 = vpack.c.b16 %v2377, %v2377
    %v2442 = vpack.c.b16 %v2378, %v2378
    %v2443 = vpack.c.b16 %v2379, %v2379
    %v2444 = vpack.c.b16 %v2380, %v2380
    %v2445 = vpack.c.b16 %v2381, %v2381
    %v2446 = vpack.c.b16 %v2382, %v2382
    %v2447 = vpack.c.b16 %v2383, %v2383
    %v2448 = vpack.c.b16 %v2384, %v2384
    %v2449 = vpack.c.b16 %v2385, %v2385
    %v2450 = vpack.c.b16 %v2386, %v2386
    %v2451 = vpack.c.b16 %v2387, %v2387
    %v2452 = vpack.c.b16 %v2388, %v2388
    %v2453 = vpack.c.b16 %v2389, %v2389
    %v2454 = vpack.c.b16 %v2390, %v2390
    %v2455 = vpack.c.b16 %v2391, %v2391
    %v2456 = vpack.c.b16 %v2392, %v2392
    %v2457 = vpack.c.b16 %v2393, %v2393
    %v2458 = vpack.c.b16 %v2394, %v2394
    %2459 = vrot.lane.b32.xlu0 %v2395, 12
    %v2460 = vpop.permute.xlu0 %2459
    %2461 = vrot.lane.b32.xlu0 %v2396, 12
    %v2462 = vpop.permute.xlu0 %2461
    %2463 = vrot.lane.b32.xlu0 %v2397, 12
    %v2464 = vpop.permute.xlu0 %2463
    %2465 = vrot.lane.b32.xlu0 %v2398, 12
    %v2466 = vpop.permute.xlu0 %2465
    %2467 = vrot.lane.b32.xlu0 %v2399, 12
    %v2468 = vpop.permute.xlu0 %2467
    %2469 = vrot.lane.b32.xlu0 %v2400, 12
    %v2470 = vpop.permute.xlu0 %2469
    %2471 = vrot.lane.b32.xlu0 %v2401, 12
    %v2472 = vpop.permute.xlu0 %2471
    %2473 = vrot.lane.b32.xlu0 %v2402, 12
    %v2474 = vpop.permute.xlu0 %2473
    %2475 = vrot.lane.b32.xlu0 %v2403, 12
    %v2476 = vpop.permute.xlu0 %2475
    %2477 = vrot.lane.b32.xlu0 %v2404, 12
    %v2478 = vpop.permute.xlu0 %2477
    %2479 = vrot.lane.b32.xlu0 %v2405, 12
    %v2480 = vpop.permute.xlu0 %2479
    %2481 = vrot.lane.b32.xlu0 %v2406, 12
    %v2482 = vpop.permute.xlu0 %2481
    %2483 = vrot.lane.b32.xlu0 %v2407, 12
    %v2484 = vpop.permute.xlu0 %2483
    %2485 = vrot.lane.b32.xlu0 %v2408, 12
    %v2486 = vpop.permute.xlu0 %2485
    %2487 = vrot.lane.b32.xlu0 %v2409, 12
    %v2488 = vpop.permute.xlu0 %2487
    %2489 = vrot.lane.b32.xlu0 %v2410, 12
    %v2490 = vpop.permute.xlu0 %2489
    %2491 = vrot.lane.b32.xlu0 %v2411, 12
    %v2492 = vpop.permute.xlu0 %2491
    %2493 = vrot.lane.b32.xlu0 %v2412, 12
    %v2494 = vpop.permute.xlu0 %2493
    %2495 = vrot.lane.b32.xlu0 %v2413, 12
    %v2496 = vpop.permute.xlu0 %2495
    %2497 = vrot.lane.b32.xlu0 %v2414, 12
    %v2498 = vpop.permute.xlu0 %2497
    %2499 = vrot.lane.b32.xlu0 %v2415, 12
    %v2500 = vpop.permute.xlu0 %2499
    %2501 = vrot.lane.b32.xlu0 %v2416, 12
    %v2502 = vpop.permute.xlu0 %2501
    %2503 = vrot.lane.b32.xlu0 %v2417, 12
    %v2504 = vpop.permute.xlu0 %2503
    %2505 = vrot.lane.b32.xlu0 %v2418, 12
    %v2506 = vpop.permute.xlu0 %2505
    %2507 = vrot.lane.b32.xlu0 %v2419, 12
    %v2508 = vpop.permute.xlu0 %2507
    %2509 = vrot.lane.b32.xlu0 %v2420, 12
    %v2510 = vpop.permute.xlu0 %2509
    %2511 = vrot.lane.b32.xlu0 %v2421, 12
    %v2512 = vpop.permute.xlu0 %2511
    %2513 = vrot.lane.b32.xlu0 %v2422, 12
    %v2514 = vpop.permute.xlu0 %2513
    %2515 = vrot.lane.b32.xlu0 %v2423, 12
    %v2516 = vpop.permute.xlu0 %2515
    %2517 = vrot.lane.b32.xlu0 %v2424, 12
    %v2518 = vpop.permute.xlu0 %2517
    %2519 = vrot.lane.b32.xlu0 %v2425, 12
    %v2520 = vpop.permute.xlu0 %2519
    %2521 = vrot.lane.b32.xlu0 %v2426, 12
    %v2522 = vpop.permute.xlu0 %2521
    %2523 = vrot.lane.b32.xlu0 %v2427, 12
    %v2524 = vpop.permute.xlu0 %2523
    %2525 = vrot.lane.b32.xlu0 %v2428, 12
    %v2526 = vpop.permute.xlu0 %2525
    %2527 = vrot.lane.b32.xlu0 %v2429, 12
    %v2528 = vpop.permute.xlu0 %2527
    %2529 = vrot.lane.b32.xlu0 %v2430, 12
    %v2530 = vpop.permute.xlu0 %2529
    %2531 = vrot.lane.b32.xlu0 %v2431, 12
    %v2532 = vpop.permute.xlu0 %2531
    %2533 = vrot.lane.b32.xlu0 %v2432, 12
    %v2534 = vpop.permute.xlu0 %2533
    %2535 = vrot.lane.b32.xlu0 %v2433, 12
    %v2536 = vpop.permute.xlu0 %2535
    %2537 = vrot.lane.b32.xlu0 %v2434, 12
    %v2538 = vpop.permute.xlu0 %2537
    %2539 = vrot.lane.b32.xlu0 %v2435, 12
    %v2540 = vpop.permute.xlu0 %2539
    %2541 = vrot.lane.b32.xlu0 %v2436, 12
    %v2542 = vpop.permute.xlu0 %2541
    %2543 = vrot.lane.b32.xlu0 %v2437, 12
    %v2544 = vpop.permute.xlu0 %2543
    %2545 = vrot.lane.b32.xlu0 %v2438, 12
    %v2546 = vpop.permute.xlu0 %2545
    %2547 = vrot.lane.b32.xlu0 %v2439, 12
    %v2548 = vpop.permute.xlu0 %2547
    %2549 = vrot.lane.b32.xlu0 %v2440, 12
    %v2550 = vpop.permute.xlu0 %2549
    %2551 = vrot.lane.b32.xlu0 %v2441, 12
    %v2552 = vpop.permute.xlu0 %2551
    %2553 = vrot.lane.b32.xlu0 %v2442, 12
    %v2554 = vpop.permute.xlu0 %2553
    %2555 = vrot.lane.b32.xlu0 %v2443, 12
    %v2556 = vpop.permute.xlu0 %2555
    %2557 = vrot.lane.b32.xlu0 %v2444, 12
    %v2558 = vpop.permute.xlu0 %2557
    %2559 = vrot.lane.b32.xlu0 %v2445, 12
    %v2560 = vpop.permute.xlu0 %2559
    %2561 = vrot.lane.b32.xlu0 %v2446, 12
    %v2562 = vpop.permute.xlu0 %2561
    %2563 = vrot.lane.b32.xlu0 %v2447, 12
    %v2564 = vpop.permute.xlu0 %2563
    %2565 = vrot.lane.b32.xlu0 %v2448, 12
    %v2566 = vpop.permute.xlu0 %2565
    %2567 = vrot.lane.b32.xlu0 %v2449, 12
    %v2568 = vpop.permute.xlu0 %2567
    %2569 = vrot.lane.b32.xlu0 %v2450, 12
    %v2570 = vpop.permute.xlu0 %2569
    %2571 = vrot.lane.b32.xlu0 %v2451, 12
    %v2572 = vpop.permute.xlu0 %2571
    %2573 = vrot.lane.b32.xlu0 %v2452, 12
    %v2574 = vpop.permute.xlu0 %2573
    %2575 = vrot.lane.b32.xlu0 %v2453, 12
    %v2576 = vpop.permute.xlu0 %2575
    %2577 = vrot.lane.b32.xlu0 %v2454, 12
    %v2578 = vpop.permute.xlu0 %2577
    %2579 = vrot.lane.b32.xlu0 %v2455, 12
    %v2580 = vpop.permute.xlu0 %2579
    %2581 = vrot.lane.b32.xlu0 %v2456, 12
    %v2582 = vpop.permute.xlu0 %2581
    %2583 = vrot.lane.b32.xlu0 %v2457, 12
    %v2584 = vpop.permute.xlu0 %2583
    %2585 = vrot.lane.b32.xlu0 %v2458, 12
    %v2586 = vpop.permute.xlu0 %2585
    %vm2651 = vcmask 117856
    %2652 = vst.msk [vmem:[#allocation3] sm:$0xf] %vm2651, %v2460
    %2653 = vst.msk [vmem:[#allocation3 + $0x4] sm:$0xf] %vm2651, %v2462
    %2654 = vst.msk [vmem:[#allocation3 + $0x8] sm:$0xf] %vm2651, %v2464
    %2655 = vst.msk [vmem:[#allocation3 + $0xc] sm:$0xf] %vm2651, %v2466
    %2656 = vst.msk [vmem:[#allocation3 + $0x10] sm:$0xf] %vm2651, %v2468
    %2657 = vst.msk [vmem:[#allocation3 + $0x14] sm:$0xf] %vm2651, %v2470
    %2658 = vst.msk [vmem:[#allocation3 + $0x18] sm:$0xf] %vm2651, %v2472
    %2659 = vst.msk [vmem:[#allocation3 + $0x1c] sm:$0xf] %vm2651, %v2474
    %2660 = vst.msk [vmem:[#allocation3 + $0x20] sm:$0xf] %vm2651, %v2476
    %2661 = vst.msk [vmem:[#allocation3 + $0x24] sm:$0xf] %vm2651, %v2478
    %2662 = vst.msk [vmem:[#allocation3 + $0x28] sm:$0xf] %vm2651, %v2480
    %2663 = vst.msk [vmem:[#allocation3 + $0x2c] sm:$0xf] %vm2651, %v2482
    %2664 = vst.msk [vmem:[#allocation3 + $0x30] sm:$0xf] %vm2651, %v2484
    %2665 = vst.msk [vmem:[#allocation3 + $0x34] sm:$0xf] %vm2651, %v2486
    %2666 = vst.msk [vmem:[#allocation3 + $0x38] sm:$0xf] %vm2651, %v2488
    %2667 = vst.msk [vmem:[#allocation3 + $0x3c] sm:$0xf] %vm2651, %v2490
    %2668 = vst.msk [vmem:[#allocation3 + $0x40] sm:$0xf] %vm2651, %v2492
    %2669 = vst.msk [vmem:[#allocation3 + $0x44] sm:$0xf] %vm2651, %v2494
    %2670 = vst.msk [vmem:[#allocation3 + $0x48] sm:$0xf] %vm2651, %v2496
    %2671 = vst.msk [vmem:[#allocation3 + $0x4c] sm:$0xf] %vm2651, %v2498
    %2672 = vst.msk [vmem:[#allocation3 + $0x50] sm:$0xf] %vm2651, %v2500
    %2673 = vst.msk [vmem:[#allocation3 + $0x54] sm:$0xf] %vm2651, %v2502
    %2674 = vst.msk [vmem:[#allocation3 + $0x58] sm:$0xf] %vm2651, %v2504
    %2675 = vst.msk [vmem:[#allocation3 + $0x5c] sm:$0xf] %vm2651, %v2506
    %2676 = vst.msk [vmem:[#allocation3 + $0x60] sm:$0xf] %vm2651, %v2508
    %2677 = vst.msk [vmem:[#allocation3 + $0x64] sm:$0xf] %vm2651, %v2510
    %2678 = vst.msk [vmem:[#allocation3 + $0x68] sm:$0xf] %vm2651, %v2512
    %2679 = vst.msk [vmem:[#allocation3 + $0x6c] sm:$0xf] %vm2651, %v2514
    %2680 = vst.msk [vmem:[#allocation3 + $0x70] sm:$0xf] %vm2651, %v2516
    %2681 = vst.msk [vmem:[#allocation3 + $0x74] sm:$0xf] %vm2651, %v2518
    %2682 = vst.msk [vmem:[#allocation3 + $0x78] sm:$0xf] %vm2651, %v2520
    %2683 = vst.msk [vmem:[#allocation3 + $0x7c] sm:$0xf] %vm2651, %v2522
    %2684 = vst.msk [vmem:[#allocation3 + $0x80] sm:$0xf] %vm2651, %v2524
    %2685 = vst.msk [vmem:[#allocation3 + $0x84] sm:$0xf] %vm2651, %v2526
    %2686 = vst.msk [vmem:[#allocation3 + $0x88] sm:$0xf] %vm2651, %v2528
    %2687 = vst.msk [vmem:[#allocation3 + $0x8c] sm:$0xf] %vm2651, %v2530
    %2688 = vst.msk [vmem:[#allocation3 + $0x90] sm:$0xf] %vm2651, %v2532
    %2689 = vst.msk [vmem:[#allocation3 + $0x94] sm:$0xf] %vm2651, %v2534
    %2690 = vst.msk [vmem:[#allocation3 + $0x98] sm:$0xf] %vm2651, %v2536
    %2691 = vst.msk [vmem:[#allocation3 + $0x9c] sm:$0xf] %vm2651, %v2538
    %2692 = vst.msk [vmem:[#allocation3 + $0xa0] sm:$0xf] %vm2651, %v2540
    %2693 = vst.msk [vmem:[#allocation3 + $0xa4] sm:$0xf] %vm2651, %v2542
    %2694 = vst.msk [vmem:[#allocation3 + $0xa8] sm:$0xf] %vm2651, %v2544
    %2695 = vst.msk [vmem:[#allocation3 + $0xac] sm:$0xf] %vm2651, %v2546
    %2696 = vst.msk [vmem:[#allocation3 + $0xb0] sm:$0xf] %vm2651, %v2548
    %2697 = vst.msk [vmem:[#allocation3 + $0xb4] sm:$0xf] %vm2651, %v2550
    %2698 = vst.msk [vmem:[#allocation3 + $0xb8] sm:$0xf] %vm2651, %v2552
    %2699 = vst.msk [vmem:[#allocation3 + $0xbc] sm:$0xf] %vm2651, %v2554
    %2700 = vst.msk [vmem:[#allocation3 + $0xc0] sm:$0xf] %vm2651, %v2556
    %2701 = vst.msk [vmem:[#allocation3 + $0xc4] sm:$0xf] %vm2651, %v2558
    %2702 = vst.msk [vmem:[#allocation3 + $0xc8] sm:$0xf] %vm2651, %v2560
    %2703 = vst.msk [vmem:[#allocation3 + $0xcc] sm:$0xf] %vm2651, %v2562
    %2704 = vst.msk [vmem:[#allocation3 + $0xd0] sm:$0xf] %vm2651, %v2564
    %2705 = vst.msk [vmem:[#allocation3 + $0xd4] sm:$0xf] %vm2651, %v2566
    %2706 = vst.msk [vmem:[#allocation3 + $0xd8] sm:$0xf] %vm2651, %v2568
    %2707 = vst.msk [vmem:[#allocation3 + $0xdc] sm:$0xf] %vm2651, %v2570
    %2708 = vst.msk [vmem:[#allocation3 + $0xe0] sm:$0xf] %vm2651, %v2572
    %2709 = vst.msk [vmem:[#allocation3 + $0xe4] sm:$0xf] %vm2651, %v2574
    %2710 = vst.msk [vmem:[#allocation3 + $0xe8] sm:$0xf] %vm2651, %v2576
    %2711 = vst.msk [vmem:[#allocation3 + $0xec] sm:$0xf] %vm2651, %v2578
    %2712 = vst.msk [vmem:[#allocation3 + $0xf0] sm:$0xf] %vm2651, %v2580
    %2713 = vst.msk [vmem:[#allocation3 + $0xf4] sm:$0xf] %vm2651, %v2582
    %2714 = vst.msk [vmem:[#allocation3 + $0xf8] sm:$0xf] %vm2651, %v2584
    %2715 = vst.msk [vmem:[#allocation3 + $0xfc] sm:$0xf] %vm2651, %v2586
    %v2716 = vld [vmem:[%s214 + $0x2] sm:$0xff]
    %v2717 = vld [vmem:[%s214 + $0xa] sm:$0xff]
    %v2718 = vld [vmem:[%s214 + $0x1a] sm:$0xff]
    %v2719 = vld [vmem:[%s214 + $0x22] sm:$0xff]
    %v2720 = vld [vmem:[%s214 + $0x32] sm:$0xff]
    %v2721 = vld [vmem:[%s214 + $0x3a] sm:$0xff]
    %v2722 = vld [vmem:[%s214 + $0x4a] sm:$0xff]
    %v2723 = vld [vmem:[%s214 + $0x52] sm:$0xff]
    %v2724 = vld [vmem:[%s214 + $0x62] sm:$0xff]
    %v2725 = vld [vmem:[%s214 + $0x6a] sm:$0xff]
    %v2726 = vld [vmem:[%s214 + $0x7a] sm:$0xff]
    %v2727 = vld [vmem:[%s214 + $0x82] sm:$0xff]
    %v2728 = vld [vmem:[%s214 + $0x92] sm:$0xff]
    %v2729 = vld [vmem:[%s214 + $0x9a] sm:$0xff]
    %v2730 = vld [vmem:[%s214 + $0xaa] sm:$0xff]
    %v2731 = vld [vmem:[%s214 + $0xb2] sm:$0xff]
    %v2732 = vld [vmem:[%s214 + $0xc2] sm:$0xff]
    %v2733 = vld [vmem:[%s214 + $0xca] sm:$0xff]
    %v2734 = vld [vmem:[%s214 + $0xda] sm:$0xff]
    %v2735 = vld [vmem:[%s214 + $0xe2] sm:$0xff]
    %v2736 = vld [vmem:[%s214 + $0xf2] sm:$0xff]
    %v2737 = vld [vmem:[%s214 + $0xfa] sm:$0xff]
    %v2738 = vld [vmem:[%s214 + $0x10a] sm:$0xff]
    %v2739 = vld [vmem:[%s214 + $0x112] sm:$0xff]
    %v2740 = vld [vmem:[%s214 + $0x122] sm:$0xff]
    %v2741 = vld [vmem:[%s214 + $0x12a] sm:$0xff]
    %v2742 = vld [vmem:[%s214 + $0x13a] sm:$0xff]
    %v2743 = vld [vmem:[%s214 + $0x142] sm:$0xff]
    %v2744 = vld [vmem:[%s214 + $0x152] sm:$0xff]
    %v2745 = vld [vmem:[%s214 + $0x15a] sm:$0xff]
    %v2746 = vld [vmem:[%s214 + $0x16a] sm:$0xff]
    %v2747 = vld [vmem:[%s214 + $0x172] sm:$0xff]
    %v2748 = vld [vmem:[%s214 + $0x1b2] sm:$0xff]
    %v2749 = vld [vmem:[%s214 + $0x1ba] sm:$0xff]
    %v2750 = vld [vmem:[%s214 + $0x1ca] sm:$0xff]
    %v2751 = vld [vmem:[%s214 + $0x1d2] sm:$0xff]
    %v2752 = vld [vmem:[%s214 + $0x1e2] sm:$0xff]
    %v2753 = vld [vmem:[%s214 + $0x1ea] sm:$0xff]
    %v2754 = vld [vmem:[%s214 + $0x1fa] sm:$0xff]
    %v2755 = vld [vmem:[%s214 + $0x202] sm:$0xff]
    %v2756 = vld [vmem:[%s214 + $0x212] sm:$0xff]
    %v2757 = vld [vmem:[%s214 + $0x21a] sm:$0xff]
    %v2758 = vld [vmem:[%s214 + $0x22a] sm:$0xff]
    %v2759 = vld [vmem:[%s214 + $0x232] sm:$0xff]
    %v2760 = vld [vmem:[%s214 + $0x242] sm:$0xff]
    %v2761 = vld [vmem:[%s214 + $0x24a] sm:$0xff]
    %v2762 = vld [vmem:[%s214 + $0x25a] sm:$0xff]
    %v2763 = vld [vmem:[%s214 + $0x262] sm:$0xff]
    %v2764 = vld [vmem:[%s214 + $0x272] sm:$0xff]
    %v2765 = vld [vmem:[%s214 + $0x27a] sm:$0xff]
    %v2766 = vld [vmem:[%s214 + $0x28a] sm:$0xff]
    %v2767 = vld [vmem:[%s214 + $0x292] sm:$0xff]
    %v2768 = vld [vmem:[%s214 + $0x2a2] sm:$0xff]
    %v2769 = vld [vmem:[%s214 + $0x2aa] sm:$0xff]
    %v2770 = vld [vmem:[%s214 + $0x2ba] sm:$0xff]
    %v2771 = vld [vmem:[%s214 + $0x2c2] sm:$0xff]
    %v2772 = vld [vmem:[%s214 + $0x2d2] sm:$0xff]
    %v2773 = vld [vmem:[%s214 + $0x2da] sm:$0xff]
    %v2774 = vld [vmem:[%s214 + $0x2ea] sm:$0xff]
    %v2775 = vld [vmem:[%s214 + $0x2f2] sm:$0xff]
    %v2776 = vld [vmem:[%s214 + $0x302] sm:$0xff]
    %v2777 = vld [vmem:[%s214 + $0x30a] sm:$0xff]
    %v2778 = vld [vmem:[%s214 + $0x31a] sm:$0xff]
    %v2779 = vld [vmem:[%s214 + $0x322] sm:$0xff]
    %v2780 = vpack.c.bf16 %v2717, %v2716
    %v2781 = vpack.c.bf16 %v2719, %v2718
    %v2782 = vpack.c.bf16 %v2721, %v2720
    %v2783 = vpack.c.bf16 %v2723, %v2722
    %v2784 = vpack.c.bf16 %v2725, %v2724
    %v2785 = vpack.c.bf16 %v2727, %v2726
    %v2786 = vpack.c.bf16 %v2729, %v2728
    %v2787 = vpack.c.bf16 %v2731, %v2730
    %v2788 = vpack.c.bf16 %v2733, %v2732
    %v2789 = vpack.c.bf16 %v2735, %v2734
    %v2790 = vpack.c.bf16 %v2737, %v2736
    %v2791 = vpack.c.bf16 %v2739, %v2738
    %v2792 = vpack.c.bf16 %v2741, %v2740
    %v2793 = vpack.c.bf16 %v2743, %v2742
    %v2794 = vpack.c.bf16 %v2745, %v2744
    %v2795 = vpack.c.bf16 %v2747, %v2746
    %v2796 = vpack.c.bf16 %v2749, %v2748
    %v2797 = vpack.c.bf16 %v2751, %v2750
    %v2798 = vpack.c.bf16 %v2753, %v2752
    %v2799 = vpack.c.bf16 %v2755, %v2754
    %v2800 = vpack.c.bf16 %v2757, %v2756
    %v2801 = vpack.c.bf16 %v2759, %v2758
    %v2802 = vpack.c.bf16 %v2761, %v2760
    %v2803 = vpack.c.bf16 %v2763, %v2762
    %v2804 = vpack.c.bf16 %v2765, %v2764
    %v2805 = vpack.c.bf16 %v2767, %v2766
    %v2806 = vpack.c.bf16 %v2769, %v2768
    %v2807 = vpack.c.bf16 %v2771, %v2770
    %v2808 = vpack.c.bf16 %v2773, %v2772
    %v2809 = vpack.c.bf16 %v2775, %v2774
    %v2810 = vpack.c.bf16 %v2777, %v2776
    %v2811 = vpack.c.bf16 %v2779, %v2778
    %v2844 = vunpack.c.l.b16 %v2780
    %v2845 = vunpack.c.h.b16 %v2780
    %v2846 = vunpack.c.l.b16 %v2781
    %v2847 = vunpack.c.h.b16 %v2781
    %v2848 = vunpack.c.l.b16 %v2782
    %v2849 = vunpack.c.h.b16 %v2782
    %v2850 = vunpack.c.l.b16 %v2783
    %v2851 = vunpack.c.h.b16 %v2783
    %v2852 = vunpack.c.l.b16 %v2784
    %v2853 = vunpack.c.h.b16 %v2784
    %v2854 = vunpack.c.l.b16 %v2785
    %v2855 = vunpack.c.h.b16 %v2785
    %v2856 = vunpack.c.l.b16 %v2786
    %v2857 = vunpack.c.h.b16 %v2786
    %v2858 = vunpack.c.l.b16 %v2787
    %v2859 = vunpack.c.h.b16 %v2787
    %v2860 = vunpack.c.l.b16 %v2788
    %v2861 = vunpack.c.h.b16 %v2788
    %v2862 = vunpack.c.l.b16 %v2789
    %v2863 = vunpack.c.h.b16 %v2789
    %v2864 = vunpack.c.l.b16 %v2790
    %v2865 = vunpack.c.h.b16 %v2790
    %v2866 = vunpack.c.l.b16 %v2791
    %v2867 = vunpack.c.h.b16 %v2791
    %v2868 = vunpack.c.l.b16 %v2792
    %v2869 = vunpack.c.h.b16 %v2792
    %v2870 = vunpack.c.l.b16 %v2793
    %v2871 = vunpack.c.h.b16 %v2793
    %v2872 = vunpack.c.l.b16 %v2794
    %v2873 = vunpack.c.h.b16 %v2794
    %v2874 = vunpack.c.l.b16 %v2795
    %v2875 = vunpack.c.h.b16 %v2795
    %v2876 = vunpack.c.l.b16 %v2796
    %v2877 = vunpack.c.h.b16 %v2796
    %v2878 = vunpack.c.l.b16 %v2797
    %v2879 = vunpack.c.h.b16 %v2797
    %v2880 = vunpack.c.l.b16 %v2798
    %v2881 = vunpack.c.h.b16 %v2798
    %v2882 = vunpack.c.l.b16 %v2799
    %v2883 = vunpack.c.h.b16 %v2799
    %v2884 = vunpack.c.l.b16 %v2800
    %v2885 = vunpack.c.h.b16 %v2800
    %v2886 = vunpack.c.l.b16 %v2801
    %v2887 = vunpack.c.h.b16 %v2801
    %v2888 = vunpack.c.l.b16 %v2802
    %v2889 = vunpack.c.h.b16 %v2802
    %v2890 = vunpack.c.l.b16 %v2803
    %v2891 = vunpack.c.h.b16 %v2803
    %v2892 = vunpack.c.l.b16 %v2804
    %v2893 = vunpack.c.h.b16 %v2804
    %v2894 = vunpack.c.l.b16 %v2805
    %v2895 = vunpack.c.h.b16 %v2805
    %v2896 = vunpack.c.l.b16 %v2806
    %v2897 = vunpack.c.h.b16 %v2806
    %v2898 = vunpack.c.l.b16 %v2807
    %v2899 = vunpack.c.h.b16 %v2807
    %v2900 = vunpack.c.l.b16 %v2808
    %v2901 = vunpack.c.h.b16 %v2808
    %v2902 = vunpack.c.l.b16 %v2809
    %v2903 = vunpack.c.h.b16 %v2809
    %v2904 = vunpack.c.l.b16 %v2810
    %v2905 = vunpack.c.h.b16 %v2810
    %v2906 = vunpack.c.l.b16 %v2811
    %v2907 = vunpack.c.h.b16 %v2811
    %v2908 = vpack.c.b16 %v2844, %v2844
    %v2909 = vpack.c.b16 %v2845, %v2845
    %v2910 = vpack.c.b16 %v2846, %v2846
    %v2911 = vpack.c.b16 %v2847, %v2847
    %v2912 = vpack.c.b16 %v2848, %v2848
    %v2913 = vpack.c.b16 %v2849, %v2849
    %v2914 = vpack.c.b16 %v2850, %v2850
    %v2915 = vpack.c.b16 %v2851, %v2851
    %v2916 = vpack.c.b16 %v2852, %v2852
    %v2917 = vpack.c.b16 %v2853, %v2853
    %v2918 = vpack.c.b16 %v2854, %v2854
    %v2919 = vpack.c.b16 %v2855, %v2855
    %v2920 = vpack.c.b16 %v2856, %v2856
    %v2921 = vpack.c.b16 %v2857, %v2857
    %v2922 = vpack.c.b16 %v2858, %v2858
    %v2923 = vpack.c.b16 %v2859, %v2859
    %v2924 = vpack.c.b16 %v2860, %v2860
    %v2925 = vpack.c.b16 %v2861, %v2861
    %v2926 = vpack.c.b16 %v2862, %v2862
    %v2927 = vpack.c.b16 %v2863, %v2863
    %v2928 = vpack.c.b16 %v2864, %v2864
    %v2929 = vpack.c.b16 %v2865, %v2865
    %v2930 = vpack.c.b16 %v2866, %v2866
    %v2931 = vpack.c.b16 %v2867, %v2867
    %v2932 = vpack.c.b16 %v2868, %v2868
    %v2933 = vpack.c.b16 %v2869, %v2869
    %v2934 = vpack.c.b16 %v2870, %v2870
    %v2935 = vpack.c.b16 %v2871, %v2871
    %v2936 = vpack.c.b16 %v2872, %v2872
    %v2937 = vpack.c.b16 %v2873, %v2873
    %v2938 = vpack.c.b16 %v2874, %v2874
    %v2939 = vpack.c.b16 %v2875, %v2875
    %v2940 = vpack.c.b16 %v2876, %v2876
    %v2941 = vpack.c.b16 %v2877, %v2877
    %v2942 = vpack.c.b16 %v2878, %v2878
    %v2943 = vpack.c.b16 %v2879, %v2879
    %v2944 = vpack.c.b16 %v2880, %v2880
    %v2945 = vpack.c.b16 %v2881, %v2881
    %v2946 = vpack.c.b16 %v2882, %v2882
    %v2947 = vpack.c.b16 %v2883, %v2883
    %v2948 = vpack.c.b16 %v2884, %v2884
    %v2949 = vpack.c.b16 %v2885, %v2885
    %v2950 = vpack.c.b16 %v2886, %v2886
    %v2951 = vpack.c.b16 %v2887, %v2887
    %v2952 = vpack.c.b16 %v2888, %v2888
    %v2953 = vpack.c.b16 %v2889, %v2889
    %v2954 = vpack.c.b16 %v2890, %v2890
    %v2955 = vpack.c.b16 %v2891, %v2891
    %v2956 = vpack.c.b16 %v2892, %v2892
    %v2957 = vpack.c.b16 %v2893, %v2893
    %v2958 = vpack.c.b16 %v2894, %v2894
    %v2959 = vpack.c.b16 %v2895, %v2895
    %v2960 = vpack.c.b16 %v2896, %v2896
    %v2961 = vpack.c.b16 %v2897, %v2897
    %v2962 = vpack.c.b16 %v2898, %v2898
    %v2963 = vpack.c.b16 %v2899, %v2899
    %v2964 = vpack.c.b16 %v2900, %v2900
    %v2965 = vpack.c.b16 %v2901, %v2901
    %v2966 = vpack.c.b16 %v2902, %v2902
    %v2967 = vpack.c.b16 %v2903, %v2903
    %v2968 = vpack.c.b16 %v2904, %v2904
    %v2969 = vpack.c.b16 %v2905, %v2905
    %v2970 = vpack.c.b16 %v2906, %v2906
    %v2971 = vpack.c.b16 %v2907, %v2907
    %2972 = vrot.lane.b32.xlu0 %v2908, 15
    %v2973 = vpop.permute.xlu0 %2972
    %2974 = vrot.lane.b32.xlu0 %v2909, 15
    %v2975 = vpop.permute.xlu0 %2974
    %2976 = vrot.lane.b32.xlu0 %v2910, 15
    %v2977 = vpop.permute.xlu0 %2976
    %2978 = vrot.lane.b32.xlu0 %v2911, 15
    %v2979 = vpop.permute.xlu0 %2978
    %2980 = vrot.lane.b32.xlu0 %v2912, 15
    %v2981 = vpop.permute.xlu0 %2980
    %2982 = vrot.lane.b32.xlu0 %v2913, 15
    %v2983 = vpop.permute.xlu0 %2982
    %2984 = vrot.lane.b32.xlu0 %v2914, 15
    %v2985 = vpop.permute.xlu0 %2984
    %2986 = vrot.lane.b32.xlu0 %v2915, 15
    %v2987 = vpop.permute.xlu0 %2986
    %2988 = vrot.lane.b32.xlu0 %v2916, 15
    %v2989 = vpop.permute.xlu0 %2988
    %2990 = vrot.lane.b32.xlu0 %v2917, 15
    %v2991 = vpop.permute.xlu0 %2990
    %2992 = vrot.lane.b32.xlu0 %v2918, 15
    %v2993 = vpop.permute.xlu0 %2992
    %2994 = vrot.lane.b32.xlu0 %v2919, 15
    %v2995 = vpop.permute.xlu0 %2994
    %2996 = vrot.lane.b32.xlu0 %v2920, 15
    %v2997 = vpop.permute.xlu0 %2996
    %2998 = vrot.lane.b32.xlu0 %v2921, 15
    %v2999 = vpop.permute.xlu0 %2998
    %3000 = vrot.lane.b32.xlu0 %v2922, 15
    %v3001 = vpop.permute.xlu0 %3000
    %3002 = vrot.lane.b32.xlu0 %v2923, 15
    %v3003 = vpop.permute.xlu0 %3002
    %3004 = vrot.lane.b32.xlu0 %v2924, 15
    %v3005 = vpop.permute.xlu0 %3004
    %3006 = vrot.lane.b32.xlu0 %v2925, 15
    %v3007 = vpop.permute.xlu0 %3006
    %3008 = vrot.lane.b32.xlu0 %v2926, 15
    %v3009 = vpop.permute.xlu0 %3008
    %3010 = vrot.lane.b32.xlu0 %v2927, 15
    %v3011 = vpop.permute.xlu0 %3010
    %3012 = vrot.lane.b32.xlu0 %v2928, 15
    %v3013 = vpop.permute.xlu0 %3012
    %3014 = vrot.lane.b32.xlu0 %v2929, 15
    %v3015 = vpop.permute.xlu0 %3014
    %3016 = vrot.lane.b32.xlu0 %v2930, 15
    %v3017 = vpop.permute.xlu0 %3016
    %3018 = vrot.lane.b32.xlu0 %v2931, 15
    %v3019 = vpop.permute.xlu0 %3018
    %3020 = vrot.lane.b32.xlu0 %v2932, 15
    %v3021 = vpop.permute.xlu0 %3020
    %3022 = vrot.lane.b32.xlu0 %v2933, 15
    %v3023 = vpop.permute.xlu0 %3022
    %3024 = vrot.lane.b32.xlu0 %v2934, 15
    %v3025 = vpop.permute.xlu0 %3024
    %3026 = vrot.lane.b32.xlu0 %v2935, 15
    %v3027 = vpop.permute.xlu0 %3026
    %3028 = vrot.lane.b32.xlu0 %v2936, 15
    %v3029 = vpop.permute.xlu0 %3028
    %3030 = vrot.lane.b32.xlu0 %v2937, 15
    %v3031 = vpop.permute.xlu0 %3030
    %3032 = vrot.lane.b32.xlu0 %v2938, 15
    %v3033 = vpop.permute.xlu0 %3032
    %3034 = vrot.lane.b32.xlu0 %v2939, 15
    %v3035 = vpop.permute.xlu0 %3034
    %3036 = vrot.lane.b32.xlu0 %v2940, 15
    %v3037 = vpop.permute.xlu0 %3036
    %3038 = vrot.lane.b32.xlu0 %v2941, 15
    %v3039 = vpop.permute.xlu0 %3038
    %3040 = vrot.lane.b32.xlu0 %v2942, 15
    %v3041 = vpop.permute.xlu0 %3040
    %3042 = vrot.lane.b32.xlu0 %v2943, 15
    %v3043 = vpop.permute.xlu0 %3042
    %3044 = vrot.lane.b32.xlu0 %v2944, 15
    %v3045 = vpop.permute.xlu0 %3044
    %3046 = vrot.lane.b32.xlu0 %v2945, 15
    %v3047 = vpop.permute.xlu0 %3046
    %3048 = vrot.lane.b32.xlu0 %v2946, 15
    %v3049 = vpop.permute.xlu0 %3048
    %3050 = vrot.lane.b32.xlu0 %v2947, 15
    %v3051 = vpop.permute.xlu0 %3050
    %3052 = vrot.lane.b32.xlu0 %v2948, 15
    %v3053 = vpop.permute.xlu0 %3052
    %3054 = vrot.lane.b32.xlu0 %v2949, 15
    %v3055 = vpop.permute.xlu0 %3054
    %3056 = vrot.lane.b32.xlu0 %v2950, 15
    %v3057 = vpop.permute.xlu0 %3056
    %3058 = vrot.lane.b32.xlu0 %v2951, 15
    %v3059 = vpop.permute.xlu0 %3058
    %3060 = vrot.lane.b32.xlu0 %v2952, 15
    %v3061 = vpop.permute.xlu0 %3060
    %3062 = vrot.lane.b32.xlu0 %v2953, 15
    %v3063 = vpop.permute.xlu0 %3062
    %3064 = vrot.lane.b32.xlu0 %v2954, 15
    %v3065 = vpop.permute.xlu0 %3064
    %3066 = vrot.lane.b32.xlu0 %v2955, 15
    %v3067 = vpop.permute.xlu0 %3066
    %3068 = vrot.lane.b32.xlu0 %v2956, 15
    %v3069 = vpop.permute.xlu0 %3068
    %3070 = vrot.lane.b32.xlu0 %v2957, 15
    %v3071 = vpop.permute.xlu0 %3070
    %3072 = vrot.lane.b32.xlu0 %v2958, 15
    %v3073 = vpop.permute.xlu0 %3072
    %3074 = vrot.lane.b32.xlu0 %v2959, 15
    %v3075 = vpop.permute.xlu0 %3074
    %3076 = vrot.lane.b32.xlu0 %v2960, 15
    %v3077 = vpop.permute.xlu0 %3076
    %3078 = vrot.lane.b32.xlu0 %v2961, 15
    %v3079 = vpop.permute.xlu0 %3078
    %3080 = vrot.lane.b32.xlu0 %v2962, 15
    %v3081 = vpop.permute.xlu0 %3080
    %3082 = vrot.lane.b32.xlu0 %v2963, 15
    %v3083 = vpop.permute.xlu0 %3082
    %3084 = vrot.lane.b32.xlu0 %v2964, 15
    %v3085 = vpop.permute.xlu0 %3084
    %3086 = vrot.lane.b32.xlu0 %v2965, 15
    %v3087 = vpop.permute.xlu0 %3086
    %3088 = vrot.lane.b32.xlu0 %v2966, 15
    %v3089 = vpop.permute.xlu0 %3088
    %3090 = vrot.lane.b32.xlu0 %v2967, 15
    %v3091 = vpop.permute.xlu0 %3090
    %3092 = vrot.lane.b32.xlu0 %v2968, 15
    %v3093 = vpop.permute.xlu0 %3092
    %3094 = vrot.lane.b32.xlu0 %v2969, 15
    %v3095 = vpop.permute.xlu0 %3094
    %3096 = vrot.lane.b32.xlu0 %v2970, 15
    %v3097 = vpop.permute.xlu0 %3096
    %3098 = vrot.lane.b32.xlu0 %v2971, 15
    %v3099 = vpop.permute.xlu0 %3098
    %vm3164 = vcmask 142456
    %3165 = vst.msk [vmem:[#allocation3] sm:$0xf] %vm3164, %v2973
    %3166 = vst.msk [vmem:[#allocation3 + $0x4] sm:$0xf] %vm3164, %v2975
    %3167 = vst.msk [vmem:[#allocation3 + $0x8] sm:$0xf] %vm3164, %v2977
    %3168 = vst.msk [vmem:[#allocation3 + $0xc] sm:$0xf] %vm3164, %v2979
    %3169 = vst.msk [vmem:[#allocation3 + $0x10] sm:$0xf] %vm3164, %v2981
    %3170 = vst.msk [vmem:[#allocation3 + $0x14] sm:$0xf] %vm3164, %v2983
    %3171 = vst.msk [vmem:[#allocation3 + $0x18] sm:$0xf] %vm3164, %v2985
    %3172 = vst.msk [vmem:[#allocation3 + $0x1c] sm:$0xf] %vm3164, %v2987
    %3173 = vst.msk [vmem:[#allocation3 + $0x20] sm:$0xf] %vm3164, %v2989
    %3174 = vst.msk [vmem:[#allocation3 + $0x24] sm:$0xf] %vm3164, %v2991
    %3175 = vst.msk [vmem:[#allocation3 + $0x28] sm:$0xf] %vm3164, %v2993
    %3176 = vst.msk [vmem:[#allocation3 + $0x2c] sm:$0xf] %vm3164, %v2995
    %3177 = vst.msk [vmem:[#allocation3 + $0x30] sm:$0xf] %vm3164, %v2997
    %3178 = vst.msk [vmem:[#allocation3 + $0x34] sm:$0xf] %vm3164, %v2999
    %3179 = vst.msk [vmem:[#allocation3 + $0x38] sm:$0xf] %vm3164, %v3001
    %3180 = vst.msk [vmem:[#allocation3 + $0x3c] sm:$0xf] %vm3164, %v3003
    %3181 = vst.msk [vmem:[#allocation3 + $0x40] sm:$0xf] %vm3164, %v3005
    %3182 = vst.msk [vmem:[#allocation3 + $0x44] sm:$0xf] %vm3164, %v3007
    %3183 = vst.msk [vmem:[#allocation3 + $0x48] sm:$0xf] %vm3164, %v3009
    %3184 = vst.msk [vmem:[#allocation3 + $0x4c] sm:$0xf] %vm3164, %v3011
    %3185 = vst.msk [vmem:[#allocation3 + $0x50] sm:$0xf] %vm3164, %v3013
    %3186 = vst.msk [vmem:[#allocation3 + $0x54] sm:$0xf] %vm3164, %v3015
    %3187 = vst.msk [vmem:[#allocation3 + $0x58] sm:$0xf] %vm3164, %v3017
    %3188 = vst.msk [vmem:[#allocation3 + $0x5c] sm:$0xf] %vm3164, %v3019
    %3189 = vst.msk [vmem:[#allocation3 + $0x60] sm:$0xf] %vm3164, %v3021
    %3190 = vst.msk [vmem:[#allocation3 + $0x64] sm:$0xf] %vm3164, %v3023
    %3191 = vst.msk [vmem:[#allocation3 + $0x68] sm:$0xf] %vm3164, %v3025
    %3192 = vst.msk [vmem:[#allocation3 + $0x6c] sm:$0xf] %vm3164, %v3027
    %3193 = vst.msk [vmem:[#allocation3 + $0x70] sm:$0xf] %vm3164, %v3029
    %3194 = vst.msk [vmem:[#allocation3 + $0x74] sm:$0xf] %vm3164, %v3031
    %3195 = vst.msk [vmem:[#allocation3 + $0x78] sm:$0xf] %vm3164, %v3033
    %3196 = vst.msk [vmem:[#allocation3 + $0x7c] sm:$0xf] %vm3164, %v3035
    %3197 = vst.msk [vmem:[#allocation3 + $0x80] sm:$0xf] %vm3164, %v3037
    %3198 = vst.msk [vmem:[#allocation3 + $0x84] sm:$0xf] %vm3164, %v3039
    %3199 = vst.msk [vmem:[#allocation3 + $0x88] sm:$0xf] %vm3164, %v3041
    %3200 = vst.msk [vmem:[#allocation3 + $0x8c] sm:$0xf] %vm3164, %v3043
    %3201 = vst.msk [vmem:[#allocation3 + $0x90] sm:$0xf] %vm3164, %v3045
    %3202 = vst.msk [vmem:[#allocation3 + $0x94] sm:$0xf] %vm3164, %v3047
    %3203 = vst.msk [vmem:[#allocation3 + $0x98] sm:$0xf] %vm3164, %v3049
    %3204 = vst.msk [vmem:[#allocation3 + $0x9c] sm:$0xf] %vm3164, %v3051
    %3205 = vst.msk [vmem:[#allocation3 + $0xa0] sm:$0xf] %vm3164, %v3053
    %3206 = vst.msk [vmem:[#allocation3 + $0xa4] sm:$0xf] %vm3164, %v3055
    %3207 = vst.msk [vmem:[#allocation3 + $0xa8] sm:$0xf] %vm3164, %v3057
    %3208 = vst.msk [vmem:[#allocation3 + $0xac] sm:$0xf] %vm3164, %v3059
    %3209 = vst.msk [vmem:[#allocation3 + $0xb0] sm:$0xf] %vm3164, %v3061
    %3210 = vst.msk [vmem:[#allocation3 + $0xb4] sm:$0xf] %vm3164, %v3063
    %3211 = vst.msk [vmem:[#allocation3 + $0xb8] sm:$0xf] %vm3164, %v3065
    %3212 = vst.msk [vmem:[#allocation3 + $0xbc] sm:$0xf] %vm3164, %v3067
    %3213 = vst.msk [vmem:[#allocation3 + $0xc0] sm:$0xf] %vm3164, %v3069
    %3214 = vst.msk [vmem:[#allocation3 + $0xc4] sm:$0xf] %vm3164, %v3071
    %3215 = vst.msk [vmem:[#allocation3 + $0xc8] sm:$0xf] %vm3164, %v3073
    %3216 = vst.msk [vmem:[#allocation3 + $0xcc] sm:$0xf] %vm3164, %v3075
    %3217 = vst.msk [vmem:[#allocation3 + $0xd0] sm:$0xf] %vm3164, %v3077
    %3218 = vst.msk [vmem:[#allocation3 + $0xd4] sm:$0xf] %vm3164, %v3079
    %3219 = vst.msk [vmem:[#allocation3 + $0xd8] sm:$0xf] %vm3164, %v3081
    %3220 = vst.msk [vmem:[#allocation3 + $0xdc] sm:$0xf] %vm3164, %v3083
    %3221 = vst.msk [vmem:[#allocation3 + $0xe0] sm:$0xf] %vm3164, %v3085
    %3222 = vst.msk [vmem:[#allocation3 + $0xe4] sm:$0xf] %vm3164, %v3087
    %3223 = vst.msk [vmem:[#allocation3 + $0xe8] sm:$0xf] %vm3164, %v3089
    %3224 = vst.msk [vmem:[#allocation3 + $0xec] sm:$0xf] %vm3164, %v3091
    %3225 = vst.msk [vmem:[#allocation3 + $0xf0] sm:$0xf] %vm3164, %v3093
    %3226 = vst.msk [vmem:[#allocation3 + $0xf4] sm:$0xf] %vm3164, %v3095
    %3227 = vst.msk [vmem:[#allocation3 + $0xf8] sm:$0xf] %vm3164, %v3097
    %3228 = vst.msk [vmem:[#allocation3 + $0xfc] sm:$0xf] %vm3164, %v3099
    %s3229 = scalar_lea.vmem [#allocation2], 48
    %v3230 = vld [vmem:[%s3229] sm:$0xff]
    %v3231 = vld [vmem:[%s3229 + $0x8] sm:$0xff]
    %v3232 = vld [vmem:[%s3229 + $0x18] sm:$0xff]
    %v3233 = vld [vmem:[%s3229 + $0x20] sm:$0xff]
    %v3234 = vld [vmem:[%s3229 + $0x30] sm:$0xff]
    %v3235 = vld [vmem:[%s3229 + $0x38] sm:$0xff]
    %v3236 = vld [vmem:[%s3229 + $0x48] sm:$0xff]
    %v3237 = vld [vmem:[%s3229 + $0x50] sm:$0xff]
    %v3238 = vld [vmem:[%s3229 + $0x60] sm:$0xff]
    %v3239 = vld [vmem:[%s3229 + $0x68] sm:$0xff]
    %v3240 = vld [vmem:[%s3229 + $0x78] sm:$0xff]
    %v3241 = vld [vmem:[%s3229 + $0x80] sm:$0xff]
    %v3242 = vld [vmem:[%s3229 + $0x90] sm:$0xff]
    %v3243 = vld [vmem:[%s3229 + $0x98] sm:$0xff]
    %v3244 = vld [vmem:[%s3229 + $0xa8] sm:$0xff]
    %v3245 = vld [vmem:[%s3229 + $0xb0] sm:$0xff]
    %v3246 = vld [vmem:[%s3229 + $0xc0] sm:$0xff]
    %v3247 = vld [vmem:[%s3229 + $0xc8] sm:$0xff]
    %v3248 = vld [vmem:[%s3229 + $0xd8] sm:$0xff]
    %v3249 = vld [vmem:[%s3229 + $0xe0] sm:$0xff]
    %v3250 = vld [vmem:[%s3229 + $0xf0] sm:$0xff]
    %v3251 = vld [vmem:[%s3229 + $0xf8] sm:$0xff]
    %v3252 = vld [vmem:[%s3229 + $0x108] sm:$0xff]
    %v3253 = vld [vmem:[%s3229 + $0x110] sm:$0xff]
    %v3254 = vld [vmem:[%s3229 + $0x120] sm:$0xff]
    %v3255 = vld [vmem:[%s3229 + $0x128] sm:$0xff]
    %v3256 = vld [vmem:[%s3229 + $0x138] sm:$0xff]
    %v3257 = vld [vmem:[%s3229 + $0x140] sm:$0xff]
    %v3258 = vld [vmem:[%s3229 + $0x150] sm:$0xff]
    %v3259 = vld [vmem:[%s3229 + $0x158] sm:$0xff]
    %v3260 = vld [vmem:[%s3229 + $0x168] sm:$0xff]
    %v3261 = vld [vmem:[%s3229 + $0x170] sm:$0xff]
    %v3262 = vld [vmem:[%s3229 + $0x1b0] sm:$0xff]
    %v3263 = vld [vmem:[%s3229 + $0x1b8] sm:$0xff]
    %v3264 = vld [vmem:[%s3229 + $0x1c8] sm:$0xff]
    %v3265 = vld [vmem:[%s3229 + $0x1d0] sm:$0xff]
    %v3266 = vld [vmem:[%s3229 + $0x1e0] sm:$0xff]
    %v3267 = vld [vmem:[%s3229 + $0x1e8] sm:$0xff]
    %v3268 = vld [vmem:[%s3229 + $0x1f8] sm:$0xff]
    %v3269 = vld [vmem:[%s3229 + $0x200] sm:$0xff]
    %v3270 = vld [vmem:[%s3229 + $0x210] sm:$0xff]
    %v3271 = vld [vmem:[%s3229 + $0x218] sm:$0xff]
    %v3272 = vld [vmem:[%s3229 + $0x228] sm:$0xff]
    %v3273 = vld [vmem:[%s3229 + $0x230] sm:$0xff]
    %v3274 = vld [vmem:[%s3229 + $0x240] sm:$0xff]
    %v3275 = vld [vmem:[%s3229 + $0x248] sm:$0xff]
    %v3276 = vld [vmem:[%s3229 + $0x258] sm:$0xff]
    %v3277 = vld [vmem:[%s3229 + $0x260] sm:$0xff]
    %v3278 = vld [vmem:[%s3229 + $0x270] sm:$0xff]
    %v3279 = vld [vmem:[%s3229 + $0x278] sm:$0xff]
    %v3280 = vld [vmem:[%s3229 + $0x288] sm:$0xff]
    %v3281 = vld [vmem:[%s3229 + $0x290] sm:$0xff]
    %v3282 = vld [vmem:[%s3229 + $0x2a0] sm:$0xff]
    %v3283 = vld [vmem:[%s3229 + $0x2a8] sm:$0xff]
    %v3284 = vld [vmem:[%s3229 + $0x2b8] sm:$0xff]
    %v3285 = vld [vmem:[%s3229 + $0x2c0] sm:$0xff]
    %v3286 = vld [vmem:[%s3229 + $0x2d0] sm:$0xff]
    %v3287 = vld [vmem:[%s3229 + $0x2d8] sm:$0xff]
    %v3288 = vld [vmem:[%s3229 + $0x2e8] sm:$0xff]
    %v3289 = vld [vmem:[%s3229 + $0x2f0] sm:$0xff]
    %v3290 = vld [vmem:[%s3229 + $0x300] sm:$0xff]
    %v3291 = vld [vmem:[%s3229 + $0x308] sm:$0xff]
    %v3292 = vld [vmem:[%s3229 + $0x318] sm:$0xff]
    %v3293 = vld [vmem:[%s3229 + $0x320] sm:$0xff]
    %v3294 = vpack.c.bf16 %v3231, %v3230
    %v3295 = vpack.c.bf16 %v3233, %v3232
    %v3296 = vpack.c.bf16 %v3235, %v3234
    %v3297 = vpack.c.bf16 %v3237, %v3236
    %v3298 = vpack.c.bf16 %v3239, %v3238
    %v3299 = vpack.c.bf16 %v3241, %v3240
    %v3300 = vpack.c.bf16 %v3243, %v3242
    %v3301 = vpack.c.bf16 %v3245, %v3244
    %v3302 = vpack.c.bf16 %v3247, %v3246
    %v3303 = vpack.c.bf16 %v3249, %v3248
    %v3304 = vpack.c.bf16 %v3251, %v3250
    %v3305 = vpack.c.bf16 %v3253, %v3252
    %v3306 = vpack.c.bf16 %v3255, %v3254
    %v3307 = vpack.c.bf16 %v3257, %v3256
    %v3308 = vpack.c.bf16 %v3259, %v3258
    %v3309 = vpack.c.bf16 %v3261, %v3260
    %v3310 = vpack.c.bf16 %v3263, %v3262
    %v3311 = vpack.c.bf16 %v3265, %v3264
    %v3312 = vpack.c.bf16 %v3267, %v3266
    %v3313 = vpack.c.bf16 %v3269, %v3268
    %v3314 = vpack.c.bf16 %v3271, %v3270
    %v3315 = vpack.c.bf16 %v3273, %v3272
    %v3316 = vpack.c.bf16 %v3275, %v3274
    %v3317 = vpack.c.bf16 %v3277, %v3276
    %v3318 = vpack.c.bf16 %v3279, %v3278
    %v3319 = vpack.c.bf16 %v3281, %v3280
    %v3320 = vpack.c.bf16 %v3283, %v3282
    %v3321 = vpack.c.bf16 %v3285, %v3284
    %v3322 = vpack.c.bf16 %v3287, %v3286
    %v3323 = vpack.c.bf16 %v3289, %v3288
    %v3324 = vpack.c.bf16 %v3291, %v3290
    %v3325 = vpack.c.bf16 %v3293, %v3292
    %v3358 = vunpack.c.l.b16 %v3294
    %v3359 = vunpack.c.h.b16 %v3294
    %v3360 = vunpack.c.l.b16 %v3295
    %v3361 = vunpack.c.h.b16 %v3295
    %v3362 = vunpack.c.l.b16 %v3296
    %v3363 = vunpack.c.h.b16 %v3296
    %v3364 = vunpack.c.l.b16 %v3297
    %v3365 = vunpack.c.h.b16 %v3297
    %v3366 = vunpack.c.l.b16 %v3298
    %v3367 = vunpack.c.h.b16 %v3298
    %v3368 = vunpack.c.l.b16 %v3299
    %v3369 = vunpack.c.h.b16 %v3299
    %v3370 = vunpack.c.l.b16 %v3300
    %v3371 = vunpack.c.h.b16 %v3300
    %v3372 = vunpack.c.l.b16 %v3301
    %v3373 = vunpack.c.h.b16 %v3301
    %v3374 = vunpack.c.l.b16 %v3302
    %v3375 = vunpack.c.h.b16 %v3302
    %v3376 = vunpack.c.l.b16 %v3303
    %v3377 = vunpack.c.h.b16 %v3303
    %v3378 = vunpack.c.l.b16 %v3304
    %v3379 = vunpack.c.h.b16 %v3304
    %v3380 = vunpack.c.l.b16 %v3305
    %v3381 = vunpack.c.h.b16 %v3305
    %v3382 = vunpack.c.l.b16 %v3306
    %v3383 = vunpack.c.h.b16 %v3306
    %v3384 = vunpack.c.l.b16 %v3307
    %v3385 = vunpack.c.h.b16 %v3307
    %v3386 = vunpack.c.l.b16 %v3308
    %v3387 = vunpack.c.h.b16 %v3308
    %v3388 = vunpack.c.l.b16 %v3309
    %v3389 = vunpack.c.h.b16 %v3309
    %v3390 = vunpack.c.l.b16 %v3310
    %v3391 = vunpack.c.h.b16 %v3310
    %v3392 = vunpack.c.l.b16 %v3311
    %v3393 = vunpack.c.h.b16 %v3311
    %v3394 = vunpack.c.l.b16 %v3312
    %v3395 = vunpack.c.h.b16 %v3312
    %v3396 = vunpack.c.l.b16 %v3313
    %v3397 = vunpack.c.h.b16 %v3313
    %v3398 = vunpack.c.l.b16 %v3314
    %v3399 = vunpack.c.h.b16 %v3314
    %v3400 = vunpack.c.l.b16 %v3315
    %v3401 = vunpack.c.h.b16 %v3315
    %v3402 = vunpack.c.l.b16 %v3316
    %v3403 = vunpack.c.h.b16 %v3316
    %v3404 = vunpack.c.l.b16 %v3317
    %v3405 = vunpack.c.h.b16 %v3317
    %v3406 = vunpack.c.l.b16 %v3318
    %v3407 = vunpack.c.h.b16 %v3318
    %v3408 = vunpack.c.l.b16 %v3319
    %v3409 = vunpack.c.h.b16 %v3319
    %v3410 = vunpack.c.l.b16 %v3320
    %v3411 = vunpack.c.h.b16 %v3320
    %v3412 = vunpack.c.l.b16 %v3321
    %v3413 = vunpack.c.h.b16 %v3321
    %v3414 = vunpack.c.l.b16 %v3322
    %v3415 = vunpack.c.h.b16 %v3322
    %v3416 = vunpack.c.l.b16 %v3323
    %v3417 = vunpack.c.h.b16 %v3323
    %v3418 = vunpack.c.l.b16 %v3324
    %v3419 = vunpack.c.h.b16 %v3324
    %v3420 = vunpack.c.l.b16 %v3325
    %v3421 = vunpack.c.h.b16 %v3325
    %v3422 = vpack.c.b16 %v3358, %v3358
    %v3423 = vpack.c.b16 %v3359, %v3359
    %v3424 = vpack.c.b16 %v3360, %v3360
    %v3425 = vpack.c.b16 %v3361, %v3361
    %v3426 = vpack.c.b16 %v3362, %v3362
    %v3427 = vpack.c.b16 %v3363, %v3363
    %v3428 = vpack.c.b16 %v3364, %v3364
    %v3429 = vpack.c.b16 %v3365, %v3365
    %v3430 = vpack.c.b16 %v3366, %v3366
    %v3431 = vpack.c.b16 %v3367, %v3367
    %v3432 = vpack.c.b16 %v3368, %v3368
    %v3433 = vpack.c.b16 %v3369, %v3369
    %v3434 = vpack.c.b16 %v3370, %v3370
    %v3435 = vpack.c.b16 %v3371, %v3371
    %v3436 = vpack.c.b16 %v3372, %v3372
    %v3437 = vpack.c.b16 %v3373, %v3373
    %v3438 = vpack.c.b16 %v3374, %v3374
    %v3439 = vpack.c.b16 %v3375, %v3375
    %v3440 = vpack.c.b16 %v3376, %v3376
    %v3441 = vpack.c.b16 %v3377, %v3377
    %v3442 = vpack.c.b16 %v3378, %v3378
    %v3443 = vpack.c.b16 %v3379, %v3379
    %v3444 = vpack.c.b16 %v3380, %v3380
    %v3445 = vpack.c.b16 %v3381, %v3381
    %v3446 = vpack.c.b16 %v3382, %v3382
    %v3447 = vpack.c.b16 %v3383, %v3383
    %v3448 = vpack.c.b16 %v3384, %v3384
    %v3449 = vpack.c.b16 %v3385, %v3385
    %v3450 = vpack.c.b16 %v3386, %v3386
    %v3451 = vpack.c.b16 %v3387, %v3387
    %v3452 = vpack.c.b16 %v3388, %v3388
    %v3453 = vpack.c.b16 %v3389, %v3389
    %v3454 = vpack.c.b16 %v3390, %v3390
    %v3455 = vpack.c.b16 %v3391, %v3391
    %v3456 = vpack.c.b16 %v3392, %v3392
    %v3457 = vpack.c.b16 %v3393, %v3393
    %v3458 = vpack.c.b16 %v3394, %v3394
    %v3459 = vpack.c.b16 %v3395, %v3395
    %v3460 = vpack.c.b16 %v3396, %v3396
    %v3461 = vpack.c.b16 %v3397, %v3397
    %v3462 = vpack.c.b16 %v3398, %v3398
    %v3463 = vpack.c.b16 %v3399, %v3399
    %v3464 = vpack.c.b16 %v3400, %v3400
    %v3465 = vpack.c.b16 %v3401, %v3401
    %v3466 = vpack.c.b16 %v3402, %v3402
    %v3467 = vpack.c.b16 %v3403, %v3403
    %v3468 = vpack.c.b16 %v3404, %v3404
    %v3469 = vpack.c.b16 %v3405, %v3405
    %v3470 = vpack.c.b16 %v3406, %v3406
    %v3471 = vpack.c.b16 %v3407, %v3407
    %v3472 = vpack.c.b16 %v3408, %v3408
    %v3473 = vpack.c.b16 %v3409, %v3409
    %v3474 = vpack.c.b16 %v3410, %v3410
    %v3475 = vpack.c.b16 %v3411, %v3411
    %v3476 = vpack.c.b16 %v3412, %v3412
    %v3477 = vpack.c.b16 %v3413, %v3413
    %v3478 = vpack.c.b16 %v3414, %v3414
    %v3479 = vpack.c.b16 %v3415, %v3415
    %v3480 = vpack.c.b16 %v3416, %v3416
    %v3481 = vpack.c.b16 %v3417, %v3417
    %v3482 = vpack.c.b16 %v3418, %v3418
    %v3483 = vpack.c.b16 %v3419, %v3419
    %v3484 = vpack.c.b16 %v3420, %v3420
    %v3485 = vpack.c.b16 %v3421, %v3421
    %3486 = vrot.lane.b32.xlu0 %v3422, 18
    %v3487 = vpop.permute.xlu0 %3486
    %3488 = vrot.lane.b32.xlu0 %v3423, 18
    %v3489 = vpop.permute.xlu0 %3488
    %3490 = vrot.lane.b32.xlu0 %v3424, 18
    %v3491 = vpop.permute.xlu0 %3490
    %3492 = vrot.lane.b32.xlu0 %v3425, 18
    %v3493 = vpop.permute.xlu0 %3492
    %3494 = vrot.lane.b32.xlu0 %v3426, 18
    %v3495 = vpop.permute.xlu0 %3494
    %3496 = vrot.lane.b32.xlu0 %v3427, 18
    %v3497 = vpop.permute.xlu0 %3496
    %3498 = vrot.lane.b32.xlu0 %v3428, 18
    %v3499 = vpop.permute.xlu0 %3498
    %3500 = vrot.lane.b32.xlu0 %v3429, 18
    %v3501 = vpop.permute.xlu0 %3500
    %3502 = vrot.lane.b32.xlu0 %v3430, 18
    %v3503 = vpop.permute.xlu0 %3502
    %3504 = vrot.lane.b32.xlu0 %v3431, 18
    %v3505 = vpop.permute.xlu0 %3504
    %3506 = vrot.lane.b32.xlu0 %v3432, 18
    %v3507 = vpop.permute.xlu0 %3506
    %3508 = vrot.lane.b32.xlu0 %v3433, 18
    %v3509 = vpop.permute.xlu0 %3508
    %3510 = vrot.lane.b32.xlu0 %v3434, 18
    %v3511 = vpop.permute.xlu0 %3510
    %3512 = vrot.lane.b32.xlu0 %v3435, 18
    %v3513 = vpop.permute.xlu0 %3512
    %3514 = vrot.lane.b32.xlu0 %v3436, 18
    %v3515 = vpop.permute.xlu0 %3514
    %3516 = vrot.lane.b32.xlu0 %v3437, 18
    %v3517 = vpop.permute.xlu0 %3516
    %3518 = vrot.lane.b32.xlu0 %v3438, 18
    %v3519 = vpop.permute.xlu0 %3518
    %3520 = vrot.lane.b32.xlu0 %v3439, 18
    %v3521 = vpop.permute.xlu0 %3520
    %3522 = vrot.lane.b32.xlu0 %v3440, 18
    %v3523 = vpop.permute.xlu0 %3522
    %3524 = vrot.lane.b32.xlu0 %v3441, 18
    %v3525 = vpop.permute.xlu0 %3524
    %3526 = vrot.lane.b32.xlu0 %v3442, 18
    %v3527 = vpop.permute.xlu0 %3526
    %3528 = vrot.lane.b32.xlu0 %v3443, 18
    %v3529 = vpop.permute.xlu0 %3528
    %3530 = vrot.lane.b32.xlu0 %v3444, 18
    %v3531 = vpop.permute.xlu0 %3530
    %3532 = vrot.lane.b32.xlu0 %v3445, 18
    %v3533 = vpop.permute.xlu0 %3532
    %3534 = vrot.lane.b32.xlu0 %v3446, 18
    %v3535 = vpop.permute.xlu0 %3534
    %3536 = vrot.lane.b32.xlu0 %v3447, 18
    %v3537 = vpop.permute.xlu0 %3536
    %3538 = vrot.lane.b32.xlu0 %v3448, 18
    %v3539 = vpop.permute.xlu0 %3538
    %3540 = vrot.lane.b32.xlu0 %v3449, 18
    %v3541 = vpop.permute.xlu0 %3540
    %3542 = vrot.lane.b32.xlu0 %v3450, 18
    %v3543 = vpop.permute.xlu0 %3542
    %3544 = vrot.lane.b32.xlu0 %v3451, 18
    %v3545 = vpop.permute.xlu0 %3544
    %3546 = vrot.lane.b32.xlu0 %v3452, 18
    %v3547 = vpop.permute.xlu0 %3546
    %3548 = vrot.lane.b32.xlu0 %v3453, 18
    %v3549 = vpop.permute.xlu0 %3548
    %3550 = vrot.lane.b32.xlu0 %v3454, 18
    %v3551 = vpop.permute.xlu0 %3550
    %3552 = vrot.lane.b32.xlu0 %v3455, 18
    %v3553 = vpop.permute.xlu0 %3552
    %3554 = vrot.lane.b32.xlu0 %v3456, 18
    %v3555 = vpop.permute.xlu0 %3554
    %3556 = vrot.lane.b32.xlu0 %v3457, 18
    %v3557 = vpop.permute.xlu0 %3556
    %3558 = vrot.lane.b32.xlu0 %v3458, 18
    %v3559 = vpop.permute.xlu0 %3558
    %3560 = vrot.lane.b32.xlu0 %v3459, 18
    %v3561 = vpop.permute.xlu0 %3560
    %3562 = vrot.lane.b32.xlu0 %v3460, 18
    %v3563 = vpop.permute.xlu0 %3562
    %3564 = vrot.lane.b32.xlu0 %v3461, 18
    %v3565 = vpop.permute.xlu0 %3564
    %3566 = vrot.lane.b32.xlu0 %v3462, 18
    %v3567 = vpop.permute.xlu0 %3566
    %3568 = vrot.lane.b32.xlu0 %v3463, 18
    %v3569 = vpop.permute.xlu0 %3568
    %3570 = vrot.lane.b32.xlu0 %v3464, 18
    %v3571 = vpop.permute.xlu0 %3570
    %3572 = vrot.lane.b32.xlu0 %v3465, 18
    %v3573 = vpop.permute.xlu0 %3572
    %3574 = vrot.lane.b32.xlu0 %v3466, 18
    %v3575 = vpop.permute.xlu0 %3574
    %3576 = vrot.lane.b32.xlu0 %v3467, 18
    %v3577 = vpop.permute.xlu0 %3576
    %3578 = vrot.lane.b32.xlu0 %v3468, 18
    %v3579 = vpop.permute.xlu0 %3578
    %3580 = vrot.lane.b32.xlu0 %v3469, 18
    %v3581 = vpop.permute.xlu0 %3580
    %3582 = vrot.lane.b32.xlu0 %v3470, 18
    %v3583 = vpop.permute.xlu0 %3582
    %3584 = vrot.lane.b32.xlu0 %v3471, 18
    %v3585 = vpop.permute.xlu0 %3584
    %3586 = vrot.lane.b32.xlu0 %v3472, 18
    %v3587 = vpop.permute.xlu0 %3586
    %3588 = vrot.lane.b32.xlu0 %v3473, 18
    %v3589 = vpop.permute.xlu0 %3588
    %3590 = vrot.lane.b32.xlu0 %v3474, 18
    %v3591 = vpop.permute.xlu0 %3590
    %3592 = vrot.lane.b32.xlu0 %v3475, 18
    %v3593 = vpop.permute.xlu0 %3592
    %3594 = vrot.lane.b32.xlu0 %v3476, 18
    %v3595 = vpop.permute.xlu0 %3594
    %3596 = vrot.lane.b32.xlu0 %v3477, 18
    %v3597 = vpop.permute.xlu0 %3596
    %3598 = vrot.lane.b32.xlu0 %v3478, 18
    %v3599 = vpop.permute.xlu0 %3598
    %3600 = vrot.lane.b32.xlu0 %v3479, 18
    %v3601 = vpop.permute.xlu0 %3600
    %3602 = vrot.lane.b32.xlu0 %v3480, 18
    %v3603 = vpop.permute.xlu0 %3602
    %3604 = vrot.lane.b32.xlu0 %v3481, 18
    %v3605 = vpop.permute.xlu0 %3604
    %3606 = vrot.lane.b32.xlu0 %v3482, 18
    %v3607 = vpop.permute.xlu0 %3606
    %3608 = vrot.lane.b32.xlu0 %v3483, 18
    %v3609 = vpop.permute.xlu0 %3608
    %3610 = vrot.lane.b32.xlu0 %v3484, 18
    %v3611 = vpop.permute.xlu0 %3610
    %3612 = vrot.lane.b32.xlu0 %v3485, 18
    %v3613 = vpop.permute.xlu0 %3612
    %vm3678 = vcmask 167056
    %3679 = vst.msk [vmem:[#allocation3] sm:$0xf] %vm3678, %v3487
    %3680 = vst.msk [vmem:[#allocation3 + $0x4] sm:$0xf] %vm3678, %v3489
    %3681 = vst.msk [vmem:[#allocation3 + $0x8] sm:$0xf] %vm3678, %v3491
    %3682 = vst.msk [vmem:[#allocation3 + $0xc] sm:$0xf] %vm3678, %v3493
    %3683 = vst.msk [vmem:[#allocation3 + $0x10] sm:$0xf] %vm3678, %v3495
    %3684 = vst.msk [vmem:[#allocation3 + $0x14] sm:$0xf] %vm3678, %v3497
    %3685 = vst.msk [vmem:[#allocation3 + $0x18] sm:$0xf] %vm3678, %v3499
    %3686 = vst.msk [vmem:[#allocation3 + $0x1c] sm:$0xf] %vm3678, %v3501
    %3687 = vst.msk [vmem:[#allocation3 + $0x20] sm:$0xf] %vm3678, %v3503
    %3688 = vst.msk [vmem:[#allocation3 + $0x24] sm:$0xf] %vm3678, %v3505
    %3689 = vst.msk [vmem:[#allocation3 + $0x28] sm:$0xf] %vm3678, %v3507
    %3690 = vst.msk [vmem:[#allocation3 + $0x2c] sm:$0xf] %vm3678, %v3509
    %3691 = vst.msk [vmem:[#allocation3 + $0x30] sm:$0xf] %vm3678, %v3511
    %3692 = vst.msk [vmem:[#allocation3 + $0x34] sm:$0xf] %vm3678, %v3513
    %3693 = vst.msk [vmem:[#allocation3 + $0x38] sm:$0xf] %vm3678, %v3515
    %3694 = vst.msk [vmem:[#allocation3 + $0x3c] sm:$0xf] %vm3678, %v3517
    %3695 = vst.msk [vmem:[#allocation3 + $0x40] sm:$0xf] %vm3678, %v3519
    %3696 = vst.msk [vmem:[#allocation3 + $0x44] sm:$0xf] %vm3678, %v3521
    %3697 = vst.msk [vmem:[#allocation3 + $0x48] sm:$0xf] %vm3678, %v3523
    %3698 = vst.msk [vmem:[#allocation3 + $0x4c] sm:$0xf] %vm3678, %v3525
    %3699 = vst.msk [vmem:[#allocation3 + $0x50] sm:$0xf] %vm3678, %v3527
    %3700 = vst.msk [vmem:[#allocation3 + $0x54] sm:$0xf] %vm3678, %v3529
    %3701 = vst.msk [vmem:[#allocation3 + $0x58] sm:$0xf] %vm3678, %v3531
    %3702 = vst.msk [vmem:[#allocation3 + $0x5c] sm:$0xf] %vm3678, %v3533
    %3703 = vst.msk [vmem:[#allocation3 + $0x60] sm:$0xf] %vm3678, %v3535
    %3704 = vst.msk [vmem:[#allocation3 + $0x64] sm:$0xf] %vm3678, %v3537
    %3705 = vst.msk [vmem:[#allocation3 + $0x68] sm:$0xf] %vm3678, %v3539
    %3706 = vst.msk [vmem:[#allocation3 + $0x6c] sm:$0xf] %vm3678, %v3541
    %3707 = vst.msk [vmem:[#allocation3 + $0x70] sm:$0xf] %vm3678, %v3543
    %3708 = vst.msk [vmem:[#allocation3 + $0x74] sm:$0xf] %vm3678, %v3545
    %3709 = vst.msk [vmem:[#allocation3 + $0x78] sm:$0xf] %vm3678, %v3547
    %3710 = vst.msk [vmem:[#allocation3 + $0x7c] sm:$0xf] %vm3678, %v3549
    %3711 = vst.msk [vmem:[#allocation3 + $0x80] sm:$0xf] %vm3678, %v3551
    %3712 = vst.msk [vmem:[#allocation3 + $0x84] sm:$0xf] %vm3678, %v3553
    %3713 = vst.msk [vmem:[#allocation3 + $0x88] sm:$0xf] %vm3678, %v3555
    %3714 = vst.msk [vmem:[#allocation3 + $0x8c] sm:$0xf] %vm3678, %v3557
    %3715 = vst.msk [vmem:[#allocation3 + $0x90] sm:$0xf] %vm3678, %v3559
    %3716 = vst.msk [vmem:[#allocation3 + $0x94] sm:$0xf] %vm3678, %v3561
    %3717 = vst.msk [vmem:[#allocation3 + $0x98] sm:$0xf] %vm3678, %v3563
    %3718 = vst.msk [vmem:[#allocation3 + $0x9c] sm:$0xf] %vm3678, %v3565
    %3719 = vst.msk [vmem:[#allocation3 + $0xa0] sm:$0xf] %vm3678, %v3567
    %3720 = vst.msk [vmem:[#allocation3 + $0xa4] sm:$0xf] %vm3678, %v3569
    %3721 = vst.msk [vmem:[#allocation3 + $0xa8] sm:$0xf] %vm3678, %v3571
    %3722 = vst.msk [vmem:[#allocation3 + $0xac] sm:$0xf] %vm3678, %v3573
    %3723 = vst.msk [vmem:[#allocation3 + $0xb0] sm:$0xf] %vm3678, %v3575
    %3724 = vst.msk [vmem:[#allocation3 + $0xb4] sm:$0xf] %vm3678, %v3577
    %3725 = vst.msk [vmem:[#allocation3 + $0xb8] sm:$0xf] %vm3678, %v3579
    %3726 = vst.msk [vmem:[#allocation3 + $0xbc] sm:$0xf] %vm3678, %v3581
    %3727 = vst.msk [vmem:[#allocation3 + $0xc0] sm:$0xf] %vm3678, %v3583
    %3728 = vst.msk [vmem:[#allocation3 + $0xc4] sm:$0xf] %vm3678, %v3585
    %3729 = vst.msk [vmem:[#allocation3 + $0xc8] sm:$0xf] %vm3678, %v3587
    %3730 = vst.msk [vmem:[#allocation3 + $0xcc] sm:$0xf] %vm3678, %v3589
    %3731 = vst.msk [vmem:[#allocation3 + $0xd0] sm:$0xf] %vm3678, %v3591
    %3732 = vst.msk [vmem:[#allocation3 + $0xd4] sm:$0xf] %vm3678, %v3593
    %3733 = vst.msk [vmem:[#allocation3 + $0xd8] sm:$0xf] %vm3678, %v3595
    %3734 = vst.msk [vmem:[#allocation3 + $0xdc] sm:$0xf] %vm3678, %v3597
    %3735 = vst.msk [vmem:[#allocation3 + $0xe0] sm:$0xf] %vm3678, %v3599
    %3736 = vst.msk [vmem:[#allocation3 + $0xe4] sm:$0xf] %vm3678, %v3601
    %3737 = vst.msk [vmem:[#allocation3 + $0xe8] sm:$0xf] %vm3678, %v3603
    %3738 = vst.msk [vmem:[#allocation3 + $0xec] sm:$0xf] %vm3678, %v3605
    %3739 = vst.msk [vmem:[#allocation3 + $0xf0] sm:$0xf] %vm3678, %v3607
    %3740 = vst.msk [vmem:[#allocation3 + $0xf4] sm:$0xf] %vm3678, %v3609
    %3741 = vst.msk [vmem:[#allocation3 + $0xf8] sm:$0xf] %vm3678, %v3611
    %3742 = vst.msk [vmem:[#allocation3 + $0xfc] sm:$0xf] %vm3678, %v3613
    %v3743 = vld [vmem:[%s3229 + $0x1] sm:$0xff]
    %v3744 = vld [vmem:[%s3229 + $0x9] sm:$0xff]
    %v3745 = vld [vmem:[%s3229 + $0x19] sm:$0xff]
    %v3746 = vld [vmem:[%s3229 + $0x21] sm:$0xff]
    %v3747 = vld [vmem:[%s3229 + $0x31] sm:$0xff]
    %v3748 = vld [vmem:[%s3229 + $0x39] sm:$0xff]
    %v3749 = vld [vmem:[%s3229 + $0x49] sm:$0xff]
    %v3750 = vld [vmem:[%s3229 + $0x51] sm:$0xff]
    %v3751 = vld [vmem:[%s3229 + $0x61] sm:$0xff]
    %v3752 = vld [vmem:[%s3229 + $0x69] sm:$0xff]
    %v3753 = vld [vmem:[%s3229 + $0x79] sm:$0xff]
    %v3754 = vld [vmem:[%s3229 + $0x81] sm:$0xff]
    %v3755 = vld [vmem:[%s3229 + $0x91] sm:$0xff]
    %v3756 = vld [vmem:[%s3229 + $0x99] sm:$0xff]
    %v3757 = vld [vmem:[%s3229 + $0xa9] sm:$0xff]
    %v3758 = vld [vmem:[%s3229 + $0xb1] sm:$0xff]
    %v3759 = vld [vmem:[%s3229 + $0xc1] sm:$0xff]
    %v3760 = vld [vmem:[%s3229 + $0xc9] sm:$0xff]
    %v3761 = vld [vmem:[%s3229 + $0xd9] sm:$0xff]
    %v3762 = vld [vmem:[%s3229 + $0xe1] sm:$0xff]
    %v3763 = vld [vmem:[%s3229 + $0xf1] sm:$0xff]
    %v3764 = vld [vmem:[%s3229 + $0xf9] sm:$0xff]
    %v3765 = vld [vmem:[%s3229 + $0x109] sm:$0xff]
    %v3766 = vld [vmem:[%s3229 + $0x111] sm:$0xff]
    %v3767 = vld [vmem:[%s3229 + $0x121] sm:$0xff]
    %v3768 = vld [vmem:[%s3229 + $0x129] sm:$0xff]
    %v3769 = vld [vmem:[%s3229 + $0x139] sm:$0xff]
    %v3770 = vld [vmem:[%s3229 + $0x141] sm:$0xff]
    %v3771 = vld [vmem:[%s3229 + $0x151] sm:$0xff]
    %v3772 = vld [vmem:[%s3229 + $0x159] sm:$0xff]
    %v3773 = vld [vmem:[%s3229 + $0x169] sm:$0xff]
    %v3774 = vld [vmem:[%s3229 + $0x171] sm:$0xff]
    %v3775 = vld [vmem:[%s3229 + $0x1b1] sm:$0xff]
    %v3776 = vld [vmem:[%s3229 + $0x1b9] sm:$0xff]
    %v3777 = vld [vmem:[%s3229 + $0x1c9] sm:$0xff]
    %v3778 = vld [vmem:[%s3229 + $0x1d1] sm:$0xff]
    %v3779 = vld [vmem:[%s3229 + $0x1e1] sm:$0xff]
    %v3780 = vld [vmem:[%s3229 + $0x1e9] sm:$0xff]
    %v3781 = vld [vmem:[%s3229 + $0x1f9] sm:$0xff]
    %v3782 = vld [vmem:[%s3229 + $0x201] sm:$0xff]
    %v3783 = vld [vmem:[%s3229 + $0x211] sm:$0xff]
    %v3784 = vld [vmem:[%s3229 + $0x219] sm:$0xff]
    %v3785 = vld [vmem:[%s3229 + $0x229] sm:$0xff]
    %v3786 = vld [vmem:[%s3229 + $0x231] sm:$0xff]
    %v3787 = vld [vmem:[%s3229 + $0x241] sm:$0xff]
    %v3788 = vld [vmem:[%s3229 + $0x249] sm:$0xff]
    %v3789 = vld [vmem:[%s3229 + $0x259] sm:$0xff]
    %v3790 = vld [vmem:[%s3229 + $0x261] sm:$0xff]
    %v3791 = vld [vmem:[%s3229 + $0x271] sm:$0xff]
    %v3792 = vld [vmem:[%s3229 + $0x279] sm:$0xff]
    %v3793 = vld [vmem:[%s3229 + $0x289] sm:$0xff]
    %v3794 = vld [vmem:[%s3229 + $0x291] sm:$0xff]
    %v3795 = vld [vmem:[%s3229 + $0x2a1] sm:$0xff]
    %v3796 = vld [vmem:[%s3229 + $0x2a9] sm:$0xff]
    %v3797 = vld [vmem:[%s3229 + $0x2b9] sm:$0xff]
    %v3798 = vld [vmem:[%s3229 + $0x2c1] sm:$0xff]
    %v3799 = vld [vmem:[%s3229 + $0x2d1] sm:$0xff]
    %v3800 = vld [vmem:[%s3229 + $0x2d9] sm:$0xff]
    %v3801 = vld [vmem:[%s3229 + $0x2e9] sm:$0xff]
    %v3802 = vld [vmem:[%s3229 + $0x2f1] sm:$0xff]
    %v3803 = vld [vmem:[%s3229 + $0x301] sm:$0xff]
    %v3804 = vld [vmem:[%s3229 + $0x309] sm:$0xff]
    %v3805 = vld [vmem:[%s3229 + $0x319] sm:$0xff]
    %v3806 = vld [vmem:[%s3229 + $0x321] sm:$0xff]
    %v3807 = vpack.c.bf16 %v3744, %v3743
    %v3808 = vpack.c.bf16 %v3746, %v3745
    %v3809 = vpack.c.bf16 %v3748, %v3747
    %v3810 = vpack.c.bf16 %v3750, %v3749
    %v3811 = vpack.c.bf16 %v3752, %v3751
    %v3812 = vpack.c.bf16 %v3754, %v3753
    %v3813 = vpack.c.bf16 %v3756, %v3755
    %v3814 = vpack.c.bf16 %v3758, %v3757
    %v3815 = vpack.c.bf16 %v3760, %v3759
    %v3816 = vpack.c.bf16 %v3762, %v3761
    %v3817 = vpack.c.bf16 %v3764, %v3763
    %v3818 = vpack.c.bf16 %v3766, %v3765
    %v3819 = vpack.c.bf16 %v3768, %v3767
    %v3820 = vpack.c.bf16 %v3770, %v3769
    %v3821 = vpack.c.bf16 %v3772, %v3771
    %v3822 = vpack.c.bf16 %v3774, %v3773
    %v3823 = vpack.c.bf16 %v3776, %v3775
    %v3824 = vpack.c.bf16 %v3778, %v3777
    %v3825 = vpack.c.bf16 %v3780, %v3779
    %v3826 = vpack.c.bf16 %v3782, %v3781
    %v3827 = vpack.c.bf16 %v3784, %v3783
    %v3828 = vpack.c.bf16 %v3786, %v3785
    %v3829 = vpack.c.bf16 %v3788, %v3787
    %v3830 = vpack.c.bf16 %v3790, %v3789
    %v3831 = vpack.c.bf16 %v3792, %v3791
    %v3832 = vpack.c.bf16 %v3794, %v3793
    %v3833 = vpack.c.bf16 %v3796, %v3795
    %v3834 = vpack.c.bf16 %v3798, %v3797
    %v3835 = vpack.c.bf16 %v3800, %v3799
    %v3836 = vpack.c.bf16 %v3802, %v3801
    %v3837 = vpack.c.bf16 %v3804, %v3803
    %v3838 = vpack.c.bf16 %v3806, %v3805
    %v3871 = vunpack.c.l.b16 %v3807
    %v3872 = vunpack.c.h.b16 %v3807
    %v3873 = vunpack.c.l.b16 %v3808
    %v3874 = vunpack.c.h.b16 %v3808
    %v3875 = vunpack.c.l.b16 %v3809
    %v3876 = vunpack.c.h.b16 %v3809
    %v3877 = vunpack.c.l.b16 %v3810
    %v3878 = vunpack.c.h.b16 %v3810
    %v3879 = vunpack.c.l.b16 %v3811
    %v3880 = vunpack.c.h.b16 %v3811
    %v3881 = vunpack.c.l.b16 %v3812
    %v3882 = vunpack.c.h.b16 %v3812
    %v3883 = vunpack.c.l.b16 %v3813
    %v3884 = vunpack.c.h.b16 %v3813
    %v3885 = vunpack.c.l.b16 %v3814
    %v3886 = vunpack.c.h.b16 %v3814
    %v3887 = vunpack.c.l.b16 %v3815
    %v3888 = vunpack.c.h.b16 %v3815
    %v3889 = vunpack.c.l.b16 %v3816
    %v3890 = vunpack.c.h.b16 %v3816
    %v3891 = vunpack.c.l.b16 %v3817
    %v3892 = vunpack.c.h.b16 %v3817
    %v3893 = vunpack.c.l.b16 %v3818
    %v3894 = vunpack.c.h.b16 %v3818
    %v3895 = vunpack.c.l.b16 %v3819
    %v3896 = vunpack.c.h.b16 %v3819
    %v3897 = vunpack.c.l.b16 %v3820
    %v3898 = vunpack.c.h.b16 %v3820
    %v3899 = vunpack.c.l.b16 %v3821
    %v3900 = vunpack.c.h.b16 %v3821
    %v3901 = vunpack.c.l.b16 %v3822
    %v3902 = vunpack.c.h.b16 %v3822
    %v3903 = vunpack.c.l.b16 %v3823
    %v3904 = vunpack.c.h.b16 %v3823
    %v3905 = vunpack.c.l.b16 %v3824
    %v3906 = vunpack.c.h.b16 %v3824
    %v3907 = vunpack.c.l.b16 %v3825
    %v3908 = vunpack.c.h.b16 %v3825
    %v3909 = vunpack.c.l.b16 %v3826
    %v3910 = vunpack.c.h.b16 %v3826
    %v3911 = vunpack.c.l.b16 %v3827
    %v3912 = vunpack.c.h.b16 %v3827
    %v3913 = vunpack.c.l.b16 %v3828
    %v3914 = vunpack.c.h.b16 %v3828
    %v3915 = vunpack.c.l.b16 %v3829
    %v3916 = vunpack.c.h.b16 %v3829
    %v3917 = vunpack.c.l.b16 %v3830
    %v3918 = vunpack.c.h.b16 %v3830
    %v3919 = vunpack.c.l.b16 %v3831
    %v3920 = vunpack.c.h.b16 %v3831
    %v3921 = vunpack.c.l.b16 %v3832
    %v3922 = vunpack.c.h.b16 %v3832
    %v3923 = vunpack.c.l.b16 %v3833
    %v3924 = vunpack.c.h.b16 %v3833
    %v3925 = vunpack.c.l.b16 %v3834
    %v3926 = vunpack.c.h.b16 %v3834
    %v3927 = vunpack.c.l.b16 %v3835
    %v3928 = vunpack.c.h.b16 %v3835
    %v3929 = vunpack.c.l.b16 %v3836
    %v3930 = vunpack.c.h.b16 %v3836
    %v3931 = vunpack.c.l.b16 %v3837
    %v3932 = vunpack.c.h.b16 %v3837
    %v3933 = vunpack.c.l.b16 %v3838
    %v3934 = vunpack.c.h.b16 %v3838
    %v3935 = vpack.c.b16 %v3871, %v3871
    %v3936 = vpack.c.b16 %v3872, %v3872
    %v3937 = vpack.c.b16 %v3873, %v3873
    %v3938 = vpack.c.b16 %v3874, %v3874
    %v3939 = vpack.c.b16 %v3875, %v3875
    %v3940 = vpack.c.b16 %v3876, %v3876
    %v3941 = vpack.c.b16 %v3877, %v3877
    %v3942 = vpack.c.b16 %v3878, %v3878
    %v3943 = vpack.c.b16 %v3879, %v3879
    %v3944 = vpack.c.b16 %v3880, %v3880
    %v3945 = vpack.c.b16 %v3881, %v3881
    %v3946 = vpack.c.b16 %v3882, %v3882
    %v3947 = vpack.c.b16 %v3883, %v3883
    %v3948 = vpack.c.b16 %v3884, %v3884
    %v3949 = vpack.c.b16 %v3885, %v3885
    %v3950 = vpack.c.b16 %v3886, %v3886
    %v3951 = vpack.c.b16 %v3887, %v3887
    %v3952 = vpack.c.b16 %v3888, %v3888
    %v3953 = vpack.c.b16 %v3889, %v3889
    %v3954 = vpack.c.b16 %v3890, %v3890
    %v3955 = vpack.c.b16 %v3891, %v3891
    %v3956 = vpack.c.b16 %v3892, %v3892
    %v3957 = vpack.c.b16 %v3893, %v3893
    %v3958 = vpack.c.b16 %v3894, %v3894
    %v3959 = vpack.c.b16 %v3895, %v3895
    %v3960 = vpack.c.b16 %v3896, %v3896
    %v3961 = vpack.c.b16 %v3897, %v3897
    %v3962 = vpack.c.b16 %v3898, %v3898
    %v3963 = vpack.c.b16 %v3899, %v3899
    %v3964 = vpack.c.b16 %v3900, %v3900
    %v3965 = vpack.c.b16 %v3901, %v3901
    %v3966 = vpack.c.b16 %v3902, %v3902
    %v3967 = vpack.c.b16 %v3903, %v3903
    %v3968 = vpack.c.b16 %v3904, %v3904
    %v3969 = vpack.c.b16 %v3905, %v3905
    %v3970 = vpack.c.b16 %v3906, %v3906
    %v3971 = vpack.c.b16 %v3907, %v3907
    %v3972 = vpack.c.b16 %v3908, %v3908
    %v3973 = vpack.c.b16 %v3909, %v3909
    %v3974 = vpack.c.b16 %v3910, %v3910
    %v3975 = vpack.c.b16 %v3911, %v3911
    %v3976 = vpack.c.b16 %v3912, %v3912
    %v3977 = vpack.c.b16 %v3913, %v3913
    %v3978 = vpack.c.b16 %v3914, %v3914
    %v3979 = vpack.c.b16 %v3915, %v3915
    %v3980 = vpack.c.b16 %v3916, %v3916
    %v3981 = vpack.c.b16 %v3917, %v3917
    %v3982 = vpack.c.b16 %v3918, %v3918
    %v3983 = vpack.c.b16 %v3919, %v3919
    %v3984 = vpack.c.b16 %v3920, %v3920
    %v3985 = vpack.c.b16 %v3921, %v3921
    %v3986 = vpack.c.b16 %v3922, %v3922
    %v3987 = vpack.c.b16 %v3923, %v3923
    %v3988 = vpack.c.b16 %v3924, %v3924
    %v3989 = vpack.c.b16 %v3925, %v3925
    %v3990 = vpack.c.b16 %v3926, %v3926
    %v3991 = vpack.c.b16 %v3927, %v3927
    %v3992 = vpack.c.b16 %v3928, %v3928
    %v3993 = vpack.c.b16 %v3929, %v3929
    %v3994 = vpack.c.b16 %v3930, %v3930
    %v3995 = vpack.c.b16 %v3931, %v3931
    %v3996 = vpack.c.b16 %v3932, %v3932
    %v3997 = vpack.c.b16 %v3933, %v3933
    %v3998 = vpack.c.b16 %v3934, %v3934
    %3999 = vrot.lane.b32.xlu0 %v3935, 21
    %v4000 = vpop.permute.xlu0 %3999
    %4001 = vrot.lane.b32.xlu0 %v3936, 21
    %v4002 = vpop.permute.xlu0 %4001
    %4003 = vrot.lane.b32.xlu0 %v3937, 21
    %v4004 = vpop.permute.xlu0 %4003
    %4005 = vrot.lane.b32.xlu0 %v3938, 21
    %v4006 = vpop.permute.xlu0 %4005
    %4007 = vrot.lane.b32.xlu0 %v3939, 21
    %v4008 = vpop.permute.xlu0 %4007
    %4009 = vrot.lane.b32.xlu0 %v3940, 21
    %v4010 = vpop.permute.xlu0 %4009
    %4011 = vrot.lane.b32.xlu0 %v3941, 21
    %v4012 = vpop.permute.xlu0 %4011
    %4013 = vrot.lane.b32.xlu0 %v3942, 21
    %v4014 = vpop.permute.xlu0 %4013
    %4015 = vrot.lane.b32.xlu0 %v3943, 21
    %v4016 = vpop.permute.xlu0 %4015
    %4017 = vrot.lane.b32.xlu0 %v3944, 21
    %v4018 = vpop.permute.xlu0 %4017
    %4019 = vrot.lane.b32.xlu0 %v3945, 21
    %v4020 = vpop.permute.xlu0 %4019
    %4021 = vrot.lane.b32.xlu0 %v3946, 21
    %v4022 = vpop.permute.xlu0 %4021
    %4023 = vrot.lane.b32.xlu0 %v3947, 21
    %v4024 = vpop.permute.xlu0 %4023
    %4025 = vrot.lane.b32.xlu0 %v3948, 21
    %v4026 = vpop.permute.xlu0 %4025
    %4027 = vrot.lane.b32.xlu0 %v3949, 21
    %v4028 = vpop.permute.xlu0 %4027
    %4029 = vrot.lane.b32.xlu0 %v3950, 21
    %v4030 = vpop.permute.xlu0 %4029
    %4031 = vrot.lane.b32.xlu0 %v3951, 21
    %v4032 = vpop.permute.xlu0 %4031
    %4033 = vrot.lane.b32.xlu0 %v3952, 21
    %v4034 = vpop.permute.xlu0 %4033
    %4035 = vrot.lane.b32.xlu0 %v3953, 21
    %v4036 = vpop.permute.xlu0 %4035
    %4037 = vrot.lane.b32.xlu0 %v3954, 21
    %v4038 = vpop.permute.xlu0 %4037
    %4039 = vrot.lane.b32.xlu0 %v3955, 21
    %v4040 = vpop.permute.xlu0 %4039
    %4041 = vrot.lane.b32.xlu0 %v3956, 21
    %v4042 = vpop.permute.xlu0 %4041
    %4043 = vrot.lane.b32.xlu0 %v3957, 21
    %v4044 = vpop.permute.xlu0 %4043
    %4045 = vrot.lane.b32.xlu0 %v3958, 21
    %v4046 = vpop.permute.xlu0 %4045
    %4047 = vrot.lane.b32.xlu0 %v3959, 21
    %v4048 = vpop.permute.xlu0 %4047
    %4049 = vrot.lane.b32.xlu0 %v3960, 21
    %v4050 = vpop.permute.xlu0 %4049
    %4051 = vrot.lane.b32.xlu0 %v3961, 21
    %v4052 = vpop.permute.xlu0 %4051
    %4053 = vrot.lane.b32.xlu0 %v3962, 21
    %v4054 = vpop.permute.xlu0 %4053
    %4055 = vrot.lane.b32.xlu0 %v3963, 21
    %v4056 = vpop.permute.xlu0 %4055
    %4057 = vrot.lane.b32.xlu0 %v3964, 21
    %v4058 = vpop.permute.xlu0 %4057
    %4059 = vrot.lane.b32.xlu0 %v3965, 21
    %v4060 = vpop.permute.xlu0 %4059
    %4061 = vrot.lane.b32.xlu0 %v3966, 21
    %v4062 = vpop.permute.xlu0 %4061
    %4063 = vrot.lane.b32.xlu0 %v3967, 21
    %v4064 = vpop.permute.xlu0 %4063
    %4065 = vrot.lane.b32.xlu0 %v3968, 21
    %v4066 = vpop.permute.xlu0 %4065
    %4067 = vrot.lane.b32.xlu0 %v3969, 21
    %v4068 = vpop.permute.xlu0 %4067
    %4069 = vrot.lane.b32.xlu0 %v3970, 21
    %v4070 = vpop.permute.xlu0 %4069
    %4071 = vrot.lane.b32.xlu0 %v3971, 21
    %v4072 = vpop.permute.xlu0 %4071
    %4073 = vrot.lane.b32.xlu0 %v3972, 21
    %v4074 = vpop.permute.xlu0 %4073
    %4075 = vrot.lane.b32.xlu0 %v3973, 21
    %v4076 = vpop.permute.xlu0 %4075
    %4077 = vrot.lane.b32.xlu0 %v3974, 21
    %v4078 = vpop.permute.xlu0 %4077
    %4079 = vrot.lane.b32.xlu0 %v3975, 21
    %v4080 = vpop.permute.xlu0 %4079
    %4081 = vrot.lane.b32.xlu0 %v3976, 21
    %v4082 = vpop.permute.xlu0 %4081
    %4083 = vrot.lane.b32.xlu0 %v3977, 21
    %v4084 = vpop.permute.xlu0 %4083
    %4085 = vrot.lane.b32.xlu0 %v3978, 21
    %v4086 = vpop.permute.xlu0 %4085
    %4087 = vrot.lane.b32.xlu0 %v3979, 21
    %v4088 = vpop.permute.xlu0 %4087
    %4089 = vrot.lane.b32.xlu0 %v3980, 21
    %v4090 = vpop.permute.xlu0 %4089
    %4091 = vrot.lane.b32.xlu0 %v3981, 21
    %v4092 = vpop.permute.xlu0 %4091
    %4093 = vrot.lane.b32.xlu0 %v3982, 21
    %v4094 = vpop.permute.xlu0 %4093
    %4095 = vrot.lane.b32.xlu0 %v3983, 21
    %v4096 = vpop.permute.xlu0 %4095
    %4097 = vrot.lane.b32.xlu0 %v3984, 21
    %v4098 = vpop.permute.xlu0 %4097
    %4099 = vrot.lane.b32.xlu0 %v3985, 21
    %v4100 = vpop.permute.xlu0 %4099
    %4101 = vrot.lane.b32.xlu0 %v3986, 21
    %v4102 = vpop.permute.xlu0 %4101
    %4103 = vrot.lane.b32.xlu0 %v3987, 21
    %v4104 = vpop.permute.xlu0 %4103
    %4105 = vrot.lane.b32.xlu0 %v3988, 21
    %v4106 = vpop.permute.xlu0 %4105
    %4107 = vrot.lane.b32.xlu0 %v3989, 21
    %v4108 = vpop.permute.xlu0 %4107
    %4109 = vrot.lane.b32.xlu0 %v3990, 21
    %v4110 = vpop.permute.xlu0 %4109
    %4111 = vrot.lane.b32.xlu0 %v3991, 21
    %v4112 = vpop.permute.xlu0 %4111
    %4113 = vrot.lane.b32.xlu0 %v3992, 21
    %v4114 = vpop.permute.xlu0 %4113
    %4115 = vrot.lane.b32.xlu0 %v3993, 21
    %v4116 = vpop.permute.xlu0 %4115
    %4117 = vrot.lane.b32.xlu0 %v3994, 21
    %v4118 = vpop.permute.xlu0 %4117
    %4119 = vrot.lane.b32.xlu0 %v3995, 21
    %v4120 = vpop.permute.xlu0 %4119
    %4121 = vrot.lane.b32.xlu0 %v3996, 21
    %v4122 = vpop.permute.xlu0 %4121
    %4123 = vrot.lane.b32.xlu0 %v3997, 21
    %v4124 = vpop.permute.xlu0 %4123
    %4125 = vrot.lane.b32.xlu0 %v3998, 21
    %v4126 = vpop.permute.xlu0 %4125
    %vm4191 = vcmask 191656
    %4192 = vst.msk [vmem:[#allocation3] sm:$0xf] %vm4191, %v4000
    %4193 = vst.msk [vmem:[#allocation3 + $0x4] sm:$0xf] %vm4191, %v4002
    %4194 = vst.msk [vmem:[#allocation3 + $0x8] sm:$0xf] %vm4191, %v4004
    %4195 = vst.msk [vmem:[#allocation3 + $0xc] sm:$0xf] %vm4191, %v4006
    %4196 = vst.msk [vmem:[#allocation3 + $0x10] sm:$0xf] %vm4191, %v4008
    %4197 = vst.msk [vmem:[#allocation3 + $0x14] sm:$0xf] %vm4191, %v4010
    %4198 = vst.msk [vmem:[#allocation3 + $0x18] sm:$0xf] %vm4191, %v4012
    %4199 = vst.msk [vmem:[#allocation3 + $0x1c] sm:$0xf] %vm4191, %v4014
    %4200 = vst.msk [vmem:[#allocation3 + $0x20] sm:$0xf] %vm4191, %v4016
    %4201 = vst.msk [vmem:[#allocation3 + $0x24] sm:$0xf] %vm4191, %v4018
    %4202 = vst.msk [vmem:[#allocation3 + $0x28] sm:$0xf] %vm4191, %v4020
    %4203 = vst.msk [vmem:[#allocation3 + $0x2c] sm:$0xf] %vm4191, %v4022
    %4204 = vst.msk [vmem:[#allocation3 + $0x30] sm:$0xf] %vm4191, %v4024
    %4205 = vst.msk [vmem:[#allocation3 + $0x34] sm:$0xf] %vm4191, %v4026
    %4206 = vst.msk [vmem:[#allocation3 + $0x38] sm:$0xf] %vm4191, %v4028
    %4207 = vst.msk [vmem:[#allocation3 + $0x3c] sm:$0xf] %vm4191, %v4030
    %4208 = vst.msk [vmem:[#allocation3 + $0x40] sm:$0xf] %vm4191, %v4032
    %4209 = vst.msk [vmem:[#allocation3 + $0x44] sm:$0xf] %vm4191, %v4034
    %4210 = vst.msk [vmem:[#allocation3 + $0x48] sm:$0xf] %vm4191, %v4036
    %4211 = vst.msk [vmem:[#allocation3 + $0x4c] sm:$0xf] %vm4191, %v4038
    %4212 = vst.msk [vmem:[#allocation3 + $0x50] sm:$0xf] %vm4191, %v4040
    %4213 = vst.msk [vmem:[#allocation3 + $0x54] sm:$0xf] %vm4191, %v4042
    %4214 = vst.msk [vmem:[#allocation3 + $0x58] sm:$0xf] %vm4191, %v4044
    %4215 = vst.msk [vmem:[#allocation3 + $0x5c] sm:$0xf] %vm4191, %v4046
    %4216 = vst.msk [vmem:[#allocation3 + $0x60] sm:$0xf] %vm4191, %v4048
    %4217 = vst.msk [vmem:[#allocation3 + $0x64] sm:$0xf] %vm4191, %v4050
    %4218 = vst.msk [vmem:[#allocation3 + $0x68] sm:$0xf] %vm4191, %v4052
    %4219 = vst.msk [vmem:[#allocation3 + $0x6c] sm:$0xf] %vm4191, %v4054
    %4220 = vst.msk [vmem:[#allocation3 + $0x70] sm:$0xf] %vm4191, %v4056
    %4221 = vst.msk [vmem:[#allocation3 + $0x74] sm:$0xf] %vm4191, %v4058
    %4222 = vst.msk [vmem:[#allocation3 + $0x78] sm:$0xf] %vm4191, %v4060
    %4223 = vst.msk [vmem:[#allocation3 + $0x7c] sm:$0xf] %vm4191, %v4062
    %4224 = vst.msk [vmem:[#allocation3 + $0x80] sm:$0xf] %vm4191, %v4064
    %4225 = vst.msk [vmem:[#allocation3 + $0x84] sm:$0xf] %vm4191, %v4066
    %4226 = vst.msk [vmem:[#allocation3 + $0x88] sm:$0xf] %vm4191, %v4068
    %4227 = vst.msk [vmem:[#allocation3 + $0x8c] sm:$0xf] %vm4191, %v4070
    %4228 = vst.msk [vmem:[#allocation3 + $0x90] sm:$0xf] %vm4191, %v4072
    %4229 = vst.msk [vmem:[#allocation3 + $0x94] sm:$0xf] %vm4191, %v4074
    %4230 = vst.msk [vmem:[#allocation3 + $0x98] sm:$0xf] %vm4191, %v4076
    %4231 = vst.msk [vmem:[#allocation3 + $0x9c] sm:$0xf] %vm4191, %v4078
    %4232 = vst.msk [vmem:[#allocation3 + $0xa0] sm:$0xf] %vm4191, %v4080
    %4233 = vst.msk [vmem:[#allocation3 + $0xa4] sm:$0xf] %vm4191, %v4082
    %4234 = vst.msk [vmem:[#allocation3 + $0xa8] sm:$0xf] %vm4191, %v4084
    %4235 = vst.msk [vmem:[#allocation3 + $0xac] sm:$0xf] %vm4191, %v4086
    %4236 = vst.msk [vmem:[#allocation3 + $0xb0] sm:$0xf] %vm4191, %v4088
    %4237 = vst.msk [vmem:[#allocation3 + $0xb4] sm:$0xf] %vm4191, %v4090
    %4238 = vst.msk [vmem:[#allocation3 + $0xb8] sm:$0xf] %vm4191, %v4092
    %4239 = vst.msk [vmem:[#allocation3 + $0xbc] sm:$0xf] %vm4191, %v4094
    %4240 = vst.msk [vmem:[#allocation3 + $0xc0] sm:$0xf] %vm4191, %v4096
    %4241 = vst.msk [vmem:[#allocation3 + $0xc4] sm:$0xf] %vm4191, %v4098
    %4242 = vst.msk [vmem:[#allocation3 + $0xc8] sm:$0xf] %vm4191, %v4100
    %4243 = vst.msk [vmem:[#allocation3 + $0xcc] sm:$0xf] %vm4191, %v4102
    %4244 = vst.msk [vmem:[#allocation3 + $0xd0] sm:$0xf] %vm4191, %v4104
    %4245 = vst.msk [vmem:[#allocation3 + $0xd4] sm:$0xf] %vm4191, %v4106
    %4246 = vst.msk [vmem:[#allocation3 + $0xd8] sm:$0xf] %vm4191, %v4108
    %4247 = vst.msk [vmem:[#allocation3 + $0xdc] sm:$0xf] %vm4191, %v4110
    %4248 = vst.msk [vmem:[#allocation3 + $0xe0] sm:$0xf] %vm4191, %v4112
    %4249 = vst.msk [vmem:[#allocation3 + $0xe4] sm:$0xf] %vm4191, %v4114
    %4250 = vst.msk [vmem:[#allocation3 + $0xe8] sm:$0xf] %vm4191, %v4116
    %4251 = vst.msk [vmem:[#allocation3 + $0xec] sm:$0xf] %vm4191, %v4118
    %4252 = vst.msk [vmem:[#allocation3 + $0xf0] sm:$0xf] %vm4191, %v4120
    %4253 = vst.msk [vmem:[#allocation3 + $0xf4] sm:$0xf] %vm4191, %v4122
    %4254 = vst.msk [vmem:[#allocation3 + $0xf8] sm:$0xf] %vm4191, %v4124
    %4255 = vst.msk [vmem:[#allocation3 + $0xfc] sm:$0xf] %vm4191, %v4126
    %v4256 = vld [vmem:[%s3229 + $0x2] sm:$0xff]
    %v4257 = vld [vmem:[%s3229 + $0xa] sm:$0xff]
    %v4258 = vld [vmem:[%s3229 + $0x1a] sm:$0xff]
    %v4259 = vld [vmem:[%s3229 + $0x22] sm:$0xff]
    %v4260 = vld [vmem:[%s3229 + $0x32] sm:$0xff]
    %v4261 = vld [vmem:[%s3229 + $0x3a] sm:$0xff]
    %v4262 = vld [vmem:[%s3229 + $0x4a] sm:$0xff]
    %v4263 = vld [vmem:[%s3229 + $0x52] sm:$0xff]
    %v4264 = vld [vmem:[%s3229 + $0x62] sm:$0xff]
    %v4265 = vld [vmem:[%s3229 + $0x6a] sm:$0xff]
    %v4266 = vld [vmem:[%s3229 + $0x7a] sm:$0xff]
    %v4267 = vld [vmem:[%s3229 + $0x82] sm:$0xff]
    %v4268 = vld [vmem:[%s3229 + $0x92] sm:$0xff]
    %v4269 = vld [vmem:[%s3229 + $0x9a] sm:$0xff]
    %v4270 = vld [vmem:[%s3229 + $0xaa] sm:$0xff]
    %v4271 = vld [vmem:[%s3229 + $0xb2] sm:$0xff]
    %v4272 = vld [vmem:[%s3229 + $0xc2] sm:$0xff]
    %v4273 = vld [vmem:[%s3229 + $0xca] sm:$0xff]
    %v4274 = vld [vmem:[%s3229 + $0xda] sm:$0xff]
    %v4275 = vld [vmem:[%s3229 + $0xe2] sm:$0xff]
    %v4276 = vld [vmem:[%s3229 + $0xf2] sm:$0xff]
    %v4277 = vld [vmem:[%s3229 + $0xfa] sm:$0xff]
    %v4278 = vld [vmem:[%s3229 + $0x10a] sm:$0xff]
    %v4279 = vld [vmem:[%s3229 + $0x112] sm:$0xff]
    %v4280 = vld [vmem:[%s3229 + $0x122] sm:$0xff]
    %v4281 = vld [vmem:[%s3229 + $0x12a] sm:$0xff]
    %v4282 = vld [vmem:[%s3229 + $0x13a] sm:$0xff]
    %v4283 = vld [vmem:[%s3229 + $0x142] sm:$0xff]
    %v4284 = vld [vmem:[%s3229 + $0x152] sm:$0xff]
    %v4285 = vld [vmem:[%s3229 + $0x15a] sm:$0xff]
    %v4286 = vld [vmem:[%s3229 + $0x16a] sm:$0xff]
    %v4287 = vld [vmem:[%s3229 + $0x172] sm:$0xff]
    %v4288 = vld [vmem:[%s3229 + $0x1b2] sm:$0xff]
    %v4289 = vld [vmem:[%s3229 + $0x1ba] sm:$0xff]
    %v4290 = vld [vmem:[%s3229 + $0x1ca] sm:$0xff]
    %v4291 = vld [vmem:[%s3229 + $0x1d2] sm:$0xff]
    %v4292 = vld [vmem:[%s3229 + $0x1e2] sm:$0xff]
    %v4293 = vld [vmem:[%s3229 + $0x1ea] sm:$0xff]
    %v4294 = vld [vmem:[%s3229 + $0x1fa] sm:$0xff]
    %v4295 = vld [vmem:[%s3229 + $0x202] sm:$0xff]
    %v4296 = vld [vmem:[%s3229 + $0x212] sm:$0xff]
    %v4297 = vld [vmem:[%s3229 + $0x21a] sm:$0xff]
    %v4298 = vld [vmem:[%s3229 + $0x22a] sm:$0xff]
    %v4299 = vld [vmem:[%s3229 + $0x232] sm:$0xff]
    %v4300 = vld [vmem:[%s3229 + $0x242] sm:$0xff]
    %v4301 = vld [vmem:[%s3229 + $0x24a] sm:$0xff]
    %v4302 = vld [vmem:[%s3229 + $0x25a] sm:$0xff]
    %v4303 = vld [vmem:[%s3229 + $0x262] sm:$0xff]
    %v4304 = vld [vmem:[%s3229 + $0x272] sm:$0xff]
    %v4305 = vld [vmem:[%s3229 + $0x27a] sm:$0xff]
    %v4306 = vld [vmem:[%s3229 + $0x28a] sm:$0xff]
    %v4307 = vld [vmem:[%s3229 + $0x292] sm:$0xff]
    %v4308 = vld [vmem:[%s3229 + $0x2a2] sm:$0xff]
    %v4309 = vld [vmem:[%s3229 + $0x2aa] sm:$0xff]
    %v4310 = vld [vmem:[%s3229 + $0x2ba] sm:$0xff]
    %v4311 = vld [vmem:[%s3229 + $0x2c2] sm:$0xff]
    %v4312 = vld [vmem:[%s3229 + $0x2d2] sm:$0xff]
    %v4313 = vld [vmem:[%s3229 + $0x2da] sm:$0xff]
    %v4314 = vld [vmem:[%s3229 + $0x2ea] sm:$0xff]
    %v4315 = vld [vmem:[%s3229 + $0x2f2] sm:$0xff]
    %v4316 = vld [vmem:[%s3229 + $0x302] sm:$0xff]
    %v4317 = vld [vmem:[%s3229 + $0x30a] sm:$0xff]
    %v4318 = vld [vmem:[%s3229 + $0x31a] sm:$0xff]
    %v4319 = vld [vmem:[%s3229 + $0x322] sm:$0xff]
    %v4320 = vpack.c.bf16 %v4257, %v4256
    %v4321 = vpack.c.bf16 %v4259, %v4258
    %v4322 = vpack.c.bf16 %v4261, %v4260
    %v4323 = vpack.c.bf16 %v4263, %v4262
    %v4324 = vpack.c.bf16 %v4265, %v4264
    %v4325 = vpack.c.bf16 %v4267, %v4266
    %v4326 = vpack.c.bf16 %v4269, %v4268
    %v4327 = vpack.c.bf16 %v4271, %v4270
    %v4328 = vpack.c.bf16 %v4273, %v4272
    %v4329 = vpack.c.bf16 %v4275, %v4274
    %v4330 = vpack.c.bf16 %v4277, %v4276
    %v4331 = vpack.c.bf16 %v4279, %v4278
    %v4332 = vpack.c.bf16 %v4281, %v4280
    %v4333 = vpack.c.bf16 %v4283, %v4282
    %v4334 = vpack.c.bf16 %v4285, %v4284
    %v4335 = vpack.c.bf16 %v4287, %v4286
    %v4336 = vpack.c.bf16 %v4289, %v4288
    %v4337 = vpack.c.bf16 %v4291, %v4290
    %v4338 = vpack.c.bf16 %v4293, %v4292
    %v4339 = vpack.c.bf16 %v4295, %v4294
    %v4340 = vpack.c.bf16 %v4297, %v4296
    %v4341 = vpack.c.bf16 %v4299, %v4298
    %v4342 = vpack.c.bf16 %v4301, %v4300
    %v4343 = vpack.c.bf16 %v4303, %v4302
    %v4344 = vpack.c.bf16 %v4305, %v4304
    %v4345 = vpack.c.bf16 %v4307, %v4306
    %v4346 = vpack.c.bf16 %v4309, %v4308
    %v4347 = vpack.c.bf16 %v4311, %v4310
    %v4348 = vpack.c.bf16 %v4313, %v4312
    %v4349 = vpack.c.bf16 %v4315, %v4314
    %v4350 = vpack.c.bf16 %v4317, %v4316
    %v4351 = vpack.c.bf16 %v4319, %v4318
    %v4384 = vunpack.c.l.b16 %v4320
    %v4385 = vunpack.c.h.b16 %v4320
    %v4386 = vunpack.c.l.b16 %v4321
    %v4387 = vunpack.c.h.b16 %v4321
    %v4388 = vunpack.c.l.b16 %v4322
    %v4389 = vunpack.c.h.b16 %v4322
    %v4390 = vunpack.c.l.b16 %v4323
    %v4391 = vunpack.c.h.b16 %v4323
    %v4392 = vunpack.c.l.b16 %v4324
    %v4393 = vunpack.c.h.b16 %v4324
    %v4394 = vunpack.c.l.b16 %v4325
    %v4395 = vunpack.c.h.b16 %v4325
    %v4396 = vunpack.c.l.b16 %v4326
    %v4397 = vunpack.c.h.b16 %v4326
    %v4398 = vunpack.c.l.b16 %v4327
    %v4399 = vunpack.c.h.b16 %v4327
    %v4400 = vunpack.c.l.b16 %v4328
    %v4401 = vunpack.c.h.b16 %v4328
    %v4402 = vunpack.c.l.b16 %v4329
    %v4403 = vunpack.c.h.b16 %v4329
    %v4404 = vunpack.c.l.b16 %v4330
    %v4405 = vunpack.c.h.b16 %v4330
    %v4406 = vunpack.c.l.b16 %v4331
    %v4407 = vunpack.c.h.b16 %v4331
    %v4408 = vunpack.c.l.b16 %v4332
    %v4409 = vunpack.c.h.b16 %v4332
    %v4410 = vunpack.c.l.b16 %v4333
    %v4411 = vunpack.c.h.b16 %v4333
    %v4412 = vunpack.c.l.b16 %v4334
    %v4413 = vunpack.c.h.b16 %v4334
    %v4414 = vunpack.c.l.b16 %v4335
    %v4415 = vunpack.c.h.b16 %v4335
    %v4416 = vunpack.c.l.b16 %v4336
    %v4417 = vunpack.c.h.b16 %v4336
    %v4418 = vunpack.c.l.b16 %v4337
    %v4419 = vunpack.c.h.b16 %v4337
    %v4420 = vunpack.c.l.b16 %v4338
    %v4421 = vunpack.c.h.b16 %v4338
    %v4422 = vunpack.c.l.b16 %v4339
    %v4423 = vunpack.c.h.b16 %v4339
    %v4424 = vunpack.c.l.b16 %v4340
    %v4425 = vunpack.c.h.b16 %v4340
    %v4426 = vunpack.c.l.b16 %v4341
    %v4427 = vunpack.c.h.b16 %v4341
    %v4428 = vunpack.c.l.b16 %v4342
    %v4429 = vunpack.c.h.b16 %v4342
    %v4430 = vunpack.c.l.b16 %v4343
    %v4431 = vunpack.c.h.b16 %v4343
    %v4432 = vunpack.c.l.b16 %v4344
    %v4433 = vunpack.c.h.b16 %v4344
    %v4434 = vunpack.c.l.b16 %v4345
    %v4435 = vunpack.c.h.b16 %v4345
    %v4436 = vunpack.c.l.b16 %v4346
    %v4437 = vunpack.c.h.b16 %v4346
    %v4438 = vunpack.c.l.b16 %v4347
    %v4439 = vunpack.c.h.b16 %v4347
    %v4440 = vunpack.c.l.b16 %v4348
    %v4441 = vunpack.c.h.b16 %v4348
    %v4442 = vunpack.c.l.b16 %v4349
    %v4443 = vunpack.c.h.b16 %v4349
    %v4444 = vunpack.c.l.b16 %v4350
    %v4445 = vunpack.c.h.b16 %v4350
    %v4446 = vunpack.c.l.b16 %v4351
    %v4447 = vunpack.c.h.b16 %v4351
    %v4448 = vpack.c.b16 %v4384, %v4384
    %v4449 = vpack.c.b16 %v4385, %v4385
    %v4450 = vpack.c.b16 %v4386, %v4386
    %v4451 = vpack.c.b16 %v4387, %v4387
    %v4452 = vpack.c.b16 %v4388, %v4388
    %v4453 = vpack.c.b16 %v4389, %v4389
    %v4454 = vpack.c.b16 %v4390, %v4390
    %v4455 = vpack.c.b16 %v4391, %v4391
    %v4456 = vpack.c.b16 %v4392, %v4392
    %v4457 = vpack.c.b16 %v4393, %v4393
    %v4458 = vpack.c.b16 %v4394, %v4394
    %v4459 = vpack.c.b16 %v4395, %v4395
    %v4460 = vpack.c.b16 %v4396, %v4396
    %v4461 = vpack.c.b16 %v4397, %v4397
    %v4462 = vpack.c.b16 %v4398, %v4398
    %v4463 = vpack.c.b16 %v4399, %v4399
    %v4464 = vpack.c.b16 %v4400, %v4400
    %v4465 = vpack.c.b16 %v4401, %v4401
    %v4466 = vpack.c.b16 %v4402, %v4402
    %v4467 = vpack.c.b16 %v4403, %v4403
    %v4468 = vpack.c.b16 %v4404, %v4404
    %v4469 = vpack.c.b16 %v4405, %v4405
    %v4470 = vpack.c.b16 %v4406, %v4406
    %v4471 = vpack.c.b16 %v4407, %v4407
    %v4472 = vpack.c.b16 %v4408, %v4408
    %v4473 = vpack.c.b16 %v4409, %v4409
    %v4474 = vpack.c.b16 %v4410, %v4410
    %v4475 = vpack.c.b16 %v4411, %v4411
    %v4476 = vpack.c.b16 %v4412, %v4412
    %v4477 = vpack.c.b16 %v4413, %v4413
    %v4478 = vpack.c.b16 %v4414, %v4414
    %v4479 = vpack.c.b16 %v4415, %v4415
    %v4480 = vpack.c.b16 %v4416, %v4416
    %v4481 = vpack.c.b16 %v4417, %v4417
    %v4482 = vpack.c.b16 %v4418, %v4418
    %v4483 = vpack.c.b16 %v4419, %v4419
    %v4484 = vpack.c.b16 %v4420, %v4420
    %v4485 = vpack.c.b16 %v4421, %v4421
    %v4486 = vpack.c.b16 %v4422, %v4422
    %v4487 = vpack.c.b16 %v4423, %v4423
    %v4488 = vpack.c.b16 %v4424, %v4424
    %v4489 = vpack.c.b16 %v4425, %v4425
    %v4490 = vpack.c.b16 %v4426, %v4426
    %v4491 = vpack.c.b16 %v4427, %v4427
    %v4492 = vpack.c.b16 %v4428, %v4428
    %v4493 = vpack.c.b16 %v4429, %v4429
    %v4494 = vpack.c.b16 %v4430, %v4430
    %v4495 = vpack.c.b16 %v4431, %v4431
    %v4496 = vpack.c.b16 %v4432, %v4432
    %v4497 = vpack.c.b16 %v4433, %v4433
    %v4498 = vpack.c.b16 %v4434, %v4434
    %v4499 = vpack.c.b16 %v4435, %v4435
    %v4500 = vpack.c.b16 %v4436, %v4436
    %v4501 = vpack.c.b16 %v4437, %v4437
    %v4502 = vpack.c.b16 %v4438, %v4438
    %v4503 = vpack.c.b16 %v4439, %v4439
    %v4504 = vpack.c.b16 %v4440, %v4440
    %v4505 = vpack.c.b16 %v4441, %v4441
    %v4506 = vpack.c.b16 %v4442, %v4442
    %v4507 = vpack.c.b16 %v4443, %v4443
    %v4508 = vpack.c.b16 %v4444, %v4444
    %v4509 = vpack.c.b16 %v4445, %v4445
    %v4510 = vpack.c.b16 %v4446, %v4446
    %v4511 = vpack.c.b16 %v4447, %v4447
    %4512 = vrot.lane.b32.xlu0 %v4448, 24
    %v4513 = vpop.permute.xlu0 %4512
    %4514 = vrot.lane.b32.xlu0 %v4449, 24
    %v4515 = vpop.permute.xlu0 %4514
    %4516 = vrot.lane.b32.xlu0 %v4450, 24
    %v4517 = vpop.permute.xlu0 %4516
    %4518 = vrot.lane.b32.xlu0 %v4451, 24
    %v4519 = vpop.permute.xlu0 %4518
    %4520 = vrot.lane.b32.xlu0 %v4452, 24
    %v4521 = vpop.permute.xlu0 %4520
    %4522 = vrot.lane.b32.xlu0 %v4453, 24
    %v4523 = vpop.permute.xlu0 %4522
    %4524 = vrot.lane.b32.xlu0 %v4454, 24
    %v4525 = vpop.permute.xlu0 %4524
    %4526 = vrot.lane.b32.xlu0 %v4455, 24
    %v4527 = vpop.permute.xlu0 %4526
    %4528 = vrot.lane.b32.xlu0 %v4456, 24
    %v4529 = vpop.permute.xlu0 %4528
    %4530 = vrot.lane.b32.xlu0 %v4457, 24
    %v4531 = vpop.permute.xlu0 %4530
    %4532 = vrot.lane.b32.xlu0 %v4458, 24
    %v4533 = vpop.permute.xlu0 %4532
    %4534 = vrot.lane.b32.xlu0 %v4459, 24
    %v4535 = vpop.permute.xlu0 %4534
    %4536 = vrot.lane.b32.xlu0 %v4460, 24
    %v4537 = vpop.permute.xlu0 %4536
    %4538 = vrot.lane.b32.xlu0 %v4461, 24
    %v4539 = vpop.permute.xlu0 %4538
    %4540 = vrot.lane.b32.xlu0 %v4462, 24
    %v4541 = vpop.permute.xlu0 %4540
    %4542 = vrot.lane.b32.xlu0 %v4463, 24
    %v4543 = vpop.permute.xlu0 %4542
    %4544 = vrot.lane.b32.xlu0 %v4464, 24
    %v4545 = vpop.permute.xlu0 %4544
    %4546 = vrot.lane.b32.xlu0 %v4465, 24
    %v4547 = vpop.permute.xlu0 %4546
    %4548 = vrot.lane.b32.xlu0 %v4466, 24
    %v4549 = vpop.permute.xlu0 %4548
    %4550 = vrot.lane.b32.xlu0 %v4467, 24
    %v4551 = vpop.permute.xlu0 %4550
    %4552 = vrot.lane.b32.xlu0 %v4468, 24
    %v4553 = vpop.permute.xlu0 %4552
    %4554 = vrot.lane.b32.xlu0 %v4469, 24
    %v4555 = vpop.permute.xlu0 %4554
    %4556 = vrot.lane.b32.xlu0 %v4470, 24
    %v4557 = vpop.permute.xlu0 %4556
    %4558 = vrot.lane.b32.xlu0 %v4471, 24
    %v4559 = vpop.permute.xlu0 %4558
    %4560 = vrot.lane.b32.xlu0 %v4472, 24
    %v4561 = vpop.permute.xlu0 %4560
    %4562 = vrot.lane.b32.xlu0 %v4473, 24
    %v4563 = vpop.permute.xlu0 %4562
    %4564 = vrot.lane.b32.xlu0 %v4474, 24
    %v4565 = vpop.permute.xlu0 %4564
    %4566 = vrot.lane.b32.xlu0 %v4475, 24
    %v4567 = vpop.permute.xlu0 %4566
    %4568 = vrot.lane.b32.xlu0 %v4476, 24
    %v4569 = vpop.permute.xlu0 %4568
    %4570 = vrot.lane.b32.xlu0 %v4477, 24
    %v4571 = vpop.permute.xlu0 %4570
    %4572 = vrot.lane.b32.xlu0 %v4478, 24
    %v4573 = vpop.permute.xlu0 %4572
    %4574 = vrot.lane.b32.xlu0 %v4479, 24
    %v4575 = vpop.permute.xlu0 %4574
    %4576 = vrot.lane.b32.xlu0 %v4480, 24
    %v4577 = vpop.permute.xlu0 %4576
    %4578 = vrot.lane.b32.xlu0 %v4481, 24
    %v4579 = vpop.permute.xlu0 %4578
    %4580 = vrot.lane.b32.xlu0 %v4482, 24
    %v4581 = vpop.permute.xlu0 %4580
    %4582 = vrot.lane.b32.xlu0 %v4483, 24
    %v4583 = vpop.permute.xlu0 %4582
    %4584 = vrot.lane.b32.xlu0 %v4484, 24
    %v4585 = vpop.permute.xlu0 %4584
    %4586 = vrot.lane.b32.xlu0 %v4485, 24
    %v4587 = vpop.permute.xlu0 %4586
    %4588 = vrot.lane.b32.xlu0 %v4486, 24
    %v4589 = vpop.permute.xlu0 %4588
    %4590 = vrot.lane.b32.xlu0 %v4487, 24
    %v4591 = vpop.permute.xlu0 %4590
    %4592 = vrot.lane.b32.xlu0 %v4488, 24
    %v4593 = vpop.permute.xlu0 %4592
    %4594 = vrot.lane.b32.xlu0 %v4489, 24
    %v4595 = vpop.permute.xlu0 %4594
    %4596 = vrot.lane.b32.xlu0 %v4490, 24
    %v4597 = vpop.permute.xlu0 %4596
    %4598 = vrot.lane.b32.xlu0 %v4491, 24
    %v4599 = vpop.permute.xlu0 %4598
    %4600 = vrot.lane.b32.xlu0 %v4492, 24
    %v4601 = vpop.permute.xlu0 %4600
    %4602 = vrot.lane.b32.xlu0 %v4493, 24
    %v4603 = vpop.permute.xlu0 %4602
    %4604 = vrot.lane.b32.xlu0 %v4494, 24
    %v4605 = vpop.permute.xlu0 %4604
    %4606 = vrot.lane.b32.xlu0 %v4495, 24
    %v4607 = vpop.permute.xlu0 %4606
    %4608 = vrot.lane.b32.xlu0 %v4496, 24
    %v4609 = vpop.permute.xlu0 %4608
    %4610 = vrot.lane.b32.xlu0 %v4497, 24
    %v4611 = vpop.permute.xlu0 %4610
    %4612 = vrot.lane.b32.xlu0 %v4498, 24
    %v4613 = vpop.permute.xlu0 %4612
    %4614 = vrot.lane.b32.xlu0 %v4499, 24
    %v4615 = vpop.permute.xlu0 %4614
    %4616 = vrot.lane.b32.xlu0 %v4500, 24
    %v4617 = vpop.permute.xlu0 %4616
    %4618 = vrot.lane.b32.xlu0 %v4501, 24
    %v4619 = vpop.permute.xlu0 %4618
    %4620 = vrot.lane.b32.xlu0 %v4502, 24
    %v4621 = vpop.permute.xlu0 %4620
    %4622 = vrot.lane.b32.xlu0 %v4503, 24
    %v4623 = vpop.permute.xlu0 %4622
    %4624 = vrot.lane.b32.xlu0 %v4504, 24
    %v4625 = vpop.permute.xlu0 %4624
    %4626 = vrot.lane.b32.xlu0 %v4505, 24
    %v4627 = vpop.permute.xlu0 %4626
    %4628 = vrot.lane.b32.xlu0 %v4506, 24
    %v4629 = vpop.permute.xlu0 %4628
    %4630 = vrot.lane.b32.xlu0 %v4507, 24
    %v4631 = vpop.permute.xlu0 %4630
    %4632 = vrot.lane.b32.xlu0 %v4508, 24
    %v4633 = vpop.permute.xlu0 %4632
    %4634 = vrot.lane.b32.xlu0 %v4509, 24
    %v4635 = vpop.permute.xlu0 %4634
    %4636 = vrot.lane.b32.xlu0 %v4510, 24
    %v4637 = vpop.permute.xlu0 %4636
    %4638 = vrot.lane.b32.xlu0 %v4511, 24
    %v4639 = vpop.permute.xlu0 %4638
    %vm4704 = vcmask 216256
    %4705 = vst.msk [vmem:[#allocation3] sm:$0xf] %vm4704, %v4513
    %4706 = vst.msk [vmem:[#allocation3 + $0x4] sm:$0xf] %vm4704, %v4515
    %4707 = vst.msk [vmem:[#allocation3 + $0x8] sm:$0xf] %vm4704, %v4517
    %4708 = vst.msk [vmem:[#allocation3 + $0xc] sm:$0xf] %vm4704, %v4519
    %4709 = vst.msk [vmem:[#allocation3 + $0x10] sm:$0xf] %vm4704, %v4521
    %4710 = vst.msk [vmem:[#allocation3 + $0x14] sm:$0xf] %vm4704, %v4523
    %4711 = vst.msk [vmem:[#allocation3 + $0x18] sm:$0xf] %vm4704, %v4525
    %4712 = vst.msk [vmem:[#allocation3 + $0x1c] sm:$0xf] %vm4704, %v4527
    %4713 = vst.msk [vmem:[#allocation3 + $0x20] sm:$0xf] %vm4704, %v4529
    %4714 = vst.msk [vmem:[#allocation3 + $0x24] sm:$0xf] %vm4704, %v4531
    %4715 = vst.msk [vmem:[#allocation3 + $0x28] sm:$0xf] %vm4704, %v4533
    %4716 = vst.msk [vmem:[#allocation3 + $0x2c] sm:$0xf] %vm4704, %v4535
    %4717 = vst.msk [vmem:[#allocation3 + $0x30] sm:$0xf] %vm4704, %v4537
    %4718 = vst.msk [vmem:[#allocation3 + $0x34] sm:$0xf] %vm4704, %v4539
    %4719 = vst.msk [vmem:[#allocation3 + $0x38] sm:$0xf] %vm4704, %v4541
    %4720 = vst.msk [vmem:[#allocation3 + $0x3c] sm:$0xf] %vm4704, %v4543
    %4721 = vst.msk [vmem:[#allocation3 + $0x40] sm:$0xf] %vm4704, %v4545
    %4722 = vst.msk [vmem:[#allocation3 + $0x44] sm:$0xf] %vm4704, %v4547
    %4723 = vst.msk [vmem:[#allocation3 + $0x48] sm:$0xf] %vm4704, %v4549
    %4724 = vst.msk [vmem:[#allocation3 + $0x4c] sm:$0xf] %vm4704, %v4551
    %4725 = vst.msk [vmem:[#allocation3 + $0x50] sm:$0xf] %vm4704, %v4553
    %4726 = vst.msk [vmem:[#allocation3 + $0x54] sm:$0xf] %vm4704, %v4555
    %4727 = vst.msk [vmem:[#allocation3 + $0x58] sm:$0xf] %vm4704, %v4557
    %4728 = vst.msk [vmem:[#allocation3 + $0x5c] sm:$0xf] %vm4704, %v4559
    %4729 = vst.msk [vmem:[#allocation3 + $0x60] sm:$0xf] %vm4704, %v4561
    %4730 = vst.msk [vmem:[#allocation3 + $0x64] sm:$0xf] %vm4704, %v4563
    %4731 = vst.msk [vmem:[#allocation3 + $0x68] sm:$0xf] %vm4704, %v4565
    %4732 = vst.msk [vmem:[#allocation3 + $0x6c] sm:$0xf] %vm4704, %v4567
    %4733 = vst.msk [vmem:[#allocation3 + $0x70] sm:$0xf] %vm4704, %v4569
    %4734 = vst.msk [vmem:[#allocation3 + $0x74] sm:$0xf] %vm4704, %v4571
    %4735 = vst.msk [vmem:[#allocation3 + $0x78] sm:$0xf] %vm4704, %v4573
    %4736 = vst.msk [vmem:[#allocation3 + $0x7c] sm:$0xf] %vm4704, %v4575
    %4737 = vst.msk [vmem:[#allocation3 + $0x80] sm:$0xf] %vm4704, %v4577
    %4738 = vst.msk [vmem:[#allocation3 + $0x84] sm:$0xf] %vm4704, %v4579
    %4739 = vst.msk [vmem:[#allocation3 + $0x88] sm:$0xf] %vm4704, %v4581
    %4740 = vst.msk [vmem:[#allocation3 + $0x8c] sm:$0xf] %vm4704, %v4583
    %4741 = vst.msk [vmem:[#allocation3 + $0x90] sm:$0xf] %vm4704, %v4585
    %4742 = vst.msk [vmem:[#allocation3 + $0x94] sm:$0xf] %vm4704, %v4587
    %4743 = vst.msk [vmem:[#allocation3 + $0x98] sm:$0xf] %vm4704, %v4589
    %4744 = vst.msk [vmem:[#allocation3 + $0x9c] sm:$0xf] %vm4704, %v4591
    %4745 = vst.msk [vmem:[#allocation3 + $0xa0] sm:$0xf] %vm4704, %v4593
    %4746 = vst.msk [vmem:[#allocation3 + $0xa4] sm:$0xf] %vm4704, %v4595
    %4747 = vst.msk [vmem:[#allocation3 + $0xa8] sm:$0xf] %vm4704, %v4597
    %4748 = vst.msk [vmem:[#allocation3 + $0xac] sm:$0xf] %vm4704, %v4599
    %4749 = vst.msk [vmem:[#allocation3 + $0xb0] sm:$0xf] %vm4704, %v4601
    %4750 = vst.msk [vmem:[#allocation3 + $0xb4] sm:$0xf] %vm4704, %v4603
    %4751 = vst.msk [vmem:[#allocation3 + $0xb8] sm:$0xf] %vm4704, %v4605
    %4752 = vst.msk [vmem:[#allocation3 + $0xbc] sm:$0xf] %vm4704, %v4607
    %4753 = vst.msk [vmem:[#allocation3 + $0xc0] sm:$0xf] %vm4704, %v4609
    %4754 = vst.msk [vmem:[#allocation3 + $0xc4] sm:$0xf] %vm4704, %v4611
    %4755 = vst.msk [vmem:[#allocation3 + $0xc8] sm:$0xf] %vm4704, %v4613
    %4756 = vst.msk [vmem:[#allocation3 + $0xcc] sm:$0xf] %vm4704, %v4615
    %4757 = vst.msk [vmem:[#allocation3 + $0xd0] sm:$0xf] %vm4704, %v4617
    %4758 = vst.msk [vmem:[#allocation3 + $0xd4] sm:$0xf] %vm4704, %v4619
    %4759 = vst.msk [vmem:[#allocation3 + $0xd8] sm:$0xf] %vm4704, %v4621
    %4760 = vst.msk [vmem:[#allocation3 + $0xdc] sm:$0xf] %vm4704, %v4623
    %4761 = vst.msk [vmem:[#allocation3 + $0xe0] sm:$0xf] %vm4704, %v4625
    %4762 = vst.msk [vmem:[#allocation3 + $0xe4] sm:$0xf] %vm4704, %v4627
    %4763 = vst.msk [vmem:[#allocation3 + $0xe8] sm:$0xf] %vm4704, %v4629
    %4764 = vst.msk [vmem:[#allocation3 + $0xec] sm:$0xf] %vm4704, %v4631
    %4765 = vst.msk [vmem:[#allocation3 + $0xf0] sm:$0xf] %vm4704, %v4633
    %4766 = vst.msk [vmem:[#allocation3 + $0xf4] sm:$0xf] %vm4704, %v4635
    %4767 = vst.msk [vmem:[#allocation3 + $0xf8] sm:$0xf] %vm4704, %v4637
    %4768 = vst.msk [vmem:[#allocation3 + $0xfc] sm:$0xf] %vm4704, %v4639
    %v4769 = vld [vmem:[#allocation3] sm:$0xf]
    %v4770 = vld [vmem:[#allocation3 + $0x4] sm:$0xf]
    %v4771 = vld [vmem:[#allocation3 + $0x8] sm:$0xf]
    %v4772 = vld [vmem:[#allocation3 + $0xc] sm:$0xf]
    %v4773 = vld [vmem:[#allocation3 + $0x10] sm:$0xf]
    %v4774 = vld [vmem:[#allocation3 + $0x14] sm:$0xf]
    %v4775 = vld [vmem:[#allocation3 + $0x18] sm:$0xf]
    %v4776 = vld [vmem:[#allocation3 + $0x1c] sm:$0xf]
    %v4777 = vld [vmem:[#allocation3 + $0x20] sm:$0xf]
    %v4778 = vld [vmem:[#allocation3 + $0x24] sm:$0xf]
    %v4779 = vld [vmem:[#allocation3 + $0x28] sm:$0xf]
    %v4780 = vld [vmem:[#allocation3 + $0x2c] sm:$0xf]
    %v4781 = vld [vmem:[#allocation3 + $0x30] sm:$0xf]
    %v4782 = vld [vmem:[#allocation3 + $0x34] sm:$0xf]
    %v4783 = vld [vmem:[#allocation3 + $0x38] sm:$0xf]
    %v4784 = vld [vmem:[#allocation3 + $0x3c] sm:$0xf]
    %v4785 = vld [vmem:[#allocation3 + $0x40] sm:$0xf]
    %v4786 = vld [vmem:[#allocation3 + $0x44] sm:$0xf]
    %v4787 = vld [vmem:[#allocation3 + $0x48] sm:$0xf]
    %v4788 = vld [vmem:[#allocation3 + $0x4c] sm:$0xf]
    %v4789 = vld [vmem:[#allocation3 + $0x50] sm:$0xf]
    %v4790 = vld [vmem:[#allocation3 + $0x54] sm:$0xf]
    %v4791 = vld [vmem:[#allocation3 + $0x58] sm:$0xf]
    %v4792 = vld [vmem:[#allocation3 + $0x5c] sm:$0xf]
    %v4793 = vld [vmem:[#allocation3 + $0x60] sm:$0xf]
    %v4794 = vld [vmem:[#allocation3 + $0x64] sm:$0xf]
    %v4795 = vld [vmem:[#allocation3 + $0x68] sm:$0xf]
    %v4796 = vld [vmem:[#allocation3 + $0x6c] sm:$0xf]
    %v4797 = vld [vmem:[#allocation3 + $0x70] sm:$0xf]
    %v4798 = vld [vmem:[#allocation3 + $0x74] sm:$0xf]
    %v4799 = vld [vmem:[#allocation3 + $0x78] sm:$0xf]
    %v4800 = vld [vmem:[#allocation3 + $0x7c] sm:$0xf]
    %v4801 = vld [vmem:[#allocation3 + $0x80] sm:$0xf]
    %v4802 = vld [vmem:[#allocation3 + $0x84] sm:$0xf]
    %v4803 = vld [vmem:[#allocation3 + $0x88] sm:$0xf]
    %v4804 = vld [vmem:[#allocation3 + $0x8c] sm:$0xf]
    %v4805 = vld [vmem:[#allocation3 + $0x90] sm:$0xf]
    %v4806 = vld [vmem:[#allocation3 + $0x94] sm:$0xf]
    %v4807 = vld [vmem:[#allocation3 + $0x98] sm:$0xf]
    %v4808 = vld [vmem:[#allocation3 + $0x9c] sm:$0xf]
    %v4809 = vld [vmem:[#allocation3 + $0xa0] sm:$0xf]
    %v4810 = vld [vmem:[#allocation3 + $0xa4] sm:$0xf]
    %v4811 = vld [vmem:[#allocation3 + $0xa8] sm:$0xf]
    %v4812 = vld [vmem:[#allocation3 + $0xac] sm:$0xf]
    %v4813 = vld [vmem:[#allocation3 + $0xb0] sm:$0xf]
    %v4814 = vld [vmem:[#allocation3 + $0xb4] sm:$0xf]
    %v4815 = vld [vmem:[#allocation3 + $0xb8] sm:$0xf]
    %v4816 = vld [vmem:[#allocation3 + $0xbc] sm:$0xf]
    %v4817 = vld [vmem:[#allocation3 + $0xc0] sm:$0xf]
    %v4818 = vld [vmem:[#allocation3 + $0xc4] sm:$0xf]
    %v4819 = vld [vmem:[#allocation3 + $0xc8] sm:$0xf]
    %v4820 = vld [vmem:[#allocation3 + $0xcc] sm:$0xf]
    %v4821 = vld [vmem:[#allocation3 + $0xd0] sm:$0xf]
    %v4822 = vld [vmem:[#allocation3 + $0xd4] sm:$0xf]
    %v4823 = vld [vmem:[#allocation3 + $0xd8] sm:$0xf]
    %v4824 = vld [vmem:[#allocation3 + $0xdc] sm:$0xf]
    %v4825 = vld [vmem:[#allocation3 + $0xe0] sm:$0xf]
    %v4826 = vld [vmem:[#allocation3 + $0xe4] sm:$0xf]
    %v4827 = vld [vmem:[#allocation3 + $0xe8] sm:$0xf]
    %v4828 = vld [vmem:[#allocation3 + $0xec] sm:$0xf]
    %v4829 = vld [vmem:[#allocation3 + $0xf0] sm:$0xf]
    %v4830 = vld [vmem:[#allocation3 + $0xf4] sm:$0xf]
    %v4831 = vld [vmem:[#allocation3 + $0xf8] sm:$0xf]
    %v4832 = vld [vmem:[#allocation3 + $0xfc] sm:$0xf]
    %v4833 = vld [vmem:[%s1] sm:$0xf]
    %v4834 = vld [vmem:[%s1 + $0x4] sm:$0xf]
    %v4835 = vld [vmem:[%s1 + $0x8] sm:$0xf]
    %v4836 = vld [vmem:[%s1 + $0xc] sm:$0x3]
    %v4837 = vld [vmem:[%s2] sm:$0x1]
    %v4839 = vlaneseq
    %v4840 = vshrl.u32 %v4839, 7
    %v4841 = vsub.s32 0, %v4840
    %v4842 = vrot.slane %v4837, %v4841
    %v4908 = vunpack.c.l.b16 %v4769
    %v4909 = vunpack.c.l.b16 %v4770
    %v4910 = vunpack.c.l.b16 %v4771
    %v4911 = vunpack.c.l.b16 %v4772
    %v4912 = vunpack.c.l.b16 %v4773
    %v4913 = vunpack.c.l.b16 %v4774
    %v4914 = vunpack.c.l.b16 %v4775
    %v4915 = vunpack.c.l.b16 %v4776
    %v4916 = vunpack.c.l.b16 %v4777
    %v4917 = vunpack.c.l.b16 %v4778
    %v4918 = vunpack.c.l.b16 %v4779
    %v4919 = vunpack.c.l.b16 %v4780
    %v4920 = vunpack.c.l.b16 %v4781
    %v4921 = vunpack.c.l.b16 %v4782
    %v4922 = vunpack.c.l.b16 %v4783
    %v4923 = vunpack.c.l.b16 %v4784
    %v4924 = vunpack.c.l.b16 %v4785
    %v4925 = vunpack.c.l.b16 %v4786
    %v4926 = vunpack.c.l.b16 %v4787
    %v4927 = vunpack.c.l.b16 %v4788
    %v4928 = vunpack.c.l.b16 %v4789
    %v4929 = vunpack.c.l.b16 %v4790
    %v4930 = vunpack.c.l.b16 %v4791
    %v4931 = vunpack.c.l.b16 %v4792
    %v4932 = vunpack.c.l.b16 %v4793
    %v4933 = vunpack.c.l.b16 %v4794
    %v4934 = vunpack.c.l.b16 %v4795
    %v4935 = vunpack.c.l.b16 %v4796
    %v4936 = vunpack.c.l.b16 %v4797
    %v4937 = vunpack.c.l.b16 %v4798
    %v4938 = vunpack.c.l.b16 %v4799
    %v4939 = vunpack.c.l.b16 %v4800
    %v4940 = vunpack.c.l.b16 %v4801
    %v4941 = vunpack.c.l.b16 %v4802
    %v4942 = vunpack.c.l.b16 %v4803
    %v4943 = vunpack.c.l.b16 %v4804
    %v4944 = vunpack.c.l.b16 %v4805
    %v4945 = vunpack.c.l.b16 %v4806
    %v4946 = vunpack.c.l.b16 %v4807
    %v4947 = vunpack.c.l.b16 %v4808
    %v4948 = vunpack.c.l.b16 %v4809
    %v4949 = vunpack.c.l.b16 %v4810
    %v4950 = vunpack.c.l.b16 %v4811
    %v4951 = vunpack.c.l.b16 %v4812
    %v4952 = vunpack.c.l.b16 %v4813
    %v4953 = vunpack.c.l.b16 %v4814
    %v4954 = vunpack.c.l.b16 %v4815
    %v4955 = vunpack.c.l.b16 %v4816
    %v4956 = vunpack.c.l.b16 %v4817
    %v4957 = vunpack.c.l.b16 %v4818
    %v4958 = vunpack.c.l.b16 %v4819
    %v4959 = vunpack.c.l.b16 %v4820
    %v4960 = vunpack.c.l.b16 %v4821
    %v4961 = vunpack.c.l.b16 %v4822
    %v4962 = vunpack.c.l.b16 %v4823
    %v4963 = vunpack.c.l.b16 %v4824
    %v4964 = vunpack.c.l.b16 %v4825
    %v4965 = vunpack.c.l.b16 %v4826
    %v4966 = vunpack.c.l.b16 %v4827
    %v4967 = vunpack.c.l.b16 %v4828
    %v4968 = vunpack.c.l.b16 %v4829
    %v4969 = vunpack.c.l.b16 %v4830
    %v4970 = vunpack.c.l.b16 %v4831
    %v4971 = vunpack.c.l.b16 %v4832
    %v4972 = vpack.c.b16 %v4909, %v4908
    %v4973 = vpack.c.b16 %v4911, %v4910
    %v4974 = vpack.c.b16 %v4913, %v4912
    %v4975 = vpack.c.b16 %v4915, %v4914
    %v4976 = vpack.c.b16 %v4917, %v4916
    %v4977 = vpack.c.b16 %v4919, %v4918
    %v4978 = vpack.c.b16 %v4921, %v4920
    %v4979 = vpack.c.b16 %v4923, %v4922
    %v4980 = vpack.c.b16 %v4925, %v4924
    %v4981 = vpack.c.b16 %v4927, %v4926
    %v4982 = vpack.c.b16 %v4929, %v4928
    %v4983 = vpack.c.b16 %v4931, %v4930
    %v4984 = vpack.c.b16 %v4933, %v4932
    %v4985 = vpack.c.b16 %v4935, %v4934
    %v4986 = vpack.c.b16 %v4937, %v4936
    %v4987 = vpack.c.b16 %v4939, %v4938
    %v4988 = vpack.c.b16 %v4941, %v4940
    %v4989 = vpack.c.b16 %v4943, %v4942
    %v4990 = vpack.c.b16 %v4945, %v4944
    %v4991 = vpack.c.b16 %v4947, %v4946
    %v4992 = vpack.c.b16 %v4949, %v4948
    %v4993 = vpack.c.b16 %v4951, %v4950
    %v4994 = vpack.c.b16 %v4953, %v4952
    %v4995 = vpack.c.b16 %v4955, %v4954
    %v4996 = vpack.c.b16 %v4957, %v4956
    %v4997 = vpack.c.b16 %v4959, %v4958
    %v4998 = vpack.c.b16 %v4961, %v4960
    %v4999 = vpack.c.b16 %v4963, %v4962
    %v5000 = vpack.c.b16 %v4965, %v4964
    %v5001 = vpack.c.b16 %v4967, %v4966
    %v5002 = vpack.c.b16 %v4969, %v4968
    %v5003 = vpack.c.b16 %v4971, %v4970
    %v5008 = vunpack.c.l.b16 %v4833
    %v5009 = vunpack.c.l.b16 %v4834
    %v5010 = vunpack.c.l.b16 %v4835
    %v5011 = vunpack.c.l.b16 %v4836
    %v5012 = vpack.c.b16 %v5009, %v5008
    %v5013 = vpack.c.b16 %v5011, %v5010
    %vm5015 = vcmask 220160
    %v5017 = vsel %vm5015, %v4972, 0
    %v5020 = vsel %vm5015, %v4973, 0
    %v5023 = vsel %vm5015, %v4974, 0
    %v5026 = vsel %vm5015, %v4975, 0
    %v5029 = vsel %vm5015, %v4976, 0
    %v5032 = vsel %vm5015, %v4977, 0
    %v5035 = vsel %vm5015, %v4978, 0
    %v5038 = vsel %vm5015, %v4979, 0
    %v5041 = vsel %vm5015, %v4980, 0
    %v5044 = vsel %vm5015, %v4981, 0
    %v5047 = vsel %vm5015, %v4982, 0
    %v5050 = vsel %vm5015, %v4983, 0
    %v5053 = vsel %vm5015, %v4984, 0
    %v5056 = vsel %vm5015, %v4985, 0
    %v5059 = vsel %vm5015, %v4986, 0
    %v5062 = vsel %vm5015, %v4987, 0
    %v5065 = vsel %vm5015, %v4988, 0
    %v5068 = vsel %vm5015, %v4989, 0
    %v5071 = vsel %vm5015, %v4990, 0
    %v5074 = vsel %vm5015, %v4991, 0
    %v5077 = vsel %vm5015, %v4992, 0
    %v5080 = vsel %vm5015, %v4993, 0
    %v5083 = vsel %vm5015, %v4994, 0
    %v5086 = vsel %vm5015, %v4995, 0
    %v5089 = vsel %vm5015, %v4996, 0
    %v5092 = vsel %vm5015, %v4997, 0
    %v5095 = vsel %vm5015, %v4998, 0
    %v5098 = vsel %vm5015, %v4999, 0
    %v5101 = vsel %vm5015, %v5000, 0
    %v5104 = vsel %vm5015, %v5001, 0
    %v5107 = vsel %vm5015, %v5002, 0
    %v5110 = vsel %vm5015, %v5003, 0
    %vm5112 = vcmask 1044480
    %vm5113 = vcmask 1045504
    %v5114 = vsel %vm5112, 4294967295, 65535
    %v5115 = vsel %vm5113, %v5114, 0
    %v5117 = vand.u32 %v5013, %v5115
    %5119 = vmatprep.subr.bf16.mxu0 0
    %5120 = vmatpush1.bf16.msra.mxu0 0
    %5121 = vmatprep.subr.bf16.mxu0 0
    %5122 = vmatpush1.bf16.msra.mxu0 0
    %5123 = vmatprep.subr.bf16.mxu0 0
    %5124 = vmatpush1.bf16.msra.mxu0 0
    %5125 = vmatprep.subr.bf16.mxu0 0
    %5126 = vmatpush1.bf16.msra.mxu0 0
    %5127 = vmatprep.subr.bf16.mxu0 0
    %5128 = vmatpush1.bf16.msra.mxu0 0
    %5129 = vmatprep.subr.bf16.mxu0 0
    %5130 = vmatpush1.bf16.msra.mxu0 0
    %5131 = vmatprep.subr.bf16.mxu0 0
    %5132 = vmatpush1.bf16.msra.mxu0 %v5117
    %5133 = vmatprep.subr.bf16.mxu0 0
    %5134 = vmatpush1.bf16.msra.mxu0 %v5012
    %5135 = vmatprep.subr.bf16.mxu0 0
    %5136 = vmatpush2.bf16.msra.mxu0 0
    %5137 = vmatprep.subr.bf16.mxu0 0
    %5138 = vmatpush2.bf16.msra.mxu0 0
    %5139 = vmatprep.subr.bf16.mxu0 0
    %5140 = vmatpush2.bf16.msra.mxu0 0
    %5141 = vmatprep.subr.bf16.mxu0 0
    %5142 = vmatpush2.bf16.msra.mxu0 0
    %5143 = vmatprep.subr.bf16.mxu0 0
    %5144 = vmatpush2.bf16.msra.mxu0 0
    %5145 = vmatprep.subr.bf16.mxu0 0
    %5146 = vmatpush2.bf16.msra.mxu0 0
    %5147 = vmatprep.subr.bf16.mxu0 0
    %5148 = vmatpush2.bf16.msra.mxu0 0
    %5149 = vmatprep.subr.bf16.mxu0 0
    %5150 = vmatpush2.bf16.msra.mxu0 0
    %5151 = vmatprep.mubr.bf16.mxu0 0
    %5152 = vmatmul.mubr.bf16.gmra.mxu0 %v5017
    %v5153 = vpop.f32.mrf.mxu0
    %v5154 = vadd.f32 %v4842, %v5153
    %v5155 = vpop.f32.mrf.mxu0
    %v5156 = vpop.f32.mrf.mxu0
    %v5157 = vadd.f32 %v4842, %v5156
    %v5158 = vpop.f32.mrf.mxu0
    %5159 = vmatprep.mubr.bf16.mxu0 0
    %5160 = vmatmul.mubr.bf16.gmra.mxu0 %v5020
    %v5161 = vpop.f32.mrf.mxu0
    %v5162 = vadd.f32 %v4842, %v5161
    %v5163 = vpop.f32.mrf.mxu0
    %v5164 = vpop.f32.mrf.mxu0
    %v5165 = vadd.f32 %v4842, %v5164
    %v5166 = vpop.f32.mrf.mxu0
    %5167 = vmatprep.mubr.bf16.mxu0 0
    %5168 = vmatmul.mubr.bf16.gmra.mxu0 %v5023
    %v5169 = vpop.f32.mrf.mxu0
    %v5170 = vadd.f32 %v4842, %v5169
    %v5171 = vpop.f32.mrf.mxu0
    %v5172 = vpop.f32.mrf.mxu0
    %v5173 = vadd.f32 %v4842, %v5172
    %v5174 = vpop.f32.mrf.mxu0
    %5175 = vmatprep.mubr.bf16.mxu0 0
    %5176 = vmatmul.mubr.bf16.gmra.mxu0 %v5026
    %v5177 = vpop.f32.mrf.mxu0
    %v5178 = vadd.f32 %v4842, %v5177
    %v5179 = vpop.f32.mrf.mxu0
    %v5180 = vpop.f32.mrf.mxu0
    %v5181 = vadd.f32 %v4842, %v5180
    %v5182 = vpop.f32.mrf.mxu0
    %5183 = vmatprep.mubr.bf16.mxu0 0
    %5184 = vmatmul.mubr.bf16.gmra.mxu0 %v5029
    %v5185 = vpop.f32.mrf.mxu0
    %v5186 = vadd.f32 %v4842, %v5185
    %v5187 = vpop.f32.mrf.mxu0
    %v5188 = vpop.f32.mrf.mxu0
    %v5189 = vadd.f32 %v4842, %v5188
    %v5190 = vpop.f32.mrf.mxu0
    %5191 = vmatprep.mubr.bf16.mxu0 0
    %5192 = vmatmul.mubr.bf16.gmra.mxu0 %v5032
    %v5193 = vpop.f32.mrf.mxu0
    %v5194 = vadd.f32 %v4842, %v5193
    %v5195 = vpop.f32.mrf.mxu0
    %v5196 = vpop.f32.mrf.mxu0
    %v5197 = vadd.f32 %v4842, %v5196
    %v5198 = vpop.f32.mrf.mxu0
    %5199 = vmatprep.mubr.bf16.mxu0 0
    %5200 = vmatmul.mubr.bf16.gmra.mxu0 %v5035
    %v5201 = vpop.f32.mrf.mxu0
    %v5202 = vadd.f32 %v4842, %v5201
    %v5203 = vpop.f32.mrf.mxu0
    %v5204 = vpop.f32.mrf.mxu0
    %v5205 = vadd.f32 %v4842, %v5204
    %v5206 = vpop.f32.mrf.mxu0
    %5207 = vmatprep.mubr.bf16.mxu0 0
    %5208 = vmatmul.mubr.bf16.gmra.mxu0 %v5038
    %v5209 = vpop.f32.mrf.mxu0
    %v5210 = vadd.f32 %v4842, %v5209
    %v5211 = vpop.f32.mrf.mxu0
    %v5212 = vpop.f32.mrf.mxu0
    %v5213 = vadd.f32 %v4842, %v5212
    %v5214 = vpop.f32.mrf.mxu0
    %5215 = vmatprep.mubr.bf16.mxu0 0
    %5216 = vmatmul.mubr.bf16.gmra.mxu0 %v5041
    %v5217 = vpop.f32.mrf.mxu0
    %v5218 = vadd.f32 %v4842, %v5217
    %v5219 = vpop.f32.mrf.mxu0
    %v5220 = vpop.f32.mrf.mxu0
    %v5221 = vadd.f32 %v4842, %v5220
    %v5222 = vpop.f32.mrf.mxu0
    %5223 = vmatprep.mubr.bf16.mxu0 0
    %5224 = vmatmul.mubr.bf16.gmra.mxu0 %v5044
    %v5225 = vpop.f32.mrf.mxu0
    %v5226 = vadd.f32 %v4842, %v5225
    %v5227 = vpop.f32.mrf.mxu0
    %v5228 = vpop.f32.mrf.mxu0
    %v5229 = vadd.f32 %v4842, %v5228
    %v5230 = vpop.f32.mrf.mxu0
    %5231 = vmatprep.mubr.bf16.mxu0 0
    %5232 = vmatmul.mubr.bf16.gmra.mxu0 %v5047
    %v5233 = vpop.f32.mrf.mxu0
    %v5234 = vadd.f32 %v4842, %v5233
    %v5235 = vpop.f32.mrf.mxu0
    %v5236 = vpop.f32.mrf.mxu0
    %v5237 = vadd.f32 %v4842, %v5236
    %v5238 = vpop.f32.mrf.mxu0
    %5239 = vmatprep.mubr.bf16.mxu0 0
    %5240 = vmatmul.mubr.bf16.gmra.mxu0 %v5050
    %v5241 = vpop.f32.mrf.mxu0
    %v5242 = vadd.f32 %v4842, %v5241
    %v5243 = vpop.f32.mrf.mxu0
    %v5244 = vpop.f32.mrf.mxu0
    %v5245 = vadd.f32 %v4842, %v5244
    %v5246 = vpop.f32.mrf.mxu0
    %5247 = vmatprep.mubr.bf16.mxu0 0
    %5248 = vmatmul.mubr.bf16.gmra.mxu0 %v5053
    %v5249 = vpop.f32.mrf.mxu0
    %v5250 = vadd.f32 %v4842, %v5249
    %v5251 = vpop.f32.mrf.mxu0
    %v5252 = vpop.f32.mrf.mxu0
    %v5253 = vadd.f32 %v4842, %v5252
    %v5254 = vpop.f32.mrf.mxu0
    %5255 = vmatprep.mubr.bf16.mxu0 0
    %5256 = vmatmul.mubr.bf16.gmra.mxu0 %v5056
    %v5257 = vpop.f32.mrf.mxu0
    %v5258 = vadd.f32 %v4842, %v5257
    %v5259 = vpop.f32.mrf.mxu0
    %v5260 = vpop.f32.mrf.mxu0
    %v5261 = vadd.f32 %v4842, %v5260
    %v5262 = vpop.f32.mrf.mxu0
    %5263 = vmatprep.mubr.bf16.mxu0 0
    %5264 = vmatmul.mubr.bf16.gmra.mxu0 %v5059
    %v5265 = vpop.f32.mrf.mxu0
    %v5266 = vadd.f32 %v4842, %v5265
    %v5267 = vpop.f32.mrf.mxu0
    %v5268 = vpop.f32.mrf.mxu0
    %v5269 = vadd.f32 %v4842, %v5268
    %v5270 = vpop.f32.mrf.mxu0
    %5271 = vmatprep.mubr.bf16.mxu0 0
    %5272 = vmatmul.mubr.bf16.gmra.mxu0 %v5062
    %v5273 = vpop.f32.mrf.mxu0
    %v5274 = vadd.f32 %v4842, %v5273
    %v5275 = vpop.f32.mrf.mxu0
    %v5276 = vpop.f32.mrf.mxu0
    %v5277 = vadd.f32 %v4842, %v5276
    %v5278 = vpop.f32.mrf.mxu0
    %5279 = vmatprep.mubr.bf16.mxu0 0
    %5280 = vmatmul.mubr.bf16.gmra.mxu0 %v5065
    %v5281 = vpop.f32.mrf.mxu0
    %v5282 = vadd.f32 %v4842, %v5281
    %v5283 = vpop.f32.mrf.mxu0
    %v5284 = vpop.f32.mrf.mxu0
    %v5285 = vadd.f32 %v4842, %v5284
    %v5286 = vpop.f32.mrf.mxu0
    %5287 = vmatprep.mubr.bf16.mxu0 0
    %5288 = vmatmul.mubr.bf16.gmra.mxu0 %v5068
    %v5289 = vpop.f32.mrf.mxu0
    %v5290 = vadd.f32 %v4842, %v5289
    %v5291 = vpop.f32.mrf.mxu0
    %v5292 = vpop.f32.mrf.mxu0
    %v5293 = vadd.f32 %v4842, %v5292
    %v5294 = vpop.f32.mrf.mxu0
    %5295 = vmatprep.mubr.bf16.mxu0 0
    %5296 = vmatmul.mubr.bf16.gmra.mxu0 %v5071
    %v5297 = vpop.f32.mrf.mxu0
    %v5298 = vadd.f32 %v4842, %v5297
    %v5299 = vpop.f32.mrf.mxu0
    %v5300 = vpop.f32.mrf.mxu0
    %v5301 = vadd.f32 %v4842, %v5300
    %v5302 = vpop.f32.mrf.mxu0
    %5303 = vmatprep.mubr.bf16.mxu0 0
    %5304 = vmatmul.mubr.bf16.gmra.mxu0 %v5074
    %v5305 = vpop.f32.mrf.mxu0
    %v5306 = vadd.f32 %v4842, %v5305
    %v5307 = vpop.f32.mrf.mxu0
    %v5308 = vpop.f32.mrf.mxu0
    %v5309 = vadd.f32 %v4842, %v5308
    %v5310 = vpop.f32.mrf.mxu0
    %5311 = vmatprep.mubr.bf16.mxu0 0
    %5312 = vmatmul.mubr.bf16.gmra.mxu0 %v5077
    %v5313 = vpop.f32.mrf.mxu0
    %v5314 = vadd.f32 %v4842, %v5313
    %v5315 = vpop.f32.mrf.mxu0
    %v5316 = vpop.f32.mrf.mxu0
    %v5317 = vadd.f32 %v4842, %v5316
    %v5318 = vpop.f32.mrf.mxu0
    %5319 = vmatprep.mubr.bf16.mxu0 0
    %5320 = vmatmul.mubr.bf16.gmra.mxu0 %v5080
    %v5321 = vpop.f32.mrf.mxu0
    %v5322 = vadd.f32 %v4842, %v5321
    %v5323 = vpop.f32.mrf.mxu0
    %v5324 = vpop.f32.mrf.mxu0
    %v5325 = vadd.f32 %v4842, %v5324
    %v5326 = vpop.f32.mrf.mxu0
    %5327 = vmatprep.mubr.bf16.mxu0 0
    %5328 = vmatmul.mubr.bf16.gmra.mxu0 %v5083
    %v5329 = vpop.f32.mrf.mxu0
    %v5330 = vadd.f32 %v4842, %v5329
    %v5331 = vpop.f32.mrf.mxu0
    %v5332 = vpop.f32.mrf.mxu0
    %v5333 = vadd.f32 %v4842, %v5332
    %v5334 = vpop.f32.mrf.mxu0
    %5335 = vmatprep.mubr.bf16.mxu0 0
    %5336 = vmatmul.mubr.bf16.gmra.mxu0 %v5086
    %v5337 = vpop.f32.mrf.mxu0
    %v5338 = vadd.f32 %v4842, %v5337
    %v5339 = vpop.f32.mrf.mxu0
    %v5340 = vpop.f32.mrf.mxu0
    %v5341 = vadd.f32 %v4842, %v5340
    %v5342 = vpop.f32.mrf.mxu0
    %5343 = vmatprep.mubr.bf16.mxu0 0
    %5344 = vmatmul.mubr.bf16.gmra.mxu0 %v5089
    %v5345 = vpop.f32.mrf.mxu0
    %v5346 = vadd.f32 %v4842, %v5345
    %v5347 = vpop.f32.mrf.mxu0
    %v5348 = vpop.f32.mrf.mxu0
    %v5349 = vadd.f32 %v4842, %v5348
    %v5350 = vpop.f32.mrf.mxu0
    %5351 = vmatprep.mubr.bf16.mxu0 0
    %5352 = vmatmul.mubr.bf16.gmra.mxu0 %v5092
    %v5353 = vpop.f32.mrf.mxu0
    %v5354 = vadd.f32 %v4842, %v5353
    %v5355 = vpop.f32.mrf.mxu0
    %v5356 = vpop.f32.mrf.mxu0
    %v5357 = vadd.f32 %v4842, %v5356
    %v5358 = vpop.f32.mrf.mxu0
    %5359 = vmatprep.mubr.bf16.mxu0 0
    %5360 = vmatmul.mubr.bf16.gmra.mxu0 %v5095
    %v5361 = vpop.f32.mrf.mxu0
    %v5362 = vadd.f32 %v4842, %v5361
    %v5363 = vpop.f32.mrf.mxu0
    %v5364 = vpop.f32.mrf.mxu0
    %v5365 = vadd.f32 %v4842, %v5364
    %v5366 = vpop.f32.mrf.mxu0
    %5367 = vmatprep.mubr.bf16.mxu0 0
    %5368 = vmatmul.mubr.bf16.gmra.mxu0 %v5098
    %v5369 = vpop.f32.mrf.mxu0
    %v5370 = vadd.f32 %v4842, %v5369
    %v5371 = vpop.f32.mrf.mxu0
    %v5372 = vpop.f32.mrf.mxu0
    %v5373 = vadd.f32 %v4842, %v5372
    %v5374 = vpop.f32.mrf.mxu0
    %5375 = vmatprep.mubr.bf16.mxu0 0
    %5376 = vmatmul.mubr.bf16.gmra.mxu0 %v5101
    %v5377 = vpop.f32.mrf.mxu0
    %v5378 = vadd.f32 %v4842, %v5377
    %v5379 = vpop.f32.mrf.mxu0
    %v5380 = vpop.f32.mrf.mxu0
    %v5381 = vadd.f32 %v4842, %v5380
    %v5382 = vpop.f32.mrf.mxu0
    %5383 = vmatprep.mubr.bf16.mxu0 0
    %5384 = vmatmul.mubr.bf16.gmra.mxu0 %v5104
    %v5385 = vpop.f32.mrf.mxu0
    %v5386 = vadd.f32 %v4842, %v5385
    %v5387 = vpop.f32.mrf.mxu0
    %v5388 = vpop.f32.mrf.mxu0
    %v5389 = vadd.f32 %v4842, %v5388
    %v5390 = vpop.f32.mrf.mxu0
    %5391 = vmatprep.mubr.bf16.mxu0 0
    %5392 = vmatmul.mubr.bf16.gmra.mxu0 %v5107
    %v5393 = vpop.f32.mrf.mxu0
    %v5394 = vadd.f32 %v4842, %v5393
    %v5395 = vpop.f32.mrf.mxu0
    %v5396 = vpop.f32.mrf.mxu0
    %v5397 = vadd.f32 %v4842, %v5396
    %v5398 = vpop.f32.mrf.mxu0
    %5399 = vmatprep.mubr.bf16.mxu0 0
    %5400 = vmatmul.mubr.bf16.gmra.mxu0 %v5110
    %v5401 = vpop.f32.mrf.mxu0
    %v5402 = vadd.f32 %v4842, %v5401
    %v5403 = vpop.f32.mrf.mxu0
    %v5404 = vpop.f32.mrf.mxu0
    %v5405 = vadd.f32 %v4842, %v5404
    %v5406 = vpop.f32.mrf.mxu0
    %5407 = vdwg.mxu0
    %v5408 = vmax.f32 %v5154, 0.0
    %v5409 = vmax.f32 %v5157, 0.0
    %v5410 = vmax.f32 %v5162, 0.0
    %v5411 = vmax.f32 %v5165, 0.0
    %v5412 = vmax.f32 %v5170, 0.0
    %v5413 = vmax.f32 %v5173, 0.0
    %v5414 = vmax.f32 %v5178, 0.0
    %v5415 = vmax.f32 %v5181, 0.0
    %v5416 = vmax.f32 %v5186, 0.0
    %v5417 = vmax.f32 %v5189, 0.0
    %v5418 = vmax.f32 %v5194, 0.0
    %v5419 = vmax.f32 %v5197, 0.0
    %v5420 = vmax.f32 %v5202, 0.0
    %v5421 = vmax.f32 %v5205, 0.0
    %v5422 = vmax.f32 %v5210, 0.0
    %v5423 = vmax.f32 %v5213, 0.0
    %v5424 = vmax.f32 %v5218, 0.0
    %v5425 = vmax.f32 %v5221, 0.0
    %v5426 = vmax.f32 %v5226, 0.0
    %v5427 = vmax.f32 %v5229, 0.0
    %v5428 = vmax.f32 %v5234, 0.0
    %v5429 = vmax.f32 %v5237, 0.0
    %v5430 = vmax.f32 %v5242, 0.0
    %v5431 = vmax.f32 %v5245, 0.0
    %v5432 = vmax.f32 %v5250, 0.0
    %v5433 = vmax.f32 %v5253, 0.0
    %v5434 = vmax.f32 %v5258, 0.0
    %v5435 = vmax.f32 %v5261, 0.0
    %v5436 = vmax.f32 %v5266, 0.0
    %v5437 = vmax.f32 %v5269, 0.0
    %v5438 = vmax.f32 %v5274, 0.0
    %v5439 = vmax.f32 %v5277, 0.0
    %v5440 = vmax.f32 %v5282, 0.0
    %v5441 = vmax.f32 %v5285, 0.0
    %v5442 = vmax.f32 %v5290, 0.0
    %v5443 = vmax.f32 %v5293, 0.0
    %v5444 = vmax.f32 %v5298, 0.0
    %v5445 = vmax.f32 %v5301, 0.0
    %v5446 = vmax.f32 %v5306, 0.0
    %v5447 = vmax.f32 %v5309, 0.0
    %v5448 = vmax.f32 %v5314, 0.0
    %v5449 = vmax.f32 %v5317, 0.0
    %v5450 = vmax.f32 %v5322, 0.0
    %v5451 = vmax.f32 %v5325, 0.0
    %v5452 = vmax.f32 %v5330, 0.0
    %v5453 = vmax.f32 %v5333, 0.0
    %v5454 = vmax.f32 %v5338, 0.0
    %v5455 = vmax.f32 %v5341, 0.0
    %v5456 = vmax.f32 %v5346, 0.0
    %v5457 = vmax.f32 %v5349, 0.0
    %v5458 = vmax.f32 %v5354, 0.0
    %v5459 = vmax.f32 %v5357, 0.0
    %v5460 = vmax.f32 %v5362, 0.0
    %v5461 = vmax.f32 %v5365, 0.0
    %v5462 = vmax.f32 %v5370, 0.0
    %v5463 = vmax.f32 %v5373, 0.0
    %v5464 = vmax.f32 %v5378, 0.0
    %v5465 = vmax.f32 %v5381, 0.0
    %v5466 = vmax.f32 %v5386, 0.0
    %v5467 = vmax.f32 %v5389, 0.0
    %v5468 = vmax.f32 %v5394, 0.0
    %v5469 = vmax.f32 %v5397, 0.0
    %v5470 = vmax.f32 %v5402, 0.0
    %v5471 = vmax.f32 %v5405, 0.0
    %v5472 = vmax.f32 %v5408, %v5410
    %v5473 = vmax.f32 %v5409, %v5411
    %v5474 = vmax.f32 %v5412, %v5414
    %v5475 = vmax.f32 %v5413, %v5415
    %v5476 = vmax.f32 %v5416, %v5418
    %v5477 = vmax.f32 %v5417, %v5419
    %v5478 = vmax.f32 %v5420, %v5422
    %v5479 = vmax.f32 %v5421, %v5423
    %v5480 = vmax.f32 %v5424, %v5426
    %v5481 = vmax.f32 %v5425, %v5427
    %v5482 = vmax.f32 %v5428, %v5430
    %v5483 = vmax.f32 %v5429, %v5431
    %v5484 = vmax.f32 %v5432, %v5434
    %v5485 = vmax.f32 %v5433, %v5435
    %v5486 = vmax.f32 %v5436, %v5438
    %v5487 = vmax.f32 %v5437, %v5439
    %v5488 = vmax.f32 %v5440, %v5442
    %v5489 = vmax.f32 %v5441, %v5443
    %v5490 = vmax.f32 %v5444, %v5446
    %v5491 = vmax.f32 %v5445, %v5447
    %v5492 = vmax.f32 %v5448, %v5450
    %v5493 = vmax.f32 %v5449, %v5451
    %v5494 = vmax.f32 %v5452, %v5454
    %v5495 = vmax.f32 %v5453, %v5455
    %v5496 = vmax.f32 %v5456, %v5458
    %v5497 = vmax.f32 %v5457, %v5459
    %v5498 = vmax.f32 %v5460, %v5462
    %v5499 = vmax.f32 %v5461, %v5463
    %v5500 = vmax.f32 %v5464, %v5466
    %v5501 = vmax.f32 %v5465, %v5467
    %v5502 = vmax.f32 %v5468, %v5470
    %v5503 = vmax.f32 %v5469, %v5471
    %vm5504 = vcmask 64512
    %5505 = vst.msk [vmem:[#allocation4] sm:$0xff] %vm5504, %v5472
    %5506 = vst.msk [vmem:[#allocation4 + $0x8] sm:$0xff] %vm5504, %v5473
    %5507 = vst.msk [vmem:[#allocation4 + $0x10] sm:$0xff] %vm5504, %v5474
    %5508 = vst.msk [vmem:[#allocation4 + $0x18] sm:$0xff] %vm5504, %v5475
    %5509 = vst.msk [vmem:[#allocation4 + $0x20] sm:$0xff] %vm5504, %v5476
    %5510 = vst.msk [vmem:[#allocation4 + $0x28] sm:$0xff] %vm5504, %v5477
    %5511 = vst.msk [vmem:[#allocation4 + $0x30] sm:$0xff] %vm5504, %v5478
    %5512 = vst.msk [vmem:[#allocation4 + $0x38] sm:$0xff] %vm5504, %v5479
    %5513 = vst.msk [vmem:[#allocation4 + $0x40] sm:$0xff] %vm5504, %v5480
    %5514 = vst.msk [vmem:[#allocation4 + $0x48] sm:$0xff] %vm5504, %v5481
    %5515 = vst.msk [vmem:[#allocation4 + $0x50] sm:$0xff] %vm5504, %v5482
    %5516 = vst.msk [vmem:[#allocation4 + $0x58] sm:$0xff] %vm5504, %v5483
    %5517 = vst.msk [vmem:[#allocation4 + $0x60] sm:$0xff] %vm5504, %v5484
    %5518 = vst.msk [vmem:[#allocation4 + $0x68] sm:$0xff] %vm5504, %v5485
    %5519 = vst.msk [vmem:[#allocation4 + $0x70] sm:$0xff] %vm5504, %v5486
    %5520 = vst.msk [vmem:[#allocation4 + $0x78] sm:$0xff] %vm5504, %v5487
    %5521 = vst.msk [vmem:[#allocation4 + $0x80] sm:$0xff] %vm5504, %v5488
    %5522 = vst.msk [vmem:[#allocation4 + $0x88] sm:$0xff] %vm5504, %v5489
    %5523 = vst.msk [vmem:[#allocation4 + $0x90] sm:$0xff] %vm5504, %v5490
    %5524 = vst.msk [vmem:[#allocation4 + $0x98] sm:$0xff] %vm5504, %v5491
    %5525 = vst.msk [vmem:[#allocation4 + $0xa0] sm:$0xff] %vm5504, %v5492
    %5526 = vst.msk [vmem:[#allocation4 + $0xa8] sm:$0xff] %vm5504, %v5493
    %5527 = vst.msk [vmem:[#allocation4 + $0xb0] sm:$0xff] %vm5504, %v5494
    %5528 = vst.msk [vmem:[#allocation4 + $0xb8] sm:$0xff] %vm5504, %v5495
    %5529 = vst.msk [vmem:[#allocation4 + $0xc0] sm:$0xff] %vm5504, %v5496
    %5530 = vst.msk [vmem:[#allocation4 + $0xc8] sm:$0xff] %vm5504, %v5497
    %5531 = vst.msk [vmem:[#allocation4 + $0xd0] sm:$0xff] %vm5504, %v5498
    %5532 = vst.msk [vmem:[#allocation4 + $0xd8] sm:$0xff] %vm5504, %v5499
    %5533 = vst.msk [vmem:[#allocation4 + $0xe0] sm:$0xff] %vm5504, %v5500
    %5534 = vst.msk [vmem:[#allocation4 + $0xe8] sm:$0xff] %vm5504, %v5501
    %5535 = vst.msk [vmem:[#allocation4 + $0xf0] sm:$0xff] %vm5504, %v5502
    %5536 = vst.msk [vmem:[#allocation4 + $0xf8] sm:$0xff] %vm5504, %v5503
    %v5537 = vld [vmem:[#allocation4] ss:$2 sm:$0xff]
    %s5538 = scalar_lea.vmem [#allocation4], 16
    %v5539 = vld [vmem:[%s5538] ss:$2 sm:$0xff]
    %s5540 = scalar_lea.vmem [#allocation4], 32
    %v5541 = vld [vmem:[%s5540] ss:$2 sm:$0xff]
    %s5542 = scalar_lea.vmem [#allocation4], 48
    %v5543 = vld [vmem:[%s5542] ss:$2 sm:$0xff]
    %s5544 = scalar_lea.vmem [#allocation4], 64
    %v5545 = vld [vmem:[%s5544] ss:$2 sm:$0xff]
    %s5546 = scalar_lea.vmem [#allocation4], 80
    %v5547 = vld [vmem:[%s5546] ss:$2 sm:$0xff]
    %s5548 = scalar_lea.vmem [#allocation4], 96
    %v5549 = vld [vmem:[%s5548] ss:$2 sm:$0xff]
    %s5550 = scalar_lea.vmem [#allocation4], 112
    %v5551 = vld [vmem:[%s5550] ss:$2 sm:$0xff]
    %s5552 = scalar_lea.vmem [#allocation4], 128
    %v5553 = vld [vmem:[%s5552] ss:$2 sm:$0xff]
    %s5554 = scalar_lea.vmem [#allocation4], 144
    %v5555 = vld [vmem:[%s5554] ss:$2 sm:$0xff]
    %s5556 = scalar_lea.vmem [#allocation4], 160
    %v5557 = vld [vmem:[%s5556] ss:$2 sm:$0xff]
    %s5558 = scalar_lea.vmem [#allocation4], 176
    %v5559 = vld [vmem:[%s5558] ss:$2 sm:$0xff]
    %s5560 = scalar_lea.vmem [#allocation4], 192
    %v5561 = vld [vmem:[%s5560] ss:$2 sm:$0xff]
    %s5562 = scalar_lea.vmem [#allocation4], 208
    %v5563 = vld [vmem:[%s5562] ss:$2 sm:$0xff]
    %s5564 = scalar_lea.vmem [#allocation4], 224
    %v5565 = vld [vmem:[%s5564] ss:$2 sm:$0xff]
    %s5566 = scalar_lea.vmem [#allocation4], 240
    %v5567 = vld [vmem:[%s5566] ss:$2 sm:$0xff]
    %s5568 = scalar_lea.vmem [#allocation4], 1
    %v5569 = vld [vmem:[%s5568] ss:$2 sm:$0xff]
    %s5570 = scalar_lea.vmem [#allocation4], 17
    %v5571 = vld [vmem:[%s5570] ss:$2 sm:$0xff]
    %s5572 = scalar_lea.vmem [#allocation4], 33
    %v5573 = vld [vmem:[%s5572] ss:$2 sm:$0xff]
    %s5574 = scalar_lea.vmem [#allocation4], 49
    %v5575 = vld [vmem:[%s5574] ss:$2 sm:$0xff]
    %s5576 = scalar_lea.vmem [#allocation4], 65
    %v5577 = vld [vmem:[%s5576] ss:$2 sm:$0xff]
    %s5578 = scalar_lea.vmem [#allocation4], 81
    %v5579 = vld [vmem:[%s5578] ss:$2 sm:$0xff]
    %s5580 = scalar_lea.vmem [#allocation4], 97
    %v5581 = vld [vmem:[%s5580] ss:$2 sm:$0xff]
    %s5582 = scalar_lea.vmem [#allocation4], 113
    %v5583 = vld [vmem:[%s5582] ss:$2 sm:$0xff]
    %s5584 = scalar_lea.vmem [#allocation4], 129
    %v5585 = vld [vmem:[%s5584] ss:$2 sm:$0xff]
    %s5586 = scalar_lea.vmem [#allocation4], 145
    %v5587 = vld [vmem:[%s5586] ss:$2 sm:$0xff]
    %s5588 = scalar_lea.vmem [#allocation4], 161
    %v5589 = vld [vmem:[%s5588] ss:$2 sm:$0xff]
    %s5590 = scalar_lea.vmem [#allocation4], 177
    %v5591 = vld [vmem:[%s5590] ss:$2 sm:$0xff]
    %s5592 = scalar_lea.vmem [#allocation4], 193
    %v5593 = vld [vmem:[%s5592] ss:$2 sm:$0xff]
    %s5594 = scalar_lea.vmem [#allocation4], 209
    %v5595 = vld [vmem:[%s5594] ss:$2 sm:$0xff]
    %s5596 = scalar_lea.vmem [#allocation4], 225
    %v5597 = vld [vmem:[%s5596] ss:$2 sm:$0xff]
    %s5598 = scalar_lea.vmem [#allocation4], 241
    %v5599 = vld [vmem:[%s5598] ss:$2 sm:$0xff]
    %v5600 = vmax.f32 %v5537, %v5569
    %v5601 = vmax.f32 %v5539, %v5571
    %v5602 = vmax.f32 %v5541, %v5573
    %v5603 = vmax.f32 %v5543, %v5575
    %v5604 = vmax.f32 %v5545, %v5577
    %v5605 = vmax.f32 %v5547, %v5579
    %v5606 = vmax.f32 %v5549, %v5581
    %v5607 = vmax.f32 %v5551, %v5583
    %v5608 = vmax.f32 %v5553, %v5585
    %v5609 = vmax.f32 %v5555, %v5587
    %v5610 = vmax.f32 %v5557, %v5589
    %v5611 = vmax.f32 %v5559, %v5591
    %v5612 = vmax.f32 %v5561, %v5593
    %v5613 = vmax.f32 %v5563, %v5595
    %v5614 = vmax.f32 %v5565, %v5597
    %v5615 = vmax.f32 %v5567, %v5599
    %5616 = vst.msk [vmem:[#allocation5] sm:$0xff] %vm5504, 0.0
    %vm5617 = vcmask 58368
    %5618 = vst.msk [vmem:[#allocation5 + $0x8] sm:$0x3] %vm5617, 0.0
    %5619 = vst.msk [vmem:[#allocation5 + $0x10] sm:$0xff] %vm5504, 0.0
    %5620 = vst.msk [vmem:[#allocation5 + $0x18] sm:$0x3] %vm5617, 0.0
    %5621 = vst.msk [vmem:[#allocation5 + $0x20] sm:$0xff] %vm5504, 0.0
    %5622 = vst.msk [vmem:[#allocation5 + $0x28] sm:$0x3] %vm5617, 0.0
    %5623 = vst.msk [vmem:[#allocation5 + $0x30] sm:$0xff] %vm5504, 0.0
    %5624 = vst.msk [vmem:[#allocation5 + $0x38] sm:$0x3] %vm5617, 0.0
    %5625 = vst.msk [vmem:[#allocation5 + $0x40] sm:$0xff] %vm5504, 0.0
    %5626 = vst.msk [vmem:[#allocation5 + $0x48] sm:$0x3] %vm5617, 0.0
    %5627 = vst.msk [vmem:[#allocation5 + $0x50] sm:$0xff] %vm5504, 0.0
    %5628 = vst.msk [vmem:[#allocation5 + $0x58] sm:$0x3] %vm5617, 0.0
    %5629 = vst.msk [vmem:[#allocation5 + $0x60] sm:$0xff] %vm5504, 0.0
    %5630 = vst.msk [vmem:[#allocation5 + $0x68] sm:$0x3] %vm5617, 0.0
    %5631 = vst.msk [vmem:[#allocation5 + $0x70] sm:$0xff] %vm5504, 0.0
    %5632 = vst.msk [vmem:[#allocation5 + $0x78] sm:$0x3] %vm5617, 0.0
    %5633 = vst.msk [vmem:[#allocation5 + $0x80] sm:$0xff] %vm5504, 0.0
    %5634 = vst.msk [vmem:[#allocation5 + $0x88] sm:$0x3] %vm5617, 0.0
    %5635 = vst.msk [vmem:[#allocation5 + $0x90] sm:$0xff] %vm5504, 0.0
    %5636 = vst.msk [vmem:[#allocation5 + $0x98] sm:$0x3] %vm5617, 0.0
    %5637 = vst.msk [vmem:[#allocation5 + $0xa0] sm:$0xff] %vm5504, 0.0
    %5638 = vst.msk [vmem:[#allocation5 + $0xa8] sm:$0x3] %vm5617, 0.0
    %5639 = vst.msk [vmem:[#allocation5 + $0xb0] sm:$0xff] %vm5504, 0.0
    %5640 = vst.msk [vmem:[#allocation5 + $0xb8] sm:$0x3] %vm5617, 0.0
    %5641 = vst.msk [vmem:[#allocation5 + $0xc0] sm:$0xff] %vm5504, 0.0
    %5642 = vst.msk [vmem:[#allocation5 + $0xc8] sm:$0x3] %vm5617, 0.0
    %5643 = vst.msk [vmem:[#allocation5 + $0xd0] sm:$0xff] %vm5504, 0.0
    %5644 = vst.msk [vmem:[#allocation5 + $0xd8] sm:$0x3] %vm5617, 0.0
    %5645 = vst.msk [vmem:[#allocation5 + $0xe0] sm:$0xff] %vm5504, 0.0
    %5646 = vst.msk [vmem:[#allocation5 + $0xe8] sm:$0x3] %vm5617, 0.0
    %5647 = vst.msk [vmem:[#allocation5 + $0xf0] sm:$0xff] %vm5504, 0.0
    %5648 = vst.msk [vmem:[#allocation5 + $0xf8] sm:$0x3] %vm5617, 0.0
    %5649 = vst.msk [vmem:[#allocation5 + $0x100] sm:$0xff] %vm5504, 0.0
    %5650 = vst.msk [vmem:[#allocation5 + $0x108] sm:$0x3] %vm5617, 0.0
    %5651 = vst.msk [vmem:[#allocation5 + $0x110] sm:$0xff] %vm5504, 0.0
    %5652 = vst.msk [vmem:[#allocation5 + $0x118] sm:$0x3] %vm5617, 0.0
    %5653 = vst.msk [vmem:[#allocation5 + $0x120] sm:$0xff] %vm5504, 0.0
    %5654 = vst.msk [vmem:[#allocation5 + $0x128] sm:$0x3] %vm5617, 0.0
    %5655 = vst.msk [vmem:[#allocation5 + $0x130] sm:$0xff] %vm5504, 0.0
    %5656 = vst.msk [vmem:[#allocation5 + $0x138] sm:$0x3] %vm5617, 0.0
    %s5657 = scalar_lea.vmem [#allocation5], 16
    %5658 = vst.msk [vmem:[%s5657 + $0x1] sm:$0xff] %vm5504, %v5600
    %5659 = vst.msk [vmem:[%s5657 + $0x11] sm:$0xff] %vm5504, %v5601
    %5660 = vst.msk [vmem:[%s5657 + $0x21] sm:$0xff] %vm5504, %v5602
    %5661 = vst.msk [vmem:[%s5657 + $0x31] sm:$0xff] %vm5504, %v5603
    %5662 = vst.msk [vmem:[%s5657 + $0x41] sm:$0xff] %vm5504, %v5604
    %5663 = vst.msk [vmem:[%s5657 + $0x51] sm:$0xff] %vm5504, %v5605
    %5664 = vst.msk [vmem:[%s5657 + $0x61] sm:$0xff] %vm5504, %v5606
    %5665 = vst.msk [vmem:[%s5657 + $0x71] sm:$0xff] %vm5504, %v5607
    %5666 = vst.msk [vmem:[%s5657 + $0xa1] sm:$0xff] %vm5504, %v5608
    %5667 = vst.msk [vmem:[%s5657 + $0xb1] sm:$0xff] %vm5504, %v5609
    %5668 = vst.msk [vmem:[%s5657 + $0xc1] sm:$0xff] %vm5504, %v5610
    %5669 = vst.msk [vmem:[%s5657 + $0xd1] sm:$0xff] %vm5504, %v5611
    %5670 = vst.msk [vmem:[%s5657 + $0xe1] sm:$0xff] %vm5504, %v5612
    %5671 = vst.msk [vmem:[%s5657 + $0xf1] sm:$0xff] %vm5504, %v5613
    %5672 = vst.msk [vmem:[%s5657 + $0x101] sm:$0xff] %vm5504, %v5614
    %5673 = vst.msk [vmem:[%s5657 + $0x111] sm:$0xff] %vm5504, %v5615
    %v5674 = vld [vmem:[#allocation5] sm:$0xff]
    %v5675 = vld [vmem:[#allocation5 + $0x10] sm:$0xff]
    %v5676 = vld [vmem:[#allocation5 + $0x20] sm:$0xff]
    %v5677 = vld [vmem:[#allocation5 + $0x30] sm:$0xff]
    %v5678 = vld [vmem:[#allocation5 + $0x40] sm:$0xff]
    %v5679 = vld [vmem:[#allocation5 + $0x50] sm:$0xff]
    %v5680 = vld [vmem:[#allocation5 + $0x60] sm:$0xff]
    %v5681 = vld [vmem:[#allocation5 + $0x70] sm:$0xff]
    %v5682 = vld [vmem:[#allocation5 + $0xa0] sm:$0xff]
    %v5683 = vld [vmem:[#allocation5 + $0xb0] sm:$0xff]
    %v5684 = vld [vmem:[#allocation5 + $0xc0] sm:$0xff]
    %v5685 = vld [vmem:[#allocation5 + $0xd0] sm:$0xff]
    %v5686 = vld [vmem:[#allocation5 + $0xe0] sm:$0xff]
    %v5687 = vld [vmem:[#allocation5 + $0xf0] sm:$0xff]
    %v5688 = vld [vmem:[#allocation5 + $0x100] sm:$0xff]
    %v5689 = vld [vmem:[#allocation5 + $0x110] sm:$0xff]
    %v5690 = vpack.c.bf16 %v5675, %v5674
    %v5691 = vpack.c.bf16 %v5677, %v5676
    %v5692 = vpack.c.bf16 %v5679, %v5678
    %v5693 = vpack.c.bf16 %v5681, %v5680
    %v5694 = vpack.c.bf16 %v5683, %v5682
    %v5695 = vpack.c.bf16 %v5685, %v5684
    %v5696 = vpack.c.bf16 %v5687, %v5686
    %v5697 = vpack.c.bf16 %v5689, %v5688
    %v5706 = vunpack.c.l.b16 %v5690
    %v5707 = vunpack.c.h.b16 %v5690
    %v5708 = vunpack.c.l.b16 %v5691
    %v5709 = vunpack.c.h.b16 %v5691
    %v5710 = vunpack.c.l.b16 %v5692
    %v5711 = vunpack.c.h.b16 %v5692
    %v5712 = vunpack.c.l.b16 %v5693
    %v5713 = vunpack.c.h.b16 %v5693
    %v5714 = vunpack.c.l.b16 %v5694
    %v5715 = vunpack.c.h.b16 %v5694
    %v5716 = vunpack.c.l.b16 %v5695
    %v5717 = vunpack.c.h.b16 %v5695
    %v5718 = vunpack.c.l.b16 %v5696
    %v5719 = vunpack.c.h.b16 %v5696
    %v5720 = vunpack.c.l.b16 %v5697
    %v5721 = vunpack.c.h.b16 %v5697
    %v5722 = vpack.c.b16 %v5706, %v5706
    %v5723 = vpack.c.b16 %v5707, %v5707
    %v5724 = vpack.c.b16 %v5708, %v5708
    %v5725 = vpack.c.b16 %v5709, %v5709
    %v5726 = vpack.c.b16 %v5710, %v5710
    %v5727 = vpack.c.b16 %v5711, %v5711
    %v5728 = vpack.c.b16 %v5712, %v5712
    %v5729 = vpack.c.b16 %v5713, %v5713
    %v5730 = vpack.c.b16 %v5714, %v5714
    %v5731 = vpack.c.b16 %v5715, %v5715
    %v5732 = vpack.c.b16 %v5716, %v5716
    %v5733 = vpack.c.b16 %v5717, %v5717
    %v5734 = vpack.c.b16 %v5718, %v5718
    %v5735 = vpack.c.b16 %v5719, %v5719
    %v5736 = vpack.c.b16 %v5720, %v5720
    %v5737 = vpack.c.b16 %v5721, %v5721
    %vm5754 = vcmask 60416
    %5755 = vst.msk [vmem:[#allocation6] sm:$0xf] %vm5754, %v5722
    %5756 = vst.msk [vmem:[#allocation6 + $0x4] sm:$0xf] %vm5754, %v5723
    %5757 = vst.msk [vmem:[#allocation6 + $0x8] sm:$0xf] %vm5754, %v5724
    %5758 = vst.msk [vmem:[#allocation6 + $0xc] sm:$0xf] %vm5754, %v5725
    %5759 = vst.msk [vmem:[#allocation6 + $0x10] sm:$0xf] %vm5754, %v5726
    %5760 = vst.msk [vmem:[#allocation6 + $0x14] sm:$0xf] %vm5754, %v5727
    %5761 = vst.msk [vmem:[#allocation6 + $0x18] sm:$0xf] %vm5754, %v5728
    %5762 = vst.msk [vmem:[#allocation6 + $0x1c] sm:$0xf] %vm5754, %v5729
    %5763 = vst.msk [vmem:[#allocation6 + $0x20] sm:$0xf] %vm5754, %v5730
    %5764 = vst.msk [vmem:[#allocation6 + $0x24] sm:$0xf] %vm5754, %v5731
    %5765 = vst.msk [vmem:[#allocation6 + $0x28] sm:$0xf] %vm5754, %v5732
    %5766 = vst.msk [vmem:[#allocation6 + $0x2c] sm:$0xf] %vm5754, %v5733
    %5767 = vst.msk [vmem:[#allocation6 + $0x30] sm:$0xf] %vm5754, %v5734
    %5768 = vst.msk [vmem:[#allocation6 + $0x34] sm:$0xf] %vm5754, %v5735
    %5769 = vst.msk [vmem:[#allocation6 + $0x38] sm:$0xf] %vm5754, %v5736
    %5770 = vst.msk [vmem:[#allocation6 + $0x3c] sm:$0xf] %vm5754, %v5737
    %v5771 = vld [vmem:[#allocation5 + $0x1] sm:$0xff]
    %v5772 = vld [vmem:[#allocation5 + $0x11] sm:$0xff]
    %v5773 = vld [vmem:[#allocation5 + $0x21] sm:$0xff]
    %v5774 = vld [vmem:[#allocation5 + $0x31] sm:$0xff]
    %v5775 = vld [vmem:[#allocation5 + $0x41] sm:$0xff]
    %v5776 = vld [vmem:[#allocation5 + $0x51] sm:$0xff]
    %v5777 = vld [vmem:[#allocation5 + $0x61] sm:$0xff]
    %v5778 = vld [vmem:[#allocation5 + $0x71] sm:$0xff]
    %v5779 = vld [vmem:[#allocation5 + $0xa1] sm:$0xff]
    %v5780 = vld [vmem:[#allocation5 + $0xb1] sm:$0xff]
    %v5781 = vld [vmem:[#allocation5 + $0xc1] sm:$0xff]
    %v5782 = vld [vmem:[#allocation5 + $0xd1] sm:$0xff]
    %v5783 = vld [vmem:[#allocation5 + $0xe1] sm:$0xff]
    %v5784 = vld [vmem:[#allocation5 + $0xf1] sm:$0xff]
    %v5785 = vld [vmem:[#allocation5 + $0x101] sm:$0xff]
    %v5786 = vld [vmem:[#allocation5 + $0x111] sm:$0xff]
    %v5787 = vpack.c.bf16 %v5772, %v5771
    %v5788 = vpack.c.bf16 %v5774, %v5773
    %v5789 = vpack.c.bf16 %v5776, %v5775
    %v5790 = vpack.c.bf16 %v5778, %v5777
    %v5791 = vpack.c.bf16 %v5780, %v5779
    %v5792 = vpack.c.bf16 %v5782, %v5781
    %v5793 = vpack.c.bf16 %v5784, %v5783
    %v5794 = vpack.c.bf16 %v5786, %v5785
    %v5803 = vunpack.c.l.b16 %v5787
    %v5804 = vunpack.c.h.b16 %v5787
    %v5805 = vunpack.c.l.b16 %v5788
    %v5806 = vunpack.c.h.b16 %v5788
    %v5807 = vunpack.c.l.b16 %v5789
    %v5808 = vunpack.c.h.b16 %v5789
    %v5809 = vunpack.c.l.b16 %v5790
    %v5810 = vunpack.c.h.b16 %v5790
    %v5811 = vunpack.c.l.b16 %v5791
    %v5812 = vunpack.c.h.b16 %v5791
    %v5813 = vunpack.c.l.b16 %v5792
    %v5814 = vunpack.c.h.b16 %v5792
    %v5815 = vunpack.c.l.b16 %v5793
    %v5816 = vunpack.c.h.b16 %v5793
    %v5817 = vunpack.c.l.b16 %v5794
    %v5818 = vunpack.c.h.b16 %v5794
    %v5819 = vpack.c.b16 %v5803, %v5803
    %v5820 = vpack.c.b16 %v5804, %v5804
    %v5821 = vpack.c.b16 %v5805, %v5805
    %v5822 = vpack.c.b16 %v5806, %v5806
    %v5823 = vpack.c.b16 %v5807, %v5807
    %v5824 = vpack.c.b16 %v5808, %v5808
    %v5825 = vpack.c.b16 %v5809, %v5809
    %v5826 = vpack.c.b16 %v5810, %v5810
    %v5827 = vpack.c.b16 %v5811, %v5811
    %v5828 = vpack.c.b16 %v5812, %v5812
    %v5829 = vpack.c.b16 %v5813, %v5813
    %v5830 = vpack.c.b16 %v5814, %v5814
    %v5831 = vpack.c.b16 %v5815, %v5815
    %v5832 = vpack.c.b16 %v5816, %v5816
    %v5833 = vpack.c.b16 %v5817, %v5817
    %v5834 = vpack.c.b16 %v5818, %v5818
    %5835 = vrot.lane.b32.xlu0 %v5819, 8
    %v5836 = vpop.permute.xlu0 %5835
    %5837 = vrot.lane.b32.xlu0 %v5820, 8
    %v5838 = vpop.permute.xlu0 %5837
    %5839 = vrot.lane.b32.xlu0 %v5821, 8
    %v5840 = vpop.permute.xlu0 %5839
    %5841 = vrot.lane.b32.xlu0 %v5822, 8
    %v5842 = vpop.permute.xlu0 %5841
    %5843 = vrot.lane.b32.xlu0 %v5823, 8
    %v5844 = vpop.permute.xlu0 %5843
    %5845 = vrot.lane.b32.xlu0 %v5824, 8
    %v5846 = vpop.permute.xlu0 %5845
    %5847 = vrot.lane.b32.xlu0 %v5825, 8
    %v5848 = vpop.permute.xlu0 %5847
    %5849 = vrot.lane.b32.xlu0 %v5826, 8
    %v5850 = vpop.permute.xlu0 %5849
    %5851 = vrot.lane.b32.xlu0 %v5827, 8
    %v5852 = vpop.permute.xlu0 %5851
    %5853 = vrot.lane.b32.xlu0 %v5828, 8
    %v5854 = vpop.permute.xlu0 %5853
    %5855 = vrot.lane.b32.xlu0 %v5829, 8
    %v5856 = vpop.permute.xlu0 %5855
    %5857 = vrot.lane.b32.xlu0 %v5830, 8
    %v5858 = vpop.permute.xlu0 %5857
    %5859 = vrot.lane.b32.xlu0 %v5831, 8
    %v5860 = vpop.permute.xlu0 %5859
    %5861 = vrot.lane.b32.xlu0 %v5832, 8
    %v5862 = vpop.permute.xlu0 %5861
    %5863 = vrot.lane.b32.xlu0 %v5833, 8
    %v5864 = vpop.permute.xlu0 %5863
    %5865 = vrot.lane.b32.xlu0 %v5834, 8
    %v5866 = vpop.permute.xlu0 %5865
    %vm5883 = vcmask 126016
    %5884 = vst.msk [vmem:[#allocation6] sm:$0xf] %vm5883, %v5836
    %5885 = vst.msk [vmem:[#allocation6 + $0x4] sm:$0xf] %vm5883, %v5838
    %5886 = vst.msk [vmem:[#allocation6 + $0x8] sm:$0xf] %vm5883, %v5840
    %5887 = vst.msk [vmem:[#allocation6 + $0xc] sm:$0xf] %vm5883, %v5842
    %5888 = vst.msk [vmem:[#allocation6 + $0x10] sm:$0xf] %vm5883, %v5844
    %5889 = vst.msk [vmem:[#allocation6 + $0x14] sm:$0xf] %vm5883, %v5846
    %5890 = vst.msk [vmem:[#allocation6 + $0x18] sm:$0xf] %vm5883, %v5848
    %5891 = vst.msk [vmem:[#allocation6 + $0x1c] sm:$0xf] %vm5883, %v5850
    %5892 = vst.msk [vmem:[#allocation6 + $0x20] sm:$0xf] %vm5883, %v5852
    %5893 = vst.msk [vmem:[#allocation6 + $0x24] sm:$0xf] %vm5883, %v5854
    %5894 = vst.msk [vmem:[#allocation6 + $0x28] sm:$0xf] %vm5883, %v5856
    %5895 = vst.msk [vmem:[#allocation6 + $0x2c] sm:$0xf] %vm5883, %v5858
    %5896 = vst.msk [vmem:[#allocation6 + $0x30] sm:$0xf] %vm5883, %v5860
    %5897 = vst.msk [vmem:[#allocation6 + $0x34] sm:$0xf] %vm5883, %v5862
    %5898 = vst.msk [vmem:[#allocation6 + $0x38] sm:$0xf] %vm5883, %v5864
    %5899 = vst.msk [vmem:[#allocation6 + $0x3c] sm:$0xf] %vm5883, %v5866
    %v5900 = vld [vmem:[#allocation5 + $0x2] sm:$0xff]
    %v5901 = vld [vmem:[#allocation5 + $0x12] sm:$0xff]
    %v5902 = vld [vmem:[#allocation5 + $0x22] sm:$0xff]
    %v5903 = vld [vmem:[#allocation5 + $0x32] sm:$0xff]
    %v5904 = vld [vmem:[#allocation5 + $0x42] sm:$0xff]
    %v5905 = vld [vmem:[#allocation5 + $0x52] sm:$0xff]
    %v5906 = vld [vmem:[#allocation5 + $0x62] sm:$0xff]
    %v5907 = vld [vmem:[#allocation5 + $0x72] sm:$0xff]
    %v5908 = vld [vmem:[#allocation5 + $0xa2] sm:$0xff]
    %v5909 = vld [vmem:[#allocation5 + $0xb2] sm:$0xff]
    %v5910 = vld [vmem:[#allocation5 + $0xc2] sm:$0xff]
    %v5911 = vld [vmem:[#allocation5 + $0xd2] sm:$0xff]
    %v5912 = vld [vmem:[#allocation5 + $0xe2] sm:$0xff]
    %v5913 = vld [vmem:[#allocation5 + $0xf2] sm:$0xff]
    %v5914 = vld [vmem:[#allocation5 + $0x102] sm:$0xff]
    %v5915 = vld [vmem:[#allocation5 + $0x112] sm:$0xff]
    %v5916 = vpack.c.bf16 %v5901, %v5900
    %v5917 = vpack.c.bf16 %v5903, %v5902
    %v5918 = vpack.c.bf16 %v5905, %v5904
    %v5919 = vpack.c.bf16 %v5907, %v5906
    %v5920 = vpack.c.bf16 %v5909, %v5908
    %v5921 = vpack.c.bf16 %v5911, %v5910
    %v5922 = vpack.c.bf16 %v5913, %v5912
    %v5923 = vpack.c.bf16 %v5915, %v5914
    %v5932 = vunpack.c.l.b16 %v5916
    %v5933 = vunpack.c.h.b16 %v5916
    %v5934 = vunpack.c.l.b16 %v5917
    %v5935 = vunpack.c.h.b16 %v5917
    %v5936 = vunpack.c.l.b16 %v5918
    %v5937 = vunpack.c.h.b16 %v5918
    %v5938 = vunpack.c.l.b16 %v5919
    %v5939 = vunpack.c.h.b16 %v5919
    %v5940 = vunpack.c.l.b16 %v5920
    %v5941 = vunpack.c.h.b16 %v5920
    %v5942 = vunpack.c.l.b16 %v5921
    %v5943 = vunpack.c.h.b16 %v5921
    %v5944 = vunpack.c.l.b16 %v5922
    %v5945 = vunpack.c.h.b16 %v5922
    %v5946 = vunpack.c.l.b16 %v5923
    %v5947 = vunpack.c.h.b16 %v5923
    %v5948 = vpack.c.b16 %v5932, %v5932
    %v5949 = vpack.c.b16 %v5933, %v5933
    %v5950 = vpack.c.b16 %v5934, %v5934
    %v5951 = vpack.c.b16 %v5935, %v5935
    %v5952 = vpack.c.b16 %v5936, %v5936
    %v5953 = vpack.c.b16 %v5937, %v5937
    %v5954 = vpack.c.b16 %v5938, %v5938
    %v5955 = vpack.c.b16 %v5939, %v5939
    %v5956 = vpack.c.b16 %v5940, %v5940
    %v5957 = vpack.c.b16 %v5941, %v5941
    %v5958 = vpack.c.b16 %v5942, %v5942
    %v5959 = vpack.c.b16 %v5943, %v5943
    %v5960 = vpack.c.b16 %v5944, %v5944
    %v5961 = vpack.c.b16 %v5945, %v5945
    %v5962 = vpack.c.b16 %v5946, %v5946
    %v5963 = vpack.c.b16 %v5947, %v5947
    %5964 = vrot.lane.b32.xlu0 %v5948, 16
    %v5965 = vpop.permute.xlu0 %5964
    %5966 = vrot.lane.b32.xlu0 %v5949, 16
    %v5967 = vpop.permute.xlu0 %5966
    %5968 = vrot.lane.b32.xlu0 %v5950, 16
    %v5969 = vpop.permute.xlu0 %5968
    %5970 = vrot.lane.b32.xlu0 %v5951, 16
    %v5971 = vpop.permute.xlu0 %5970
    %5972 = vrot.lane.b32.xlu0 %v5952, 16
    %v5973 = vpop.permute.xlu0 %5972
    %5974 = vrot.lane.b32.xlu0 %v5953, 16
    %v5975 = vpop.permute.xlu0 %5974
    %5976 = vrot.lane.b32.xlu0 %v5954, 16
    %v5977 = vpop.permute.xlu0 %5976
    %5978 = vrot.lane.b32.xlu0 %v5955, 16
    %v5979 = vpop.permute.xlu0 %5978
    %5980 = vrot.lane.b32.xlu0 %v5956, 16
    %v5981 = vpop.permute.xlu0 %5980
    %5982 = vrot.lane.b32.xlu0 %v5957, 16
    %v5983 = vpop.permute.xlu0 %5982
    %5984 = vrot.lane.b32.xlu0 %v5958, 16
    %v5985 = vpop.permute.xlu0 %5984
    %5986 = vrot.lane.b32.xlu0 %v5959, 16
    %v5987 = vpop.permute.xlu0 %5986
    %5988 = vrot.lane.b32.xlu0 %v5960, 16
    %v5989 = vpop.permute.xlu0 %5988
    %5990 = vrot.lane.b32.xlu0 %v5961, 16
    %v5991 = vpop.permute.xlu0 %5990
    %5992 = vrot.lane.b32.xlu0 %v5962, 16
    %v5993 = vpop.permute.xlu0 %5992
    %5994 = vrot.lane.b32.xlu0 %v5963, 16
    %v5995 = vpop.permute.xlu0 %5994
    %vm6012 = vcmask 191616
    %6013 = vst.msk [vmem:[#allocation6] sm:$0xf] %vm6012, %v5965
    %6014 = vst.msk [vmem:[#allocation6 + $0x4] sm:$0xf] %vm6012, %v5967
    %6015 = vst.msk [vmem:[#allocation6 + $0x8] sm:$0xf] %vm6012, %v5969
    %6016 = vst.msk [vmem:[#allocation6 + $0xc] sm:$0xf] %vm6012, %v5971
    %6017 = vst.msk [vmem:[#allocation6 + $0x10] sm:$0xf] %vm6012, %v5973
    %6018 = vst.msk [vmem:[#allocation6 + $0x14] sm:$0xf] %vm6012, %v5975
    %6019 = vst.msk [vmem:[#allocation6 + $0x18] sm:$0xf] %vm6012, %v5977
    %6020 = vst.msk [vmem:[#allocation6 + $0x1c] sm:$0xf] %vm6012, %v5979
    %6021 = vst.msk [vmem:[#allocation6 + $0x20] sm:$0xf] %vm6012, %v5981
    %6022 = vst.msk [vmem:[#allocation6 + $0x24] sm:$0xf] %vm6012, %v5983
    %6023 = vst.msk [vmem:[#allocation6 + $0x28] sm:$0xf] %vm6012, %v5985
    %6024 = vst.msk [vmem:[#allocation6 + $0x2c] sm:$0xf] %vm6012, %v5987
    %6025 = vst.msk [vmem:[#allocation6 + $0x30] sm:$0xf] %vm6012, %v5989
    %6026 = vst.msk [vmem:[#allocation6 + $0x34] sm:$0xf] %vm6012, %v5991
    %6027 = vst.msk [vmem:[#allocation6 + $0x38] sm:$0xf] %vm6012, %v5993
    %6028 = vst.msk [vmem:[#allocation6 + $0x3c] sm:$0xf] %vm6012, %v5995
    %v6029 = vld [vmem:[%s5657] sm:$0xff]
    %v6030 = vld [vmem:[%s5657 + $0x10] sm:$0xff]
    %v6031 = vld [vmem:[%s5657 + $0x20] sm:$0xff]
    %v6032 = vld [vmem:[%s5657 + $0x30] sm:$0xff]
    %v6033 = vld [vmem:[%s5657 + $0x40] sm:$0xff]
    %v6034 = vld [vmem:[%s5657 + $0x50] sm:$0xff]
    %v6035 = vld [vmem:[%s5657 + $0x60] sm:$0xff]
    %v6036 = vld [vmem:[%s5657 + $0x70] sm:$0xff]
    %v6037 = vld [vmem:[%s5657 + $0xa0] sm:$0xff]
    %v6038 = vld [vmem:[%s5657 + $0xb0] sm:$0xff]
    %v6039 = vld [vmem:[%s5657 + $0xc0] sm:$0xff]
    %v6040 = vld [vmem:[%s5657 + $0xd0] sm:$0xff]
    %v6041 = vld [vmem:[%s5657 + $0xe0] sm:$0xff]
    %v6042 = vld [vmem:[%s5657 + $0xf0] sm:$0xff]
    %v6043 = vld [vmem:[%s5657 + $0x100] sm:$0xff]
    %v6044 = vld [vmem:[%s5657 + $0x110] sm:$0xff]
    %v6045 = vpack.c.bf16 %v6030, %v6029
    %v6046 = vpack.c.bf16 %v6032, %v6031
    %v6047 = vpack.c.bf16 %v6034, %v6033
    %v6048 = vpack.c.bf16 %v6036, %v6035
    %v6049 = vpack.c.bf16 %v6038, %v6037
    %v6050 = vpack.c.bf16 %v6040, %v6039
    %v6051 = vpack.c.bf16 %v6042, %v6041
    %v6052 = vpack.c.bf16 %v6044, %v6043
    %v6061 = vunpack.c.l.b16 %v6045
    %v6062 = vunpack.c.h.b16 %v6045
    %v6063 = vunpack.c.l.b16 %v6046
    %v6064 = vunpack.c.h.b16 %v6046
    %v6065 = vunpack.c.l.b16 %v6047
    %v6066 = vunpack.c.h.b16 %v6047
    %v6067 = vunpack.c.l.b16 %v6048
    %v6068 = vunpack.c.h.b16 %v6048
    %v6069 = vunpack.c.l.b16 %v6049
    %v6070 = vunpack.c.h.b16 %v6049
    %v6071 = vunpack.c.l.b16 %v6050
    %v6072 = vunpack.c.h.b16 %v6050
    %v6073 = vunpack.c.l.b16 %v6051
    %v6074 = vunpack.c.h.b16 %v6051
    %v6075 = vunpack.c.l.b16 %v6052
    %v6076 = vunpack.c.h.b16 %v6052
    %v6077 = vpack.c.b16 %v6061, %v6061
    %v6078 = vpack.c.b16 %v6062, %v6062
    %v6079 = vpack.c.b16 %v6063, %v6063
    %v6080 = vpack.c.b16 %v6064, %v6064
    %v6081 = vpack.c.b16 %v6065, %v6065
    %v6082 = vpack.c.b16 %v6066, %v6066
    %v6083 = vpack.c.b16 %v6067, %v6067
    %v6084 = vpack.c.b16 %v6068, %v6068
    %v6085 = vpack.c.b16 %v6069, %v6069
    %v6086 = vpack.c.b16 %v6070, %v6070
    %v6087 = vpack.c.b16 %v6071, %v6071
    %v6088 = vpack.c.b16 %v6072, %v6072
    %v6089 = vpack.c.b16 %v6073, %v6073
    %v6090 = vpack.c.b16 %v6074, %v6074
    %v6091 = vpack.c.b16 %v6075, %v6075
    %v6092 = vpack.c.b16 %v6076, %v6076
    %6093 = vrot.lane.b32.xlu0 %v6077, 24
    %v6094 = vpop.permute.xlu0 %6093
    %6095 = vrot.lane.b32.xlu0 %v6078, 24
    %v6096 = vpop.permute.xlu0 %6095
    %6097 = vrot.lane.b32.xlu0 %v6079, 24
    %v6098 = vpop.permute.xlu0 %6097
    %6099 = vrot.lane.b32.xlu0 %v6080, 24
    %v6100 = vpop.permute.xlu0 %6099
    %6101 = vrot.lane.b32.xlu0 %v6081, 24
    %v6102 = vpop.permute.xlu0 %6101
    %6103 = vrot.lane.b32.xlu0 %v6082, 24
    %v6104 = vpop.permute.xlu0 %6103
    %6105 = vrot.lane.b32.xlu0 %v6083, 24
    %v6106 = vpop.permute.xlu0 %6105
    %6107 = vrot.lane.b32.xlu0 %v6084, 24
    %v6108 = vpop.permute.xlu0 %6107
    %6109 = vrot.lane.b32.xlu0 %v6085, 24
    %v6110 = vpop.permute.xlu0 %6109
    %6111 = vrot.lane.b32.xlu0 %v6086, 24
    %v6112 = vpop.permute.xlu0 %6111
    %6113 = vrot.lane.b32.xlu0 %v6087, 24
    %v6114 = vpop.permute.xlu0 %6113
    %6115 = vrot.lane.b32.xlu0 %v6088, 24
    %v6116 = vpop.permute.xlu0 %6115
    %6117 = vrot.lane.b32.xlu0 %v6089, 24
    %v6118 = vpop.permute.xlu0 %6117
    %6119 = vrot.lane.b32.xlu0 %v6090, 24
    %v6120 = vpop.permute.xlu0 %6119
    %6121 = vrot.lane.b32.xlu0 %v6091, 24
    %v6122 = vpop.permute.xlu0 %6121
    %6123 = vrot.lane.b32.xlu0 %v6092, 24
    %v6124 = vpop.permute.xlu0 %6123
    %vm6141 = vcmask 257216
    %6142 = vst.msk [vmem:[#allocation6] sm:$0xf] %vm6141, %v6094
    %6143 = vst.msk [vmem:[#allocation6 + $0x4] sm:$0xf] %vm6141, %v6096
    %6144 = vst.msk [vmem:[#allocation6 + $0x8] sm:$0xf] %vm6141, %v6098
    %6145 = vst.msk [vmem:[#allocation6 + $0xc] sm:$0xf] %vm6141, %v6100
    %6146 = vst.msk [vmem:[#allocation6 + $0x10] sm:$0xf] %vm6141, %v6102
    %6147 = vst.msk [vmem:[#allocation6 + $0x14] sm:$0xf] %vm6141, %v6104
    %6148 = vst.msk [vmem:[#allocation6 + $0x18] sm:$0xf] %vm6141, %v6106
    %6149 = vst.msk [vmem:[#allocation6 + $0x1c] sm:$0xf] %vm6141, %v6108
    %6150 = vst.msk [vmem:[#allocation6 + $0x20] sm:$0xf] %vm6141, %v6110
    %6151 = vst.msk [vmem:[#allocation6 + $0x24] sm:$0xf] %vm6141, %v6112
    %6152 = vst.msk [vmem:[#allocation6 + $0x28] sm:$0xf] %vm6141, %v6114
    %6153 = vst.msk [vmem:[#allocation6 + $0x2c] sm:$0xf] %vm6141, %v6116
    %6154 = vst.msk [vmem:[#allocation6 + $0x30] sm:$0xf] %vm6141, %v6118
    %6155 = vst.msk [vmem:[#allocation6 + $0x34] sm:$0xf] %vm6141, %v6120
    %6156 = vst.msk [vmem:[#allocation6 + $0x38] sm:$0xf] %vm6141, %v6122
    %6157 = vst.msk [vmem:[#allocation6 + $0x3c] sm:$0xf] %vm6141, %v6124
    %v6158 = vld [vmem:[%s5657 + $0x1] sm:$0xff]
    %v6159 = vld [vmem:[%s5657 + $0x11] sm:$0xff]
    %v6160 = vld [vmem:[%s5657 + $0x21] sm:$0xff]
    %v6161 = vld [vmem:[%s5657 + $0x31] sm:$0xff]
    %v6162 = vld [vmem:[%s5657 + $0x41] sm:$0xff]
    %v6163 = vld [vmem:[%s5657 + $0x51] sm:$0xff]
    %v6164 = vld [vmem:[%s5657 + $0x61] sm:$0xff]
    %v6165 = vld [vmem:[%s5657 + $0x71] sm:$0xff]
    %v6166 = vld [vmem:[%s5657 + $0xa1] sm:$0xff]
    %v6167 = vld [vmem:[%s5657 + $0xb1] sm:$0xff]
    %v6168 = vld [vmem:[%s5657 + $0xc1] sm:$0xff]
    %v6169 = vld [vmem:[%s5657 + $0xd1] sm:$0xff]
    %v6170 = vld [vmem:[%s5657 + $0xe1] sm:$0xff]
    %v6171 = vld [vmem:[%s5657 + $0xf1] sm:$0xff]
    %v6172 = vld [vmem:[%s5657 + $0x101] sm:$0xff]
    %v6173 = vld [vmem:[%s5657 + $0x111] sm:$0xff]
    %v6174 = vpack.c.bf16 %v6159, %v6158
    %v6175 = vpack.c.bf16 %v6161, %v6160
    %v6176 = vpack.c.bf16 %v6163, %v6162
    %v6177 = vpack.c.bf16 %v6165, %v6164
    %v6178 = vpack.c.bf16 %v6167, %v6166
    %v6179 = vpack.c.bf16 %v6169, %v6168
    %v6180 = vpack.c.bf16 %v6171, %v6170
    %v6181 = vpack.c.bf16 %v6173, %v6172
    %v6190 = vunpack.c.l.b16 %v6174
    %v6191 = vunpack.c.h.b16 %v6174
    %v6192 = vunpack.c.l.b16 %v6175
    %v6193 = vunpack.c.h.b16 %v6175
    %v6194 = vunpack.c.l.b16 %v6176
    %v6195 = vunpack.c.h.b16 %v6176
    %v6196 = vunpack.c.l.b16 %v6177
    %v6197 = vunpack.c.h.b16 %v6177
    %v6198 = vunpack.c.l.b16 %v6178
    %v6199 = vunpack.c.h.b16 %v6178
    %v6200 = vunpack.c.l.b16 %v6179
    %v6201 = vunpack.c.h.b16 %v6179
    %v6202 = vunpack.c.l.b16 %v6180
    %v6203 = vunpack.c.h.b16 %v6180
    %v6204 = vunpack.c.l.b16 %v6181
    %v6205 = vunpack.c.h.b16 %v6181
    %v6206 = vpack.c.b16 %v6190, %v6190
    %v6207 = vpack.c.b16 %v6191, %v6191
    %v6208 = vpack.c.b16 %v6192, %v6192
    %v6209 = vpack.c.b16 %v6193, %v6193
    %v6210 = vpack.c.b16 %v6194, %v6194
    %v6211 = vpack.c.b16 %v6195, %v6195
    %v6212 = vpack.c.b16 %v6196, %v6196
    %v6213 = vpack.c.b16 %v6197, %v6197
    %v6214 = vpack.c.b16 %v6198, %v6198
    %v6215 = vpack.c.b16 %v6199, %v6199
    %v6216 = vpack.c.b16 %v6200, %v6200
    %v6217 = vpack.c.b16 %v6201, %v6201
    %v6218 = vpack.c.b16 %v6202, %v6202
    %v6219 = vpack.c.b16 %v6203, %v6203
    %v6220 = vpack.c.b16 %v6204, %v6204
    %v6221 = vpack.c.b16 %v6205, %v6205
    %6222 = vrot.lane.b32.xlu0 %v6206, 32
    %v6223 = vpop.permute.xlu0 %6222
    %6224 = vrot.lane.b32.xlu0 %v6207, 32
    %v6225 = vpop.permute.xlu0 %6224
    %6226 = vrot.lane.b32.xlu0 %v6208, 32
    %v6227 = vpop.permute.xlu0 %6226
    %6228 = vrot.lane.b32.xlu0 %v6209, 32
    %v6229 = vpop.permute.xlu0 %6228
    %6230 = vrot.lane.b32.xlu0 %v6210, 32
    %v6231 = vpop.permute.xlu0 %6230
    %6232 = vrot.lane.b32.xlu0 %v6211, 32
    %v6233 = vpop.permute.xlu0 %6232
    %6234 = vrot.lane.b32.xlu0 %v6212, 32
    %v6235 = vpop.permute.xlu0 %6234
    %6236 = vrot.lane.b32.xlu0 %v6213, 32
    %v6237 = vpop.permute.xlu0 %6236
    %6238 = vrot.lane.b32.xlu0 %v6214, 32
    %v6239 = vpop.permute.xlu0 %6238
    %6240 = vrot.lane.b32.xlu0 %v6215, 32
    %v6241 = vpop.permute.xlu0 %6240
    %6242 = vrot.lane.b32.xlu0 %v6216, 32
    %v6243 = vpop.permute.xlu0 %6242
    %6244 = vrot.lane.b32.xlu0 %v6217, 32
    %v6245 = vpop.permute.xlu0 %6244
    %6246 = vrot.lane.b32.xlu0 %v6218, 32
    %v6247 = vpop.permute.xlu0 %6246
    %6248 = vrot.lane.b32.xlu0 %v6219, 32
    %v6249 = vpop.permute.xlu0 %6248
    %6250 = vrot.lane.b32.xlu0 %v6220, 32
    %v6251 = vpop.permute.xlu0 %6250
    %6252 = vrot.lane.b32.xlu0 %v6221, 32
    %v6253 = vpop.permute.xlu0 %6252
    %vm6270 = vcmask 322816
    %6271 = vst.msk [vmem:[#allocation6] sm:$0xf] %vm6270, %v6223
    %6272 = vst.msk [vmem:[#allocation6 + $0x4] sm:$0xf] %vm6270, %v6225
    %6273 = vst.msk [vmem:[#allocation6 + $0x8] sm:$0xf] %vm6270, %v6227
    %6274 = vst.msk [vmem:[#allocation6 + $0xc] sm:$0xf] %vm6270, %v6229
    %6275 = vst.msk [vmem:[#allocation6 + $0x10] sm:$0xf] %vm6270, %v6231
    %6276 = vst.msk [vmem:[#allocation6 + $0x14] sm:$0xf] %vm6270, %v6233
    %6277 = vst.msk [vmem:[#allocation6 + $0x18] sm:$0xf] %vm6270, %v6235
    %6278 = vst.msk [vmem:[#allocation6 + $0x1c] sm:$0xf] %vm6270, %v6237
    %6279 = vst.msk [vmem:[#allocation6 + $0x20] sm:$0xf] %vm6270, %v6239
    %6280 = vst.msk [vmem:[#allocation6 + $0x24] sm:$0xf] %vm6270, %v6241
    %6281 = vst.msk [vmem:[#allocation6 + $0x28] sm:$0xf] %vm6270, %v6243
    %6282 = vst.msk [vmem:[#allocation6 + $0x2c] sm:$0xf] %vm6270, %v6245
    %6283 = vst.msk [vmem:[#allocation6 + $0x30] sm:$0xf] %vm6270, %v6247
    %6284 = vst.msk [vmem:[#allocation6 + $0x34] sm:$0xf] %vm6270, %v6249
    %6285 = vst.msk [vmem:[#allocation6 + $0x38] sm:$0xf] %vm6270, %v6251
    %6286 = vst.msk [vmem:[#allocation6 + $0x3c] sm:$0xf] %vm6270, %v6253
    %v6287 = vld [vmem:[%s5657 + $0x2] sm:$0xff]
    %v6288 = vld [vmem:[%s5657 + $0x12] sm:$0xff]
    %v6289 = vld [vmem:[%s5657 + $0x22] sm:$0xff]
    %v6290 = vld [vmem:[%s5657 + $0x32] sm:$0xff]
    %v6291 = vld [vmem:[%s5657 + $0x42] sm:$0xff]
    %v6292 = vld [vmem:[%s5657 + $0x52] sm:$0xff]
    %v6293 = vld [vmem:[%s5657 + $0x62] sm:$0xff]
    %v6294 = vld [vmem:[%s5657 + $0x72] sm:$0xff]
    %v6295 = vld [vmem:[%s5657 + $0xa2] sm:$0xff]
    %v6296 = vld [vmem:[%s5657 + $0xb2] sm:$0xff]
    %v6297 = vld [vmem:[%s5657 + $0xc2] sm:$0xff]
    %v6298 = vld [vmem:[%s5657 + $0xd2] sm:$0xff]
    %v6299 = vld [vmem:[%s5657 + $0xe2] sm:$0xff]
    %v6300 = vld [vmem:[%s5657 + $0xf2] sm:$0xff]
    %v6301 = vld [vmem:[%s5657 + $0x102] sm:$0xff]
    %v6302 = vld [vmem:[%s5657 + $0x112] sm:$0xff]
    %v6303 = vpack.c.bf16 %v6288, %v6287
    %v6304 = vpack.c.bf16 %v6290, %v6289
    %v6305 = vpack.c.bf16 %v6292, %v6291
    %v6306 = vpack.c.bf16 %v6294, %v6293
    %v6307 = vpack.c.bf16 %v6296, %v6295
    %v6308 = vpack.c.bf16 %v6298, %v6297
    %v6309 = vpack.c.bf16 %v6300, %v6299
    %v6310 = vpack.c.bf16 %v6302, %v6301
    %v6319 = vunpack.c.l.b16 %v6303
    %v6320 = vunpack.c.h.b16 %v6303
    %v6321 = vunpack.c.l.b16 %v6304
    %v6322 = vunpack.c.h.b16 %v6304
    %v6323 = vunpack.c.l.b16 %v6305
    %v6324 = vunpack.c.h.b16 %v6305
    %v6325 = vunpack.c.l.b16 %v6306
    %v6326 = vunpack.c.h.b16 %v6306
    %v6327 = vunpack.c.l.b16 %v6307
    %v6328 = vunpack.c.h.b16 %v6307
    %v6329 = vunpack.c.l.b16 %v6308
    %v6330 = vunpack.c.h.b16 %v6308
    %v6331 = vunpack.c.l.b16 %v6309
    %v6332 = vunpack.c.h.b16 %v6309
    %v6333 = vunpack.c.l.b16 %v6310
    %v6334 = vunpack.c.h.b16 %v6310
    %v6335 = vpack.c.b16 %v6319, %v6319
    %v6336 = vpack.c.b16 %v6320, %v6320
    %v6337 = vpack.c.b16 %v6321, %v6321
    %v6338 = vpack.c.b16 %v6322, %v6322
    %v6339 = vpack.c.b16 %v6323, %v6323
    %v6340 = vpack.c.b16 %v6324, %v6324
    %v6341 = vpack.c.b16 %v6325, %v6325
    %v6342 = vpack.c.b16 %v6326, %v6326
    %v6343 = vpack.c.b16 %v6327, %v6327
    %v6344 = vpack.c.b16 %v6328, %v6328
    %v6345 = vpack.c.b16 %v6329, %v6329
    %v6346 = vpack.c.b16 %v6330, %v6330
    %v6347 = vpack.c.b16 %v6331, %v6331
    %v6348 = vpack.c.b16 %v6332, %v6332
    %v6349 = vpack.c.b16 %v6333, %v6333
    %v6350 = vpack.c.b16 %v6334, %v6334
    %6351 = vrot.lane.b32.xlu0 %v6335, 40
    %v6352 = vpop.permute.xlu0 %6351
    %6353 = vrot.lane.b32.xlu0 %v6336, 40
    %v6354 = vpop.permute.xlu0 %6353
    %6355 = vrot.lane.b32.xlu0 %v6337, 40
    %v6356 = vpop.permute.xlu0 %6355
    %6357 = vrot.lane.b32.xlu0 %v6338, 40
    %v6358 = vpop.permute.xlu0 %6357
    %6359 = vrot.lane.b32.xlu0 %v6339, 40
    %v6360 = vpop.permute.xlu0 %6359
    %6361 = vrot.lane.b32.xlu0 %v6340, 40
    %v6362 = vpop.permute.xlu0 %6361
    %6363 = vrot.lane.b32.xlu0 %v6341, 40
    %v6364 = vpop.permute.xlu0 %6363
    %6365 = vrot.lane.b32.xlu0 %v6342, 40
    %v6366 = vpop.permute.xlu0 %6365
    %6367 = vrot.lane.b32.xlu0 %v6343, 40
    %v6368 = vpop.permute.xlu0 %6367
    %6369 = vrot.lane.b32.xlu0 %v6344, 40
    %v6370 = vpop.permute.xlu0 %6369
    %6371 = vrot.lane.b32.xlu0 %v6345, 40
    %v6372 = vpop.permute.xlu0 %6371
    %6373 = vrot.lane.b32.xlu0 %v6346, 40
    %v6374 = vpop.permute.xlu0 %6373
    %6375 = vrot.lane.b32.xlu0 %v6347, 40
    %v6376 = vpop.permute.xlu0 %6375
    %6377 = vrot.lane.b32.xlu0 %v6348, 40
    %v6378 = vpop.permute.xlu0 %6377
    %6379 = vrot.lane.b32.xlu0 %v6349, 40
    %v6380 = vpop.permute.xlu0 %6379
    %6381 = vrot.lane.b32.xlu0 %v6350, 40
    %v6382 = vpop.permute.xlu0 %6381
    %vm6399 = vcmask 388416
    %6400 = vst.msk [vmem:[#allocation6] sm:$0xf] %vm6399, %v6352
    %6401 = vst.msk [vmem:[#allocation6 + $0x4] sm:$0xf] %vm6399, %v6354
    %6402 = vst.msk [vmem:[#allocation6 + $0x8] sm:$0xf] %vm6399, %v6356
    %6403 = vst.msk [vmem:[#allocation6 + $0xc] sm:$0xf] %vm6399, %v6358
    %6404 = vst.msk [vmem:[#allocation6 + $0x10] sm:$0xf] %vm6399, %v6360
    %6405 = vst.msk [vmem:[#allocation6 + $0x14] sm:$0xf] %vm6399, %v6362
    %6406 = vst.msk [vmem:[#allocation6 + $0x18] sm:$0xf] %vm6399, %v6364
    %6407 = vst.msk [vmem:[#allocation6 + $0x1c] sm:$0xf] %vm6399, %v6366
    %6408 = vst.msk [vmem:[#allocation6 + $0x20] sm:$0xf] %vm6399, %v6368
    %6409 = vst.msk [vmem:[#allocation6 + $0x24] sm:$0xf] %vm6399, %v6370
    %6410 = vst.msk [vmem:[#allocation6 + $0x28] sm:$0xf] %vm6399, %v6372
    %6411 = vst.msk [vmem:[#allocation6 + $0x2c] sm:$0xf] %vm6399, %v6374
    %6412 = vst.msk [vmem:[#allocation6 + $0x30] sm:$0xf] %vm6399, %v6376
    %6413 = vst.msk [vmem:[#allocation6 + $0x34] sm:$0xf] %vm6399, %v6378
    %6414 = vst.msk [vmem:[#allocation6 + $0x38] sm:$0xf] %vm6399, %v6380
    %6415 = vst.msk [vmem:[#allocation6 + $0x3c] sm:$0xf] %vm6399, %v6382
    %s6416 = scalar_lea.vmem [#allocation5], 32
    %v6417 = vld [vmem:[%s6416] sm:$0xff]
    %v6418 = vld [vmem:[%s6416 + $0x10] sm:$0xff]
    %v6419 = vld [vmem:[%s6416 + $0x20] sm:$0xff]
    %v6420 = vld [vmem:[%s6416 + $0x30] sm:$0xff]
    %v6421 = vld [vmem:[%s6416 + $0x40] sm:$0xff]
    %v6422 = vld [vmem:[%s6416 + $0x50] sm:$0xff]
    %v6423 = vld [vmem:[%s6416 + $0x60] sm:$0xff]
    %v6424 = vld [vmem:[%s6416 + $0x70] sm:$0xff]
    %v6425 = vld [vmem:[%s6416 + $0xa0] sm:$0xff]
    %v6426 = vld [vmem:[%s6416 + $0xb0] sm:$0xff]
    %v6427 = vld [vmem:[%s6416 + $0xc0] sm:$0xff]
    %v6428 = vld [vmem:[%s6416 + $0xd0] sm:$0xff]
    %v6429 = vld [vmem:[%s6416 + $0xe0] sm:$0xff]
    %v6430 = vld [vmem:[%s6416 + $0xf0] sm:$0xff]
    %v6431 = vld [vmem:[%s6416 + $0x100] sm:$0xff]
    %v6432 = vld [vmem:[%s6416 + $0x110] sm:$0xff]
    %v6433 = vpack.c.bf16 %v6418, %v6417
    %v6434 = vpack.c.bf16 %v6420, %v6419
    %v6435 = vpack.c.bf16 %v6422, %v6421
    %v6436 = vpack.c.bf16 %v6424, %v6423
    %v6437 = vpack.c.bf16 %v6426, %v6425
    %v6438 = vpack.c.bf16 %v6428, %v6427
    %v6439 = vpack.c.bf16 %v6430, %v6429
    %v6440 = vpack.c.bf16 %v6432, %v6431
    %v6449 = vunpack.c.l.b16 %v6433
    %v6450 = vunpack.c.h.b16 %v6433
    %v6451 = vunpack.c.l.b16 %v6434
    %v6452 = vunpack.c.h.b16 %v6434
    %v6453 = vunpack.c.l.b16 %v6435
    %v6454 = vunpack.c.h.b16 %v6435
    %v6455 = vunpack.c.l.b16 %v6436
    %v6456 = vunpack.c.h.b16 %v6436
    %v6457 = vunpack.c.l.b16 %v6437
    %v6458 = vunpack.c.h.b16 %v6437
    %v6459 = vunpack.c.l.b16 %v6438
    %v6460 = vunpack.c.h.b16 %v6438
    %v6461 = vunpack.c.l.b16 %v6439
    %v6462 = vunpack.c.h.b16 %v6439
    %v6463 = vunpack.c.l.b16 %v6440
    %v6464 = vunpack.c.h.b16 %v6440
    %v6465 = vpack.c.b16 %v6449, %v6449
    %v6466 = vpack.c.b16 %v6450, %v6450
    %v6467 = vpack.c.b16 %v6451, %v6451
    %v6468 = vpack.c.b16 %v6452, %v6452
    %v6469 = vpack.c.b16 %v6453, %v6453
    %v6470 = vpack.c.b16 %v6454, %v6454
    %v6471 = vpack.c.b16 %v6455, %v6455
    %v6472 = vpack.c.b16 %v6456, %v6456
    %v6473 = vpack.c.b16 %v6457, %v6457
    %v6474 = vpack.c.b16 %v6458, %v6458
    %v6475 = vpack.c.b16 %v6459, %v6459
    %v6476 = vpack.c.b16 %v6460, %v6460
    %v6477 = vpack.c.b16 %v6461, %v6461
    %v6478 = vpack.c.b16 %v6462, %v6462
    %v6479 = vpack.c.b16 %v6463, %v6463
    %v6480 = vpack.c.b16 %v6464, %v6464
    %6481 = vrot.lane.b32.xlu0 %v6465, 48
    %v6482 = vpop.permute.xlu0 %6481
    %6483 = vrot.lane.b32.xlu0 %v6466, 48
    %v6484 = vpop.permute.xlu0 %6483
    %6485 = vrot.lane.b32.xlu0 %v6467, 48
    %v6486 = vpop.permute.xlu0 %6485
    %6487 = vrot.lane.b32.xlu0 %v6468, 48
    %v6488 = vpop.permute.xlu0 %6487
    %6489 = vrot.lane.b32.xlu0 %v6469, 48
    %v6490 = vpop.permute.xlu0 %6489
    %6491 = vrot.lane.b32.xlu0 %v6470, 48
    %v6492 = vpop.permute.xlu0 %6491
    %6493 = vrot.lane.b32.xlu0 %v6471, 48
    %v6494 = vpop.permute.xlu0 %6493
    %6495 = vrot.lane.b32.xlu0 %v6472, 48
    %v6496 = vpop.permute.xlu0 %6495
    %6497 = vrot.lane.b32.xlu0 %v6473, 48
    %v6498 = vpop.permute.xlu0 %6497
    %6499 = vrot.lane.b32.xlu0 %v6474, 48
    %v6500 = vpop.permute.xlu0 %6499
    %6501 = vrot.lane.b32.xlu0 %v6475, 48
    %v6502 = vpop.permute.xlu0 %6501
    %6503 = vrot.lane.b32.xlu0 %v6476, 48
    %v6504 = vpop.permute.xlu0 %6503
    %6505 = vrot.lane.b32.xlu0 %v6477, 48
    %v6506 = vpop.permute.xlu0 %6505
    %6507 = vrot.lane.b32.xlu0 %v6478, 48
    %v6508 = vpop.permute.xlu0 %6507
    %6509 = vrot.lane.b32.xlu0 %v6479, 48
    %v6510 = vpop.permute.xlu0 %6509
    %6511 = vrot.lane.b32.xlu0 %v6480, 48
    %v6512 = vpop.permute.xlu0 %6511
    %vm6529 = vcmask 454016
    %6530 = vst.msk [vmem:[#allocation6] sm:$0xf] %vm6529, %v6482
    %6531 = vst.msk [vmem:[#allocation6 + $0x4] sm:$0xf] %vm6529, %v6484
    %6532 = vst.msk [vmem:[#allocation6 + $0x8] sm:$0xf] %vm6529, %v6486
    %6533 = vst.msk [vmem:[#allocation6 + $0xc] sm:$0xf] %vm6529, %v6488
    %6534 = vst.msk [vmem:[#allocation6 + $0x10] sm:$0xf] %vm6529, %v6490
    %6535 = vst.msk [vmem:[#allocation6 + $0x14] sm:$0xf] %vm6529, %v6492
    %6536 = vst.msk [vmem:[#allocation6 + $0x18] sm:$0xf] %vm6529, %v6494
    %6537 = vst.msk [vmem:[#allocation6 + $0x1c] sm:$0xf] %vm6529, %v6496
    %6538 = vst.msk [vmem:[#allocation6 + $0x20] sm:$0xf] %vm6529, %v6498
    %6539 = vst.msk [vmem:[#allocation6 + $0x24] sm:$0xf] %vm6529, %v6500
    %6540 = vst.msk [vmem:[#allocation6 + $0x28] sm:$0xf] %vm6529, %v6502
    %6541 = vst.msk [vmem:[#allocation6 + $0x2c] sm:$0xf] %vm6529, %v6504
    %6542 = vst.msk [vmem:[#allocation6 + $0x30] sm:$0xf] %vm6529, %v6506
    %6543 = vst.msk [vmem:[#allocation6 + $0x34] sm:$0xf] %vm6529, %v6508
    %6544 = vst.msk [vmem:[#allocation6 + $0x38] sm:$0xf] %vm6529, %v6510
    %6545 = vst.msk [vmem:[#allocation6 + $0x3c] sm:$0xf] %vm6529, %v6512
    %v6546 = vld [vmem:[%s6416 + $0x1] sm:$0xff]
    %v6547 = vld [vmem:[%s6416 + $0x11] sm:$0xff]
    %v6548 = vld [vmem:[%s6416 + $0x21] sm:$0xff]
    %v6549 = vld [vmem:[%s6416 + $0x31] sm:$0xff]
    %v6550 = vld [vmem:[%s6416 + $0x41] sm:$0xff]
    %v6551 = vld [vmem:[%s6416 + $0x51] sm:$0xff]
    %v6552 = vld [vmem:[%s6416 + $0x61] sm:$0xff]
    %v6553 = vld [vmem:[%s6416 + $0x71] sm:$0xff]
    %v6554 = vld [vmem:[%s6416 + $0xa1] sm:$0xff]
    %v6555 = vld [vmem:[%s6416 + $0xb1] sm:$0xff]
    %v6556 = vld [vmem:[%s6416 + $0xc1] sm:$0xff]
    %v6557 = vld [vmem:[%s6416 + $0xd1] sm:$0xff]
    %v6558 = vld [vmem:[%s6416 + $0xe1] sm:$0xff]
    %v6559 = vld [vmem:[%s6416 + $0xf1] sm:$0xff]
    %v6560 = vld [vmem:[%s6416 + $0x101] sm:$0xff]
    %v6561 = vld [vmem:[%s6416 + $0x111] sm:$0xff]
    %v6562 = vpack.c.bf16 %v6547, %v6546
    %v6563 = vpack.c.bf16 %v6549, %v6548
    %v6564 = vpack.c.bf16 %v6551, %v6550
    %v6565 = vpack.c.bf16 %v6553, %v6552
    %v6566 = vpack.c.bf16 %v6555, %v6554
    %v6567 = vpack.c.bf16 %v6557, %v6556
    %v6568 = vpack.c.bf16 %v6559, %v6558
    %v6569 = vpack.c.bf16 %v6561, %v6560
    %v6578 = vunpack.c.l.b16 %v6562
    %v6579 = vunpack.c.h.b16 %v6562
    %v6580 = vunpack.c.l.b16 %v6563
    %v6581 = vunpack.c.h.b16 %v6563
    %v6582 = vunpack.c.l.b16 %v6564
    %v6583 = vunpack.c.h.b16 %v6564
    %v6584 = vunpack.c.l.b16 %v6565
    %v6585 = vunpack.c.h.b16 %v6565
    %v6586 = vunpack.c.l.b16 %v6566
    %v6587 = vunpack.c.h.b16 %v6566
    %v6588 = vunpack.c.l.b16 %v6567
    %v6589 = vunpack.c.h.b16 %v6567
    %v6590 = vunpack.c.l.b16 %v6568
    %v6591 = vunpack.c.h.b16 %v6568
    %v6592 = vunpack.c.l.b16 %v6569
    %v6593 = vunpack.c.h.b16 %v6569
    %v6594 = vpack.c.b16 %v6578, %v6578
    %v6595 = vpack.c.b16 %v6579, %v6579
    %v6596 = vpack.c.b16 %v6580, %v6580
    %v6597 = vpack.c.b16 %v6581, %v6581
    %v6598 = vpack.c.b16 %v6582, %v6582
    %v6599 = vpack.c.b16 %v6583, %v6583
    %v6600 = vpack.c.b16 %v6584, %v6584
    %v6601 = vpack.c.b16 %v6585, %v6585
    %v6602 = vpack.c.b16 %v6586, %v6586
    %v6603 = vpack.c.b16 %v6587, %v6587
    %v6604 = vpack.c.b16 %v6588, %v6588
    %v6605 = vpack.c.b16 %v6589, %v6589
    %v6606 = vpack.c.b16 %v6590, %v6590
    %v6607 = vpack.c.b16 %v6591, %v6591
    %v6608 = vpack.c.b16 %v6592, %v6592
    %v6609 = vpack.c.b16 %v6593, %v6593
    %6610 = vrot.lane.b32.xlu0 %v6594, 56
    %v6611 = vpop.permute.xlu0 %6610
    %6612 = vrot.lane.b32.xlu0 %v6595, 56
    %v6613 = vpop.permute.xlu0 %6612
    %6614 = vrot.lane.b32.xlu0 %v6596, 56
    %v6615 = vpop.permute.xlu0 %6614
    %6616 = vrot.lane.b32.xlu0 %v6597, 56
    %v6617 = vpop.permute.xlu0 %6616
    %6618 = vrot.lane.b32.xlu0 %v6598, 56
    %v6619 = vpop.permute.xlu0 %6618
    %6620 = vrot.lane.b32.xlu0 %v6599, 56
    %v6621 = vpop.permute.xlu0 %6620
    %6622 = vrot.lane.b32.xlu0 %v6600, 56
    %v6623 = vpop.permute.xlu0 %6622
    %6624 = vrot.lane.b32.xlu0 %v6601, 56
    %v6625 = vpop.permute.xlu0 %6624
    %6626 = vrot.lane.b32.xlu0 %v6602, 56
    %v6627 = vpop.permute.xlu0 %6626
    %6628 = vrot.lane.b32.xlu0 %v6603, 56
    %v6629 = vpop.permute.xlu0 %6628
    %6630 = vrot.lane.b32.xlu0 %v6604, 56
    %v6631 = vpop.permute.xlu0 %6630
    %6632 = vrot.lane.b32.xlu0 %v6605, 56
    %v6633 = vpop.permute.xlu0 %6632
    %6634 = vrot.lane.b32.xlu0 %v6606, 56
    %v6635 = vpop.permute.xlu0 %6634
    %6636 = vrot.lane.b32.xlu0 %v6607, 56
    %v6637 = vpop.permute.xlu0 %6636
    %6638 = vrot.lane.b32.xlu0 %v6608, 56
    %v6639 = vpop.permute.xlu0 %6638
    %6640 = vrot.lane.b32.xlu0 %v6609, 56
    %v6641 = vpop.permute.xlu0 %6640
    %vm6658 = vcmask 519616
    %6659 = vst.msk [vmem:[#allocation6] sm:$0xf] %vm6658, %v6611
    %6660 = vst.msk [vmem:[#allocation6 + $0x4] sm:$0xf] %vm6658, %v6613
    %6661 = vst.msk [vmem:[#allocation6 + $0x8] sm:$0xf] %vm6658, %v6615
    %6662 = vst.msk [vmem:[#allocation6 + $0xc] sm:$0xf] %vm6658, %v6617
    %6663 = vst.msk [vmem:[#allocation6 + $0x10] sm:$0xf] %vm6658, %v6619
    %6664 = vst.msk [vmem:[#allocation6 + $0x14] sm:$0xf] %vm6658, %v6621
    %6665 = vst.msk [vmem:[#allocation6 + $0x18] sm:$0xf] %vm6658, %v6623
    %6666 = vst.msk [vmem:[#allocation6 + $0x1c] sm:$0xf] %vm6658, %v6625
    %6667 = vst.msk [vmem:[#allocation6 + $0x20] sm:$0xf] %vm6658, %v6627
    %6668 = vst.msk [vmem:[#allocation6 + $0x24] sm:$0xf] %vm6658, %v6629
    %6669 = vst.msk [vmem:[#allocation6 + $0x28] sm:$0xf] %vm6658, %v6631
    %6670 = vst.msk [vmem:[#allocation6 + $0x2c] sm:$0xf] %vm6658, %v6633
    %6671 = vst.msk [vmem:[#allocation6 + $0x30] sm:$0xf] %vm6658, %v6635
    %6672 = vst.msk [vmem:[#allocation6 + $0x34] sm:$0xf] %vm6658, %v6637
    %6673 = vst.msk [vmem:[#allocation6 + $0x38] sm:$0xf] %vm6658, %v6639
    %6674 = vst.msk [vmem:[#allocation6 + $0x3c] sm:$0xf] %vm6658, %v6641
    %v6675 = vld [vmem:[%s6416 + $0x2] sm:$0xff]
    %v6676 = vld [vmem:[%s6416 + $0x12] sm:$0xff]
    %v6677 = vld [vmem:[%s6416 + $0x22] sm:$0xff]
    %v6678 = vld [vmem:[%s6416 + $0x32] sm:$0xff]
    %v6679 = vld [vmem:[%s6416 + $0x42] sm:$0xff]
    %v6680 = vld [vmem:[%s6416 + $0x52] sm:$0xff]
    %v6681 = vld [vmem:[%s6416 + $0x62] sm:$0xff]
    %v6682 = vld [vmem:[%s6416 + $0x72] sm:$0xff]
    %v6683 = vld [vmem:[%s6416 + $0xa2] sm:$0xff]
    %v6684 = vld [vmem:[%s6416 + $0xb2] sm:$0xff]
    %v6685 = vld [vmem:[%s6416 + $0xc2] sm:$0xff]
    %v6686 = vld [vmem:[%s6416 + $0xd2] sm:$0xff]
    %v6687 = vld [vmem:[%s6416 + $0xe2] sm:$0xff]
    %v6688 = vld [vmem:[%s6416 + $0xf2] sm:$0xff]
    %v6689 = vld [vmem:[%s6416 + $0x102] sm:$0xff]
    %v6690 = vld [vmem:[%s6416 + $0x112] sm:$0xff]
    %v6691 = vpack.c.bf16 %v6676, %v6675
    %v6692 = vpack.c.bf16 %v6678, %v6677
    %v6693 = vpack.c.bf16 %v6680, %v6679
    %v6694 = vpack.c.bf16 %v6682, %v6681
    %v6695 = vpack.c.bf16 %v6684, %v6683
    %v6696 = vpack.c.bf16 %v6686, %v6685
    %v6697 = vpack.c.bf16 %v6688, %v6687
    %v6698 = vpack.c.bf16 %v6690, %v6689
    %v6707 = vunpack.c.l.b16 %v6691
    %v6708 = vunpack.c.h.b16 %v6691
    %v6709 = vunpack.c.l.b16 %v6692
    %v6710 = vunpack.c.h.b16 %v6692
    %v6711 = vunpack.c.l.b16 %v6693
    %v6712 = vunpack.c.h.b16 %v6693
    %v6713 = vunpack.c.l.b16 %v6694
    %v6714 = vunpack.c.h.b16 %v6694
    %v6715 = vunpack.c.l.b16 %v6695
    %v6716 = vunpack.c.h.b16 %v6695
    %v6717 = vunpack.c.l.b16 %v6696
    %v6718 = vunpack.c.h.b16 %v6696
    %v6719 = vunpack.c.l.b16 %v6697
    %v6720 = vunpack.c.h.b16 %v6697
    %v6721 = vunpack.c.l.b16 %v6698
    %v6722 = vunpack.c.h.b16 %v6698
    %v6723 = vpack.c.b16 %v6707, %v6707
    %v6724 = vpack.c.b16 %v6708, %v6708
    %v6725 = vpack.c.b16 %v6709, %v6709
    %v6726 = vpack.c.b16 %v6710, %v6710
    %v6727 = vpack.c.b16 %v6711, %v6711
    %v6728 = vpack.c.b16 %v6712, %v6712
    %v6729 = vpack.c.b16 %v6713, %v6713
    %v6730 = vpack.c.b16 %v6714, %v6714
    %v6731 = vpack.c.b16 %v6715, %v6715
    %v6732 = vpack.c.b16 %v6716, %v6716
    %v6733 = vpack.c.b16 %v6717, %v6717
    %v6734 = vpack.c.b16 %v6718, %v6718
    %v6735 = vpack.c.b16 %v6719, %v6719
    %v6736 = vpack.c.b16 %v6720, %v6720
    %v6737 = vpack.c.b16 %v6721, %v6721
    %v6738 = vpack.c.b16 %v6722, %v6722
    %6739 = vrot.lane.b32.xlu0 %v6723, 64
    %v6740 = vpop.permute.xlu0 %6739
    %6741 = vrot.lane.b32.xlu0 %v6724, 64
    %v6742 = vpop.permute.xlu0 %6741
    %6743 = vrot.lane.b32.xlu0 %v6725, 64
    %v6744 = vpop.permute.xlu0 %6743
    %6745 = vrot.lane.b32.xlu0 %v6726, 64
    %v6746 = vpop.permute.xlu0 %6745
    %6747 = vrot.lane.b32.xlu0 %v6727, 64
    %v6748 = vpop.permute.xlu0 %6747
    %6749 = vrot.lane.b32.xlu0 %v6728, 64
    %v6750 = vpop.permute.xlu0 %6749
    %6751 = vrot.lane.b32.xlu0 %v6729, 64
    %v6752 = vpop.permute.xlu0 %6751
    %6753 = vrot.lane.b32.xlu0 %v6730, 64
    %v6754 = vpop.permute.xlu0 %6753
    %6755 = vrot.lane.b32.xlu0 %v6731, 64
    %v6756 = vpop.permute.xlu0 %6755
    %6757 = vrot.lane.b32.xlu0 %v6732, 64
    %v6758 = vpop.permute.xlu0 %6757
    %6759 = vrot.lane.b32.xlu0 %v6733, 64
    %v6760 = vpop.permute.xlu0 %6759
    %6761 = vrot.lane.b32.xlu0 %v6734, 64
    %v6762 = vpop.permute.xlu0 %6761
    %6763 = vrot.lane.b32.xlu0 %v6735, 64
    %v6764 = vpop.permute.xlu0 %6763
    %6765 = vrot.lane.b32.xlu0 %v6736, 64
    %v6766 = vpop.permute.xlu0 %6765
    %6767 = vrot.lane.b32.xlu0 %v6737, 64
    %v6768 = vpop.permute.xlu0 %6767
    %6769 = vrot.lane.b32.xlu0 %v6738, 64
    %v6770 = vpop.permute.xlu0 %6769
    %vm6787 = vcmask 585216
    %6788 = vst.msk [vmem:[#allocation6] sm:$0xf] %vm6787, %v6740
    %6789 = vst.msk [vmem:[#allocation6 + $0x4] sm:$0xf] %vm6787, %v6742
    %6790 = vst.msk [vmem:[#allocation6 + $0x8] sm:$0xf] %vm6787, %v6744
    %6791 = vst.msk [vmem:[#allocation6 + $0xc] sm:$0xf] %vm6787, %v6746
    %6792 = vst.msk [vmem:[#allocation6 + $0x10] sm:$0xf] %vm6787, %v6748
    %6793 = vst.msk [vmem:[#allocation6 + $0x14] sm:$0xf] %vm6787, %v6750
    %6794 = vst.msk [vmem:[#allocation6 + $0x18] sm:$0xf] %vm6787, %v6752
    %6795 = vst.msk [vmem:[#allocation6 + $0x1c] sm:$0xf] %vm6787, %v6754
    %6796 = vst.msk [vmem:[#allocation6 + $0x20] sm:$0xf] %vm6787, %v6756
    %6797 = vst.msk [vmem:[#allocation6 + $0x24] sm:$0xf] %vm6787, %v6758
    %6798 = vst.msk [vmem:[#allocation6 + $0x28] sm:$0xf] %vm6787, %v6760
    %6799 = vst.msk [vmem:[#allocation6 + $0x2c] sm:$0xf] %vm6787, %v6762
    %6800 = vst.msk [vmem:[#allocation6 + $0x30] sm:$0xf] %vm6787, %v6764
    %6801 = vst.msk [vmem:[#allocation6 + $0x34] sm:$0xf] %vm6787, %v6766
    %6802 = vst.msk [vmem:[#allocation6 + $0x38] sm:$0xf] %vm6787, %v6768
    %6803 = vst.msk [vmem:[#allocation6 + $0x3c] sm:$0xf] %vm6787, %v6770
    %v6804 = vld [vmem:[#allocation6] sm:$0xf]
    %v6805 = vld [vmem:[#allocation6 + $0x4] sm:$0xf]
    %v6806 = vld [vmem:[#allocation6 + $0x8] sm:$0xf]
    %v6807 = vld [vmem:[#allocation6 + $0xc] sm:$0xf]
    %v6808 = vld [vmem:[#allocation6 + $0x10] sm:$0xf]
    %v6809 = vld [vmem:[#allocation6 + $0x14] sm:$0xf]
    %v6810 = vld [vmem:[#allocation6 + $0x18] sm:$0xf]
    %v6811 = vld [vmem:[#allocation6 + $0x1c] sm:$0xf]
    %v6812 = vld [vmem:[#allocation6 + $0x20] sm:$0xf]
    %v6813 = vld [vmem:[#allocation6 + $0x24] sm:$0xf]
    %v6814 = vld [vmem:[#allocation6 + $0x28] sm:$0xf]
    %v6815 = vld [vmem:[#allocation6 + $0x2c] sm:$0xf]
    %v6816 = vld [vmem:[#allocation6 + $0x30] sm:$0xf]
    %v6817 = vld [vmem:[#allocation6 + $0x34] sm:$0xf]
    %v6818 = vld [vmem:[#allocation6 + $0x38] sm:$0xf]
    %v6819 = vld [vmem:[#allocation6 + $0x3c] sm:$0xf]
    %v6820 = vld [vmem:[%s3] sm:$0xf]
    %v6821 = vld [vmem:[%s3 + $0x4] sm:$0xf]
    %v6822 = vld [vmem:[%s3 + $0x8] sm:$0xf]
    %v6823 = vld [vmem:[%s3 + $0xc] sm:$0xf]
    %v6824 = vld [vmem:[%s3 + $0x10] sm:$0xf]
    %v6825 = vld [vmem:[%s3 + $0x14] sm:$0xf]
    %v6826 = vld [vmem:[%s3 + $0x18] sm:$0xf]
    %v6827 = vld [vmem:[%s3 + $0x1c] sm:$0xf]
    %v6828 = vld [vmem:[%s3 + $0x20] sm:$0xf]
    %v6829 = vld [vmem:[%s4] sm:$0x1]
    %v6831 = vlaneseq
    %v6832 = vshrl.u32 %v6831, 7
    %v6833 = vsub.s32 0, %v6832
    %v6834 = vrot.slane %v6829, %v6833
    %v6852 = vunpack.c.l.b16 %v6804
    %v6853 = vunpack.c.l.b16 %v6805
    %v6854 = vunpack.c.l.b16 %v6806
    %v6855 = vunpack.c.l.b16 %v6807
    %v6856 = vunpack.c.l.b16 %v6808
    %v6857 = vunpack.c.l.b16 %v6809
    %v6858 = vunpack.c.l.b16 %v6810
    %v6859 = vunpack.c.l.b16 %v6811
    %v6860 = vunpack.c.l.b16 %v6812
    %v6861 = vunpack.c.l.b16 %v6813
    %v6862 = vunpack.c.l.b16 %v6814
    %v6863 = vunpack.c.l.b16 %v6815
    %v6864 = vunpack.c.l.b16 %v6816
    %v6865 = vunpack.c.l.b16 %v6817
    %v6866 = vunpack.c.l.b16 %v6818
    %v6867 = vunpack.c.l.b16 %v6819
    %v6868 = vpack.c.b16 %v6853, %v6852
    %v6869 = vpack.c.b16 %v6855, %v6854
    %v6870 = vpack.c.b16 %v6857, %v6856
    %v6871 = vpack.c.b16 %v6859, %v6858
    %v6872 = vpack.c.b16 %v6861, %v6860
    %v6873 = vpack.c.b16 %v6863, %v6862
    %v6874 = vpack.c.b16 %v6865, %v6864
    %v6875 = vpack.c.b16 %v6867, %v6866
    %v6885 = vunpack.c.l.b16 %v6820
    %v6886 = vunpack.c.l.b16 %v6821
    %v6887 = vunpack.c.l.b16 %v6822
    %v6888 = vunpack.c.l.b16 %v6823
    %v6889 = vunpack.c.l.b16 %v6824
    %v6890 = vunpack.c.l.b16 %v6825
    %v6891 = vunpack.c.l.b16 %v6826
    %v6892 = vunpack.c.l.b16 %v6827
    %v6893 = vunpack.c.l.b16 %v6828
    %v6894 = vpack.c.b16 %v6886, %v6885
    %v6895 = vpack.c.b16 %v6888, %v6887
    %v6896 = vpack.c.b16 %v6890, %v6889
    %v6897 = vpack.c.b16 %v6892, %v6891
    %v6898 = vpack.c.b16 %v6893, %v6893
    %vm6903 = vcmask 588800
    %v6905 = vsel %vm6903, %v6868, 0
    %v6908 = vsel %vm6903, %v6869, 0
    %v6911 = vsel %vm6903, %v6870, 0
    %v6914 = vsel %vm6903, %v6871, 0
    %v6917 = vsel %vm6903, %v6872, 0
    %v6920 = vsel %vm6903, %v6873, 0
    %v6923 = vsel %vm6903, %v6874, 0
    %v6926 = vsel %vm6903, %v6875, 0
    %vm6928 = vcmask 1043456
    %v6930 = vsel %vm6928, %v6898, 0
    %6932 = vmatprep.subr.bf16.mxu0 0
    %6933 = vmatpush1.bf16.msra.mxu0 0
    %6934 = vmatprep.subr.bf16.mxu0 0
    %6935 = vmatpush1.bf16.msra.mxu0 0
    %6936 = vmatprep.subr.bf16.mxu0 0
    %6937 = vmatpush1.bf16.msra.mxu0 0
    %6938 = vmatprep.subr.bf16.mxu0 0
    %6939 = vmatpush1.bf16.msra.mxu0 %v6930
    %6940 = vmatprep.subr.bf16.mxu0 0
    %6941 = vmatpush1.bf16.msra.mxu0 %v6897
    %6942 = vmatprep.subr.bf16.mxu0 0
    %6943 = vmatpush1.bf16.msra.mxu0 %v6896
    %6944 = vmatprep.subr.bf16.mxu0 0
    %6945 = vmatpush1.bf16.msra.mxu0 %v6895
    %6946 = vmatprep.subr.bf16.mxu0 0
    %6947 = vmatpush1.bf16.msra.mxu0 %v6894
    %6948 = vmatprep.subr.bf16.mxu0 0
    %6949 = vmatpush2.bf16.msra.mxu0 0
    %6950 = vmatprep.subr.bf16.mxu0 0
    %6951 = vmatpush2.bf16.msra.mxu0 0
    %6952 = vmatprep.subr.bf16.mxu0 0
    %6953 = vmatpush2.bf16.msra.mxu0 0
    %6954 = vmatprep.subr.bf16.mxu0 0
    %6955 = vmatpush2.bf16.msra.mxu0 0
    %6956 = vmatprep.subr.bf16.mxu0 0
    %6957 = vmatpush2.bf16.msra.mxu0 0
    %6958 = vmatprep.subr.bf16.mxu0 0
    %6959 = vmatpush2.bf16.msra.mxu0 0
    %6960 = vmatprep.subr.bf16.mxu0 0
    %6961 = vmatpush2.bf16.msra.mxu0 0
    %6962 = vmatprep.subr.bf16.mxu0 0
    %6963 = vmatpush2.bf16.msra.mxu0 0
    %6964 = vmatprep.mubr.bf16.mxu0 0
    %6965 = vmatmul.mubr.bf16.gmra.mxu0 %v6905
    %v6966 = vpop.f32.mrf.mxu0
    %v6967 = vadd.f32 %v6834, %v6966
    %v6968 = vpop.f32.mrf.mxu0
    %v6969 = vpop.f32.mrf.mxu0
    %v6970 = vadd.f32 %v6834, %v6969
    %v6971 = vpop.f32.mrf.mxu0
    %6972 = vmatprep.mubr.bf16.mxu0 0
    %6973 = vmatmul.mubr.bf16.gmra.mxu0 %v6908
    %v6974 = vpop.f32.mrf.mxu0
    %v6975 = vadd.f32 %v6834, %v6974
    %v6976 = vpop.f32.mrf.mxu0
    %v6977 = vpop.f32.mrf.mxu0
    %v6978 = vadd.f32 %v6834, %v6977
    %v6979 = vpop.f32.mrf.mxu0
    %6980 = vmatprep.mubr.bf16.mxu0 0
    %6981 = vmatmul.mubr.bf16.gmra.mxu0 %v6911
    %v6982 = vpop.f32.mrf.mxu0
    %v6983 = vadd.f32 %v6834, %v6982
    %v6984 = vpop.f32.mrf.mxu0
    %v6985 = vpop.f32.mrf.mxu0
    %v6986 = vadd.f32 %v6834, %v6985
    %v6987 = vpop.f32.mrf.mxu0
    %6988 = vmatprep.mubr.bf16.mxu0 0
    %6989 = vmatmul.mubr.bf16.gmra.mxu0 %v6914
    %v6990 = vpop.f32.mrf.mxu0
    %v6991 = vadd.f32 %v6834, %v6990
    %v6992 = vpop.f32.mrf.mxu0
    %v6993 = vpop.f32.mrf.mxu0
    %v6994 = vadd.f32 %v6834, %v6993
    %v6995 = vpop.f32.mrf.mxu0
    %6996 = vmatprep.mubr.bf16.mxu0 0
    %6997 = vmatmul.mubr.bf16.gmra.mxu0 %v6917
    %v6998 = vpop.f32.mrf.mxu0
    %v6999 = vadd.f32 %v6834, %v6998
    %v7000 = vpop.f32.mrf.mxu0
    %v7001 = vpop.f32.mrf.mxu0
    %v7002 = vadd.f32 %v6834, %v7001
    %v7003 = vpop.f32.mrf.mxu0
    %7004 = vmatprep.mubr.bf16.mxu0 0
    %7005 = vmatmul.mubr.bf16.gmra.mxu0 %v6920
    %v7006 = vpop.f32.mrf.mxu0
    %v7007 = vadd.f32 %v6834, %v7006
    %v7008 = vpop.f32.mrf.mxu0
    %v7009 = vpop.f32.mrf.mxu0
    %v7010 = vadd.f32 %v6834, %v7009
    %v7011 = vpop.f32.mrf.mxu0
    %7012 = vmatprep.mubr.bf16.mxu0 0
    %7013 = vmatmul.mubr.bf16.gmra.mxu0 %v6923
    %v7014 = vpop.f32.mrf.mxu0
    %v7015 = vadd.f32 %v6834, %v7014
    %v7016 = vpop.f32.mrf.mxu0
    %v7017 = vpop.f32.mrf.mxu0
    %v7018 = vadd.f32 %v6834, %v7017
    %v7019 = vpop.f32.mrf.mxu0
    %7020 = vmatprep.mubr.bf16.mxu0 0
    %7021 = vmatmul.mubr.bf16.gmra.mxu0 %v6926
    %v7022 = vpop.f32.mrf.mxu0
    %v7023 = vadd.f32 %v6834, %v7022
    %v7024 = vpop.f32.mrf.mxu0
    %v7025 = vpop.f32.mrf.mxu0
    %v7026 = vadd.f32 %v6834, %v7025
    %v7027 = vpop.f32.mrf.mxu0
    %7028 = vdwg.mxu0
    %v7029 = vmax.f32 %v6967, 0.0
    %v7030 = vmax.f32 %v6970, 0.0
    %v7031 = vmax.f32 %v6975, 0.0
    %v7032 = vmax.f32 %v6978, 0.0
    %v7033 = vmax.f32 %v6983, 0.0
    %v7034 = vmax.f32 %v6986, 0.0
    %v7035 = vmax.f32 %v6991, 0.0
    %v7036 = vmax.f32 %v6994, 0.0
    %v7037 = vmax.f32 %v6999, 0.0
    %v7038 = vmax.f32 %v7002, 0.0
    %v7039 = vmax.f32 %v7007, 0.0
    %v7040 = vmax.f32 %v7010, 0.0
    %v7041 = vmax.f32 %v7015, 0.0
    %v7042 = vmax.f32 %v7018, 0.0
    %v7043 = vmax.f32 %v7023, 0.0
    %v7044 = vmax.f32 %v7026, 0.0
    %v7045 = vmax.f32 %v7029, %v7030
    %v7046 = vmax.f32 %v7031, %v7032
    %v7047 = vmax.f32 %v7033, %v7034
    %v7048 = vmax.f32 %v7035, %v7036
    %v7049 = vmax.f32 %v7037, %v7038
    %v7050 = vmax.f32 %v7039, %v7040
    %v7051 = vmax.f32 %v7041, %v7042
    %v7052 = vmax.f32 %v7043, %v7044
    %vm7053 = vcmask 130048
    %7054 = vst.msk [vmem:[#allocation7] sm:$0xff] %vm7053, %v7045
    %7055 = vst.msk [vmem:[#allocation7 + $0x8] sm:$0xff] %vm7053, %v7046
    %7056 = vst.msk [vmem:[#allocation7 + $0x10] sm:$0xff] %vm7053, %v7047
    %7057 = vst.msk [vmem:[#allocation7 + $0x18] sm:$0xff] %vm7053, %v7048
    %7058 = vst.msk [vmem:[#allocation7 + $0x20] sm:$0xff] %vm7053, %v7049
    %7059 = vst.msk [vmem:[#allocation7 + $0x28] sm:$0xff] %vm7053, %v7050
    %7060 = vst.msk [vmem:[#allocation7 + $0x30] sm:$0xff] %vm7053, %v7051
    %7061 = vst.msk [vmem:[#allocation7 + $0x38] sm:$0xff] %vm7053, %v7052
    %v7062 = vld [vmem:[#allocation7] ss:$2 sm:$0xff]
    %s7063 = scalar_lea.vmem [#allocation7], 16
    %v7064 = vld [vmem:[%s7063] ss:$2 sm:$0xff]
    %s7065 = scalar_lea.vmem [#allocation7], 32
    %v7066 = vld [vmem:[%s7065] ss:$2 sm:$0xff]
    %s7067 = scalar_lea.vmem [#allocation7], 48
    %v7068 = vld [vmem:[%s7067] ss:$2 sm:$0xff]
    %s7069 = scalar_lea.vmem [#allocation7], 1
    %v7070 = vld [vmem:[%s7069] ss:$2 sm:$0xff]
    %s7071 = scalar_lea.vmem [#allocation7], 17
    %v7072 = vld [vmem:[%s7071] ss:$2 sm:$0xff]
    %s7073 = scalar_lea.vmem [#allocation7], 33
    %v7074 = vld [vmem:[%s7073] ss:$2 sm:$0xff]
    %s7075 = scalar_lea.vmem [#allocation7], 49
    %v7076 = vld [vmem:[%s7075] ss:$2 sm:$0xff]
    %v7077 = vmax.f32 %v7062, %v7070
    %v7078 = vmax.f32 %v7064, %v7072
    %v7079 = vmax.f32 %v7066, %v7074
    %v7080 = vmax.f32 %v7068, %v7076
    %7081 = vst.msk [vmem:[#allocation8] sm:$0xff] %vm7053, %v7077
    %7082 = vst.msk [vmem:[#allocation8 + $0x8] sm:$0xff] %vm7053, %v7078
    %7083 = vst.msk [vmem:[#allocation8 + $0x10] sm:$0xff] %vm7053, %v7079
    %7084 = vst.msk [vmem:[#allocation8 + $0x18] sm:$0xff] %vm7053, %v7080
    %v7085 = vld [vmem:[#allocation8] ss:$16 sm:$0x3]
    %v7086 = vpack.c.bf16 %v7085, %v7085
    %vm7087 = vcmask 122880
    %7088 = vst.msk [vmem:[#allocation9] sm:$0x1] %vm7087, %v7086
    %s7089 = scalar_lea.vmem [#allocation8], 1
    %v7090 = vld [vmem:[%s7089] ss:$16 sm:$0x3]
    %v7091 = vpack.c.bf16 %v7090, %v7090
    %v7094 = vunpack.c.l.s4 1966171168
    %v7095 = vunpack.c.0.s8 %v7094
    %v7096 = vlaneseq
    %v7097 = vshrl.u32 %v7096, 7
    %v7098 = vsub.s32 %v7095, %v7097
    %v7099 = vrot.slane %v7091, %v7098
    %v7101 = vunpack.c.l.s4 1966171168
    %v7102 = vunpack.c.0.s8 %v7101
    %v7103 = vlaneseq
    %v7104 = vshrl.u32 %v7103, 7
    %v7105 = vsub.s32 %v7102, %v7104
    %v7106 = vrot.slane %v7099, %v7105
    %7107 = vrot.lane.b32.xlu0 %v7106, 16
    %v7108 = vpop.permute.xlu0 %7107
    %vm7110 = vcmask 254080
    %7111 = vst.msk [vmem:[#allocation9] sm:$0x1] %vm7110, %v7108
    %s7112 = scalar_lea.vmem [#allocation8], 2
    %v7113 = vld [vmem:[%s7112] ss:$16 sm:$0x3]
    %v7114 = vpack.c.bf16 %v7113, %v7113
    %v7117 = vunpack.c.l.s4 1966171168
    %v7118 = vunpack.c.0.s8 %v7117
    %v7119 = vlaneseq
    %v7120 = vshrl.u32 %v7119, 7
    %v7121 = vsub.s32 %v7118, %v7120
    %v7122 = vrot.slane %v7114, %v7121
    %v7124 = vunpack.c.l.s4 1966171168
    %v7125 = vunpack.c.0.s8 %v7124
    %v7126 = vlaneseq
    %v7127 = vshrl.u32 %v7126, 7
    %v7128 = vsub.s32 %v7125, %v7127
    %v7129 = vrot.slane %v7122, %v7128
    %7130 = vrot.lane.b32.xlu0 %v7129, 32
    %v7131 = vpop.permute.xlu0 %7130
    %vm7133 = vcmask 385280
    %7134 = vst.msk [vmem:[#allocation9] sm:$0x1] %vm7133, %v7131
    %s7135 = scalar_lea.vmem [#allocation8], 3
    %v7136 = vld [vmem:[%s7135] ss:$16 sm:$0x3]
    %v7137 = vpack.c.bf16 %v7136, %v7136
    %v7140 = vunpack.c.l.s4 1966171168
    %v7141 = vunpack.c.0.s8 %v7140
    %v7142 = vlaneseq
    %v7143 = vshrl.u32 %v7142, 7
    %v7144 = vsub.s32 %v7141, %v7143
    %v7145 = vrot.slane %v7137, %v7144
    %v7147 = vunpack.c.l.s4 1966171168
    %v7148 = vunpack.c.0.s8 %v7147
    %v7149 = vlaneseq
    %v7150 = vshrl.u32 %v7149, 7
    %v7151 = vsub.s32 %v7148, %v7150
    %v7152 = vrot.slane %v7145, %v7151
    %7153 = vrot.lane.b32.xlu0 %v7152, 48
    %v7154 = vpop.permute.xlu0 %7153
    %vm7156 = vcmask 516480
    %7157 = vst.msk [vmem:[#allocation9] sm:$0x1] %vm7156, %v7154
    %s7158 = scalar_lea.vmem [#allocation8], 4
    %v7159 = vld [vmem:[%s7158] ss:$16 sm:$0x3]
    %v7160 = vpack.c.bf16 %v7159, %v7159
    %v7163 = vunpack.c.l.s4 1966171168
    %v7164 = vunpack.c.0.s8 %v7163
    %v7165 = vlaneseq
    %v7166 = vshrl.u32 %v7165, 7
    %v7167 = vsub.s32 %v7164, %v7166
    %v7168 = vrot.slane %v7160, %v7167
    %v7170 = vunpack.c.l.s4 1966171168
    %v7171 = vunpack.c.0.s8 %v7170
    %v7172 = vlaneseq
    %v7173 = vshrl.u32 %v7172, 7
    %v7174 = vsub.s32 %v7171, %v7173
    %v7175 = vrot.slane %v7168, %v7174
    %7176 = vrot.lane.b32.xlu0 %v7175, 64
    %v7177 = vpop.permute.xlu0 %7176
    %vm7179 = vcmask 647680
    %7180 = vst.msk [vmem:[#allocation9] sm:$0x1] %vm7179, %v7177
    %s7181 = scalar_lea.vmem [#allocation8], 5
    %v7182 = vld [vmem:[%s7181] ss:$16 sm:$0x3]
    %v7183 = vpack.c.bf16 %v7182, %v7182
    %v7186 = vunpack.c.l.s4 1966171168
    %v7187 = vunpack.c.0.s8 %v7186
    %v7188 = vlaneseq
    %v7189 = vshrl.u32 %v7188, 7
    %v7190 = vsub.s32 %v7187, %v7189
    %v7191 = vrot.slane %v7183, %v7190
    %v7193 = vunpack.c.l.s4 1966171168
    %v7194 = vunpack.c.0.s8 %v7193
    %v7195 = vlaneseq
    %v7196 = vshrl.u32 %v7195, 7
    %v7197 = vsub.s32 %v7194, %v7196
    %v7198 = vrot.slane %v7191, %v7197
    %7199 = vrot.lane.b32.xlu0 %v7198, 80
    %v7200 = vpop.permute.xlu0 %7199
    %vm7202 = vcmask 778880
    %7203 = vst.msk [vmem:[#allocation9] sm:$0x1] %vm7202, %v7200
    %s7204 = scalar_lea.vmem [#allocation8], 6
    %v7205 = vld [vmem:[%s7204] ss:$16 sm:$0x3]
    %v7206 = vpack.c.bf16 %v7205, %v7205
    %v7209 = vunpack.c.l.s4 1966171168
    %v7210 = vunpack.c.0.s8 %v7209
    %v7211 = vlaneseq
    %v7212 = vshrl.u32 %v7211, 7
    %v7213 = vsub.s32 %v7210, %v7212
    %v7214 = vrot.slane %v7206, %v7213
    %v7216 = vunpack.c.l.s4 1966171168
    %v7217 = vunpack.c.0.s8 %v7216
    %v7218 = vlaneseq
    %v7219 = vshrl.u32 %v7218, 7
    %v7220 = vsub.s32 %v7217, %v7219
    %v7221 = vrot.slane %v7214, %v7220
    %7222 = vrot.lane.b32.xlu0 %v7221, 96
    %v7223 = vpop.permute.xlu0 %7222
    %vm7225 = vcmask 910080
    %7226 = vst.msk [vmem:[#allocation9] sm:$0x1] %vm7225, %v7223
    %s7227 = scalar_lea.vmem [#allocation8], 7
    %v7228 = vld [vmem:[%s7227] ss:$16 sm:$0x3]
    %v7229 = vpack.c.bf16 %v7228, %v7228
    %v7232 = vunpack.c.l.s4 1966171168
    %v7233 = vunpack.c.0.s8 %v7232
    %v7234 = vlaneseq
    %v7235 = vshrl.u32 %v7234, 7
    %v7236 = vsub.s32 %v7233, %v7235
    %v7237 = vrot.slane %v7229, %v7236
    %v7239 = vunpack.c.l.s4 1966171168
    %v7240 = vunpack.c.0.s8 %v7239
    %v7241 = vlaneseq
    %v7242 = vshrl.u32 %v7241, 7
    %v7243 = vsub.s32 %v7240, %v7242
    %v7244 = vrot.slane %v7237, %v7243
    %7245 = vrot.lane.b32.xlu0 %v7244, 112
    %v7246 = vpop.permute.xlu0 %7245
    %vm7248 = vcmask 1041280
    %7249 = vst.msk [vmem:[#allocation9] sm:$0x1] %vm7248, %v7246
    %s7250 = scalar_lea.vmem [#allocation8], 8
    %v7251 = vld [vmem:[%s7250] ss:$16 sm:$0x3]
    %v7252 = vpack.c.bf16 %v7251, %v7251
    %7253 = vst.msk [vmem:[#allocation9 + $0x1] sm:$0x1] %vm7087, %v7252
    %s7254 = scalar_lea.vmem [#allocation8], 9
    %v7255 = vld [vmem:[%s7254] ss:$16 sm:$0x3]
    %v7256 = vpack.c.bf16 %v7255, %v7255
    %v7259 = vunpack.c.l.s4 1966171168
    %v7260 = vunpack.c.0.s8 %v7259
    %v7261 = vlaneseq
    %v7262 = vshrl.u32 %v7261, 7
    %v7263 = vsub.s32 %v7260, %v7262
    %v7264 = vrot.slane %v7256, %v7263
    %v7266 = vunpack.c.l.s4 1966171168
    %v7267 = vunpack.c.0.s8 %v7266
    %v7268 = vlaneseq
    %v7269 = vshrl.u32 %v7268, 7
    %v7270 = vsub.s32 %v7267, %v7269
    %v7271 = vrot.slane %v7264, %v7270
    %7272 = vrot.lane.b32.xlu0 %v7271, 16
    %v7273 = vpop.permute.xlu0 %7272
    %7275 = vst.msk [vmem:[#allocation9 + $0x1] sm:$0x1] %vm7110, %v7273
    %s7276 = scalar_lea.vmem [#allocation8], 10
    %v7277 = vld [vmem:[%s7276] ss:$16 sm:$0x3]
    %v7278 = vpack.c.bf16 %v7277, %v7277
    %v7281 = vunpack.c.l.s4 1966171168
    %v7282 = vunpack.c.0.s8 %v7281
    %v7283 = vlaneseq
    %v7284 = vshrl.u32 %v7283, 7
    %v7285 = vsub.s32 %v7282, %v7284
    %v7286 = vrot.slane %v7278, %v7285
    %v7288 = vunpack.c.l.s4 1966171168
    %v7289 = vunpack.c.0.s8 %v7288
    %v7290 = vlaneseq
    %v7291 = vshrl.u32 %v7290, 7
    %v7292 = vsub.s32 %v7289, %v7291
    %v7293 = vrot.slane %v7286, %v7292
    %7294 = vrot.lane.b32.xlu0 %v7293, 32
    %v7295 = vpop.permute.xlu0 %7294
    %7297 = vst.msk [vmem:[#allocation9 + $0x1] sm:$0x1] %vm7133, %v7295
    %s7298 = scalar_lea.vmem [#allocation8], 11
    %v7299 = vld [vmem:[%s7298] ss:$16 sm:$0x3]
    %v7300 = vpack.c.bf16 %v7299, %v7299
    %v7303 = vunpack.c.l.s4 1966171168
    %v7304 = vunpack.c.0.s8 %v7303
    %v7305 = vlaneseq
    %v7306 = vshrl.u32 %v7305, 7
    %v7307 = vsub.s32 %v7304, %v7306
    %v7308 = vrot.slane %v7300, %v7307
    %v7310 = vunpack.c.l.s4 1966171168
    %v7311 = vunpack.c.0.s8 %v7310
    %v7312 = vlaneseq
    %v7313 = vshrl.u32 %v7312, 7
    %v7314 = vsub.s32 %v7311, %v7313
    %v7315 = vrot.slane %v7308, %v7314
    %7316 = vrot.lane.b32.xlu0 %v7315, 48
    %v7317 = vpop.permute.xlu0 %7316
    %7319 = vst.msk [vmem:[#allocation9 + $0x1] sm:$0x1] %vm7156, %v7317
    %s7320 = scalar_lea.vmem [#allocation8], 12
    %v7321 = vld [vmem:[%s7320] ss:$16 sm:$0x3]
    %v7322 = vpack.c.bf16 %v7321, %v7321
    %v7325 = vunpack.c.l.s4 1966171168
    %v7326 = vunpack.c.0.s8 %v7325
    %v7327 = vlaneseq
    %v7328 = vshrl.u32 %v7327, 7
    %v7329 = vsub.s32 %v7326, %v7328
    %v7330 = vrot.slane %v7322, %v7329
    %v7332 = vunpack.c.l.s4 1966171168
    %v7333 = vunpack.c.0.s8 %v7332
    %v7334 = vlaneseq
    %v7335 = vshrl.u32 %v7334, 7
    %v7336 = vsub.s32 %v7333, %v7335
    %v7337 = vrot.slane %v7330, %v7336
    %7338 = vrot.lane.b32.xlu0 %v7337, 64
    %v7339 = vpop.permute.xlu0 %7338
    %7341 = vst.msk [vmem:[#allocation9 + $0x1] sm:$0x1] %vm7179, %v7339
    %s7342 = scalar_lea.vmem [#allocation8], 13
    %v7343 = vld [vmem:[%s7342] ss:$16 sm:$0x3]
    %v7344 = vpack.c.bf16 %v7343, %v7343
    %v7347 = vunpack.c.l.s4 1966171168
    %v7348 = vunpack.c.0.s8 %v7347
    %v7349 = vlaneseq
    %v7350 = vshrl.u32 %v7349, 7
    %v7351 = vsub.s32 %v7348, %v7350
    %v7352 = vrot.slane %v7344, %v7351
    %v7354 = vunpack.c.l.s4 1966171168
    %v7355 = vunpack.c.0.s8 %v7354
    %v7356 = vlaneseq
    %v7357 = vshrl.u32 %v7356, 7
    %v7358 = vsub.s32 %v7355, %v7357
    %v7359 = vrot.slane %v7352, %v7358
    %7360 = vrot.lane.b32.xlu0 %v7359, 80
    %v7361 = vpop.permute.xlu0 %7360
    %7363 = vst.msk [vmem:[#allocation9 + $0x1] sm:$0x1] %vm7202, %v7361
    %s7364 = scalar_lea.vmem [#allocation8], 14
    %v7365 = vld [vmem:[%s7364] ss:$16 sm:$0x3]
    %v7366 = vpack.c.bf16 %v7365, %v7365
    %v7369 = vunpack.c.l.s4 1966171168
    %v7370 = vunpack.c.0.s8 %v7369
    %v7371 = vlaneseq
    %v7372 = vshrl.u32 %v7371, 7
    %v7373 = vsub.s32 %v7370, %v7372
    %v7374 = vrot.slane %v7366, %v7373
    %v7376 = vunpack.c.l.s4 1966171168
    %v7377 = vunpack.c.0.s8 %v7376
    %v7378 = vlaneseq
    %v7379 = vshrl.u32 %v7378, 7
    %v7380 = vsub.s32 %v7377, %v7379
    %v7381 = vrot.slane %v7374, %v7380
    %7382 = vrot.lane.b32.xlu0 %v7381, 96
    %v7383 = vpop.permute.xlu0 %7382
    %7385 = vst.msk [vmem:[#allocation9 + $0x1] sm:$0x1] %vm7225, %v7383
    %s7386 = scalar_lea.vmem [#allocation8], 15
    %v7387 = vld [vmem:[%s7386] ss:$16 sm:$0x3]
    %v7388 = vpack.c.bf16 %v7387, %v7387
    %v7391 = vunpack.c.l.s4 1966171168
    %v7392 = vunpack.c.0.s8 %v7391
    %v7393 = vlaneseq
    %v7394 = vshrl.u32 %v7393, 7
    %v7395 = vsub.s32 %v7392, %v7394
    %v7396 = vrot.slane %v7388, %v7395
    %v7398 = vunpack.c.l.s4 1966171168
    %v7399 = vunpack.c.0.s8 %v7398
    %v7400 = vlaneseq
    %v7401 = vshrl.u32 %v7400, 7
    %v7402 = vsub.s32 %v7399, %v7401
    %v7403 = vrot.slane %v7396, %v7402
    %7404 = vrot.lane.b32.xlu0 %v7403, 112
    %v7405 = vpop.permute.xlu0 %7404
    %7407 = vst.msk [vmem:[#allocation9 + $0x1] sm:$0x1] %vm7248, %v7405
    %v7408 = vld [vmem:[#allocation9] sm:$0x3]
    %v7409 = vld [vmem:[%s5] sm:$0xf]
    %v7410 = vld [vmem:[%s5 + $0x4] sm:$0xf]
    %v7411 = vld [vmem:[%s5 + $0x8] sm:$0xf]
    %v7412 = vld [vmem:[%s5 + $0xc] sm:$0xf]
    %v7413 = vld [vmem:[%s5 + $0x10] sm:$0xf]
    %v7414 = vld [vmem:[%s5 + $0x14] sm:$0xf]
    %v7415 = vld [vmem:[%s5 + $0x18] sm:$0xf]
    %v7416 = vld [vmem:[%s5 + $0x1c] sm:$0xf]
    %v7417 = vld [vmem:[%s5 + $0x20] sm:$0xf]
    %v7418 = vld [vmem:[%s5 + $0x24] sm:$0xf]
    %v7419 = vld [vmem:[%s5 + $0x28] sm:$0xf]
    %v7420 = vld [vmem:[%s5 + $0x2c] sm:$0xf]
    %v7421 = vld [vmem:[%s5 + $0x30] sm:$0xf]
    %v7422 = vld [vmem:[%s5 + $0x34] sm:$0xf]
    %v7423 = vld [vmem:[%s5 + $0x38] sm:$0xf]
    %v7424 = vld [vmem:[%s5 + $0x3c] sm:$0xf]
    %v7425 = vld [vmem:[%s5 + $0x40] sm:$0xf]
    %v7426 = vld [vmem:[%s5 + $0x44] sm:$0xf]
    %v7427 = vld [vmem:[%s5 + $0x48] sm:$0xf]
    %v7428 = vld [vmem:[%s5 + $0x4c] sm:$0xf]
    %v7429 = vld [vmem:[%s5 + $0x50] sm:$0xf]
    %v7430 = vld [vmem:[%s5 + $0x54] sm:$0xf]
    %v7431 = vld [vmem:[%s5 + $0x58] sm:$0xf]
    %v7432 = vld [vmem:[%s5 + $0x5c] sm:$0xf]
    %v7433 = vld [vmem:[%s5 + $0x60] sm:$0xf]
    %v7434 = vld [vmem:[%s5 + $0x64] sm:$0xf]
    %v7435 = vld [vmem:[%s5 + $0x68] sm:$0xf]
    %v7436 = vld [vmem:[%s5 + $0x6c] sm:$0xf]
    %v7437 = vld [vmem:[%s5 + $0x70] sm:$0xf]
    %v7438 = vld [vmem:[%s5 + $0x74] sm:$0xf]
    %v7439 = vld [vmem:[%s5 + $0x78] sm:$0xf]
    %v7440 = vld [vmem:[%s5 + $0x7c] sm:$0xf]
    %v7441 = vld [vmem:[%s6] sm:$0x1]
    %v7443 = vlaneseq
    %v7444 = vshrl.u32 %v7443, 7
    %v7445 = vsub.s32 0, %v7444
    %v7446 = vrot.slane %v7441, %v7445
    %v7450 = vunpack.c.l.s4 1966171168
    %v7451 = vunpack.c.0.s8 %v7450
    %v7452 = vlaneseq
    %v7453 = vshrl.u32 %v7452, 7
    %v7454 = vsub.s32 %v7451, %v7453
    %v7455 = vrot.slane %v7408, %v7454
    %v7456 = vcombine.high %v7455, %v7455
    %v7458 = vunpack.c.l.s4 1966171168
    %v7459 = vunpack.c.0.s8 %v7458
    %v7460 = vlaneseq
    %v7461 = vshrl.u32 %v7460, 7
    %v7462 = vsub.s32 %v7459, %v7461
    %v7463 = vrot.slane %v7455, %v7462
    %v7465 = vunpack.c.l.s4 1966171168
    %v7466 = vunpack.c.0.s8 %v7465
    %v7467 = vlaneseq
    %v7468 = vshrl.u32 %v7467, 7
    %v7469 = vsub.s32 %v7466, %v7468
    %v7470 = vrot.slane %v7456, %v7469
    %v7505 = vunpack.c.l.b16 %v7409
    %v7506 = vunpack.c.l.b16 %v7410
    %v7507 = vunpack.c.l.b16 %v7411
    %v7508 = vunpack.c.l.b16 %v7412
    %v7509 = vunpack.c.l.b16 %v7413
    %v7510 = vunpack.c.l.b16 %v7414
    %v7511 = vunpack.c.l.b16 %v7415
    %v7512 = vunpack.c.l.b16 %v7416
    %v7513 = vunpack.c.l.b16 %v7417
    %v7514 = vunpack.c.l.b16 %v7418
    %v7515 = vunpack.c.l.b16 %v7419
    %v7516 = vunpack.c.l.b16 %v7420
    %v7517 = vunpack.c.l.b16 %v7421
    %v7518 = vunpack.c.l.b16 %v7422
    %v7519 = vunpack.c.l.b16 %v7423
    %v7520 = vunpack.c.l.b16 %v7424
    %v7521 = vunpack.c.l.b16 %v7425
    %v7522 = vunpack.c.l.b16 %v7426
    %v7523 = vunpack.c.l.b16 %v7427
    %v7524 = vunpack.c.l.b16 %v7428
    %v7525 = vunpack.c.l.b16 %v7429
    %v7526 = vunpack.c.l.b16 %v7430
    %v7527 = vunpack.c.l.b16 %v7431
    %v7528 = vunpack.c.l.b16 %v7432
    %v7529 = vunpack.c.l.b16 %v7433
    %v7530 = vunpack.c.l.b16 %v7434
    %v7531 = vunpack.c.l.b16 %v7435
    %v7532 = vunpack.c.l.b16 %v7436
    %v7533 = vunpack.c.l.b16 %v7437
    %v7534 = vunpack.c.l.b16 %v7438
    %v7535 = vunpack.c.l.b16 %v7439
    %v7536 = vunpack.c.l.b16 %v7440
    %v7537 = vpack.c.b16 %v7506, %v7505
    %v7538 = vpack.c.b16 %v7508, %v7507
    %v7539 = vpack.c.b16 %v7510, %v7509
    %v7540 = vpack.c.b16 %v7512, %v7511
    %v7541 = vpack.c.b16 %v7514, %v7513
    %v7542 = vpack.c.b16 %v7516, %v7515
    %v7543 = vpack.c.b16 %v7518, %v7517
    %v7544 = vpack.c.b16 %v7520, %v7519
    %v7545 = vpack.c.b16 %v7522, %v7521
    %v7546 = vpack.c.b16 %v7524, %v7523
    %v7547 = vpack.c.b16 %v7526, %v7525
    %v7548 = vpack.c.b16 %v7528, %v7527
    %v7549 = vpack.c.b16 %v7530, %v7529
    %v7550 = vpack.c.b16 %v7532, %v7531
    %v7551 = vpack.c.b16 %v7534, %v7533
    %v7552 = vpack.c.b16 %v7536, %v7535
    %7569 = vmatprep.subr.bf16.mxu0 0
    %7570 = vmatpush1.bf16.msra.mxu0 %v7544
    %7571 = vmatprep.subr.bf16.mxu0 0
    %7572 = vmatpush1.bf16.msra.mxu0 %v7543
    %7573 = vmatprep.subr.bf16.mxu0 0
    %7574 = vmatpush1.bf16.msra.mxu0 %v7542
    %7575 = vmatprep.subr.bf16.mxu0 0
    %7576 = vmatpush1.bf16.msra.mxu0 %v7541
    %7577 = vmatprep.subr.bf16.mxu0 0
    %7578 = vmatpush1.bf16.msra.mxu0 %v7540
    %7579 = vmatprep.subr.bf16.mxu0 0
    %7580 = vmatpush1.bf16.msra.mxu0 %v7539
    %7581 = vmatprep.subr.bf16.mxu0 0
    %7582 = vmatpush1.bf16.msra.mxu0 %v7538
    %7583 = vmatprep.subr.bf16.mxu0 0
    %7584 = vmatpush1.bf16.msra.mxu0 %v7537
    %7585 = vmatprep.subr.bf16.mxu0 0
    %7586 = vmatpush2.bf16.msra.mxu0 %v7552
    %7587 = vmatprep.subr.bf16.mxu0 0
    %7588 = vmatpush2.bf16.msra.mxu0 %v7551
    %7589 = vmatprep.subr.bf16.mxu0 0
    %7590 = vmatpush2.bf16.msra.mxu0 %v7550
    %7591 = vmatprep.subr.bf16.mxu0 0
    %7592 = vmatpush2.bf16.msra.mxu0 %v7549
    %7593 = vmatprep.subr.bf16.mxu0 0
    %7594 = vmatpush2.bf16.msra.mxu0 %v7548
    %7595 = vmatprep.subr.bf16.mxu0 0
    %7596 = vmatpush2.bf16.msra.mxu0 %v7547
    %7597 = vmatprep.subr.bf16.mxu0 0
    %7598 = vmatpush2.bf16.msra.mxu0 %v7546
    %7599 = vmatprep.subr.bf16.mxu0 0
    %7600 = vmatpush2.bf16.msra.mxu0 %v7545
    %7601 = vmatprep.mubr.bf16.mxu0 %v7470
    %7602 = vmatmul.mubr.bf16.gmra.mxu0 %v7463
    %v7603 = vpop.f32.mrf.mxu0
    %v7604 = vadd.f32 %v7446, %v7603
    %v7605 = vpop.f32.mrf.mxu0
    %v7606 = vpop.f32.mrf.mxu0
    %v7607 = vpop.f32.mrf.mxu0
    %7608 = vdwg.mxu0
    %v7609 = vmax.f32 %v7604, 0.0
    %v7610 = vpack.c.bf16 %v7609, %v7609
    %v7611 = vld [vmem:[%s7] sm:$0xf]
    %v7612 = vld [vmem:[%s7 + $0x4] sm:$0xf]
    %v7613 = vld [vmem:[%s7 + $0x8] sm:$0xf]
    %v7614 = vld [vmem:[%s7 + $0xc] sm:$0xf]
    %v7615 = vld [vmem:[%s7 + $0x10] sm:$0xf]
    %v7616 = vld [vmem:[%s7 + $0x14] sm:$0xf]
    %v7617 = vld [vmem:[%s7 + $0x18] sm:$0xf]
    %v7618 = vld [vmem:[%s7 + $0x1c] sm:$0xf]
    %v7619 = vld [vmem:[%s7 + $0x20] sm:$0xf]
    %v7620 = vld [vmem:[%s7 + $0x24] sm:$0xf]
    %v7621 = vld [vmem:[%s7 + $0x28] sm:$0xf]
    %v7622 = vld [vmem:[%s7 + $0x2c] sm:$0xf]
    %v7623 = vld [vmem:[%s7 + $0x30] sm:$0xf]
    %v7624 = vld [vmem:[%s7 + $0x34] sm:$0xf]
    %v7625 = vld [vmem:[%s7 + $0x38] sm:$0xf]
    %v7626 = vld [vmem:[%s7 + $0x3c] sm:$0xf]
    %v7627 = vld [vmem:[%s8] sm:$0x1]
    %v7629 = vlaneseq
    %v7630 = vshrl.u32 %v7629, 7
    %v7631 = vsub.s32 0, %v7630
    %v7632 = vrot.slane %v7627, %v7631
    %v7650 = vunpack.c.l.b16 %v7611
    %v7651 = vunpack.c.l.b16 %v7612
    %v7652 = vunpack.c.l.b16 %v7613
    %v7653 = vunpack.c.l.b16 %v7614
    %v7654 = vunpack.c.l.b16 %v7615
    %v7655 = vunpack.c.l.b16 %v7616
    %v7656 = vunpack.c.l.b16 %v7617
    %v7657 = vunpack.c.l.b16 %v7618
    %v7658 = vunpack.c.l.b16 %v7619
    %v7659 = vunpack.c.l.b16 %v7620
    %v7660 = vunpack.c.l.b16 %v7621
    %v7661 = vunpack.c.l.b16 %v7622
    %v7662 = vunpack.c.l.b16 %v7623
    %v7663 = vunpack.c.l.b16 %v7624
    %v7664 = vunpack.c.l.b16 %v7625
    %v7665 = vunpack.c.l.b16 %v7626
    %v7666 = vpack.c.b16 %v7651, %v7650
    %v7667 = vpack.c.b16 %v7653, %v7652
    %v7668 = vpack.c.b16 %v7655, %v7654
    %v7669 = vpack.c.b16 %v7657, %v7656
    %v7670 = vpack.c.b16 %v7659, %v7658
    %v7671 = vpack.c.b16 %v7661, %v7660
    %v7672 = vpack.c.b16 %v7663, %v7662
    %v7673 = vpack.c.b16 %v7665, %v7664
    %7682 = vmatprep.subr.bf16.mxu0 0
    %7683 = vmatpush1.bf16.msra.mxu0 %v7673
    %7684 = vmatprep.subr.bf16.mxu0 0
    %7685 = vmatpush1.bf16.msra.mxu0 %v7672
    %7686 = vmatprep.subr.bf16.mxu0 0
    %7687 = vmatpush1.bf16.msra.mxu0 %v7671
    %7688 = vmatprep.subr.bf16.mxu0 0
    %7689 = vmatpush1.bf16.msra.mxu0 %v7670
    %7690 = vmatprep.subr.bf16.mxu0 0
    %7691 = vmatpush1.bf16.msra.mxu0 %v7669
    %7692 = vmatprep.subr.bf16.mxu0 0
    %7693 = vmatpush1.bf16.msra.mxu0 %v7668
    %7694 = vmatprep.subr.bf16.mxu0 0
    %7695 = vmatpush1.bf16.msra.mxu0 %v7667
    %7696 = vmatprep.subr.bf16.mxu0 0
    %7697 = vmatpush1.bf16.msra.mxu0 %v7666
    %7698 = vmatprep.subr.bf16.mxu0 0
    %7699 = vmatpush2.bf16.msra.mxu0 0
    %7700 = vmatprep.subr.bf16.mxu0 0
    %7701 = vmatpush2.bf16.msra.mxu0 0
    %7702 = vmatprep.subr.bf16.mxu0 0
    %7703 = vmatpush2.bf16.msra.mxu0 0
    %7704 = vmatprep.subr.bf16.mxu0 0
    %7705 = vmatpush2.bf16.msra.mxu0 0
    %7706 = vmatprep.subr.bf16.mxu0 0
    %7707 = vmatpush2.bf16.msra.mxu0 0
    %7708 = vmatprep.subr.bf16.mxu0 0
    %7709 = vmatpush2.bf16.msra.mxu0 0
    %7710 = vmatprep.subr.bf16.mxu0 0
    %7711 = vmatpush2.bf16.msra.mxu0 0
    %7712 = vmatprep.subr.bf16.mxu0 0
    %7713 = vmatpush2.bf16.msra.mxu0 0
    %7714 = vmatprep.mubr.bf16.mxu0 0
    %7715 = vmatmul.mubr.bf16.gmra.mxu0 %v7610
    %v7716 = vpop.f32.mrf.mxu0
    %v7717 = vadd.f32 %v7632, %v7716
    %v7718 = vpop.f32.mrf.mxu0
    %v7719 = vpop.f32.mrf.mxu0
    %v7720 = vpop.f32.mrf.mxu0
    %7721 = vdwg.mxu0
    %v7722 = vmax.f32 %v7717, 0.0
    %v7723 = vpack.c.bf16 %v7722, %v7722
    %v7724 = vld [vmem:[%s9] sm:$0xf]
    %v7725 = vld [vmem:[%s9 + $0x4] sm:$0xf]
    %v7726 = vld [vmem:[%s9 + $0x8] sm:$0xf]
    %v7727 = vld [vmem:[%s9 + $0xc] sm:$0xf]
    %v7728 = vld [vmem:[%s9 + $0x10] sm:$0xf]
    %v7729 = vld [vmem:[%s9 + $0x14] sm:$0xf]
    %v7730 = vld [vmem:[%s9 + $0x18] sm:$0xf]
    %v7731 = vld [vmem:[%s9 + $0x1c] sm:$0xf]
    %v7732 = vld [vmem:[%s9 + $0x20] sm:$0xf]
    %v7733 = vld [vmem:[%s9 + $0x24] sm:$0xf]
    %v7734 = vld [vmem:[%s9 + $0x28] sm:$0xf]
    %v7735 = vld [vmem:[%s9 + $0x2c] sm:$0xf]
    %v7736 = vld [vmem:[%s9 + $0x30] sm:$0xf]
    %v7737 = vld [vmem:[%s9 + $0x34] sm:$0xf]
    %v7738 = vld [vmem:[%s9 + $0x38] sm:$0xf]
    %v7739 = vld [vmem:[%s9 + $0x3c] sm:$0xf]
    %v7740 = vld [vmem:[%s10] sm:$0x1]
    %v7742 = vlaneseq
    %v7743 = vshrl.u32 %v7742, 7
    %v7744 = vsub.s32 0, %v7743
    %v7745 = vrot.slane %v7740, %v7744
    %v7763 = vunpack.c.l.b16 %v7724
    %v7764 = vunpack.c.l.b16 %v7725
    %v7765 = vunpack.c.l.b16 %v7726
    %v7766 = vunpack.c.l.b16 %v7727
    %v7767 = vunpack.c.l.b16 %v7728
    %v7768 = vunpack.c.l.b16 %v7729
    %v7769 = vunpack.c.l.b16 %v7730
    %v7770 = vunpack.c.l.b16 %v7731
    %v7771 = vunpack.c.l.b16 %v7732
    %v7772 = vunpack.c.l.b16 %v7733
    %v7773 = vunpack.c.l.b16 %v7734
    %v7774 = vunpack.c.l.b16 %v7735
    %v7775 = vunpack.c.l.b16 %v7736
    %v7776 = vunpack.c.l.b16 %v7737
    %v7777 = vunpack.c.l.b16 %v7738
    %v7778 = vunpack.c.l.b16 %v7739
    %v7779 = vpack.c.b16 %v7764, %v7763
    %v7780 = vpack.c.b16 %v7766, %v7765
    %v7781 = vpack.c.b16 %v7768, %v7767
    %v7782 = vpack.c.b16 %v7770, %v7769
    %v7783 = vpack.c.b16 %v7772, %v7771
    %v7784 = vpack.c.b16 %v7774, %v7773
    %v7785 = vpack.c.b16 %v7776, %v7775
    %v7786 = vpack.c.b16 %v7778, %v7777
    %7795 = vmatprep.subr.bf16.mxu0 0
    %7796 = vmatpush1.bf16.msra.mxu0 %v7786
    %7797 = vmatprep.subr.bf16.mxu0 0
    %7798 = vmatpush1.bf16.msra.mxu0 %v7785
    %7799 = vmatprep.subr.bf16.mxu0 0
    %7800 = vmatpush1.bf16.msra.mxu0 %v7784
    %7801 = vmatprep.subr.bf16.mxu0 0
    %7802 = vmatpush1.bf16.msra.mxu0 %v7783
    %7803 = vmatprep.subr.bf16.mxu0 0
    %7804 = vmatpush1.bf16.msra.mxu0 %v7782
    %7805 = vmatprep.subr.bf16.mxu0 0
    %7806 = vmatpush1.bf16.msra.mxu0 %v7781
    %7807 = vmatprep.subr.bf16.mxu0 0
    %7808 = vmatpush1.bf16.msra.mxu0 %v7780
    %7809 = vmatprep.subr.bf16.mxu0 0
    %7810 = vmatpush1.bf16.msra.mxu0 %v7779
    %7811 = vmatprep.subr.bf16.mxu0 0
    %7812 = vmatpush2.bf16.msra.mxu0 0
    %7813 = vmatprep.subr.bf16.mxu0 0
    %7814 = vmatpush2.bf16.msra.mxu0 0
    %7815 = vmatprep.subr.bf16.mxu0 0
    %7816 = vmatpush2.bf16.msra.mxu0 0
    %7817 = vmatprep.subr.bf16.mxu0 0
    %7818 = vmatpush2.bf16.msra.mxu0 0
    %7819 = vmatprep.subr.bf16.mxu0 0
    %7820 = vmatpush2.bf16.msra.mxu0 0
    %7821 = vmatprep.subr.bf16.mxu0 0
    %7822 = vmatpush2.bf16.msra.mxu0 0
    %7823 = vmatprep.subr.bf16.mxu0 0
    %7824 = vmatpush2.bf16.msra.mxu0 0
    %7825 = vmatprep.subr.bf16.mxu0 0
    %7826 = vmatpush2.bf16.msra.mxu0 0
    %7827 = vmatprep.mubr.bf16.mxu0 0
    %7828 = vmatmul.mubr.bf16.gmra.mxu0 %v7723
    %v7829 = vpop.f32.mrf.mxu0
    %v7830 = vadd.f32 %v7745, %v7829
    %v7831 = vpop.f32.mrf.mxu0
    %v7832 = vpop.f32.mrf.mxu0
    %v7833 = vpop.f32.mrf.mxu0
    %7834 = vdwg.mxu0
    %7835 = vst [vmem:[#allocation10] sm:$0x3] %v7830
    // Predicated region
    $region46: #{vgg_forward.1} parent=1 // pred_check
      _
    $region47: #{vgg_forward.1} parent=1 // pred_check_branch
      %7837 = sbr.rel (0) target = $region49
    $region48: #{vgg_forward.1} parent=1 // pred_region
      %s7839 = ssub.s32 32, 32
      %7840 = vsyncadd [#allocation11], %s7839
      %s7842 = sshll.u32 [#allocation10], 4
      %s7843 = int_to_ptr.vmem [resolvable:$true] %s7842
      %7845 = dma.vmem_to_hbm [thread:$0]  %s7843, 32, %s11, [#allocation11]
    $region49: #{vgg_forward.1} parent=1 // pred_fallthru
      _
    // Predicated region
    $region50: #{vgg_forward.1} parent=1 // pred_check
      _
    $region51: #{vgg_forward.1} parent=1 // pred_check_branch
      %7847 = sbr.rel (0) target = $region53
    $region52: #{vgg_forward.1} parent=1 // pred_region
      %7848 = dma.done [#allocation11], 32
    $region53: #{vgg_forward.1} parent=1 // pred_fallthru
      _
    %7849 = vsyncpa [#allocation11], 1

</llo_original>
